<compile_context>
chip_gen: v7x
topology: tpu7x:2x2x1
jax: 0.10.0
libtpu: 0.0.40
codegen_flags: <defaults>
</compile_context>

<pallas_src>
import jax
import jax.numpy as jnp
from jax.experimental import pallas as pl
from jax.experimental.pallas import tpu as pltpu


def basic_block_forward(x, w1_oihw, s1, b1, w2_oihw, s2, b2):
    """BasicBlock forward. x: (B, C, H, W) f32 NCHW. w*: (C, C, 3, 3) OIHW.
    s*/b*: (C,) folded BN scale/bias. Returns (B, C, H, W) f32."""
    B, C, H, W = x.shape
    Cmid = w1_oihw.shape[0]
    Cout = w2_oihw.shape[0]
    assert w1_oihw.shape[1] == C and w2_oihw.shape[1] == Cmid
    assert Cout == C, "residual path requires inplanes == planes (downsample=None)"

    Hp, Wp = H + 2, W + 2
    Ncan = H * Wp                    # canvas rows: H rows x Wp cols (last 2 cols junk)
    ALIGN = 16                       # bf16 sublane packing alignment
    lead = (-(Wp + 1)) % ALIGN       # makes the interior staging store 16-aligned
    front = lead + Wp + 1            # flat offset of canvas row 0 inside the padded slab
    Ntot = ((lead + Hp * Wp + 2) + ALIGN - 1) // ALIGN * ALIGN
    back = Ntot - front - Ncan       # bottom halo strip rows (>= Wp + 1)

    # ---- layout plumbing + BN folding, done once in plain JAX outside the kernel ----
    x_nhwc = jnp.transpose(x, (0, 2, 3, 1))                          # (B,H,W,C)
    xpad = jnp.pad(x_nhwc, ((0, 0), (1, 1), (1, 1), (0, 0)))         # (B,Hp,Wp,C)
    xflat = xpad.reshape(B, Hp * Wp, C)
    xflat = jnp.pad(xflat, ((0, 0), (lead, Ntot - lead - Hp * Wp), (0, 0)))
    xflat = xflat.astype(jnp.bfloat16)                               # (B,Ntot,C)

    # Fold BN scale into conv weights (output-channel axis of OIHW); keep bias only.
    w1f = jnp.transpose(w1_oihw * s1[:, None, None, None], (2, 3, 1, 0))  # HWIO
    w2f = jnp.transpose(w2_oihw * s2[:, None, None, None], (2, 3, 1, 0))
    w1f = w1f.reshape(9, C, Cmid).astype(jnp.bfloat16)
    w2f = w2f.reshape(9, Cmid, Cout).astype(jnp.bfloat16)
    b1r = b1.reshape(1, Cmid).astype(jnp.float32)
    b2r = b2.reshape(1, Cout).astype(jnp.float32)

    # Row mask that zeroes the 2 junk columns of each canvas row; those positions land
    # exactly on the left/right halo columns of the conv2 input, so masking *is* the halo.
    col = jnp.arange(Ncan, dtype=jnp.int32) % Wp
    mask = (col < W).astype(jnp.float32).reshape(Ncan, 1)

    taps = [(dy, dx) for dy in range(3) for dx in range(3)]          # t = dy*3 + dx

    def kernel(xf_ref, w1_ref, b1_ref, w2_ref, b2_ref, m_ref, o_ref, z1p_ref):
        # xf_ref : (1, Ntot, Cin)  bf16 flat zero-padded input canvas
        # w*_ref : (9, Cin, C*)    bf16 scale-folded HWIO weights, one slab per tap
        # b*_ref : (1, C*)         f32 folded BN bias
        # m_ref  : (Ncan, 1)       f32 junk-column mask
        # o_ref  : (1, Ncan, Cout) bf16 output canvas
        # z1p_ref: (Ntot, Cmid)    bf16 staged conv1 activation (padded canvas)

        # ---- conv1 (+ folded BN1 scale): 9 sublane-offset slices -> MXU matmuls ----
        acc1 = jnp.zeros((Ncan, Cmid), jnp.float32)
        for t, (dy, dx) in enumerate(taps):
            lhs = xf_ref[0, pl.ds(lead + dy * Wp + dx, Ncan), :]
            acc1 = acc1 + jnp.dot(lhs, w1_ref[t], preferred_element_type=jnp.float32)

        # BN1 bias + ReLU, junk-column mask doubles as the conv2 halo columns.
        z1 = jnp.maximum(acc1 + b1_ref[...], 0.0) * m_ref[...]

        # Halo-strip zeroing only (top `front` rows / bottom `back` rows); the interior
        # is fully rewritten each step, so there is no cross-step scratch state.
        z1p_ref[pl.ds(0, front), :] = jnp.zeros((front, Cmid), z1p_ref.dtype)
        z1p_ref[pl.ds(front + Ncan, back), :] = jnp.zeros((back, Cmid), z1p_ref.dtype)
        z1p_ref[pl.ds(front, Ncan), :] = z1.astype(z1p_ref.dtype)     # 16-aligned store

        # ---- conv2 (+ folded BN2 scale) on the VMEM-resident staged canvas ----
        acc2 = jnp.zeros((Ncan, Cout), jnp.float32)
        for t, (dy, dx) in enumerate(taps):
            lhs = z1p_ref[pl.ds(lead + dy * Wp + dx, Ncan), :]
            acc2 = acc2 + jnp.dot(lhs, w2_ref[t], preferred_element_type=jnp.float32)

        # BN2 bias + residual + ReLU.  Residual = interior slice of the same input slab.
        res = xf_ref[0, pl.ds(lead + Wp + 1, Ncan), :].astype(jnp.float32)
        o_ref[0] = jnp.maximum(acc2 + b2_ref[...] + res, 0.0).astype(o_ref.dtype)

    out_canvas = pl.pallas_call(
        kernel,
        out_shape=jax.ShapeDtypeStruct((B, Ncan, Cout), jnp.bfloat16),
        grid=(B,),
        in_specs=[
            pl.BlockSpec((1, Ntot, C), lambda b: (b, 0, 0)),
            pl.BlockSpec((9, C, Cmid), lambda b: (0, 0, 0)),
            pl.BlockSpec((1, Cmid), lambda b: (0, 0)),
            pl.BlockSpec((9, Cmid, Cout), lambda b: (0, 0, 0)),
            pl.BlockSpec((1, Cout), lambda b: (0, 0)),
            pl.BlockSpec((Ncan, 1), lambda b: (0, 0)),
        ],
        out_specs=pl.BlockSpec((1, Ncan, Cout), lambda b: (b, 0, 0)),
        scratch_shapes=[pltpu.VMEM((Ntot, Cmid), jnp.bfloat16)],
        compiler_params=pltpu.CompilerParams(
            dimension_semantics=("parallel",),   # batch axis split across TensorCores
        ),
    )(xflat, w1f, b1r, w2f, b2r, mask)

    # Drop the 2 junk columns per row, back to NCHW f32.
    out = out_canvas.reshape(B, H, Wp, Cout)[:, :, :W, :].astype(jnp.float32)
    return jnp.transpose(out, (0, 3, 1, 2))


def _fold_bn(gamma, beta, mean, var, eps=1e-5):
    s = gamma * jax.lax.rsqrt(var + eps)
    return s, beta - mean * s


def _reference(x, w1f, b1, w2f, b2):
    """f32 reference using the same scale-folded weights (conv -> +bias -> relu ...)."""
    dn = ("NCHW", "OIHW", "NCHW")
    y = jax.lax.conv_general_dilated(
        x, w1f, (1, 1), ((1, 1), (1, 1)), dimension_numbers=dn,
        precision=jax.lax.Precision.HIGHEST)
    y = jnp.maximum(y + b1[None, :, None, None], 0.0)
    y = jax.lax.conv_general_dilated(
        y, w2f, (1, 1), ((1, 1), (1, 1)), dimension_numbers=dn,
        precision=jax.lax.Precision.HIGHEST)
    y = y + b2[None, :, None, None]
    return jnp.maximum(y + x, 0.0)


if __name__ == "__main__":
    B, C, H, W = 2, 32, 16, 16

    key = jax.random.PRNGKey(0)
    ks = jax.random.split(key, 11)

    x = jax.random.normal(ks[0], (B, C, H, W), dtype=jnp.float32)

    # Kaiming-normal-ish conv weights (fan_out = 3*3*C), OIHW like PyTorch.
    std = (2.0 / (9 * C)) ** 0.5
    w1 = std * jax.random.normal(ks[1], (C, C, 3, 3), dtype=jnp.float32)
    w2 = std * jax.random.normal(ks[2], (C, C, 3, 3), dtype=jnp.float32)

    # BatchNorm (inference) params, folded to per-channel scale/bias.
    g1 = 1.0 + 0.1 * jax.random.normal(ks[3], (C,), dtype=jnp.float32)
    be1 = 0.1 * jax.random.normal(ks[4], (C,), dtype=jnp.float32)
    m1 = 0.1 * jax.random.normal(ks[5], (C,), dtype=jnp.float32)
    v1 = 1.0 + 0.1 * jnp.abs(jax.random.normal(ks[6], (C,), dtype=jnp.float32))
    g2 = 1.0 + 0.1 * jax.random.normal(ks[7], (C,), dtype=jnp.float32)
    be2 = 0.1 * jax.random.normal(ks[8], (C,), dtype=jnp.float32)
    m2 = 0.1 * jax.random.normal(ks[9], (C,), dtype=jnp.float32)
    v2 = 1.0 + 0.1 * jnp.abs(jax.random.normal(ks[10], (C,), dtype=jnp.float32))

    s1, b1 = _fold_bn(g1, be1, m1, v1)
    s2, b2 = _fold_bn(g2, be2, m2, v2)

    out = basic_block_forward(x, w1, s1, b1, w2, s2, b2)
    out = jax.block_until_ready(out)

    # Reference evaluated on the same bf16-rounded operands the kernel feeds the MXU
    # (remaining delta = in-kernel bf16 staging / bf16 output rounding).
    bf = lambda a: a.astype(jnp.bfloat16).astype(jnp.float32)
    w1f_ref = bf(w1 * s1[:, None, None, None])
    w2f_ref = bf(w2 * s2[:, None, None, None])
    ref = _reference(bf(x), w1f_ref, b1, w2f_ref, b2)

    assert out.shape == ref.shape, f"shape mismatch {out.shape} vs {ref.shape}"
    max_err = float(jnp.max(jnp.abs(out - ref)))
    assert jnp.allclose(out, ref, atol=5e-2, rtol=5e-2), (
        f"mismatch vs reference, max abs err = {max_err}")

    print("KERNEL_OK")
</pallas_src>

<mosaic_0001>
module attributes {stable_mosaic.version = 11 : i64} {
  func.func @kernel(%arg0: i32, %arg1: memref<1x352x32xbf16, #tpu.memory_space<vmem>>, %arg2: memref<9x32x32xbf16, #tpu.memory_space<vmem>>, %arg3: memref<1x32xf32, #tpu.memory_space<vmem>>, %arg4: memref<9x32x32xbf16, #tpu.memory_space<vmem>>, %arg5: memref<1x32xf32, #tpu.memory_space<vmem>>, %arg6: memref<288x1xf32, #tpu.memory_space<vmem>>, %arg7: memref<1x288x32xbf16, #tpu.memory_space<vmem>>, %arg8: memref<352x32xbf16, #tpu.memory_space<vmem>>) attributes {dimension_semantics = [#tpu.dimension_semantics<parallel>], iteration_bounds = array<i64: 2>, scalar_prefetch = 0 : i64, scratch_operands = 1 : i64, tpu.core_type = #tpu.core_type<tc>, window_params = [{transform_indices = @transform_0, window_bounds = array<i64: 1, 352, 32>}, {pipeline_mode = #tpu.pipeline_mode<synchronous>, transform_indices = @transform_1, window_bounds = array<i64: 9, 32, 32>}, {pipeline_mode = #tpu.pipeline_mode<synchronous>, transform_indices = @transform_2, window_bounds = array<i64: 1, 32>}, {pipeline_mode = #tpu.pipeline_mode<synchronous>, transform_indices = @transform_3, window_bounds = array<i64: 9, 32, 32>}, {pipeline_mode = #tpu.pipeline_mode<synchronous>, transform_indices = @transform_4, window_bounds = array<i64: 1, 32>}, {pipeline_mode = #tpu.pipeline_mode<synchronous>, transform_indices = @transform_5, window_bounds = array<i64: 288, 1>}, {transform_indices = @transform_6, window_bounds = array<i64: 1, 288, 32>}]} {
    %cst = arith.constant 0.000000e+00 : f32
    %0 = vector.broadcast %cst : f32 to vector<288x32xf32>
    %c0 = arith.constant 0 : index
    %c13 = arith.constant 13 : index
    %c0_0 = arith.constant 0 : index
    %1 = vector.load %arg1[%c0, %c13, %c0_0] : memref<1x352x32xbf16, #tpu.memory_space<vmem>>, vector<1x288x32xbf16>
    %2 = vector.shape_cast %1 : vector<1x288x32xbf16> to vector<288x32xbf16>
    %c0_1 = arith.constant 0 : index
    %c0_2 = arith.constant 0 : index
    %c0_3 = arith.constant 0 : index
    %3 = vector.load %arg2[%c0_1, %c0_2, %c0_3] : memref<9x32x32xbf16, #tpu.memory_space<vmem>>, vector<1x32x32xbf16>
    %4 = vector.shape_cast %3 : vector<1x32x32xbf16> to vector<32x32xbf16>
    %cst_4 = arith.constant dense<0.000000e+00> : vector<288x32xf32>
    %5 = tpu.matmul %2, %4, %cst_4 {dimension_numbers = #tpu.dot_dimension_numbers<[1], [0], [0], [1], [0, 0, 1, 1], [], []>} : vector<288x32xbf16>, vector<32x32xbf16>, vector<288x32xf32> -> vector<288x32xf32>
    %6 = arith.addf %0, %5 : vector<288x32xf32>
    %c0_5 = arith.constant 0 : index
    %c14 = arith.constant 14 : index
    %c0_6 = arith.constant 0 : index
    %7 = vector.load %arg1[%c0_5, %c14, %c0_6] : memref<1x352x32xbf16, #tpu.memory_space<vmem>>, vector<1x288x32xbf16>
    %8 = vector.shape_cast %7 : vector<1x288x32xbf16> to vector<288x32xbf16>
    %c1 = arith.constant 1 : index
    %c0_7 = arith.constant 0 : index
    %c0_8 = arith.constant 0 : index
    %9 = vector.load %arg2[%c1, %c0_7, %c0_8] : memref<9x32x32xbf16, #tpu.memory_space<vmem>>, vector<1x32x32xbf16>
    %10 = vector.shape_cast %9 : vector<1x32x32xbf16> to vector<32x32xbf16>
    %cst_9 = arith.constant dense<0.000000e+00> : vector<288x32xf32>
    %11 = tpu.matmul %8, %10, %cst_9 {dimension_numbers = #tpu.dot_dimension_numbers<[1], [0], [0], [1], [0, 0, 1, 1], [], []>} : vector<288x32xbf16>, vector<32x32xbf16>, vector<288x32xf32> -> vector<288x32xf32>
    %12 = arith.addf %6, %11 : vector<288x32xf32>
    %c0_10 = arith.constant 0 : index
    %c15 = arith.constant 15 : index
    %c0_11 = arith.constant 0 : index
    %13 = vector.load %arg1[%c0_10, %c15, %c0_11] : memref<1x352x32xbf16, #tpu.memory_space<vmem>>, vector<1x288x32xbf16>
    %14 = vector.shape_cast %13 : vector<1x288x32xbf16> to vector<288x32xbf16>
    %c2 = arith.constant 2 : index
    %c0_12 = arith.constant 0 : index
    %c0_13 = arith.constant 0 : index
    %15 = vector.load %arg2[%c2, %c0_12, %c0_13] : memref<9x32x32xbf16, #tpu.memory_space<vmem>>, vector<1x32x32xbf16>
    %16 = vector.shape_cast %15 : vector<1x32x32xbf16> to vector<32x32xbf16>
    %cst_14 = arith.constant dense<0.000000e+00> : vector<288x32xf32>
    %17 = tpu.matmul %14, %16, %cst_14 {dimension_numbers = #tpu.dot_dimension_numbers<[1], [0], [0], [1], [0, 0, 1, 1], [], []>} : vector<288x32xbf16>, vector<32x32xbf16>, vector<288x32xf32> -> vector<288x32xf32>
    %18 = arith.addf %12, %17 : vector<288x32xf32>
    %c0_15 = arith.constant 0 : index
    %c31 = arith.constant 31 : index
    %c0_16 = arith.constant 0 : index
    %19 = vector.load %arg1[%c0_15, %c31, %c0_16] : memref<1x352x32xbf16, #tpu.memory_space<vmem>>, vector<1x288x32xbf16>
    %20 = vector.shape_cast %19 : vector<1x288x32xbf16> to vector<288x32xbf16>
    %c3 = arith.constant 3 : index
    %c0_17 = arith.constant 0 : index
    %c0_18 = arith.constant 0 : index
    %21 = vector.load %arg2[%c3, %c0_17, %c0_18] : memref<9x32x32xbf16, #tpu.memory_space<vmem>>, vector<1x32x32xbf16>
    %22 = vector.shape_cast %21 : vector<1x32x32xbf16> to vector<32x32xbf16>
    %cst_19 = arith.constant dense<0.000000e+00> : vector<288x32xf32>
    %23 = tpu.matmul %20, %22, %cst_19 {dimension_numbers = #tpu.dot_dimension_numbers<[1], [0], [0], [1], [0, 0, 1, 1], [], []>} : vector<288x32xbf16>, vector<32x32xbf16>, vector<288x32xf32> -> vector<288x32xf32>
    %24 = arith.addf %18, %23 : vector<288x32xf32>
    %c0_20 = arith.constant 0 : index
    %c32 = arith.constant 32 : index
    %c0_21 = arith.constant 0 : index
    %25 = vector.load %arg1[%c0_20, %c32, %c0_21] : memref<1x352x32xbf16, #tpu.memory_space<vmem>>, vector<1x288x32xbf16>
    %26 = vector.shape_cast %25 : vector<1x288x32xbf16> to vector<288x32xbf16>
    %c4 = arith.constant 4 : index
    %c0_22 = arith.constant 0 : index
    %c0_23 = arith.constant 0 : index
    %27 = vector.load %arg2[%c4, %c0_22, %c0_23] : memref<9x32x32xbf16, #tpu.memory_space<vmem>>, vector<1x32x32xbf16>
    %28 = vector.shape_cast %27 : vector<1x32x32xbf16> to vector<32x32xbf16>
    %cst_24 = arith.constant dense<0.000000e+00> : vector<288x32xf32>
    %29 = tpu.matmul %26, %28, %cst_24 {dimension_numbers = #tpu.dot_dimension_numbers<[1], [0], [0], [1], [0, 0, 1, 1], [], []>} : vector<288x32xbf16>, vector<32x32xbf16>, vector<288x32xf32> -> vector<288x32xf32>
    %30 = arith.addf %24, %29 : vector<288x32xf32>
    %c0_25 = arith.constant 0 : index
    %c33 = arith.constant 33 : index
    %c0_26 = arith.constant 0 : index
    %31 = vector.load %arg1[%c0_25, %c33, %c0_26] : memref<1x352x32xbf16, #tpu.memory_space<vmem>>, vector<1x288x32xbf16>
    %32 = vector.shape_cast %31 : vector<1x288x32xbf16> to vector<288x32xbf16>
    %c5 = arith.constant 5 : index
    %c0_27 = arith.constant 0 : index
    %c0_28 = arith.constant 0 : index
    %33 = vector.load %arg2[%c5, %c0_27, %c0_28] : memref<9x32x32xbf16, #tpu.memory_space<vmem>>, vector<1x32x32xbf16>
    %34 = vector.shape_cast %33 : vector<1x32x32xbf16> to vector<32x32xbf16>
    %cst_29 = arith.constant dense<0.000000e+00> : vector<288x32xf32>
    %35 = tpu.matmul %32, %34, %cst_29 {dimension_numbers = #tpu.dot_dimension_numbers<[1], [0], [0], [1], [0, 0, 1, 1], [], []>} : vector<288x32xbf16>, vector<32x32xbf16>, vector<288x32xf32> -> vector<288x32xf32>
    %36 = arith.addf %30, %35 : vector<288x32xf32>
    %c0_30 = arith.constant 0 : index
    %c49 = arith.constant 49 : index
    %c0_31 = arith.constant 0 : index
    %37 = vector.load %arg1[%c0_30, %c49, %c0_31] : memref<1x352x32xbf16, #tpu.memory_space<vmem>>, vector<1x288x32xbf16>
    %38 = vector.shape_cast %37 : vector<1x288x32xbf16> to vector<288x32xbf16>
    %c6 = arith.constant 6 : index
    %c0_32 = arith.constant 0 : index
    %c0_33 = arith.constant 0 : index
    %39 = vector.load %arg2[%c6, %c0_32, %c0_33] : memref<9x32x32xbf16, #tpu.memory_space<vmem>>, vector<1x32x32xbf16>
    %40 = vector.shape_cast %39 : vector<1x32x32xbf16> to vector<32x32xbf16>
    %cst_34 = arith.constant dense<0.000000e+00> : vector<288x32xf32>
    %41 = tpu.matmul %38, %40, %cst_34 {dimension_numbers = #tpu.dot_dimension_numbers<[1], [0], [0], [1], [0, 0, 1, 1], [], []>} : vector<288x32xbf16>, vector<32x32xbf16>, vector<288x32xf32> -> vector<288x32xf32>
    %42 = arith.addf %36, %41 : vector<288x32xf32>
    %c0_35 = arith.constant 0 : index
    %c50 = arith.constant 50 : index
    %c0_36 = arith.constant 0 : index
    %43 = vector.load %arg1[%c0_35, %c50, %c0_36] : memref<1x352x32xbf16, #tpu.memory_space<vmem>>, vector<1x288x32xbf16>
    %44 = vector.shape_cast %43 : vector<1x288x32xbf16> to vector<288x32xbf16>
    %c7 = arith.constant 7 : index
    %c0_37 = arith.constant 0 : index
    %c0_38 = arith.constant 0 : index
    %45 = vector.load %arg2[%c7, %c0_37, %c0_38] : memref<9x32x32xbf16, #tpu.memory_space<vmem>>, vector<1x32x32xbf16>
    %46 = vector.shape_cast %45 : vector<1x32x32xbf16> to vector<32x32xbf16>
    %cst_39 = arith.constant dense<0.000000e+00> : vector<288x32xf32>
    %47 = tpu.matmul %44, %46, %cst_39 {dimension_numbers = #tpu.dot_dimension_numbers<[1], [0], [0], [1], [0, 0, 1, 1], [], []>} : vector<288x32xbf16>, vector<32x32xbf16>, vector<288x32xf32> -> vector<288x32xf32>
    %48 = arith.addf %42, %47 : vector<288x32xf32>
    %c0_40 = arith.constant 0 : index
    %c51 = arith.constant 51 : index
    %c0_41 = arith.constant 0 : index
    %49 = vector.load %arg1[%c0_40, %c51, %c0_41] : memref<1x352x32xbf16, #tpu.memory_space<vmem>>, vector<1x288x32xbf16>
    %50 = vector.shape_cast %49 : vector<1x288x32xbf16> to vector<288x32xbf16>
    %c8 = arith.constant 8 : index
    %c0_42 = arith.constant 0 : index
    %c0_43 = arith.constant 0 : index
    %51 = vector.load %arg2[%c8, %c0_42, %c0_43] : memref<9x32x32xbf16, #tpu.memory_space<vmem>>, vector<1x32x32xbf16>
    %52 = vector.shape_cast %51 : vector<1x32x32xbf16> to vector<32x32xbf16>
    %cst_44 = arith.constant dense<0.000000e+00> : vector<288x32xf32>
    %53 = tpu.matmul %50, %52, %cst_44 {dimension_numbers = #tpu.dot_dimension_numbers<[1], [0], [0], [1], [0, 0, 1, 1], [], []>} : vector<288x32xbf16>, vector<32x32xbf16>, vector<288x32xf32> -> vector<288x32xf32>
    %54 = arith.addf %48, %53 : vector<288x32xf32>
    %c0_45 = arith.constant 0 : index
    %c0_46 = arith.constant 0 : index
    %55 = vector.load %arg3[%c0_45, %c0_46] : memref<1x32xf32, #tpu.memory_space<vmem>>, vector<1x32xf32>
    %56 = vector.broadcast %55 : vector<1x32xf32> to vector<288x32xf32>
    %57 = arith.addf %54, %56 : vector<288x32xf32>
    %cst_47 = arith.constant 0.000000e+00 : f32
    %58 = vector.broadcast %cst_47 : f32 to vector<288x32xf32>
    %59 = arith.maximumf %57, %58 : vector<288x32xf32>
    %c0_48 = arith.constant 0 : index
    %c0_49 = arith.constant 0 : index
    %60 = vector.load %arg6[%c0_48, %c0_49] : memref<288x1xf32, #tpu.memory_space<vmem>>, vector<288x1xf32>
    %61 = vector.broadcast %60 : vector<288x1xf32> to vector<288x32xf32>
    %62 = arith.mulf %59, %61 : vector<288x32xf32>
    %cst_50 = arith.constant 0.000000e+00 : bf16
    %63 = vector.broadcast %cst_50 : bf16 to vector<32x32xbf16>
    %c0_51 = arith.constant 0 : index
    %c0_52 = arith.constant 0 : index
    %64 = vector.load %arg8[%c0_51, %c0_52] : memref<352x32xbf16, #tpu.memory_space<vmem>>, vector<32x32xbf16>
    tpu.vector_store %arg8[%c0_51, %c0_52], %63 {strides = array<i32>} : memref<352x32xbf16, #tpu.memory_space<vmem>>, vector<32x32xbf16>,
    %cst_53 = arith.constant 0.000000e+00 : bf16
    %65 = vector.broadcast %cst_53 : bf16 to vector<32x32xbf16>
    %c320 = arith.constant 320 : index
    %c0_54 = arith.constant 0 : index
    %66 = vector.load %arg8[%c320, %c0_54] : memref<352x32xbf16, #tpu.memory_space<vmem>>, vector<32x32xbf16>
    tpu.vector_store %arg8[%c320, %c0_54], %65 {strides = array<i32>} : memref<352x32xbf16, #tpu.memory_space<vmem>>, vector<32x32xbf16>,
    %67 = arith.truncf %62 : vector<288x32xf32> to vector<288x32xbf16>
    %c32_55 = arith.constant 32 : index
    %c0_56 = arith.constant 0 : index
    %68 = vector.load %arg8[%c32_55, %c0_56] : memref<352x32xbf16, #tpu.memory_space<vmem>>, vector<288x32xbf16>
    tpu.vector_store %arg8[%c32_55, %c0_56], %67 {strides = array<i32>} : memref<352x32xbf16, #tpu.memory_space<vmem>>, vector<288x32xbf16>,
    %cst_57 = arith.constant 0.000000e+00 : f32
    %69 = vector.broadcast %cst_57 : f32 to vector<288x32xf32>
    %c13_58 = arith.constant 13 : index
    %c0_59 = arith.constant 0 : index
    %70 = vector.load %arg8[%c13_58, %c0_59] : memref<352x32xbf16, #tpu.memory_space<vmem>>, vector<288x32xbf16>
    %c0_60 = arith.constant 0 : index
    %c0_61 = arith.constant 0 : index
    %c0_62 = arith.constant 0 : index
    %71 = vector.load %arg4[%c0_60, %c0_61, %c0_62] : memref<9x32x32xbf16, #tpu.memory_space<vmem>>, vector<1x32x32xbf16>
    %72 = vector.shape_cast %71 : vector<1x32x32xbf16> to vector<32x32xbf16>
    %cst_63 = arith.constant dense<0.000000e+00> : vector<288x32xf32>
    %73 = tpu.matmul %70, %72, %cst_63 {dimension_numbers = #tpu.dot_dimension_numbers<[1], [0], [0], [1], [0, 0, 1, 1], [], []>} : vector<288x32xbf16>, vector<32x32xbf16>, vector<288x32xf32> -> vector<288x32xf32>
    %74 = arith.addf %69, %73 : vector<288x32xf32>
    %c14_64 = arith.constant 14 : index
    %c0_65 = arith.constant 0 : index
    %75 = vector.load %arg8[%c14_64, %c0_65] : memref<352x32xbf16, #tpu.memory_space<vmem>>, vector<288x32xbf16>
    %c1_66 = arith.constant 1 : index
    %c0_67 = arith.constant 0 : index
    %c0_68 = arith.constant 0 : index
    %76 = vector.load %arg4[%c1_66, %c0_67, %c0_68] : memref<9x32x32xbf16, #tpu.memory_space<vmem>>, vector<1x32x32xbf16>
    %77 = vector.shape_cast %76 : vector<1x32x32xbf16> to vector<32x32xbf16>
    %cst_69 = arith.constant dense<0.000000e+00> : vector<288x32xf32>
    %78 = tpu.matmul %75, %77, %cst_69 {dimension_numbers = #tpu.dot_dimension_numbers<[1], [0], [0], [1], [0, 0, 1, 1], [], []>} : vector<288x32xbf16>, vector<32x32xbf16>, vector<288x32xf32> -> vector<288x32xf32>
    %79 = arith.addf %74, %78 : vector<288x32xf32>
    %c15_70 = arith.constant 15 : index
    %c0_71 = arith.constant 0 : index
    %80 = vector.load %arg8[%c15_70, %c0_71] : memref<352x32xbf16, #tpu.memory_space<vmem>>, vector<288x32xbf16>
    %c2_72 = arith.constant 2 : index
    %c0_73 = arith.constant 0 : index
    %c0_74 = arith.constant 0 : index
    %81 = vector.load %arg4[%c2_72, %c0_73, %c0_74] : memref<9x32x32xbf16, #tpu.memory_space<vmem>>, vector<1x32x32xbf16>
    %82 = vector.shape_cast %81 : vector<1x32x32xbf16> to vector<32x32xbf16>
    %cst_75 = arith.constant dense<0.000000e+00> : vector<288x32xf32>
    %83 = tpu.matmul %80, %82, %cst_75 {dimension_numbers = #tpu.dot_dimension_numbers<[1], [0], [0], [1], [0, 0, 1, 1], [], []>} : vector<288x32xbf16>, vector<32x32xbf16>, vector<288x32xf32> -> vector<288x32xf32>
    %84 = arith.addf %79, %83 : vector<288x32xf32>
    %c31_76 = arith.constant 31 : index
    %c0_77 = arith.constant 0 : index
    %85 = vector.load %arg8[%c31_76, %c0_77] : memref<352x32xbf16, #tpu.memory_space<vmem>>, vector<288x32xbf16>
    %c3_78 = arith.constant 3 : index
    %c0_79 = arith.constant 0 : index
    %c0_80 = arith.constant 0 : index
    %86 = vector.load %arg4[%c3_78, %c0_79, %c0_80] : memref<9x32x32xbf16, #tpu.memory_space<vmem>>, vector<1x32x32xbf16>
    %87 = vector.shape_cast %86 : vector<1x32x32xbf16> to vector<32x32xbf16>
    %cst_81 = arith.constant dense<0.000000e+00> : vector<288x32xf32>
    %88 = tpu.matmul %85, %87, %cst_81 {dimension_numbers = #tpu.dot_dimension_numbers<[1], [0], [0], [1], [0, 0, 1, 1], [], []>} : vector<288x32xbf16>, vector<32x32xbf16>, vector<288x32xf32> -> vector<288x32xf32>
    %89 = arith.addf %84, %88 : vector<288x32xf32>
    %c32_82 = arith.constant 32 : index
    %c0_83 = arith.constant 0 : index
    %90 = vector.load %arg8[%c32_82, %c0_83] : memref<352x32xbf16, #tpu.memory_space<vmem>>, vector<288x32xbf16>
    %c4_84 = arith.constant 4 : index
    %c0_85 = arith.constant 0 : index
    %c0_86 = arith.constant 0 : index
    %91 = vector.load %arg4[%c4_84, %c0_85, %c0_86] : memref<9x32x32xbf16, #tpu.memory_space<vmem>>, vector<1x32x32xbf16>
    %92 = vector.shape_cast %91 : vector<1x32x32xbf16> to vector<32x32xbf16>
    %cst_87 = arith.constant dense<0.000000e+00> : vector<288x32xf32>
    %93 = tpu.matmul %90, %92, %cst_87 {dimension_numbers = #tpu.dot_dimension_numbers<[1], [0], [0], [1], [0, 0, 1, 1], [], []>} : vector<288x32xbf16>, vector<32x32xbf16>, vector<288x32xf32> -> vector<288x32xf32>
    %94 = arith.addf %89, %93 : vector<288x32xf32>
    %c33_88 = arith.constant 33 : index
    %c0_89 = arith.constant 0 : index
    %95 = vector.load %arg8[%c33_88, %c0_89] : memref<352x32xbf16, #tpu.memory_space<vmem>>, vector<288x32xbf16>
    %c5_90 = arith.constant 5 : index
    %c0_91 = arith.constant 0 : index
    %c0_92 = arith.constant 0 : index
    %96 = vector.load %arg4[%c5_90, %c0_91, %c0_92] : memref<9x32x32xbf16, #tpu.memory_space<vmem>>, vector<1x32x32xbf16>
    %97 = vector.shape_cast %96 : vector<1x32x32xbf16> to vector<32x32xbf16>
    %cst_93 = arith.constant dense<0.000000e+00> : vector<288x32xf32>
    %98 = tpu.matmul %95, %97, %cst_93 {dimension_numbers = #tpu.dot_dimension_numbers<[1], [0], [0], [1], [0, 0, 1, 1], [], []>} : vector<288x32xbf16>, vector<32x32xbf16>, vector<288x32xf32> -> vector<288x32xf32>
    %99 = arith.addf %94, %98 : vector<288x32xf32>
    %c49_94 = arith.constant 49 : index
    %c0_95 = arith.constant 0 : index
    %100 = vector.load %arg8[%c49_94, %c0_95] : memref<352x32xbf16, #tpu.memory_space<vmem>>, vector<288x32xbf16>
    %c6_96 = arith.constant 6 : index
    %c0_97 = arith.constant 0 : index
    %c0_98 = arith.constant 0 : index
    %101 = vector.load %arg4[%c6_96, %c0_97, %c0_98] : memref<9x32x32xbf16, #tpu.memory_space<vmem>>, vector<1x32x32xbf16>
    %102 = vector.shape_cast %101 : vector<1x32x32xbf16> to vector<32x32xbf16>
    %cst_99 = arith.constant dense<0.000000e+00> : vector<288x32xf32>
    %103 = tpu.matmul %100, %102, %cst_99 {dimension_numbers = #tpu.dot_dimension_numbers<[1], [0], [0], [1], [0, 0, 1, 1], [], []>} : vector<288x32xbf16>, vector<32x32xbf16>, vector<288x32xf32> -> vector<288x32xf32>
    %104 = arith.addf %99, %103 : vector<288x32xf32>
    %c50_100 = arith.constant 50 : index
    %c0_101 = arith.constant 0 : index
    %105 = vector.load %arg8[%c50_100, %c0_101] : memref<352x32xbf16, #tpu.memory_space<vmem>>, vector<288x32xbf16>
    %c7_102 = arith.constant 7 : index
    %c0_103 = arith.constant 0 : index
    %c0_104 = arith.constant 0 : index
    %106 = vector.load %arg4[%c7_102, %c0_103, %c0_104] : memref<9x32x32xbf16, #tpu.memory_space<vmem>>, vector<1x32x32xbf16>
    %107 = vector.shape_cast %106 : vector<1x32x32xbf16> to vector<32x32xbf16>
    %cst_105 = arith.constant dense<0.000000e+00> : vector<288x32xf32>
    %108 = tpu.matmul %105, %107, %cst_105 {dimension_numbers = #tpu.dot_dimension_numbers<[1], [0], [0], [1], [0, 0, 1, 1], [], []>} : vector<288x32xbf16>, vector<32x32xbf16>, vector<288x32xf32> -> vector<288x32xf32>
    %109 = arith.addf %104, %108 : vector<288x32xf32>
    %c51_106 = arith.constant 51 : index
    %c0_107 = arith.constant 0 : index
    %110 = vector.load %arg8[%c51_106, %c0_107] : memref<352x32xbf16, #tpu.memory_space<vmem>>, vector<288x32xbf16>
    %c8_108 = arith.constant 8 : index
    %c0_109 = arith.constant 0 : index
    %c0_110 = arith.constant 0 : index
    %111 = vector.load %arg4[%c8_108, %c0_109, %c0_110] : memref<9x32x32xbf16, #tpu.memory_space<vmem>>, vector<1x32x32xbf16>
    %112 = vector.shape_cast %111 : vector<1x32x32xbf16> to vector<32x32xbf16>
    %cst_111 = arith.constant dense<0.000000e+00> : vector<288x32xf32>
    %113 = tpu.matmul %110, %112, %cst_111 {dimension_numbers = #tpu.dot_dimension_numbers<[1], [0], [0], [1], [0, 0, 1, 1], [], []>} : vector<288x32xbf16>, vector<32x32xbf16>, vector<288x32xf32> -> vector<288x32xf32>
    %114 = arith.addf %109, %113 : vector<288x32xf32>
    %c0_112 = arith.constant 0 : index
    %c32_113 = arith.constant 32 : index
    %c0_114 = arith.constant 0 : index
    %115 = vector.load %arg1[%c0_112, %c32_113, %c0_114] : memref<1x352x32xbf16, #tpu.memory_space<vmem>>, vector<1x288x32xbf16>
    %116 = vector.shape_cast %115 : vector<1x288x32xbf16> to vector<288x32xbf16>
    %117 = arith.extf %116 : vector<288x32xbf16> to vector<288x32xf32>
    %c0_115 = arith.constant 0 : index
    %c0_116 = arith.constant 0 : index
    %118 = vector.load %arg5[%c0_115, %c0_116] : memref<1x32xf32, #tpu.memory_space<vmem>>, vector<1x32xf32>
    %119 = vector.broadcast %118 : vector<1x32xf32> to vector<288x32xf32>
    %120 = arith.addf %114, %119 : vector<288x32xf32>
    %121 = arith.addf %120, %117 : vector<288x32xf32>
    %cst_117 = arith.constant 0.000000e+00 : f32
    %122 = vector.broadcast %cst_117 : f32 to vector<288x32xf32>
    %123 = arith.maximumf %121, %122 : vector<288x32xf32>
    %124 = arith.truncf %123 : vector<288x32xf32> to vector<288x32xbf16>
    %c0_118 = arith.constant 0 : index
    %c0_119 = arith.constant 0 : index
    %c0_120 = arith.constant 0 : index
    %125 = vector.load %arg7[%c0_118, %c0_119, %c0_120] : memref<1x288x32xbf16, #tpu.memory_space<vmem>>, vector<1x288x32xbf16>
    %126 = vector.shape_cast %125 : vector<1x288x32xbf16> to vector<288x32xbf16>
    %127 = vector.shape_cast %124 : vector<288x32xbf16> to vector<1x288x32xbf16>
    tpu.vector_store %arg7[%c0_118, %c0_119, %c0_120], %127 {strides = array<i32>} : memref<1x288x32xbf16, #tpu.memory_space<vmem>>, vector<1x288x32xbf16>,
    return
  }
  func.func @transform_0(%arg0: i32) -> (i32, i32, i32) {
    %c0_i32 = arith.constant 0 : i32
    %c0_i32_0 = arith.constant 0 : i32
    %c0_i32_1 = arith.constant 0 : i32
    return %arg0, %c0_i32, %c0_i32_0 : i32, i32, i32
  }
  func.func @transform_1(%arg0: i32) -> (i32, i32, i32) {
    %c0_i32 = arith.constant 0 : i32
    %c0_i32_0 = arith.constant 0 : i32
    %c0_i32_1 = arith.constant 0 : i32
    %c0_i32_2 = arith.constant 0 : i32
    return %c0_i32, %c0_i32_0, %c0_i32_1 : i32, i32, i32
  }
  func.func @transform_2(%arg0: i32) -> (i32, i32) {
    %c0_i32 = arith.constant 0 : i32
    %c0_i32_0 = arith.constant 0 : i32
    %c0_i32_1 = arith.constant 0 : i32
    return %c0_i32, %c0_i32_0 : i32, i32
  }
  func.func @transform_3(%arg0: i32) -> (i32, i32, i32) {
    %c0_i32 = arith.constant 0 : i32
    %c0_i32_0 = arith.constant 0 : i32
    %c0_i32_1 = arith.constant 0 : i32
    %c0_i32_2 = arith.constant 0 : i32
    return %c0_i32, %c0_i32_0, %c0_i32_1 : i32, i32, i32
  }
  func.func @transform_4(%arg0: i32) -> (i32, i32) {
    %c0_i32 = arith.constant 0 : i32
    %c0_i32_0 = arith.constant 0 : i32
    %c0_i32_1 = arith.constant 0 : i32
    return %c0_i32, %c0_i32_0 : i32, i32
  }
  func.func @transform_5(%arg0: i32) -> (i32, i32) {
    %c0_i32 = arith.constant 0 : i32
    %c0_i32_0 = arith.constant 0 : i32
    %c0_i32_1 = arith.constant 0 : i32
    return %c0_i32, %c0_i32_0 : i32, i32
  }
  func.func @transform_6(%arg0: i32) -> (i32, i32, i32) {
    %c0_i32 = arith.constant 0 : i32
    %c0_i32_0 = arith.constant 0 : i32
    %c0_i32_1 = arith.constant 0 : i32
    return %arg0, %c0_i32, %c0_i32_0 : i32, i32, i32
  }
}

</mosaic_0001>

<llo_original>
// kernel: tpu_custom_call.1
$region0: #{tpu_custom_call.1}
  #allocation0 [shape = 'u32[]', space=smem, size = 0x4, offset = 0x4, fixed_abs, tag = 'smem constant byte address 0x4 - core index']
  #allocation1 [shape = 'u32[144,128]{1,0:T(1,128)}', space=vmem, size = 0x12000, scoped, tag = 'internal scratch']
  #allocation2 [shape = 'bf16[352,32]{1,0:T(16,128)(2,1)}', space=vmem, size = 0x16000, scoped, tag = 'scratch operand']
  %s0 = inlined_call_operand.vmem [shape: bf16[2,352,32], index: 0, kind: input, shape index: {}]
  %s1 = inlined_call_operand.vmem [shape: bf16[9,32,32], index: 1, kind: input, shape index: {}]
  %s2 = inlined_call_operand.vmem [shape: f32[1,32], index: 2, kind: input, shape index: {}]
  %s3 = inlined_call_operand.vmem [shape: bf16[9,32,32], index: 3, kind: input, shape index: {}]
  %s4 = inlined_call_operand.vmem [shape: f32[1,32], index: 4, kind: input, shape index: {}]
  %s5 = inlined_call_operand.vmem [shape: f32[288,1], index: 5, kind: input, shape index: {}]
  %s6 = inlined_call_operand.vmem [shape: bf16[2,288,32], index: 6, kind: output, shape index: {}]
  %s7 = sld [smem:[#allocation0]]
  $region57: #{tpu_custom_call.1} parent=0
    _
  %s9 = ssub.s32 1, %s7
  %s10 = scalar_select 0, %s9, %s7
  loop: start=0, step=1, limit=4
  $region2: #{tpu_custom_call.1} parent=0 // loop_pre_header
    _
  $region3: #{tpu_custom_call.1} parent=0 // loop_header
    %s12 = sphi 0, %s16
    %p13 = scmp.ge.s32.totalorder %s12, 4
    %s22 = sphi 0, %s24
    %s25 = sphi 0, %s22
    %s26 = sphi 0, %s25
    %s42 = sphi 0, %s26
    %s46 = sphi 0, %s46
    %s48 = sphi 0, %s46
    %s49 = sphi 0, %s48
    %s63 = sphi 0, %s49
    %s67 = sphi 0, %s67
    %s69 = sphi 0, %s67
    %s70 = sphi 0, %s69
    %s84 = sphi 0, %s70
    %s88 = sphi 0, %s88
    %s90 = sphi 0, %s88
    %s91 = sphi 0, %s90
    %s105 = sphi 0, %s91
    %s109 = sphi 0, %s109
    %s111 = sphi 0, %s109
    %s112 = sphi 0, %s111
    %s126 = sphi 0, %s112
    %s130 = sphi 0, %s130
    %s132 = sphi 0, %s130
    %s133 = sphi 0, %s132
    %s147 = sphi 0, %s133
    %s153 = sphi 0, %s155
    %s156 = sphi 0, %s153
    %s157 = sphi 0, %s156
    %s173 = sphi 0, %s157
  $region4: #{tpu_custom_call.1} parent=0 // loop_header_branch
    %15 = sbr.rel (%p13) target = $region8
  $region5: #{tpu_custom_call.1} parent=0 // loop_body
    %s17 = ssub.s32 %s12, 1
    %s18 = ssub.s32 %s12, 2
    %s19 = sadd.s32 %s12, 1
    %s20 = ssub.s32 %s12, %s19
    %p21 = scmp.eq.s32.totalorder %s20, 0
    %s23 = sadd.s32 %s22, 1
    %s24 = scalar_select %p21, %s22, %s23
    %p27 = pneg %p21
    %p28 = scmp.eq.s32.totalorder %s12, 1
    %p29 = por %p27, %p28
    %p30 = scmp.ne.s32.totalorder %s22, %s25
    %p31 = scmp.eq.s32.totalorder %s12, 0
    %p32 = por %p30, %p31
    %p33 = scmp.ne.s32.totalorder %s22, %s25
    %p34 = scmp.eq.s32.totalorder %s17, 1
    %p35 = por %p33, %p34
    %p36 = scmp.ne.s32.totalorder %s25, %s26
    %p37 = scmp.eq.s32.totalorder %s17, 0
    %p38 = por %p36, %p37
    %p39 = scmp.ne.s32.totalorder %s25, %s26
    %p40 = scmp.eq.s32.totalorder %s18, 1
    %p41 = por %p39, %p40
    %p43 = scmp.ne.s32.totalorder %s26, %s42
    %p44 = scmp.eq.s32.totalorder %s18, 0
    %p45 = por %p43, %p44
    %s47 = sadd.s32 %s46, 1
    %p50 = scmp.eq.s32.totalorder %s12, 1
    %p51 = scmp.ne.s32.totalorder %s46, %s48
    %p52 = scmp.eq.s32.totalorder %s12, 0
    %p53 = por %p51, %p52
    %p54 = scmp.ne.s32.totalorder %s46, %s48
    %p55 = scmp.eq.s32.totalorder %s17, 1
    %p56 = por %p54, %p55
    %p57 = scmp.ne.s32.totalorder %s48, %s49
    %p58 = scmp.eq.s32.totalorder %s17, 0
    %p59 = por %p57, %p58
    %p60 = scmp.ne.s32.totalorder %s48, %s49
    %p61 = scmp.eq.s32.totalorder %s18, 1
    %p62 = por %p60, %p61
    %p64 = scmp.ne.s32.totalorder %s49, %s63
    %p65 = scmp.eq.s32.totalorder %s18, 0
    %p66 = por %p64, %p65
    %s68 = sadd.s32 %s67, 1
    %p71 = scmp.eq.s32.totalorder %s12, 1
    %p72 = scmp.ne.s32.totalorder %s67, %s69
    %p73 = scmp.eq.s32.totalorder %s12, 0
    %p74 = por %p72, %p73
    %p75 = scmp.ne.s32.totalorder %s67, %s69
    %p76 = scmp.eq.s32.totalorder %s17, 1
    %p77 = por %p75, %p76
    %p78 = scmp.ne.s32.totalorder %s69, %s70
    %p79 = scmp.eq.s32.totalorder %s17, 0
    %p80 = por %p78, %p79
    %p81 = scmp.ne.s32.totalorder %s69, %s70
    %p82 = scmp.eq.s32.totalorder %s18, 1
    %p83 = por %p81, %p82
    %p85 = scmp.ne.s32.totalorder %s70, %s84
    %p86 = scmp.eq.s32.totalorder %s18, 0
    %p87 = por %p85, %p86
    %s89 = sadd.s32 %s88, 1
    %p92 = scmp.eq.s32.totalorder %s12, 1
    %p93 = scmp.ne.s32.totalorder %s88, %s90
    %p94 = scmp.eq.s32.totalorder %s12, 0
    %p95 = por %p93, %p94
    %p96 = scmp.ne.s32.totalorder %s88, %s90
    %p97 = scmp.eq.s32.totalorder %s17, 1
    %p98 = por %p96, %p97
    %p99 = scmp.ne.s32.totalorder %s90, %s91
    %p100 = scmp.eq.s32.totalorder %s17, 0
    %p101 = por %p99, %p100
    %p102 = scmp.ne.s32.totalorder %s90, %s91
    %p103 = scmp.eq.s32.totalorder %s18, 1
    %p104 = por %p102, %p103
    %p106 = scmp.ne.s32.totalorder %s91, %s105
    %p107 = scmp.eq.s32.totalorder %s18, 0
    %p108 = por %p106, %p107
    %s110 = sadd.s32 %s109, 1
    %p113 = scmp.eq.s32.totalorder %s12, 1
    %p114 = scmp.ne.s32.totalorder %s109, %s111
    %p115 = scmp.eq.s32.totalorder %s12, 0
    %p116 = por %p114, %p115
    %p117 = scmp.ne.s32.totalorder %s109, %s111
    %p118 = scmp.eq.s32.totalorder %s17, 1
    %p119 = por %p117, %p118
    %p120 = scmp.ne.s32.totalorder %s111, %s112
    %p121 = scmp.eq.s32.totalorder %s17, 0
    %p122 = por %p120, %p121
    %p123 = scmp.ne.s32.totalorder %s111, %s112
    %p124 = scmp.eq.s32.totalorder %s18, 1
    %p125 = por %p123, %p124
    %p127 = scmp.ne.s32.totalorder %s112, %s126
    %p128 = scmp.eq.s32.totalorder %s18, 0
    %p129 = por %p127, %p128
    %s131 = sadd.s32 %s130, 1
    %p134 = scmp.eq.s32.totalorder %s12, 1
    %p135 = scmp.ne.s32.totalorder %s130, %s132
    %p136 = scmp.eq.s32.totalorder %s12, 0
    %p137 = por %p135, %p136
    %p138 = scmp.ne.s32.totalorder %s130, %s132
    %p139 = scmp.eq.s32.totalorder %s17, 1
    %p140 = por %p138, %p139
    %p141 = scmp.ne.s32.totalorder %s132, %s133
    %p142 = scmp.eq.s32.totalorder %s17, 0
    %p143 = por %p141, %p142
    %p144 = scmp.ne.s32.totalorder %s132, %s133
    %p145 = scmp.eq.s32.totalorder %s18, 1
    %p146 = por %p144, %p145
    %p148 = scmp.ne.s32.totalorder %s133, %s147
    %p149 = scmp.eq.s32.totalorder %s18, 0
    %p150 = por %p148, %p149
    %s151 = ssub.s32 %s12, %s19
    %p152 = scmp.eq.s32.totalorder %s151, 0
    %s154 = sadd.s32 %s153, 1
    %s155 = scalar_select %p152, %s153, %s154
    %p158 = pneg %p152
    %p159 = scmp.eq.s32.totalorder %s12, 1
    %p160 = por %p158, %p159
    %p161 = scmp.ne.s32.totalorder %s153, %s156
    %p162 = scmp.eq.s32.totalorder %s12, 0
    %p163 = por %p161, %p162
    %p164 = scmp.ne.s32.totalorder %s153, %s156
    %p165 = scmp.eq.s32.totalorder %s17, 1
    %p166 = por %p164, %p165
    %p167 = scmp.ne.s32.totalorder %s156, %s157
    %p168 = scmp.eq.s32.totalorder %s17, 0
    %p169 = por %p167, %p168
    %p170 = scmp.ne.s32.totalorder %s156, %s157
    %p171 = scmp.eq.s32.totalorder %s18, 1
    %p172 = por %p170, %p171
    %p174 = scmp.ne.s32.totalorder %s157, %s173
    %p175 = scmp.eq.s32.totalorder %s18, 0
    %p176 = por %p174, %p175
    %p177 = scmp.le.s32.totalorder 1, %s12
    %p178 = scmp.lt.s32.totalorder %s12, 3
    %p179 = pnand %p177, %p178
    %p180 = pneg %p179
    // Predicated region
    $region9: #{tpu_custom_call.1} parent=5 // pred_check
      _
    $region10: #{tpu_custom_call.1} parent=5 // pred_check_branch
      %182 = sbr.rel (%p179) target = $region12
    $region11: #{tpu_custom_call.1} parent=5 // pred_region
      %s183 = ssub.s32 %s12, 1
      // Predicated region
      $region13: #{tpu_custom_call.1} parent=11 // pred_check
        %p184 = pneg %p59
      $region14: #{tpu_custom_call.1} parent=11 // pred_check_branch
        %186 = sbr.rel (%p184) target = $region16
      $region15: #{tpu_custom_call.1} parent=11 // pred_region
        _
      $region16: #{tpu_custom_call.1} parent=11 // pred_fallthru
        _
      // Predicated region
      $region17: #{tpu_custom_call.1} parent=11 // pred_check
        %p187 = pneg %p80
      $region18: #{tpu_custom_call.1} parent=11 // pred_check_branch
        %189 = sbr.rel (%p187) target = $region20
      $region19: #{tpu_custom_call.1} parent=11 // pred_region
        _
      $region20: #{tpu_custom_call.1} parent=11 // pred_fallthru
        _
      // Predicated region
      $region21: #{tpu_custom_call.1} parent=11 // pred_check
        %p190 = pneg %p101
      $region22: #{tpu_custom_call.1} parent=11 // pred_check_branch
        %192 = sbr.rel (%p190) target = $region24
      $region23: #{tpu_custom_call.1} parent=11 // pred_region
        _
      $region24: #{tpu_custom_call.1} parent=11 // pred_fallthru
        _
      // Predicated region
      $region25: #{tpu_custom_call.1} parent=11 // pred_check
        %p193 = pneg %p122
      $region26: #{tpu_custom_call.1} parent=11 // pred_check_branch
        %195 = sbr.rel (%p193) target = $region28
      $region27: #{tpu_custom_call.1} parent=11 // pred_region
        _
      $region28: #{tpu_custom_call.1} parent=11 // pred_fallthru
        _
      // Predicated region
      $region29: #{tpu_custom_call.1} parent=11 // pred_check
        %p196 = pneg %p143
      $region30: #{tpu_custom_call.1} parent=11 // pred_check_branch
        %198 = sbr.rel (%p196) target = $region32
      $region31: #{tpu_custom_call.1} parent=11 // pred_region
        _
      $region32: #{tpu_custom_call.1} parent=11 // pred_fallthru
        _
    $region12: #{tpu_custom_call.1} parent=5 // pred_fallthru
      _
    %p199 = scmp.lt.s32.totalorder %s12, 2
    // Predicated region
    $region33: #{tpu_custom_call.1} parent=5 // pred_check
      %p200 = pneg %p199
    $region34: #{tpu_custom_call.1} parent=5 // pred_check_branch
      %202 = sbr.rel (%p200) target = $region36
    $region35: #{tpu_custom_call.1} parent=5 // pred_region
      // Predicated region
      $region37: #{tpu_custom_call.1} parent=35 // pred_check
        %p203 = pneg %p32
      $region38: #{tpu_custom_call.1} parent=35 // pred_check_branch
        %205 = sbr.rel (%p203) target = $region40
      $region39: #{tpu_custom_call.1} parent=35 // pred_region
        %p206 = scmp.lt.s32.totalorder %s12, 1
        %s207 = scalar_select %p206, %s12, 1
        %s208 = smul.addr %s207, 44
        %s209 = smul.addr %s208, 4
        %s210 = scalar_lea.vmem %s0, %s209
      $region40: #{tpu_custom_call.1} parent=35 // pred_fallthru
        _
    $region36: #{tpu_custom_call.1} parent=5 // pred_fallthru
      _
    %p211 = scmp.le.s32.totalorder 1, %s12
    %p212 = scmp.lt.s32.totalorder %s12, 3
    %p213 = pnand %p211, %p212
    %p214 = pneg %p213
    // Predicated region
    $region41: #{tpu_custom_call.1} parent=5 // pred_check
      _
    $region42: #{tpu_custom_call.1} parent=5 // pred_check_branch
      %216 = sbr.rel (%p213) target = $region44
    $region43: #{tpu_custom_call.1} parent=5 // pred_region
      %s217 = ssub.s32 %s12, 1
      %p218 = scmp.lt.s32.totalorder %s17, 1
      %s219 = scalar_select %p218, %s17, 1
      %s220 = smul.addr %s219, 44
      %s221 = smul.addr %s220, 4
      %s222 = scalar_lea.vmem %s0, %s221
      %p223 = pneg %p38
      %p224 = pneg %p35
      %p225 = pneg %p59
      %p226 = pneg %p56
      %p227 = pneg %p80
      %p228 = pneg %p77
      %p229 = pneg %p101
      %p230 = pneg %p98
      %p231 = pneg %p122
      %p232 = pneg %p119
      %p233 = pneg %p143
      %p234 = pneg %p140
      %p235 = pneg %p169
      %p236 = pneg %p166
      %p237 = scmp.lt.s32.totalorder %s17, 1
      %s238 = scalar_select %p237, %s17, 1
      %s239 = smul.addr %s238, 36
      %s240 = smul.addr %s239, 4
      %s241 = scalar_lea.vmem %s6, %s240
      %p242 = scmp.lt.s32.totalorder %s17, 1
      %s243 = scalar_select %p242, %s17, 1
      %s244 = smul.addr %s243, 44
      %s245 = smul.addr %s244, 4
      %s246 = scalar_lea.vmem %s0, %s245
      %p247 = scmp.lt.s32.totalorder %s17, 1
      %s248 = scalar_select %p247, %s17, 1
      %s249 = smul.addr %s248, 36
      %s250 = smul.addr %s249, 4
      %s251 = scalar_lea.vmem %s6, %s250
      %v253 = vld [vmem:[%s246 + $0x4] sm:$0xc]
      %v254 = vld [vmem:[%s246 + $0x8] sm:$0xf]
      %v255 = vld [vmem:[%s246 + $0xc] sm:$0xf]
      %v256 = vld [vmem:[%s246 + $0x10] sm:$0xf]
      %v257 = vld [vmem:[%s246 + $0x14] sm:$0xf]
      %v258 = vld [vmem:[%s246 + $0x18] sm:$0xf]
      %v259 = vld [vmem:[%s246 + $0x1c] sm:$0xf]
      %v260 = vld [vmem:[%s246 + $0x20] sm:$0xf]
      %v261 = vld [vmem:[%s246 + $0x24] sm:$0xf]
      %v262 = vld [vmem:[%s246 + $0x28] sm:$0xf]
      %v263 = vld [vmem:[%s246 + $0x2c] sm:$0xf]
      %v264 = vld [vmem:[%s246 + $0x30] sm:$0xf]
      %v265 = vld [vmem:[%s246 + $0x34] sm:$0xf]
      %v266 = vld [vmem:[%s246 + $0x38] sm:$0xf]
      %v267 = vld [vmem:[%s246 + $0x3c] sm:$0xf]
      %v268 = vld [vmem:[%s246 + $0x40] sm:$0xf]
      %v269 = vld [vmem:[%s246 + $0x44] sm:$0xf]
      %v270 = vld [vmem:[%s246 + $0x48] sm:$0xf]
      %v271 = vld [vmem:[%s246 + $0x4c] sm:$0xf]
      %v272 = vld [vmem:[%s246 + $0x50] sm:$0xf]
      %v273 = vld [vmem:[%s246 + $0x54] sm:$0xf]
      %v274 = vld [vmem:[%s246 + $0x58] sm:$0xf]
      %v275 = vld [vmem:[%s246 + $0x5c] sm:$0xf]
      %v276 = vld [vmem:[%s246 + $0x60] sm:$0xf]
      %v277 = vld [vmem:[%s246 + $0x64] sm:$0xf]
      %v278 = vld [vmem:[%s246 + $0x68] sm:$0xf]
      %v279 = vld [vmem:[%s246 + $0x6c] sm:$0xf]
      %v280 = vld [vmem:[%s246 + $0x70] sm:$0xf]
      %v281 = vld [vmem:[%s246 + $0x74] sm:$0xf]
      %v282 = vld [vmem:[%s246 + $0x78] sm:$0xf]
      %v283 = vld [vmem:[%s246 + $0x7c] sm:$0xf]
      %v284 = vld [vmem:[%s246 + $0x80] sm:$0xf]
      %v285 = vld [vmem:[%s246 + $0x84] sm:$0xf]
      %v286 = vld [vmem:[%s246 + $0x88] sm:$0xf]
      %v287 = vld [vmem:[%s246 + $0x8c] sm:$0xf]
      %v288 = vld [vmem:[%s246 + $0x90] sm:$0xf]
      %v289 = vld [vmem:[%s246 + $0x94] sm:$0x7]
      %v290 = vld [vmem:[%s1] sm:$0xf]
      %v291 = vld [vmem:[%s1 + $0x4] sm:$0xf]
      %v292 = vld [vmem:[%s1 + $0x8] sm:$0xf]
      %v293 = vld [vmem:[%s1 + $0xc] sm:$0xf]
      %v294 = vld [vmem:[%s246 + $0x4] sm:$0x8]
      %s295 = scalar_lea.vmem %s1, 16
      %v296 = vld [vmem:[%s295] sm:$0xf]
      %v297 = vld [vmem:[%s295 + $0x4] sm:$0xf]
      %v298 = vld [vmem:[%s295 + $0x8] sm:$0xf]
      %v299 = vld [vmem:[%s295 + $0xc] sm:$0xf]
      %v337 = vunpack.c.l.b16 %v294
      %v338 = vunpack.c.l.b16 %v254
      %v339 = vunpack.c.l.b16 %v255
      %v340 = vunpack.c.l.b16 %v256
      %v341 = vunpack.c.l.b16 %v257
      %v342 = vunpack.c.l.b16 %v258
      %v343 = vunpack.c.l.b16 %v259
      %v344 = vunpack.c.l.b16 %v260
      %v345 = vunpack.c.l.b16 %v261
      %v346 = vunpack.c.l.b16 %v262
      %v347 = vunpack.c.l.b16 %v263
      %v348 = vunpack.c.l.b16 %v264
      %v349 = vunpack.c.l.b16 %v265
      %v350 = vunpack.c.l.b16 %v266
      %v351 = vunpack.c.l.b16 %v267
      %v352 = vunpack.c.l.b16 %v268
      %v353 = vunpack.c.l.b16 %v269
      %v354 = vunpack.c.l.b16 %v270
      %v355 = vunpack.c.l.b16 %v271
      %v356 = vunpack.c.l.b16 %v272
      %v357 = vunpack.c.l.b16 %v273
      %v358 = vunpack.c.l.b16 %v274
      %v359 = vunpack.c.l.b16 %v275
      %v360 = vunpack.c.l.b16 %v276
      %v361 = vunpack.c.l.b16 %v277
      %v362 = vunpack.c.l.b16 %v278
      %v363 = vunpack.c.l.b16 %v279
      %v364 = vunpack.c.l.b16 %v280
      %v365 = vunpack.c.l.b16 %v281
      %v366 = vunpack.c.l.b16 %v282
      %v367 = vunpack.c.l.b16 %v283
      %v368 = vunpack.c.l.b16 %v284
      %v369 = vunpack.c.l.b16 %v285
      %v370 = vunpack.c.l.b16 %v286
      %v371 = vunpack.c.l.b16 %v287
      %v372 = vunpack.c.l.b16 %v288
      %v373 = vunpack.c.l.b16 %v289
      %v374 = vpack.c.b16 %v338, %v337
      %v375 = vpack.c.b16 %v340, %v339
      %v376 = vpack.c.b16 %v342, %v341
      %v377 = vpack.c.b16 %v344, %v343
      %v378 = vpack.c.b16 %v346, %v345
      %v379 = vpack.c.b16 %v348, %v347
      %v380 = vpack.c.b16 %v350, %v349
      %v381 = vpack.c.b16 %v352, %v351
      %v382 = vpack.c.b16 %v354, %v353
      %v383 = vpack.c.b16 %v356, %v355
      %v384 = vpack.c.b16 %v358, %v357
      %v385 = vpack.c.b16 %v360, %v359
      %v386 = vpack.c.b16 %v362, %v361
      %v387 = vpack.c.b16 %v364, %v363
      %v388 = vpack.c.b16 %v366, %v365
      %v389 = vpack.c.b16 %v368, %v367
      %v390 = vpack.c.b16 %v370, %v369
      %v391 = vpack.c.b16 %v372, %v371
      %v392 = vpack.c.b16 %v373, %v373
      %vm393 = vcmask 1044480
      %v394 = vrot.slane %v374, 3
      %v395 = vrot.slane %v375, 3
      %v396 = vsel %vm393, %v394, %v395
      %v397 = vrot.slane %v376, 3
      %v398 = vsel %vm393, %v395, %v397
      %v399 = vrot.slane %v377, 3
      %v400 = vsel %vm393, %v397, %v399
      %v401 = vrot.slane %v378, 3
      %v402 = vsel %vm393, %v399, %v401
      %v403 = vrot.slane %v379, 3
      %v404 = vsel %vm393, %v401, %v403
      %v405 = vrot.slane %v380, 3
      %v406 = vsel %vm393, %v403, %v405
      %v407 = vrot.slane %v381, 3
      %v408 = vsel %vm393, %v405, %v407
      %v409 = vrot.slane %v382, 3
      %v410 = vsel %vm393, %v407, %v409
      %v411 = vrot.slane %v383, 3
      %v412 = vsel %vm393, %v409, %v411
      %v413 = vrot.slane %v384, 3
      %v414 = vsel %vm393, %v411, %v413
      %v415 = vrot.slane %v385, 3
      %v416 = vsel %vm393, %v413, %v415
      %v417 = vrot.slane %v386, 3
      %v418 = vsel %vm393, %v415, %v417
      %v419 = vrot.slane %v387, 3
      %v420 = vsel %vm393, %v417, %v419
      %v421 = vrot.slane %v388, 3
      %v422 = vsel %vm393, %v419, %v421
      %v423 = vrot.slane %v389, 3
      %v424 = vsel %vm393, %v421, %v423
      %v425 = vrot.slane %v390, 3
      %v426 = vsel %vm393, %v423, %v425
      %v427 = vrot.slane %v391, 3
      %v428 = vsel %vm393, %v425, %v427
      %v429 = vrot.slane %v392, 3
      %v430 = vsel %vm393, %v427, %v429
      %v435 = vunpack.c.l.b16 %v296
      %v436 = vunpack.c.l.b16 %v297
      %v437 = vunpack.c.l.b16 %v298
      %v438 = vunpack.c.l.b16 %v299
      %v439 = vpack.c.b16 %v436, %v435
      %v440 = vpack.c.b16 %v438, %v437
      %vm443 = vcmask 261120
      %v445 = vsel %vm443, %v396, 0
      %v448 = vsel %vm443, %v398, 0
      %v451 = vsel %vm443, %v400, 0
      %v454 = vsel %vm443, %v402, 0
      %v457 = vsel %vm443, %v404, 0
      %v460 = vsel %vm443, %v406, 0
      %v463 = vsel %vm443, %v408, 0
      %v466 = vsel %vm443, %v410, 0
      %v469 = vsel %vm443, %v412, 0
      %v472 = vsel %vm443, %v414, 0
      %v475 = vsel %vm443, %v416, 0
      %v478 = vsel %vm443, %v418, 0
      %v481 = vsel %vm443, %v420, 0
      %v484 = vsel %vm443, %v422, 0
      %v487 = vsel %vm443, %v424, 0
      %v490 = vsel %vm443, %v426, 0
      %v493 = vsel %vm443, %v428, 0
      %v496 = vsel %vm443, %v430, 0
      %498 = vmatprep.subr.bf16.mxu0 0
      %499 = vmatpush1.bf16.msra.mxu0 %v439
      %500 = vmatprep.subr.bf16.mxu0 0
      %501 = vmatpush1.bf16.msra.mxu0 %v440
      %502 = vmatprep.subr.bf16.mxu0 0
      %503 = vmatpush1.bf16.msra.mxu0 0
      %504 = vmatprep.subr.bf16.mxu0 0
      %505 = vmatpush1.bf16.msra.mxu0 0
      %506 = vmatprep.subr.bf16.mxu0 0
      %507 = vmatpush1.bf16.msra.mxu0 0
      %508 = vmatprep.subr.bf16.mxu0 0
      %509 = vmatpush1.bf16.msra.mxu0 0
      %510 = vmatprep.subr.bf16.mxu0 0
      %511 = vmatpush1.bf16.msra.mxu0 0
      %512 = vmatprep.subr.bf16.mxu0 0
      %513 = vmatpush1.bf16.msra.mxu0 0
      %514 = vmatprep.subr.bf16.mxu0 0
      %515 = vmatpush1.bf16.msra.mxu0 0
      %516 = vmatprep.subr.bf16.mxu0 0
      %517 = vmatpush1.bf16.msra.mxu0 0
      %518 = vmatprep.subr.bf16.mxu0 0
      %519 = vmatpush1.bf16.msra.mxu0 0
      %520 = vmatprep.subr.bf16.mxu0 0
      %521 = vmatpush1.bf16.msra.mxu0 0
      %522 = vmatprep.subr.bf16.mxu0 0
      %523 = vmatpush1.bf16.msra.mxu0 0
      %524 = vmatprep.subr.bf16.mxu0 0
      %525 = vmatpush1.bf16.msra.mxu0 0
      %526 = vmatprep.subr.bf16.mxu0 0
      %527 = vmatpush1.bf16.msra.mxu0 0
      %528 = vmatprep.subr.bf16.mxu0 0
      %529 = vmatpush1.bf16.msra.mxu0 0
      %530 = vmatprep.mubr.bf16.mxu0 0
      %531 = vmatmul.mubr.bf16.gmra.mrb[0].mxu0 %v445
      %v532 = vpop.f32.mrb[0].mxu0
      %v533 = vadd.f32 0.0, %v532
      %v534 = vpop.f32.mrb[0].mxu0
      %v535 = vpop.f32.mrb[0].mxu0
      %v536 = vadd.f32 0.0, %v535
      %v537 = vpop.f32.mrb[0].mxu0
      %538 = vmatprep.mubr.bf16.mxu0 0
      %539 = vmatmul.mubr.bf16.gmra.mrb[0].mxu0 %v448
      %v540 = vpop.f32.mrb[0].mxu0
      %v541 = vadd.f32 0.0, %v540
      %v542 = vpop.f32.mrb[0].mxu0
      %v543 = vpop.f32.mrb[0].mxu0
      %v544 = vadd.f32 0.0, %v543
      %v545 = vpop.f32.mrb[0].mxu0
      %546 = vmatprep.mubr.bf16.mxu0 0
      %547 = vmatmul.mubr.bf16.gmra.mrb[0].mxu0 %v451
      %v548 = vpop.f32.mrb[0].mxu0
      %v549 = vadd.f32 0.0, %v548
      %v550 = vpop.f32.mrb[0].mxu0
      %v551 = vpop.f32.mrb[0].mxu0
      %v552 = vadd.f32 0.0, %v551
      %v553 = vpop.f32.mrb[0].mxu0
      %554 = vmatprep.mubr.bf16.mxu0 0
      %555 = vmatmul.mubr.bf16.gmra.mrb[0].mxu0 %v454
      %v556 = vpop.f32.mrb[0].mxu0
      %v557 = vadd.f32 0.0, %v556
      %v558 = vpop.f32.mrb[0].mxu0
      %v559 = vpop.f32.mrb[0].mxu0
      %v560 = vadd.f32 0.0, %v559
      %v561 = vpop.f32.mrb[0].mxu0
      %562 = vmatprep.mubr.bf16.mxu0 0
      %563 = vmatmul.mubr.bf16.gmra.mrb[0].mxu0 %v457
      %v564 = vpop.f32.mrb[0].mxu0
      %v565 = vadd.f32 0.0, %v564
      %v566 = vpop.f32.mrb[0].mxu0
      %v567 = vpop.f32.mrb[0].mxu0
      %v568 = vadd.f32 0.0, %v567
      %v569 = vpop.f32.mrb[0].mxu0
      %570 = vmatprep.mubr.bf16.mxu0 0
      %571 = vmatmul.mubr.bf16.gmra.mrb[0].mxu0 %v460
      %v572 = vpop.f32.mrb[0].mxu0
      %v573 = vadd.f32 0.0, %v572
      %v574 = vpop.f32.mrb[0].mxu0
      %v575 = vpop.f32.mrb[0].mxu0
      %v576 = vadd.f32 0.0, %v575
      %v577 = vpop.f32.mrb[0].mxu0
      %578 = vmatprep.mubr.bf16.mxu0 0
      %579 = vmatmul.mubr.bf16.gmra.mrb[0].mxu0 %v463
      %v580 = vpop.f32.mrb[0].mxu0
      %v581 = vadd.f32 0.0, %v580
      %v582 = vpop.f32.mrb[0].mxu0
      %v583 = vpop.f32.mrb[0].mxu0
      %v584 = vadd.f32 0.0, %v583
      %v585 = vpop.f32.mrb[0].mxu0
      %586 = vmatprep.mubr.bf16.mxu0 0
      %587 = vmatmul.mubr.bf16.gmra.mrb[0].mxu0 %v466
      %v588 = vpop.f32.mrb[0].mxu0
      %v589 = vadd.f32 0.0, %v588
      %v590 = vpop.f32.mrb[0].mxu0
      %v591 = vpop.f32.mrb[0].mxu0
      %v592 = vadd.f32 0.0, %v591
      %v593 = vpop.f32.mrb[0].mxu0
      %594 = vmatprep.mubr.bf16.mxu0 0
      %595 = vmatmul.mubr.bf16.gmra.mrb[0].mxu0 %v469
      %v596 = vpop.f32.mrb[0].mxu0
      %v597 = vadd.f32 0.0, %v596
      %v598 = vpop.f32.mrb[0].mxu0
      %v599 = vpop.f32.mrb[0].mxu0
      %v600 = vadd.f32 0.0, %v599
      %v601 = vpop.f32.mrb[0].mxu0
      %602 = vmatprep.mubr.bf16.mxu0 0
      %603 = vmatmul.mubr.bf16.gmra.mrb[0].mxu0 %v472
      %v604 = vpop.f32.mrb[0].mxu0
      %v605 = vadd.f32 0.0, %v604
      %v606 = vpop.f32.mrb[0].mxu0
      %v607 = vpop.f32.mrb[0].mxu0
      %v608 = vadd.f32 0.0, %v607
      %v609 = vpop.f32.mrb[0].mxu0
      %610 = vmatprep.mubr.bf16.mxu0 0
      %611 = vmatmul.mubr.bf16.gmra.mrb[0].mxu0 %v475
      %v612 = vpop.f32.mrb[0].mxu0
      %v613 = vadd.f32 0.0, %v612
      %v614 = vpop.f32.mrb[0].mxu0
      %v615 = vpop.f32.mrb[0].mxu0
      %v616 = vadd.f32 0.0, %v615
      %v617 = vpop.f32.mrb[0].mxu0
      %618 = vmatprep.mubr.bf16.mxu0 0
      %619 = vmatmul.mubr.bf16.gmra.mrb[0].mxu0 %v478
      %v620 = vpop.f32.mrb[0].mxu0
      %v621 = vadd.f32 0.0, %v620
      %v622 = vpop.f32.mrb[0].mxu0
      %v623 = vpop.f32.mrb[0].mxu0
      %v624 = vadd.f32 0.0, %v623
      %v625 = vpop.f32.mrb[0].mxu0
      %626 = vmatprep.mubr.bf16.mxu0 0
      %627 = vmatmul.mubr.bf16.gmra.mrb[0].mxu0 %v481
      %v628 = vpop.f32.mrb[0].mxu0
      %v629 = vadd.f32 0.0, %v628
      %v630 = vpop.f32.mrb[0].mxu0
      %v631 = vpop.f32.mrb[0].mxu0
      %v632 = vadd.f32 0.0, %v631
      %v633 = vpop.f32.mrb[0].mxu0
      %634 = vmatprep.mubr.bf16.mxu0 0
      %635 = vmatmul.mubr.bf16.gmra.mrb[0].mxu0 %v484
      %v636 = vpop.f32.mrb[0].mxu0
      %v637 = vadd.f32 0.0, %v636
      %v638 = vpop.f32.mrb[0].mxu0
      %v639 = vpop.f32.mrb[0].mxu0
      %v640 = vadd.f32 0.0, %v639
      %v641 = vpop.f32.mrb[0].mxu0
      %642 = vmatprep.mubr.bf16.mxu0 0
      %643 = vmatmul.mubr.bf16.gmra.mrb[0].mxu0 %v487
      %v644 = vpop.f32.mrb[0].mxu0
      %v645 = vadd.f32 0.0, %v644
      %v646 = vpop.f32.mrb[0].mxu0
      %v647 = vpop.f32.mrb[0].mxu0
      %v648 = vadd.f32 0.0, %v647
      %v649 = vpop.f32.mrb[0].mxu0
      %650 = vmatprep.mubr.bf16.mxu0 0
      %651 = vmatmul.mubr.bf16.gmra.mrb[0].mxu0 %v490
      %v652 = vpop.f32.mrb[0].mxu0
      %v653 = vadd.f32 0.0, %v652
      %v654 = vpop.f32.mrb[0].mxu0
      %v655 = vpop.f32.mrb[0].mxu0
      %v656 = vadd.f32 0.0, %v655
      %v657 = vpop.f32.mrb[0].mxu0
      %658 = vmatprep.mubr.bf16.mxu0 0
      %659 = vmatmul.mubr.bf16.gmra.mrb[0].mxu0 %v493
      %v660 = vpop.f32.mrb[0].mxu0
      %v661 = vadd.f32 0.0, %v660
      %v662 = vpop.f32.mrb[0].mxu0
      %v663 = vpop.f32.mrb[0].mxu0
      %v664 = vadd.f32 0.0, %v663
      %v665 = vpop.f32.mrb[0].mxu0
      %666 = vmatprep.mubr.bf16.mxu0 0
      %667 = vmatmul.mubr.bf16.gmra.mrb[0].mxu0 %v496
      %v668 = vpop.f32.mrb[0].mxu0
      %v669 = vadd.f32 0.0, %v668
      %v670 = vpop.f32.mrb[0].mxu0
      %v671 = vpop.f32.mrb[0].mxu0
      %v672 = vadd.f32 0.0, %v671
      %v673 = vpop.f32.mrb[0].mxu0
      %674 = vdwg.mxu0
      %v676 = vunpack.c.l.b16 %v253
      %v677 = vpack.c.b16 %v338, %v676
      %vm678 = vsmask.f32 5376
      %v680 = vshrl.u32 %v677, 16
      %v682 = vrot.slane %v680, 2
      %v683 = vshll.u32 %v677, 16
      %v685 = vrot.slane %v683, 3
      %v686 = vor.u32 %v682, %v685
      %v688 = vshrl.u32 %v375, 16
      %v690 = vrot.slane %v688, 2
      %v691 = vshll.u32 %v375, 16
      %v693 = vrot.slane %v691, 3
      %v694 = vor.u32 %v690, %v693
      %v695 = vsel %vm678, %v686, %v694
      %v697 = vshrl.u32 %v376, 16
      %v699 = vrot.slane %v697, 2
      %v700 = vshll.u32 %v376, 16
      %v702 = vrot.slane %v700, 3
      %v703 = vor.u32 %v699, %v702
      %v704 = vsel %vm678, %v694, %v703
      %v706 = vshrl.u32 %v377, 16
      %v708 = vrot.slane %v706, 2
      %v709 = vshll.u32 %v377, 16
      %v711 = vrot.slane %v709, 3
      %v712 = vor.u32 %v708, %v711
      %v713 = vsel %vm678, %v703, %v712
      %v715 = vshrl.u32 %v378, 16
      %v717 = vrot.slane %v715, 2
      %v718 = vshll.u32 %v378, 16
      %v720 = vrot.slane %v718, 3
      %v721 = vor.u32 %v717, %v720
      %v722 = vsel %vm678, %v712, %v721
      %v724 = vshrl.u32 %v379, 16
      %v726 = vrot.slane %v724, 2
      %v727 = vshll.u32 %v379, 16
      %v729 = vrot.slane %v727, 3
      %v730 = vor.u32 %v726, %v729
      %v731 = vsel %vm678, %v721, %v730
      %v733 = vshrl.u32 %v380, 16
      %v735 = vrot.slane %v733, 2
      %v736 = vshll.u32 %v380, 16
      %v738 = vrot.slane %v736, 3
      %v739 = vor.u32 %v735, %v738
      %v740 = vsel %vm678, %v730, %v739
      %v742 = vshrl.u32 %v381, 16
      %v744 = vrot.slane %v742, 2
      %v745 = vshll.u32 %v381, 16
      %v747 = vrot.slane %v745, 3
      %v748 = vor.u32 %v744, %v747
      %v749 = vsel %vm678, %v739, %v748
      %v751 = vshrl.u32 %v382, 16
      %v753 = vrot.slane %v751, 2
      %v754 = vshll.u32 %v382, 16
      %v756 = vrot.slane %v754, 3
      %v757 = vor.u32 %v753, %v756
      %v758 = vsel %vm678, %v748, %v757
      %v760 = vshrl.u32 %v383, 16
      %v762 = vrot.slane %v760, 2
      %v763 = vshll.u32 %v383, 16
      %v765 = vrot.slane %v763, 3
      %v766 = vor.u32 %v762, %v765
      %v767 = vsel %vm678, %v757, %v766
      %v769 = vshrl.u32 %v384, 16
      %v771 = vrot.slane %v769, 2
      %v772 = vshll.u32 %v384, 16
      %v774 = vrot.slane %v772, 3
      %v775 = vor.u32 %v771, %v774
      %v776 = vsel %vm678, %v766, %v775
      %v778 = vshrl.u32 %v385, 16
      %v780 = vrot.slane %v778, 2
      %v781 = vshll.u32 %v385, 16
      %v783 = vrot.slane %v781, 3
      %v784 = vor.u32 %v780, %v783
      %v785 = vsel %vm678, %v775, %v784
      %v787 = vshrl.u32 %v386, 16
      %v789 = vrot.slane %v787, 2
      %v790 = vshll.u32 %v386, 16
      %v792 = vrot.slane %v790, 3
      %v793 = vor.u32 %v789, %v792
      %v794 = vsel %vm678, %v784, %v793
      %v796 = vshrl.u32 %v387, 16
      %v798 = vrot.slane %v796, 2
      %v799 = vshll.u32 %v387, 16
      %v801 = vrot.slane %v799, 3
      %v802 = vor.u32 %v798, %v801
      %v803 = vsel %vm678, %v793, %v802
      %v805 = vshrl.u32 %v388, 16
      %v807 = vrot.slane %v805, 2
      %v808 = vshll.u32 %v388, 16
      %v810 = vrot.slane %v808, 3
      %v811 = vor.u32 %v807, %v810
      %v812 = vsel %vm678, %v802, %v811
      %v814 = vshrl.u32 %v389, 16
      %v816 = vrot.slane %v814, 2
      %v817 = vshll.u32 %v389, 16
      %v819 = vrot.slane %v817, 3
      %v820 = vor.u32 %v816, %v819
      %v821 = vsel %vm678, %v811, %v820
      %v823 = vshrl.u32 %v390, 16
      %v825 = vrot.slane %v823, 2
      %v826 = vshll.u32 %v390, 16
      %v828 = vrot.slane %v826, 3
      %v829 = vor.u32 %v825, %v828
      %v830 = vsel %vm678, %v820, %v829
      %v832 = vshrl.u32 %v391, 16
      %v834 = vrot.slane %v832, 2
      %v835 = vshll.u32 %v391, 16
      %v837 = vrot.slane %v835, 3
      %v838 = vor.u32 %v834, %v837
      %v839 = vsel %vm678, %v829, %v838
      %v841 = vshrl.u32 %v392, 16
      %v843 = vrot.slane %v841, 2
      %v844 = vshll.u32 %v392, 16
      %v846 = vrot.slane %v844, 3
      %v847 = vor.u32 %v843, %v846
      %v848 = vsel %vm678, %v838, %v847
      %v853 = vunpack.c.l.b16 %v290
      %v854 = vunpack.c.l.b16 %v291
      %v855 = vunpack.c.l.b16 %v292
      %v856 = vunpack.c.l.b16 %v293
      %v857 = vpack.c.b16 %v854, %v853
      %v858 = vpack.c.b16 %v856, %v855
      %v862 = vsel %vm443, %v695, 0
      %v865 = vsel %vm443, %v704, 0
      %v868 = vsel %vm443, %v713, 0
      %v871 = vsel %vm443, %v722, 0
      %v874 = vsel %vm443, %v731, 0
      %v877 = vsel %vm443, %v740, 0
      %v880 = vsel %vm443, %v749, 0
      %v883 = vsel %vm443, %v758, 0
      %v886 = vsel %vm443, %v767, 0
      %v889 = vsel %vm443, %v776, 0
      %v892 = vsel %vm443, %v785, 0
      %v895 = vsel %vm443, %v794, 0
      %v898 = vsel %vm443, %v803, 0
      %v901 = vsel %vm443, %v812, 0
      %v904 = vsel %vm443, %v821, 0
      %v907 = vsel %vm443, %v830, 0
      %v910 = vsel %vm443, %v839, 0
      %v913 = vsel %vm443, %v848, 0
      %915 = vmatprep.subr.bf16.mxu0 0
      %916 = vmatpush1.bf16.msra.mxu0 %v857
      %917 = vmatprep.subr.bf16.mxu0 0
      %918 = vmatpush1.bf16.msra.mxu0 %v858
      %919 = vmatprep.subr.bf16.mxu0 0
      %920 = vmatpush1.bf16.msra.mxu0 0
      %921 = vmatprep.subr.bf16.mxu0 0
      %922 = vmatpush1.bf16.msra.mxu0 0
      %923 = vmatprep.subr.bf16.mxu0 0
      %924 = vmatpush1.bf16.msra.mxu0 0
      %925 = vmatprep.subr.bf16.mxu0 0
      %926 = vmatpush1.bf16.msra.mxu0 0
      %927 = vmatprep.subr.bf16.mxu0 0
      %928 = vmatpush1.bf16.msra.mxu0 0
      %929 = vmatprep.subr.bf16.mxu0 0
      %930 = vmatpush1.bf16.msra.mxu0 0
      %931 = vmatprep.subr.bf16.mxu0 0
      %932 = vmatpush1.bf16.msra.mxu0 0
      %933 = vmatprep.subr.bf16.mxu0 0
      %934 = vmatpush1.bf16.msra.mxu0 0
      %935 = vmatprep.subr.bf16.mxu0 0
      %936 = vmatpush1.bf16.msra.mxu0 0
      %937 = vmatprep.subr.bf16.mxu0 0
      %938 = vmatpush1.bf16.msra.mxu0 0
      %939 = vmatprep.subr.bf16.mxu0 0
      %940 = vmatpush1.bf16.msra.mxu0 0
      %941 = vmatprep.subr.bf16.mxu0 0
      %942 = vmatpush1.bf16.msra.mxu0 0
      %943 = vmatprep.subr.bf16.mxu0 0
      %944 = vmatpush1.bf16.msra.mxu0 0
      %945 = vmatprep.subr.bf16.mxu0 0
      %946 = vmatpush1.bf16.msra.mxu0 0
      %947 = vmatprep.mubr.bf16.mxu0 0
      %948 = vmatmul.mubr.bf16.gmra.mrb[0].mxu0 %v862
      %v949 = vpop.f32.mrb[0].mxu0
      %v950 = vadd.f32 %v533, %v949
      %v951 = vpop.f32.mrb[0].mxu0
      %v952 = vpop.f32.mrb[0].mxu0
      %v953 = vadd.f32 %v536, %v952
      %v954 = vpop.f32.mrb[0].mxu0
      %955 = vmatprep.mubr.bf16.mxu0 0
      %956 = vmatmul.mubr.bf16.gmra.mrb[0].mxu0 %v865
      %v957 = vpop.f32.mrb[0].mxu0
      %v958 = vadd.f32 %v541, %v957
      %v959 = vpop.f32.mrb[0].mxu0
      %v960 = vpop.f32.mrb[0].mxu0
      %v961 = vadd.f32 %v544, %v960
      %v962 = vpop.f32.mrb[0].mxu0
      %963 = vmatprep.mubr.bf16.mxu0 0
      %964 = vmatmul.mubr.bf16.gmra.mrb[0].mxu0 %v868
      %v965 = vpop.f32.mrb[0].mxu0
      %v966 = vadd.f32 %v549, %v965
      %v967 = vpop.f32.mrb[0].mxu0
      %v968 = vpop.f32.mrb[0].mxu0
      %v969 = vadd.f32 %v552, %v968
      %v970 = vpop.f32.mrb[0].mxu0
      %971 = vmatprep.mubr.bf16.mxu0 0
      %972 = vmatmul.mubr.bf16.gmra.mrb[0].mxu0 %v871
      %v973 = vpop.f32.mrb[0].mxu0
      %v974 = vadd.f32 %v557, %v973
      %v975 = vpop.f32.mrb[0].mxu0
      %v976 = vpop.f32.mrb[0].mxu0
      %v977 = vadd.f32 %v560, %v976
      %v978 = vpop.f32.mrb[0].mxu0
      %979 = vmatprep.mubr.bf16.mxu0 0
      %980 = vmatmul.mubr.bf16.gmra.mrb[0].mxu0 %v874
      %v981 = vpop.f32.mrb[0].mxu0
      %v982 = vadd.f32 %v565, %v981
      %v983 = vpop.f32.mrb[0].mxu0
      %v984 = vpop.f32.mrb[0].mxu0
      %v985 = vadd.f32 %v568, %v984
      %v986 = vpop.f32.mrb[0].mxu0
      %987 = vmatprep.mubr.bf16.mxu0 0
      %988 = vmatmul.mubr.bf16.gmra.mrb[0].mxu0 %v877
      %v989 = vpop.f32.mrb[0].mxu0
      %v990 = vadd.f32 %v573, %v989
      %v991 = vpop.f32.mrb[0].mxu0
      %v992 = vpop.f32.mrb[0].mxu0
      %v993 = vadd.f32 %v576, %v992
      %v994 = vpop.f32.mrb[0].mxu0
      %995 = vmatprep.mubr.bf16.mxu0 0
      %996 = vmatmul.mubr.bf16.gmra.mrb[0].mxu0 %v880
      %v997 = vpop.f32.mrb[0].mxu0
      %v998 = vadd.f32 %v581, %v997
      %v999 = vpop.f32.mrb[0].mxu0
      %v1000 = vpop.f32.mrb[0].mxu0
      %v1001 = vadd.f32 %v584, %v1000
      %v1002 = vpop.f32.mrb[0].mxu0
      %1003 = vmatprep.mubr.bf16.mxu0 0
      %1004 = vmatmul.mubr.bf16.gmra.mrb[0].mxu0 %v883
      %v1005 = vpop.f32.mrb[0].mxu0
      %v1006 = vadd.f32 %v589, %v1005
      %v1007 = vpop.f32.mrb[0].mxu0
      %v1008 = vpop.f32.mrb[0].mxu0
      %v1009 = vadd.f32 %v592, %v1008
      %v1010 = vpop.f32.mrb[0].mxu0
      %1011 = vmatprep.mubr.bf16.mxu0 0
      %1012 = vmatmul.mubr.bf16.gmra.mrb[0].mxu0 %v886
      %v1013 = vpop.f32.mrb[0].mxu0
      %v1014 = vadd.f32 %v597, %v1013
      %v1015 = vpop.f32.mrb[0].mxu0
      %v1016 = vpop.f32.mrb[0].mxu0
      %v1017 = vadd.f32 %v600, %v1016
      %v1018 = vpop.f32.mrb[0].mxu0
      %1019 = vmatprep.mubr.bf16.mxu0 0
      %1020 = vmatmul.mubr.bf16.gmra.mrb[0].mxu0 %v889
      %v1021 = vpop.f32.mrb[0].mxu0
      %v1022 = vadd.f32 %v605, %v1021
      %v1023 = vpop.f32.mrb[0].mxu0
      %v1024 = vpop.f32.mrb[0].mxu0
      %v1025 = vadd.f32 %v608, %v1024
      %v1026 = vpop.f32.mrb[0].mxu0
      %1027 = vmatprep.mubr.bf16.mxu0 0
      %1028 = vmatmul.mubr.bf16.gmra.mrb[0].mxu0 %v892
      %v1029 = vpop.f32.mrb[0].mxu0
      %v1030 = vadd.f32 %v613, %v1029
      %v1031 = vpop.f32.mrb[0].mxu0
      %v1032 = vpop.f32.mrb[0].mxu0
      %v1033 = vadd.f32 %v616, %v1032
      %v1034 = vpop.f32.mrb[0].mxu0
      %1035 = vmatprep.mubr.bf16.mxu0 0
      %1036 = vmatmul.mubr.bf16.gmra.mrb[0].mxu0 %v895
      %v1037 = vpop.f32.mrb[0].mxu0
      %v1038 = vadd.f32 %v621, %v1037
      %v1039 = vpop.f32.mrb[0].mxu0
      %v1040 = vpop.f32.mrb[0].mxu0
      %v1041 = vadd.f32 %v624, %v1040
      %v1042 = vpop.f32.mrb[0].mxu0
      %1043 = vmatprep.mubr.bf16.mxu0 0
      %1044 = vmatmul.mubr.bf16.gmra.mrb[0].mxu0 %v898
      %v1045 = vpop.f32.mrb[0].mxu0
      %v1046 = vadd.f32 %v629, %v1045
      %v1047 = vpop.f32.mrb[0].mxu0
      %v1048 = vpop.f32.mrb[0].mxu0
      %v1049 = vadd.f32 %v632, %v1048
      %v1050 = vpop.f32.mrb[0].mxu0
      %1051 = vmatprep.mubr.bf16.mxu0 0
      %1052 = vmatmul.mubr.bf16.gmra.mrb[0].mxu0 %v901
      %v1053 = vpop.f32.mrb[0].mxu0
      %v1054 = vadd.f32 %v637, %v1053
      %v1055 = vpop.f32.mrb[0].mxu0
      %v1056 = vpop.f32.mrb[0].mxu0
      %v1057 = vadd.f32 %v640, %v1056
      %v1058 = vpop.f32.mrb[0].mxu0
      %1059 = vmatprep.mubr.bf16.mxu0 0
      %1060 = vmatmul.mubr.bf16.gmra.mrb[0].mxu0 %v904
      %v1061 = vpop.f32.mrb[0].mxu0
      %v1062 = vadd.f32 %v645, %v1061
      %v1063 = vpop.f32.mrb[0].mxu0
      %v1064 = vpop.f32.mrb[0].mxu0
      %v1065 = vadd.f32 %v648, %v1064
      %v1066 = vpop.f32.mrb[0].mxu0
      %1067 = vmatprep.mubr.bf16.mxu0 0
      %1068 = vmatmul.mubr.bf16.gmra.mrb[0].mxu0 %v907
      %v1069 = vpop.f32.mrb[0].mxu0
      %v1070 = vadd.f32 %v653, %v1069
      %v1071 = vpop.f32.mrb[0].mxu0
      %v1072 = vpop.f32.mrb[0].mxu0
      %v1073 = vadd.f32 %v656, %v1072
      %v1074 = vpop.f32.mrb[0].mxu0
      %1075 = vmatprep.mubr.bf16.mxu0 0
      %1076 = vmatmul.mubr.bf16.gmra.mrb[0].mxu0 %v910
      %v1077 = vpop.f32.mrb[0].mxu0
      %v1078 = vadd.f32 %v661, %v1077
      %v1079 = vpop.f32.mrb[0].mxu0
      %v1080 = vpop.f32.mrb[0].mxu0
      %v1081 = vadd.f32 %v664, %v1080
      %v1082 = vpop.f32.mrb[0].mxu0
      %1083 = vmatprep.mubr.bf16.mxu0 0
      %1084 = vmatmul.mubr.bf16.gmra.mrb[0].mxu0 %v913
      %v1085 = vpop.f32.mrb[0].mxu0
      %v1086 = vadd.f32 %v669, %v1085
      %v1087 = vpop.f32.mrb[0].mxu0
      %v1088 = vpop.f32.mrb[0].mxu0
      %v1089 = vadd.f32 %v672, %v1088
      %v1090 = vpop.f32.mrb[0].mxu0
      %1091 = vdwg.mxu0
      %v1092 = vld [vmem:[%s246 + $0x94] sm:$0xf]
      %s1093 = scalar_lea.vmem %s1, 32
      %v1094 = vld [vmem:[%s1093] sm:$0xf]
      %v1095 = vld [vmem:[%s1093 + $0x4] sm:$0xf]
      %v1096 = vld [vmem:[%s1093 + $0x8] sm:$0xf]
      %v1097 = vld [vmem:[%s1093 + $0xc] sm:$0xf]
      %v1099 = vunpack.c.l.b16 %v1092
      %v1100 = vpack.c.b16 %v1099, %v1099
      %vm1101 = vsmask.f32 4352
      %v1103 = vshrl.u32 %v374, 16
      %v1105 = vrot.slane %v1103, 3
      %v1106 = vshll.u32 %v374, 16
      %v1108 = vrot.slane %v1106, 4
      %v1109 = vor.u32 %v1105, %v1108
      %v1110 = vrot.slane %v688, 3
      %v1111 = vrot.slane %v691, 4
      %v1112 = vor.u32 %v1110, %v1111
      %v1113 = vsel %vm1101, %v1109, %v1112
      %v1114 = vrot.slane %v697, 3
      %v1115 = vrot.slane %v700, 4
      %v1116 = vor.u32 %v1114, %v1115
      %v1117 = vsel %vm1101, %v1112, %v1116
      %v1118 = vrot.slane %v706, 3
      %v1119 = vrot.slane %v709, 4
      %v1120 = vor.u32 %v1118, %v1119
      %v1121 = vsel %vm1101, %v1116, %v1120
      %v1122 = vrot.slane %v715, 3
      %v1123 = vrot.slane %v718, 4
      %v1124 = vor.u32 %v1122, %v1123
      %v1125 = vsel %vm1101, %v1120, %v1124
      %v1126 = vrot.slane %v724, 3
      %v1127 = vrot.slane %v727, 4
      %v1128 = vor.u32 %v1126, %v1127
      %v1129 = vsel %vm1101, %v1124, %v1128
      %v1130 = vrot.slane %v733, 3
      %v1131 = vrot.slane %v736, 4
      %v1132 = vor.u32 %v1130, %v1131
      %v1133 = vsel %vm1101, %v1128, %v1132
      %v1134 = vrot.slane %v742, 3
      %v1135 = vrot.slane %v745, 4
      %v1136 = vor.u32 %v1134, %v1135
      %v1137 = vsel %vm1101, %v1132, %v1136
      %v1138 = vrot.slane %v751, 3
      %v1139 = vrot.slane %v754, 4
      %v1140 = vor.u32 %v1138, %v1139
      %v1141 = vsel %vm1101, %v1136, %v1140
      %v1142 = vrot.slane %v760, 3
      %v1143 = vrot.slane %v763, 4
      %v1144 = vor.u32 %v1142, %v1143
      %v1145 = vsel %vm1101, %v1140, %v1144
      %v1146 = vrot.slane %v769, 3
      %v1147 = vrot.slane %v772, 4
      %v1148 = vor.u32 %v1146, %v1147
      %v1149 = vsel %vm1101, %v1144, %v1148
      %v1150 = vrot.slane %v778, 3
      %v1151 = vrot.slane %v781, 4
      %v1152 = vor.u32 %v1150, %v1151
      %v1153 = vsel %vm1101, %v1148, %v1152
      %v1154 = vrot.slane %v787, 3
      %v1155 = vrot.slane %v790, 4
      %v1156 = vor.u32 %v1154, %v1155
      %v1157 = vsel %vm1101, %v1152, %v1156
      %v1158 = vrot.slane %v796, 3
      %v1159 = vrot.slane %v799, 4
      %v1160 = vor.u32 %v1158, %v1159
      %v1161 = vsel %vm1101, %v1156, %v1160
      %v1162 = vrot.slane %v805, 3
      %v1163 = vrot.slane %v808, 4
      %v1164 = vor.u32 %v1162, %v1163
      %v1165 = vsel %vm1101, %v1160, %v1164
      %v1166 = vrot.slane %v814, 3
      %v1167 = vrot.slane %v817, 4
      %v1168 = vor.u32 %v1166, %v1167
      %v1169 = vsel %vm1101, %v1164, %v1168
      %v1170 = vrot.slane %v823, 3
      %v1171 = vrot.slane %v826, 4
      %v1172 = vor.u32 %v1170, %v1171
      %v1173 = vsel %vm1101, %v1168, %v1172
      %v1174 = vrot.slane %v832, 3
      %v1175 = vrot.slane %v835, 4
      %v1176 = vor.u32 %v1174, %v1175
      %v1177 = vsel %vm1101, %v1172, %v1176
      %v1179 = vshrl.u32 %v1100, 16
      %v1181 = vrot.slane %v1179, 3
      %v1182 = vshll.u32 %v1100, 16
      %v1184 = vrot.slane %v1182, 4
      %v1185 = vor.u32 %v1181, %v1184
      %v1186 = vsel %vm1101, %v1176, %v1185
      %v1191 = vunpack.c.l.b16 %v1094
      %v1192 = vunpack.c.l.b16 %v1095
      %v1193 = vunpack.c.l.b16 %v1096
      %v1194 = vunpack.c.l.b16 %v1097
      %v1195 = vpack.c.b16 %v1192, %v1191
      %v1196 = vpack.c.b16 %v1194, %v1193
      %v1200 = vsel %vm443, %v1113, 0
      %v1203 = vsel %vm443, %v1117, 0
      %v1206 = vsel %vm443, %v1121, 0
      %v1209 = vsel %vm443, %v1125, 0
      %v1212 = vsel %vm443, %v1129, 0
      %v1215 = vsel %vm443, %v1133, 0
      %v1218 = vsel %vm443, %v1137, 0
      %v1221 = vsel %vm443, %v1141, 0
      %v1224 = vsel %vm443, %v1145, 0
      %v1227 = vsel %vm443, %v1149, 0
      %v1230 = vsel %vm443, %v1153, 0
      %v1233 = vsel %vm443, %v1157, 0
      %v1236 = vsel %vm443, %v1161, 0
      %v1239 = vsel %vm443, %v1165, 0
      %v1242 = vsel %vm443, %v1169, 0
      %v1245 = vsel %vm443, %v1173, 0
      %v1248 = vsel %vm443, %v1177, 0
      %v1251 = vsel %vm443, %v1186, 0
      %1253 = vmatprep.subr.bf16.mxu0 0
      %1254 = vmatpush1.bf16.msra.mxu0 %v1195
      %1255 = vmatprep.subr.bf16.mxu0 0
      %1256 = vmatpush1.bf16.msra.mxu0 %v1196
      %1257 = vmatprep.subr.bf16.mxu0 0
      %1258 = vmatpush1.bf16.msra.mxu0 0
      %1259 = vmatprep.subr.bf16.mxu0 0
      %1260 = vmatpush1.bf16.msra.mxu0 0
      %1261 = vmatprep.subr.bf16.mxu0 0
      %1262 = vmatpush1.bf16.msra.mxu0 0
      %1263 = vmatprep.subr.bf16.mxu0 0
      %1264 = vmatpush1.bf16.msra.mxu0 0
      %1265 = vmatprep.subr.bf16.mxu0 0
      %1266 = vmatpush1.bf16.msra.mxu0 0
      %1267 = vmatprep.subr.bf16.mxu0 0
      %1268 = vmatpush1.bf16.msra.mxu0 0
      %1269 = vmatprep.subr.bf16.mxu0 0
      %1270 = vmatpush1.bf16.msra.mxu0 0
      %1271 = vmatprep.subr.bf16.mxu0 0
      %1272 = vmatpush1.bf16.msra.mxu0 0
      %1273 = vmatprep.subr.bf16.mxu0 0
      %1274 = vmatpush1.bf16.msra.mxu0 0
      %1275 = vmatprep.subr.bf16.mxu0 0
      %1276 = vmatpush1.bf16.msra.mxu0 0
      %1277 = vmatprep.subr.bf16.mxu0 0
      %1278 = vmatpush1.bf16.msra.mxu0 0
      %1279 = vmatprep.subr.bf16.mxu0 0
      %1280 = vmatpush1.bf16.msra.mxu0 0
      %1281 = vmatprep.subr.bf16.mxu0 0
      %1282 = vmatpush1.bf16.msra.mxu0 0
      %1283 = vmatprep.subr.bf16.mxu0 0
      %1284 = vmatpush1.bf16.msra.mxu0 0
      %1285 = vmatprep.mubr.bf16.mxu0 0
      %1286 = vmatmul.mubr.bf16.gmra.mrb[0].mxu0 %v1200
      %v1287 = vpop.f32.mrb[0].mxu0
      %v1288 = vadd.f32 0.0, %v1287
      %v1289 = vpop.f32.mrb[0].mxu0
      %v1290 = vpop.f32.mrb[0].mxu0
      %v1291 = vadd.f32 0.0, %v1290
      %v1292 = vpop.f32.mrb[0].mxu0
      %1293 = vmatprep.mubr.bf16.mxu0 0
      %1294 = vmatmul.mubr.bf16.gmra.mrb[0].mxu0 %v1203
      %v1295 = vpop.f32.mrb[0].mxu0
      %v1296 = vadd.f32 0.0, %v1295
      %v1297 = vpop.f32.mrb[0].mxu0
      %v1298 = vpop.f32.mrb[0].mxu0
      %v1299 = vadd.f32 0.0, %v1298
      %v1300 = vpop.f32.mrb[0].mxu0
      %1301 = vmatprep.mubr.bf16.mxu0 0
      %1302 = vmatmul.mubr.bf16.gmra.mrb[0].mxu0 %v1206
      %v1303 = vpop.f32.mrb[0].mxu0
      %v1304 = vadd.f32 0.0, %v1303
      %v1305 = vpop.f32.mrb[0].mxu0
      %v1306 = vpop.f32.mrb[0].mxu0
      %v1307 = vadd.f32 0.0, %v1306
      %v1308 = vpop.f32.mrb[0].mxu0
      %1309 = vmatprep.mubr.bf16.mxu0 0
      %1310 = vmatmul.mubr.bf16.gmra.mrb[0].mxu0 %v1209
      %v1311 = vpop.f32.mrb[0].mxu0
      %v1312 = vadd.f32 0.0, %v1311
      %v1313 = vpop.f32.mrb[0].mxu0
      %v1314 = vpop.f32.mrb[0].mxu0
      %v1315 = vadd.f32 0.0, %v1314
      %v1316 = vpop.f32.mrb[0].mxu0
      %1317 = vmatprep.mubr.bf16.mxu0 0
      %1318 = vmatmul.mubr.bf16.gmra.mrb[0].mxu0 %v1212
      %v1319 = vpop.f32.mrb[0].mxu0
      %v1320 = vadd.f32 0.0, %v1319
      %v1321 = vpop.f32.mrb[0].mxu0
      %v1322 = vpop.f32.mrb[0].mxu0
      %v1323 = vadd.f32 0.0, %v1322
      %v1324 = vpop.f32.mrb[0].mxu0
      %1325 = vmatprep.mubr.bf16.mxu0 0
      %1326 = vmatmul.mubr.bf16.gmra.mrb[0].mxu0 %v1215
      %v1327 = vpop.f32.mrb[0].mxu0
      %v1328 = vadd.f32 0.0, %v1327
      %v1329 = vpop.f32.mrb[0].mxu0
      %v1330 = vpop.f32.mrb[0].mxu0
      %v1331 = vadd.f32 0.0, %v1330
      %v1332 = vpop.f32.mrb[0].mxu0
      %1333 = vmatprep.mubr.bf16.mxu0 0
      %1334 = vmatmul.mubr.bf16.gmra.mrb[0].mxu0 %v1218
      %v1335 = vpop.f32.mrb[0].mxu0
      %v1336 = vadd.f32 0.0, %v1335
      %v1337 = vpop.f32.mrb[0].mxu0
      %v1338 = vpop.f32.mrb[0].mxu0
      %v1339 = vadd.f32 0.0, %v1338
      %v1340 = vpop.f32.mrb[0].mxu0
      %1341 = vmatprep.mubr.bf16.mxu0 0
      %1342 = vmatmul.mubr.bf16.gmra.mrb[0].mxu0 %v1221
      %v1343 = vpop.f32.mrb[0].mxu0
      %v1344 = vadd.f32 0.0, %v1343
      %v1345 = vpop.f32.mrb[0].mxu0
      %v1346 = vpop.f32.mrb[0].mxu0
      %v1347 = vadd.f32 0.0, %v1346
      %v1348 = vpop.f32.mrb[0].mxu0
      %1349 = vmatprep.mubr.bf16.mxu0 0
      %1350 = vmatmul.mubr.bf16.gmra.mrb[0].mxu0 %v1224
      %v1351 = vpop.f32.mrb[0].mxu0
      %v1352 = vadd.f32 0.0, %v1351
      %v1353 = vpop.f32.mrb[0].mxu0
      %v1354 = vpop.f32.mrb[0].mxu0
      %v1355 = vadd.f32 0.0, %v1354
      %v1356 = vpop.f32.mrb[0].mxu0
      %1357 = vmatprep.mubr.bf16.mxu0 0
      %1358 = vmatmul.mubr.bf16.gmra.mrb[0].mxu0 %v1227
      %v1359 = vpop.f32.mrb[0].mxu0
      %v1360 = vadd.f32 0.0, %v1359
      %v1361 = vpop.f32.mrb[0].mxu0
      %v1362 = vpop.f32.mrb[0].mxu0
      %v1363 = vadd.f32 0.0, %v1362
      %v1364 = vpop.f32.mrb[0].mxu0
      %1365 = vmatprep.mubr.bf16.mxu0 0
      %1366 = vmatmul.mubr.bf16.gmra.mrb[0].mxu0 %v1230
      %v1367 = vpop.f32.mrb[0].mxu0
      %v1368 = vadd.f32 0.0, %v1367
      %v1369 = vpop.f32.mrb[0].mxu0
      %v1370 = vpop.f32.mrb[0].mxu0
      %v1371 = vadd.f32 0.0, %v1370
      %v1372 = vpop.f32.mrb[0].mxu0
      %1373 = vmatprep.mubr.bf16.mxu0 0
      %1374 = vmatmul.mubr.bf16.gmra.mrb[0].mxu0 %v1233
      %v1375 = vpop.f32.mrb[0].mxu0
      %v1376 = vadd.f32 0.0, %v1375
      %v1377 = vpop.f32.mrb[0].mxu0
      %v1378 = vpop.f32.mrb[0].mxu0
      %v1379 = vadd.f32 0.0, %v1378
      %v1380 = vpop.f32.mrb[0].mxu0
      %1381 = vmatprep.mubr.bf16.mxu0 0
      %1382 = vmatmul.mubr.bf16.gmra.mrb[0].mxu0 %v1236
      %v1383 = vpop.f32.mrb[0].mxu0
      %v1384 = vadd.f32 0.0, %v1383
      %v1385 = vpop.f32.mrb[0].mxu0
      %v1386 = vpop.f32.mrb[0].mxu0
      %v1387 = vadd.f32 0.0, %v1386
      %v1388 = vpop.f32.mrb[0].mxu0
      %1389 = vmatprep.mubr.bf16.mxu0 0
      %1390 = vmatmul.mubr.bf16.gmra.mrb[0].mxu0 %v1239
      %v1391 = vpop.f32.mrb[0].mxu0
      %v1392 = vadd.f32 0.0, %v1391
      %v1393 = vpop.f32.mrb[0].mxu0
      %v1394 = vpop.f32.mrb[0].mxu0
      %v1395 = vadd.f32 0.0, %v1394
      %v1396 = vpop.f32.mrb[0].mxu0
      %1397 = vmatprep.mubr.bf16.mxu0 0
      %1398 = vmatmul.mubr.bf16.gmra.mrb[0].mxu0 %v1242
      %v1399 = vpop.f32.mrb[0].mxu0
      %v1400 = vadd.f32 0.0, %v1399
      %v1401 = vpop.f32.mrb[0].mxu0
      %v1402 = vpop.f32.mrb[0].mxu0
      %v1403 = vadd.f32 0.0, %v1402
      %v1404 = vpop.f32.mrb[0].mxu0
      %1405 = vmatprep.mubr.bf16.mxu0 0
      %1406 = vmatmul.mubr.bf16.gmra.mrb[0].mxu0 %v1245
      %v1407 = vpop.f32.mrb[0].mxu0
      %v1408 = vadd.f32 0.0, %v1407
      %v1409 = vpop.f32.mrb[0].mxu0
      %v1410 = vpop.f32.mrb[0].mxu0
      %v1411 = vadd.f32 0.0, %v1410
      %v1412 = vpop.f32.mrb[0].mxu0
      %1413 = vmatprep.mubr.bf16.mxu0 0
      %1414 = vmatmul.mubr.bf16.gmra.mrb[0].mxu0 %v1248
      %v1415 = vpop.f32.mrb[0].mxu0
      %v1416 = vadd.f32 0.0, %v1415
      %v1417 = vpop.f32.mrb[0].mxu0
      %v1418 = vpop.f32.mrb[0].mxu0
      %v1419 = vadd.f32 0.0, %v1418
      %v1420 = vpop.f32.mrb[0].mxu0
      %1421 = vmatprep.mubr.bf16.mxu0 0
      %1422 = vmatmul.mubr.bf16.gmra.mrb[0].mxu0 %v1251
      %v1423 = vpop.f32.mrb[0].mxu0
      %v1424 = vadd.f32 0.0, %v1423
      %v1425 = vpop.f32.mrb[0].mxu0
      %v1426 = vpop.f32.mrb[0].mxu0
      %v1427 = vadd.f32 0.0, %v1426
      %v1428 = vpop.f32.mrb[0].mxu0
      %1429 = vdwg.mxu0
      %v1430 = vadd.f32 %v950, %v1288
      %v1431 = vadd.f32 %v953, %v1291
      %v1432 = vadd.f32 %v958, %v1296
      %v1433 = vadd.f32 %v961, %v1299
      %v1434 = vadd.f32 %v966, %v1304
      %v1435 = vadd.f32 %v969, %v1307
      %v1436 = vadd.f32 %v974, %v1312
      %v1437 = vadd.f32 %v977, %v1315
      %v1438 = vadd.f32 %v982, %v1320
      %v1439 = vadd.f32 %v985, %v1323
      %v1440 = vadd.f32 %v990, %v1328
      %v1441 = vadd.f32 %v993, %v1331
      %v1442 = vadd.f32 %v998, %v1336
      %v1443 = vadd.f32 %v1001, %v1339
      %v1444 = vadd.f32 %v1006, %v1344
      %v1445 = vadd.f32 %v1009, %v1347
      %v1446 = vadd.f32 %v1014, %v1352
      %v1447 = vadd.f32 %v1017, %v1355
      %v1448 = vadd.f32 %v1022, %v1360
      %v1449 = vadd.f32 %v1025, %v1363
      %v1450 = vadd.f32 %v1030, %v1368
      %v1451 = vadd.f32 %v1033, %v1371
      %v1452 = vadd.f32 %v1038, %v1376
      %v1453 = vadd.f32 %v1041, %v1379
      %v1454 = vadd.f32 %v1046, %v1384
      %v1455 = vadd.f32 %v1049, %v1387
      %v1456 = vadd.f32 %v1054, %v1392
      %v1457 = vadd.f32 %v1057, %v1395
      %v1458 = vadd.f32 %v1062, %v1400
      %v1459 = vadd.f32 %v1065, %v1403
      %v1460 = vadd.f32 %v1070, %v1408
      %v1461 = vadd.f32 %v1073, %v1411
      %v1462 = vadd.f32 %v1078, %v1416
      %v1463 = vadd.f32 %v1081, %v1419
      %v1464 = vadd.f32 %v1086, %v1424
      %v1465 = vadd.f32 %v1089, %v1427
      %v1466 = vld [vmem:[%s246 + $0xc] sm:$0x8]
      %v1467 = vld [vmem:[%s246 + $0x10] sm:$0xf]
      %v1468 = vld [vmem:[%s246 + $0x14] sm:$0xf]
      %v1469 = vld [vmem:[%s246 + $0x18] sm:$0xf]
      %v1470 = vld [vmem:[%s246 + $0x1c] sm:$0xf]
      %v1471 = vld [vmem:[%s246 + $0x20] sm:$0xf]
      %v1472 = vld [vmem:[%s246 + $0x24] sm:$0xf]
      %v1473 = vld [vmem:[%s246 + $0x28] sm:$0xf]
      %v1474 = vld [vmem:[%s246 + $0x2c] sm:$0xf]
      %v1475 = vld [vmem:[%s246 + $0x30] sm:$0xf]
      %v1476 = vld [vmem:[%s246 + $0x34] sm:$0xf]
      %v1477 = vld [vmem:[%s246 + $0x38] sm:$0xf]
      %v1478 = vld [vmem:[%s246 + $0x3c] sm:$0xf]
      %v1479 = vld [vmem:[%s246 + $0x40] sm:$0xf]
      %v1480 = vld [vmem:[%s246 + $0x44] sm:$0xf]
      %v1481 = vld [vmem:[%s246 + $0x48] sm:$0xf]
      %v1482 = vld [vmem:[%s246 + $0x4c] sm:$0xf]
      %v1483 = vld [vmem:[%s246 + $0x50] sm:$0xf]
      %v1484 = vld [vmem:[%s246 + $0x54] sm:$0xf]
      %v1485 = vld [vmem:[%s246 + $0x58] sm:$0xf]
      %v1486 = vld [vmem:[%s246 + $0x5c] sm:$0xf]
      %v1487 = vld [vmem:[%s246 + $0x60] sm:$0xf]
      %v1488 = vld [vmem:[%s246 + $0x64] sm:$0xf]
      %v1489 = vld [vmem:[%s246 + $0x68] sm:$0xf]
      %v1490 = vld [vmem:[%s246 + $0x6c] sm:$0xf]
      %v1491 = vld [vmem:[%s246 + $0x70] sm:$0xf]
      %v1492 = vld [vmem:[%s246 + $0x74] sm:$0xf]
      %v1493 = vld [vmem:[%s246 + $0x78] sm:$0xf]
      %v1494 = vld [vmem:[%s246 + $0x7c] sm:$0xf]
      %v1495 = vld [vmem:[%s246 + $0x80] sm:$0xf]
      %v1496 = vld [vmem:[%s246 + $0x84] sm:$0xf]
      %v1497 = vld [vmem:[%s246 + $0x88] sm:$0xf]
      %v1498 = vld [vmem:[%s246 + $0x8c] sm:$0xf]
      %v1499 = vld [vmem:[%s246 + $0x90] sm:$0xf]
      %v1500 = vld [vmem:[%s246 + $0x94] sm:$0xf]
      %v1501 = vld [vmem:[%s246 + $0x98] sm:$0xf]
      %v1502 = vld [vmem:[%s246 + $0x9c] sm:$0xf]
      %s1503 = scalar_lea.vmem %s1, 48
      %v1504 = vld [vmem:[%s1503] sm:$0xf]
      %v1505 = vld [vmem:[%s1503 + $0x4] sm:$0xf]
      %v1506 = vld [vmem:[%s1503 + $0x8] sm:$0xf]
      %v1507 = vld [vmem:[%s1503 + $0xc] sm:$0xf]
      %v1545 = vunpack.c.l.b16 %v1466
      %v1546 = vunpack.c.l.b16 %v1467
      %v1547 = vunpack.c.l.b16 %v1468
      %v1548 = vunpack.c.l.b16 %v1469
      %v1549 = vunpack.c.l.b16 %v1470
      %v1550 = vunpack.c.l.b16 %v1471
      %v1551 = vunpack.c.l.b16 %v1472
      %v1552 = vunpack.c.l.b16 %v1473
      %v1553 = vunpack.c.l.b16 %v1474
      %v1554 = vunpack.c.l.b16 %v1475
      %v1555 = vunpack.c.l.b16 %v1476
      %v1556 = vunpack.c.l.b16 %v1477
      %v1557 = vunpack.c.l.b16 %v1478
      %v1558 = vunpack.c.l.b16 %v1479
      %v1559 = vunpack.c.l.b16 %v1480
      %v1560 = vunpack.c.l.b16 %v1481
      %v1561 = vunpack.c.l.b16 %v1482
      %v1562 = vunpack.c.l.b16 %v1483
      %v1563 = vunpack.c.l.b16 %v1484
      %v1564 = vunpack.c.l.b16 %v1485
      %v1565 = vunpack.c.l.b16 %v1486
      %v1566 = vunpack.c.l.b16 %v1487
      %v1567 = vunpack.c.l.b16 %v1488
      %v1568 = vunpack.c.l.b16 %v1489
      %v1569 = vunpack.c.l.b16 %v1490
      %v1570 = vunpack.c.l.b16 %v1491
      %v1571 = vunpack.c.l.b16 %v1492
      %v1572 = vunpack.c.l.b16 %v1493
      %v1573 = vunpack.c.l.b16 %v1494
      %v1574 = vunpack.c.l.b16 %v1495
      %v1575 = vunpack.c.l.b16 %v1496
      %v1576 = vunpack.c.l.b16 %v1497
      %v1577 = vunpack.c.l.b16 %v1498
      %v1578 = vunpack.c.l.b16 %v1499
      %v1579 = vunpack.c.l.b16 %v1500
      %v1580 = vunpack.c.l.b16 %v1501
      %v1581 = vunpack.c.l.b16 %v1502
      %v1582 = vpack.c.b16 %v1546, %v1545
      %v1583 = vpack.c.b16 %v1548, %v1547
      %v1584 = vpack.c.b16 %v1550, %v1549
      %v1585 = vpack.c.b16 %v1552, %v1551
      %v1586 = vpack.c.b16 %v1554, %v1553
      %v1587 = vpack.c.b16 %v1556, %v1555
      %v1588 = vpack.c.b16 %v1558, %v1557
      %v1589 = vpack.c.b16 %v1560, %v1559
      %v1590 = vpack.c.b16 %v1562, %v1561
      %v1591 = vpack.c.b16 %v1564, %v1563
      %v1592 = vpack.c.b16 %v1566, %v1565
      %v1593 = vpack.c.b16 %v1568, %v1567
      %v1594 = vpack.c.b16 %v1570, %v1569
      %v1595 = vpack.c.b16 %v1572, %v1571
      %v1596 = vpack.c.b16 %v1574, %v1573
      %v1597 = vpack.c.b16 %v1576, %v1575
      %v1598 = vpack.c.b16 %v1578, %v1577
      %v1599 = vpack.c.b16 %v1580, %v1579
      %v1600 = vpack.c.b16 %v1581, %v1581
      %v1602 = vshrl.u32 %v1582, 16
      %v1604 = vrot.slane %v1602, 3
      %v1605 = vshll.u32 %v1582, 16
      %v1607 = vrot.slane %v1605, 4
      %v1608 = vor.u32 %v1604, %v1607
      %v1610 = vshrl.u32 %v1583, 16
      %v1612 = vrot.slane %v1610, 3
      %v1613 = vshll.u32 %v1583, 16
      %v1615 = vrot.slane %v1613, 4
      %v1616 = vor.u32 %v1612, %v1615
      %v1617 = vsel %vm1101, %v1608, %v1616
      %v1619 = vshrl.u32 %v1584, 16
      %v1621 = vrot.slane %v1619, 3
      %v1622 = vshll.u32 %v1584, 16
      %v1624 = vrot.slane %v1622, 4
      %v1625 = vor.u32 %v1621, %v1624
      %v1626 = vsel %vm1101, %v1616, %v1625
      %v1628 = vshrl.u32 %v1585, 16
      %v1630 = vrot.slane %v1628, 3
      %v1631 = vshll.u32 %v1585, 16
      %v1633 = vrot.slane %v1631, 4
      %v1634 = vor.u32 %v1630, %v1633
      %v1635 = vsel %vm1101, %v1625, %v1634
      %v1637 = vshrl.u32 %v1586, 16
      %v1639 = vrot.slane %v1637, 3
      %v1640 = vshll.u32 %v1586, 16
      %v1642 = vrot.slane %v1640, 4
      %v1643 = vor.u32 %v1639, %v1642
      %v1644 = vsel %vm1101, %v1634, %v1643
      %v1646 = vshrl.u32 %v1587, 16
      %v1648 = vrot.slane %v1646, 3
      %v1649 = vshll.u32 %v1587, 16
      %v1651 = vrot.slane %v1649, 4
      %v1652 = vor.u32 %v1648, %v1651
      %v1653 = vsel %vm1101, %v1643, %v1652
      %v1655 = vshrl.u32 %v1588, 16
      %v1657 = vrot.slane %v1655, 3
      %v1658 = vshll.u32 %v1588, 16
      %v1660 = vrot.slane %v1658, 4
      %v1661 = vor.u32 %v1657, %v1660
      %v1662 = vsel %vm1101, %v1652, %v1661
      %v1664 = vshrl.u32 %v1589, 16
      %v1666 = vrot.slane %v1664, 3
      %v1667 = vshll.u32 %v1589, 16
      %v1669 = vrot.slane %v1667, 4
      %v1670 = vor.u32 %v1666, %v1669
      %v1671 = vsel %vm1101, %v1661, %v1670
      %v1673 = vshrl.u32 %v1590, 16
      %v1675 = vrot.slane %v1673, 3
      %v1676 = vshll.u32 %v1590, 16
      %v1678 = vrot.slane %v1676, 4
      %v1679 = vor.u32 %v1675, %v1678
      %v1680 = vsel %vm1101, %v1670, %v1679
      %v1682 = vshrl.u32 %v1591, 16
      %v1684 = vrot.slane %v1682, 3
      %v1685 = vshll.u32 %v1591, 16
      %v1687 = vrot.slane %v1685, 4
      %v1688 = vor.u32 %v1684, %v1687
      %v1689 = vsel %vm1101, %v1679, %v1688
      %v1691 = vshrl.u32 %v1592, 16
      %v1693 = vrot.slane %v1691, 3
      %v1694 = vshll.u32 %v1592, 16
      %v1696 = vrot.slane %v1694, 4
      %v1697 = vor.u32 %v1693, %v1696
      %v1698 = vsel %vm1101, %v1688, %v1697
      %v1700 = vshrl.u32 %v1593, 16
      %v1702 = vrot.slane %v1700, 3
      %v1703 = vshll.u32 %v1593, 16
      %v1705 = vrot.slane %v1703, 4
      %v1706 = vor.u32 %v1702, %v1705
      %v1707 = vsel %vm1101, %v1697, %v1706
      %v1709 = vshrl.u32 %v1594, 16
      %v1711 = vrot.slane %v1709, 3
      %v1712 = vshll.u32 %v1594, 16
      %v1714 = vrot.slane %v1712, 4
      %v1715 = vor.u32 %v1711, %v1714
      %v1716 = vsel %vm1101, %v1706, %v1715
      %v1718 = vshrl.u32 %v1595, 16
      %v1720 = vrot.slane %v1718, 3
      %v1721 = vshll.u32 %v1595, 16
      %v1723 = vrot.slane %v1721, 4
      %v1724 = vor.u32 %v1720, %v1723
      %v1725 = vsel %vm1101, %v1715, %v1724
      %v1727 = vshrl.u32 %v1596, 16
      %v1729 = vrot.slane %v1727, 3
      %v1730 = vshll.u32 %v1596, 16
      %v1732 = vrot.slane %v1730, 4
      %v1733 = vor.u32 %v1729, %v1732
      %v1734 = vsel %vm1101, %v1724, %v1733
      %v1736 = vshrl.u32 %v1597, 16
      %v1738 = vrot.slane %v1736, 3
      %v1739 = vshll.u32 %v1597, 16
      %v1741 = vrot.slane %v1739, 4
      %v1742 = vor.u32 %v1738, %v1741
      %v1743 = vsel %vm1101, %v1733, %v1742
      %v1745 = vshrl.u32 %v1598, 16
      %v1747 = vrot.slane %v1745, 3
      %v1748 = vshll.u32 %v1598, 16
      %v1750 = vrot.slane %v1748, 4
      %v1751 = vor.u32 %v1747, %v1750
      %v1752 = vsel %vm1101, %v1742, %v1751
      %v1754 = vshrl.u32 %v1599, 16
      %v1756 = vrot.slane %v1754, 3
      %v1757 = vshll.u32 %v1599, 16
      %v1759 = vrot.slane %v1757, 4
      %v1760 = vor.u32 %v1756, %v1759
      %v1761 = vsel %vm1101, %v1751, %v1760
      %v1763 = vshrl.u32 %v1600, 16
      %v1765 = vrot.slane %v1763, 3
      %v1766 = vshll.u32 %v1600, 16
      %v1768 = vrot.slane %v1766, 4
      %v1769 = vor.u32 %v1765, %v1768
      %v1770 = vsel %vm1101, %v1760, %v1769
      %v1775 = vunpack.c.l.b16 %v1504
      %v1776 = vunpack.c.l.b16 %v1505
      %v1777 = vunpack.c.l.b16 %v1506
      %v1778 = vunpack.c.l.b16 %v1507
      %v1779 = vpack.c.b16 %v1776, %v1775
      %v1780 = vpack.c.b16 %v1778, %v1777
      %v1784 = vsel %vm443, %v1617, 0
      %v1787 = vsel %vm443, %v1626, 0
      %v1790 = vsel %vm443, %v1635, 0
      %v1793 = vsel %vm443, %v1644, 0
      %v1796 = vsel %vm443, %v1653, 0
      %v1799 = vsel %vm443, %v1662, 0
      %v1802 = vsel %vm443, %v1671, 0
      %v1805 = vsel %vm443, %v1680, 0
      %v1808 = vsel %vm443, %v1689, 0
      %v1811 = vsel %vm443, %v1698, 0
      %v1814 = vsel %vm443, %v1707, 0
      %v1817 = vsel %vm443, %v1716, 0
      %v1820 = vsel %vm443, %v1725, 0
      %v1823 = vsel %vm443, %v1734, 0
      %v1826 = vsel %vm443, %v1743, 0
      %v1829 = vsel %vm443, %v1752, 0
      %v1832 = vsel %vm443, %v1761, 0
      %v1835 = vsel %vm443, %v1770, 0
      %1837 = vmatprep.subr.bf16.mxu0 0
      %1838 = vmatpush1.bf16.msra.mxu0 %v1779
      %1839 = vmatprep.subr.bf16.mxu0 0
      %1840 = vmatpush1.bf16.msra.mxu0 %v1780
      %1841 = vmatprep.subr.bf16.mxu0 0
      %1842 = vmatpush1.bf16.msra.mxu0 0
      %1843 = vmatprep.subr.bf16.mxu0 0
      %1844 = vmatpush1.bf16.msra.mxu0 0
      %1845 = vmatprep.subr.bf16.mxu0 0
      %1846 = vmatpush1.bf16.msra.mxu0 0
      %1847 = vmatprep.subr.bf16.mxu0 0
      %1848 = vmatpush1.bf16.msra.mxu0 0
      %1849 = vmatprep.subr.bf16.mxu0 0
      %1850 = vmatpush1.bf16.msra.mxu0 0
      %1851 = vmatprep.subr.bf16.mxu0 0
      %1852 = vmatpush1.bf16.msra.mxu0 0
      %1853 = vmatprep.subr.bf16.mxu0 0
      %1854 = vmatpush1.bf16.msra.mxu0 0
      %1855 = vmatprep.subr.bf16.mxu0 0
      %1856 = vmatpush1.bf16.msra.mxu0 0
      %1857 = vmatprep.subr.bf16.mxu0 0
      %1858 = vmatpush1.bf16.msra.mxu0 0
      %1859 = vmatprep.subr.bf16.mxu0 0
      %1860 = vmatpush1.bf16.msra.mxu0 0
      %1861 = vmatprep.subr.bf16.mxu0 0
      %1862 = vmatpush1.bf16.msra.mxu0 0
      %1863 = vmatprep.subr.bf16.mxu0 0
      %1864 = vmatpush1.bf16.msra.mxu0 0
      %1865 = vmatprep.subr.bf16.mxu0 0
      %1866 = vmatpush1.bf16.msra.mxu0 0
      %1867 = vmatprep.subr.bf16.mxu0 0
      %1868 = vmatpush1.bf16.msra.mxu0 0
      %1869 = vmatprep.mubr.bf16.mxu0 0
      %1870 = vmatmul.mubr.bf16.gmra.mrb[0].mxu0 %v1784
      %v1871 = vpop.f32.mrb[0].mxu0
      %v1872 = vadd.f32 0.0, %v1871
      %v1873 = vpop.f32.mrb[0].mxu0
      %v1874 = vpop.f32.mrb[0].mxu0
      %v1875 = vadd.f32 0.0, %v1874
      %v1876 = vpop.f32.mrb[0].mxu0
      %1877 = vmatprep.mubr.bf16.mxu0 0
      %1878 = vmatmul.mubr.bf16.gmra.mrb[0].mxu0 %v1787
      %v1879 = vpop.f32.mrb[0].mxu0
      %v1880 = vadd.f32 0.0, %v1879
      %v1881 = vpop.f32.mrb[0].mxu0
      %v1882 = vpop.f32.mrb[0].mxu0
      %v1883 = vadd.f32 0.0, %v1882
      %v1884 = vpop.f32.mrb[0].mxu0
      %1885 = vmatprep.mubr.bf16.mxu0 0
      %1886 = vmatmul.mubr.bf16.gmra.mrb[0].mxu0 %v1790
      %v1887 = vpop.f32.mrb[0].mxu0
      %v1888 = vadd.f32 0.0, %v1887
      %v1889 = vpop.f32.mrb[0].mxu0
      %v1890 = vpop.f32.mrb[0].mxu0
      %v1891 = vadd.f32 0.0, %v1890
      %v1892 = vpop.f32.mrb[0].mxu0
      %1893 = vmatprep.mubr.bf16.mxu0 0
      %1894 = vmatmul.mubr.bf16.gmra.mrb[0].mxu0 %v1793
      %v1895 = vpop.f32.mrb[0].mxu0
      %v1896 = vadd.f32 0.0, %v1895
      %v1897 = vpop.f32.mrb[0].mxu0
      %v1898 = vpop.f32.mrb[0].mxu0
      %v1899 = vadd.f32 0.0, %v1898
      %v1900 = vpop.f32.mrb[0].mxu0
      %1901 = vmatprep.mubr.bf16.mxu0 0
      %1902 = vmatmul.mubr.bf16.gmra.mrb[0].mxu0 %v1796
      %v1903 = vpop.f32.mrb[0].mxu0
      %v1904 = vadd.f32 0.0, %v1903
      %v1905 = vpop.f32.mrb[0].mxu0
      %v1906 = vpop.f32.mrb[0].mxu0
      %v1907 = vadd.f32 0.0, %v1906
      %v1908 = vpop.f32.mrb[0].mxu0
      %1909 = vmatprep.mubr.bf16.mxu0 0
      %1910 = vmatmul.mubr.bf16.gmra.mrb[0].mxu0 %v1799
      %v1911 = vpop.f32.mrb[0].mxu0
      %v1912 = vadd.f32 0.0, %v1911
      %v1913 = vpop.f32.mrb[0].mxu0
      %v1914 = vpop.f32.mrb[0].mxu0
      %v1915 = vadd.f32 0.0, %v1914
      %v1916 = vpop.f32.mrb[0].mxu0
      %1917 = vmatprep.mubr.bf16.mxu0 0
      %1918 = vmatmul.mubr.bf16.gmra.mrb[0].mxu0 %v1802
      %v1919 = vpop.f32.mrb[0].mxu0
      %v1920 = vadd.f32 0.0, %v1919
      %v1921 = vpop.f32.mrb[0].mxu0
      %v1922 = vpop.f32.mrb[0].mxu0
      %v1923 = vadd.f32 0.0, %v1922
      %v1924 = vpop.f32.mrb[0].mxu0
      %1925 = vmatprep.mubr.bf16.mxu0 0
      %1926 = vmatmul.mubr.bf16.gmra.mrb[0].mxu0 %v1805
      %v1927 = vpop.f32.mrb[0].mxu0
      %v1928 = vadd.f32 0.0, %v1927
      %v1929 = vpop.f32.mrb[0].mxu0
      %v1930 = vpop.f32.mrb[0].mxu0
      %v1931 = vadd.f32 0.0, %v1930
      %v1932 = vpop.f32.mrb[0].mxu0
      %1933 = vmatprep.mubr.bf16.mxu0 0
      %1934 = vmatmul.mubr.bf16.gmra.mrb[0].mxu0 %v1808
      %v1935 = vpop.f32.mrb[0].mxu0
      %v1936 = vadd.f32 0.0, %v1935
      %v1937 = vpop.f32.mrb[0].mxu0
      %v1938 = vpop.f32.mrb[0].mxu0
      %v1939 = vadd.f32 0.0, %v1938
      %v1940 = vpop.f32.mrb[0].mxu0
      %1941 = vmatprep.mubr.bf16.mxu0 0
      %1942 = vmatmul.mubr.bf16.gmra.mrb[0].mxu0 %v1811
      %v1943 = vpop.f32.mrb[0].mxu0
      %v1944 = vadd.f32 0.0, %v1943
      %v1945 = vpop.f32.mrb[0].mxu0
      %v1946 = vpop.f32.mrb[0].mxu0
      %v1947 = vadd.f32 0.0, %v1946
      %v1948 = vpop.f32.mrb[0].mxu0
      %1949 = vmatprep.mubr.bf16.mxu0 0
      %1950 = vmatmul.mubr.bf16.gmra.mrb[0].mxu0 %v1814
      %v1951 = vpop.f32.mrb[0].mxu0
      %v1952 = vadd.f32 0.0, %v1951
      %v1953 = vpop.f32.mrb[0].mxu0
      %v1954 = vpop.f32.mrb[0].mxu0
      %v1955 = vadd.f32 0.0, %v1954
      %v1956 = vpop.f32.mrb[0].mxu0
      %1957 = vmatprep.mubr.bf16.mxu0 0
      %1958 = vmatmul.mubr.bf16.gmra.mrb[0].mxu0 %v1817
      %v1959 = vpop.f32.mrb[0].mxu0
      %v1960 = vadd.f32 0.0, %v1959
      %v1961 = vpop.f32.mrb[0].mxu0
      %v1962 = vpop.f32.mrb[0].mxu0
      %v1963 = vadd.f32 0.0, %v1962
      %v1964 = vpop.f32.mrb[0].mxu0
      %1965 = vmatprep.mubr.bf16.mxu0 0
      %1966 = vmatmul.mubr.bf16.gmra.mrb[0].mxu0 %v1820
      %v1967 = vpop.f32.mrb[0].mxu0
      %v1968 = vadd.f32 0.0, %v1967
      %v1969 = vpop.f32.mrb[0].mxu0
      %v1970 = vpop.f32.mrb[0].mxu0
      %v1971 = vadd.f32 0.0, %v1970
      %v1972 = vpop.f32.mrb[0].mxu0
      %1973 = vmatprep.mubr.bf16.mxu0 0
      %1974 = vmatmul.mubr.bf16.gmra.mrb[0].mxu0 %v1823
      %v1975 = vpop.f32.mrb[0].mxu0
      %v1976 = vadd.f32 0.0, %v1975
      %v1977 = vpop.f32.mrb[0].mxu0
      %v1978 = vpop.f32.mrb[0].mxu0
      %v1979 = vadd.f32 0.0, %v1978
      %v1980 = vpop.f32.mrb[0].mxu0
      %1981 = vmatprep.mubr.bf16.mxu0 0
      %1982 = vmatmul.mubr.bf16.gmra.mrb[0].mxu0 %v1826
      %v1983 = vpop.f32.mrb[0].mxu0
      %v1984 = vadd.f32 0.0, %v1983
      %v1985 = vpop.f32.mrb[0].mxu0
      %v1986 = vpop.f32.mrb[0].mxu0
      %v1987 = vadd.f32 0.0, %v1986
      %v1988 = vpop.f32.mrb[0].mxu0
      %1989 = vmatprep.mubr.bf16.mxu0 0
      %1990 = vmatmul.mubr.bf16.gmra.mrb[0].mxu0 %v1829
      %v1991 = vpop.f32.mrb[0].mxu0
      %v1992 = vadd.f32 0.0, %v1991
      %v1993 = vpop.f32.mrb[0].mxu0
      %v1994 = vpop.f32.mrb[0].mxu0
      %v1995 = vadd.f32 0.0, %v1994
      %v1996 = vpop.f32.mrb[0].mxu0
      %1997 = vmatprep.mubr.bf16.mxu0 0
      %1998 = vmatmul.mubr.bf16.gmra.mrb[0].mxu0 %v1832
      %v1999 = vpop.f32.mrb[0].mxu0
      %v2000 = vadd.f32 0.0, %v1999
      %v2001 = vpop.f32.mrb[0].mxu0
      %v2002 = vpop.f32.mrb[0].mxu0
      %v2003 = vadd.f32 0.0, %v2002
      %v2004 = vpop.f32.mrb[0].mxu0
      %2005 = vmatprep.mubr.bf16.mxu0 0
      %2006 = vmatmul.mubr.bf16.gmra.mrb[0].mxu0 %v1835
      %v2007 = vpop.f32.mrb[0].mxu0
      %v2008 = vadd.f32 0.0, %v2007
      %v2009 = vpop.f32.mrb[0].mxu0
      %v2010 = vpop.f32.mrb[0].mxu0
      %v2011 = vadd.f32 0.0, %v2010
      %v2012 = vpop.f32.mrb[0].mxu0
      %2013 = vdwg.mxu0
      %v2014 = vadd.f32 %v1430, %v1872
      %v2015 = vadd.f32 %v1431, %v1875
      %v2016 = vadd.f32 %v1432, %v1880
      %v2017 = vadd.f32 %v1433, %v1883
      %v2018 = vadd.f32 %v1434, %v1888
      %v2019 = vadd.f32 %v1435, %v1891
      %v2020 = vadd.f32 %v1436, %v1896
      %v2021 = vadd.f32 %v1437, %v1899
      %v2022 = vadd.f32 %v1438, %v1904
      %v2023 = vadd.f32 %v1439, %v1907
      %v2024 = vadd.f32 %v1440, %v1912
      %v2025 = vadd.f32 %v1441, %v1915
      %v2026 = vadd.f32 %v1442, %v1920
      %v2027 = vadd.f32 %v1443, %v1923
      %v2028 = vadd.f32 %v1444, %v1928
      %v2029 = vadd.f32 %v1445, %v1931
      %v2030 = vadd.f32 %v1446, %v1936
      %v2031 = vadd.f32 %v1447, %v1939
      %v2032 = vadd.f32 %v1448, %v1944
      %v2033 = vadd.f32 %v1449, %v1947
      %v2034 = vadd.f32 %v1450, %v1952
      %v2035 = vadd.f32 %v1451, %v1955
      %v2036 = vadd.f32 %v1452, %v1960
      %v2037 = vadd.f32 %v1453, %v1963
      %v2038 = vadd.f32 %v1454, %v1968
      %v2039 = vadd.f32 %v1455, %v1971
      %v2040 = vadd.f32 %v1456, %v1976
      %v2041 = vadd.f32 %v1457, %v1979
      %v2042 = vadd.f32 %v1458, %v1984
      %v2043 = vadd.f32 %v1459, %v1987
      %v2044 = vadd.f32 %v1460, %v1992
      %v2045 = vadd.f32 %v1461, %v1995
      %v2046 = vadd.f32 %v1462, %v2000
      %v2047 = vadd.f32 %v1463, %v2003
      %v2048 = vadd.f32 %v1464, %v2008
      %v2049 = vadd.f32 %v1465, %v2011
      %s2050 = scalar_lea.vmem %s1, 64
      %v2051 = vld [vmem:[%s2050] sm:$0xf]
      %v2052 = vld [vmem:[%s2050 + $0x4] sm:$0xf]
      %v2053 = vld [vmem:[%s2050 + $0x8] sm:$0xf]
      %v2054 = vld [vmem:[%s2050 + $0xc] sm:$0xf]
      %v2055 = vpack.c.b16 %v1547, %v1546
      %v2056 = vpack.c.b16 %v1549, %v1548
      %v2057 = vpack.c.b16 %v1551, %v1550
      %v2058 = vpack.c.b16 %v1553, %v1552
      %v2059 = vpack.c.b16 %v1555, %v1554
      %v2060 = vpack.c.b16 %v1557, %v1556
      %v2061 = vpack.c.b16 %v1559, %v1558
      %v2062 = vpack.c.b16 %v1561, %v1560
      %v2063 = vpack.c.b16 %v1563, %v1562
      %v2064 = vpack.c.b16 %v1565, %v1564
      %v2065 = vpack.c.b16 %v1567, %v1566
      %v2066 = vpack.c.b16 %v1569, %v1568
      %v2067 = vpack.c.b16 %v1571, %v1570
      %v2068 = vpack.c.b16 %v1573, %v1572
      %v2069 = vpack.c.b16 %v1575, %v1574
      %v2070 = vpack.c.b16 %v1577, %v1576
      %v2071 = vpack.c.b16 %v1579, %v1578
      %v2072 = vpack.c.b16 %v1581, %v1580
      %v2077 = vunpack.c.l.b16 %v2051
      %v2078 = vunpack.c.l.b16 %v2052
      %v2079 = vunpack.c.l.b16 %v2053
      %v2080 = vunpack.c.l.b16 %v2054
      %v2081 = vpack.c.b16 %v2078, %v2077
      %v2082 = vpack.c.b16 %v2080, %v2079
      %v2086 = vsel %vm443, %v2055, 0
      %v2089 = vsel %vm443, %v2056, 0
      %v2092 = vsel %vm443, %v2057, 0
      %v2095 = vsel %vm443, %v2058, 0
      %v2098 = vsel %vm443, %v2059, 0
      %v2101 = vsel %vm443, %v2060, 0
      %v2104 = vsel %vm443, %v2061, 0
      %v2107 = vsel %vm443, %v2062, 0
      %v2110 = vsel %vm443, %v2063, 0
      %v2113 = vsel %vm443, %v2064, 0
      %v2116 = vsel %vm443, %v2065, 0
      %v2119 = vsel %vm443, %v2066, 0
      %v2122 = vsel %vm443, %v2067, 0
      %v2125 = vsel %vm443, %v2068, 0
      %v2128 = vsel %vm443, %v2069, 0
      %v2131 = vsel %vm443, %v2070, 0
      %v2134 = vsel %vm443, %v2071, 0
      %v2137 = vsel %vm443, %v2072, 0
      %2139 = vmatprep.subr.bf16.mxu0 0
      %2140 = vmatpush1.bf16.msra.mxu0 %v2081
      %2141 = vmatprep.subr.bf16.mxu0 0
      %2142 = vmatpush1.bf16.msra.mxu0 %v2082
      %2143 = vmatprep.subr.bf16.mxu0 0
      %2144 = vmatpush1.bf16.msra.mxu0 0
      %2145 = vmatprep.subr.bf16.mxu0 0
      %2146 = vmatpush1.bf16.msra.mxu0 0
      %2147 = vmatprep.subr.bf16.mxu0 0
      %2148 = vmatpush1.bf16.msra.mxu0 0
      %2149 = vmatprep.subr.bf16.mxu0 0
      %2150 = vmatpush1.bf16.msra.mxu0 0
      %2151 = vmatprep.subr.bf16.mxu0 0
      %2152 = vmatpush1.bf16.msra.mxu0 0
      %2153 = vmatprep.subr.bf16.mxu0 0
      %2154 = vmatpush1.bf16.msra.mxu0 0
      %2155 = vmatprep.subr.bf16.mxu0 0
      %2156 = vmatpush1.bf16.msra.mxu0 0
      %2157 = vmatprep.subr.bf16.mxu0 0
      %2158 = vmatpush1.bf16.msra.mxu0 0
      %2159 = vmatprep.subr.bf16.mxu0 0
      %2160 = vmatpush1.bf16.msra.mxu0 0
      %2161 = vmatprep.subr.bf16.mxu0 0
      %2162 = vmatpush1.bf16.msra.mxu0 0
      %2163 = vmatprep.subr.bf16.mxu0 0
      %2164 = vmatpush1.bf16.msra.mxu0 0
      %2165 = vmatprep.subr.bf16.mxu0 0
      %2166 = vmatpush1.bf16.msra.mxu0 0
      %2167 = vmatprep.subr.bf16.mxu0 0
      %2168 = vmatpush1.bf16.msra.mxu0 0
      %2169 = vmatprep.subr.bf16.mxu0 0
      %2170 = vmatpush1.bf16.msra.mxu0 0
      %2171 = vmatprep.mubr.bf16.mxu0 0
      %2172 = vmatmul.mubr.bf16.gmra.mrb[0].mxu0 %v2086
      %v2173 = vpop.f32.mrb[0].mxu0
      %v2174 = vadd.f32 0.0, %v2173
      %v2175 = vpop.f32.mrb[0].mxu0
      %v2176 = vpop.f32.mrb[0].mxu0
      %v2177 = vadd.f32 0.0, %v2176
      %v2178 = vpop.f32.mrb[0].mxu0
      %2179 = vmatprep.mubr.bf16.mxu0 0
      %2180 = vmatmul.mubr.bf16.gmra.mrb[0].mxu0 %v2089
      %v2181 = vpop.f32.mrb[0].mxu0
      %v2182 = vadd.f32 0.0, %v2181
      %v2183 = vpop.f32.mrb[0].mxu0
      %v2184 = vpop.f32.mrb[0].mxu0
      %v2185 = vadd.f32 0.0, %v2184
      %v2186 = vpop.f32.mrb[0].mxu0
      %2187 = vmatprep.mubr.bf16.mxu0 0
      %2188 = vmatmul.mubr.bf16.gmra.mrb[0].mxu0 %v2092
      %v2189 = vpop.f32.mrb[0].mxu0
      %v2190 = vadd.f32 0.0, %v2189
      %v2191 = vpop.f32.mrb[0].mxu0
      %v2192 = vpop.f32.mrb[0].mxu0
      %v2193 = vadd.f32 0.0, %v2192
      %v2194 = vpop.f32.mrb[0].mxu0
      %2195 = vmatprep.mubr.bf16.mxu0 0
      %2196 = vmatmul.mubr.bf16.gmra.mrb[0].mxu0 %v2095
      %v2197 = vpop.f32.mrb[0].mxu0
      %v2198 = vadd.f32 0.0, %v2197
      %v2199 = vpop.f32.mrb[0].mxu0
      %v2200 = vpop.f32.mrb[0].mxu0
      %v2201 = vadd.f32 0.0, %v2200
      %v2202 = vpop.f32.mrb[0].mxu0
      %2203 = vmatprep.mubr.bf16.mxu0 0
      %2204 = vmatmul.mubr.bf16.gmra.mrb[0].mxu0 %v2098
      %v2205 = vpop.f32.mrb[0].mxu0
      %v2206 = vadd.f32 0.0, %v2205
      %v2207 = vpop.f32.mrb[0].mxu0
      %v2208 = vpop.f32.mrb[0].mxu0
      %v2209 = vadd.f32 0.0, %v2208
      %v2210 = vpop.f32.mrb[0].mxu0
      %2211 = vmatprep.mubr.bf16.mxu0 0
      %2212 = vmatmul.mubr.bf16.gmra.mrb[0].mxu0 %v2101
      %v2213 = vpop.f32.mrb[0].mxu0
      %v2214 = vadd.f32 0.0, %v2213
      %v2215 = vpop.f32.mrb[0].mxu0
      %v2216 = vpop.f32.mrb[0].mxu0
      %v2217 = vadd.f32 0.0, %v2216
      %v2218 = vpop.f32.mrb[0].mxu0
      %2219 = vmatprep.mubr.bf16.mxu0 0
      %2220 = vmatmul.mubr.bf16.gmra.mrb[0].mxu0 %v2104
      %v2221 = vpop.f32.mrb[0].mxu0
      %v2222 = vadd.f32 0.0, %v2221
      %v2223 = vpop.f32.mrb[0].mxu0
      %v2224 = vpop.f32.mrb[0].mxu0
      %v2225 = vadd.f32 0.0, %v2224
      %v2226 = vpop.f32.mrb[0].mxu0
      %2227 = vmatprep.mubr.bf16.mxu0 0
      %2228 = vmatmul.mubr.bf16.gmra.mrb[0].mxu0 %v2107
      %v2229 = vpop.f32.mrb[0].mxu0
      %v2230 = vadd.f32 0.0, %v2229
      %v2231 = vpop.f32.mrb[0].mxu0
      %v2232 = vpop.f32.mrb[0].mxu0
      %v2233 = vadd.f32 0.0, %v2232
      %v2234 = vpop.f32.mrb[0].mxu0
      %2235 = vmatprep.mubr.bf16.mxu0 0
      %2236 = vmatmul.mubr.bf16.gmra.mrb[0].mxu0 %v2110
      %v2237 = vpop.f32.mrb[0].mxu0
      %v2238 = vadd.f32 0.0, %v2237
      %v2239 = vpop.f32.mrb[0].mxu0
      %v2240 = vpop.f32.mrb[0].mxu0
      %v2241 = vadd.f32 0.0, %v2240
      %v2242 = vpop.f32.mrb[0].mxu0
      %2243 = vmatprep.mubr.bf16.mxu0 0
      %2244 = vmatmul.mubr.bf16.gmra.mrb[0].mxu0 %v2113
      %v2245 = vpop.f32.mrb[0].mxu0
      %v2246 = vadd.f32 0.0, %v2245
      %v2247 = vpop.f32.mrb[0].mxu0
      %v2248 = vpop.f32.mrb[0].mxu0
      %v2249 = vadd.f32 0.0, %v2248
      %v2250 = vpop.f32.mrb[0].mxu0
      %2251 = vmatprep.mubr.bf16.mxu0 0
      %2252 = vmatmul.mubr.bf16.gmra.mrb[0].mxu0 %v2116
      %v2253 = vpop.f32.mrb[0].mxu0
      %v2254 = vadd.f32 0.0, %v2253
      %v2255 = vpop.f32.mrb[0].mxu0
      %v2256 = vpop.f32.mrb[0].mxu0
      %v2257 = vadd.f32 0.0, %v2256
      %v2258 = vpop.f32.mrb[0].mxu0
      %2259 = vmatprep.mubr.bf16.mxu0 0
      %2260 = vmatmul.mubr.bf16.gmra.mrb[0].mxu0 %v2119
      %v2261 = vpop.f32.mrb[0].mxu0
      %v2262 = vadd.f32 0.0, %v2261
      %v2263 = vpop.f32.mrb[0].mxu0
      %v2264 = vpop.f32.mrb[0].mxu0
      %v2265 = vadd.f32 0.0, %v2264
      %v2266 = vpop.f32.mrb[0].mxu0
      %2267 = vmatprep.mubr.bf16.mxu0 0
      %2268 = vmatmul.mubr.bf16.gmra.mrb[0].mxu0 %v2122
      %v2269 = vpop.f32.mrb[0].mxu0
      %v2270 = vadd.f32 0.0, %v2269
      %v2271 = vpop.f32.mrb[0].mxu0
      %v2272 = vpop.f32.mrb[0].mxu0
      %v2273 = vadd.f32 0.0, %v2272
      %v2274 = vpop.f32.mrb[0].mxu0
      %2275 = vmatprep.mubr.bf16.mxu0 0
      %2276 = vmatmul.mubr.bf16.gmra.mrb[0].mxu0 %v2125
      %v2277 = vpop.f32.mrb[0].mxu0
      %v2278 = vadd.f32 0.0, %v2277
      %v2279 = vpop.f32.mrb[0].mxu0
      %v2280 = vpop.f32.mrb[0].mxu0
      %v2281 = vadd.f32 0.0, %v2280
      %v2282 = vpop.f32.mrb[0].mxu0
      %2283 = vmatprep.mubr.bf16.mxu0 0
      %2284 = vmatmul.mubr.bf16.gmra.mrb[0].mxu0 %v2128
      %v2285 = vpop.f32.mrb[0].mxu0
      %v2286 = vadd.f32 0.0, %v2285
      %v2287 = vpop.f32.mrb[0].mxu0
      %v2288 = vpop.f32.mrb[0].mxu0
      %v2289 = vadd.f32 0.0, %v2288
      %v2290 = vpop.f32.mrb[0].mxu0
      %2291 = vmatprep.mubr.bf16.mxu0 0
      %2292 = vmatmul.mubr.bf16.gmra.mrb[0].mxu0 %v2131
      %v2293 = vpop.f32.mrb[0].mxu0
      %v2294 = vadd.f32 0.0, %v2293
      %v2295 = vpop.f32.mrb[0].mxu0
      %v2296 = vpop.f32.mrb[0].mxu0
      %v2297 = vadd.f32 0.0, %v2296
      %v2298 = vpop.f32.mrb[0].mxu0
      %2299 = vmatprep.mubr.bf16.mxu0 0
      %2300 = vmatmul.mubr.bf16.gmra.mrb[0].mxu0 %v2134
      %v2301 = vpop.f32.mrb[0].mxu0
      %v2302 = vadd.f32 0.0, %v2301
      %v2303 = vpop.f32.mrb[0].mxu0
      %v2304 = vpop.f32.mrb[0].mxu0
      %v2305 = vadd.f32 0.0, %v2304
      %v2306 = vpop.f32.mrb[0].mxu0
      %2307 = vmatprep.mubr.bf16.mxu0 0
      %2308 = vmatmul.mubr.bf16.gmra.mrb[0].mxu0 %v2137
      %v2309 = vpop.f32.mrb[0].mxu0
      %v2310 = vadd.f32 0.0, %v2309
      %v2311 = vpop.f32.mrb[0].mxu0
      %v2312 = vpop.f32.mrb[0].mxu0
      %v2313 = vadd.f32 0.0, %v2312
      %v2314 = vpop.f32.mrb[0].mxu0
      %2315 = vdwg.mxu0
      %v2316 = vadd.f32 %v2014, %v2174
      %v2317 = vadd.f32 %v2015, %v2177
      %v2318 = vadd.f32 %v2016, %v2182
      %v2319 = vadd.f32 %v2017, %v2185
      %v2320 = vadd.f32 %v2018, %v2190
      %v2321 = vadd.f32 %v2019, %v2193
      %v2322 = vadd.f32 %v2020, %v2198
      %v2323 = vadd.f32 %v2021, %v2201
      %v2324 = vadd.f32 %v2022, %v2206
      %v2325 = vadd.f32 %v2023, %v2209
      %v2326 = vadd.f32 %v2024, %v2214
      %v2327 = vadd.f32 %v2025, %v2217
      %v2328 = vadd.f32 %v2026, %v2222
      %v2329 = vadd.f32 %v2027, %v2225
      %v2330 = vadd.f32 %v2028, %v2230
      %v2331 = vadd.f32 %v2029, %v2233
      %v2332 = vadd.f32 %v2030, %v2238
      %v2333 = vadd.f32 %v2031, %v2241
      %v2334 = vadd.f32 %v2032, %v2246
      %v2335 = vadd.f32 %v2033, %v2249
      %v2336 = vadd.f32 %v2034, %v2254
      %v2337 = vadd.f32 %v2035, %v2257
      %v2338 = vadd.f32 %v2036, %v2262
      %v2339 = vadd.f32 %v2037, %v2265
      %v2340 = vadd.f32 %v2038, %v2270
      %v2341 = vadd.f32 %v2039, %v2273
      %v2342 = vadd.f32 %v2040, %v2278
      %v2343 = vadd.f32 %v2041, %v2281
      %v2344 = vadd.f32 %v2042, %v2286
      %v2345 = vadd.f32 %v2043, %v2289
      %v2346 = vadd.f32 %v2044, %v2294
      %v2347 = vadd.f32 %v2045, %v2297
      %v2348 = vadd.f32 %v2046, %v2302
      %v2349 = vadd.f32 %v2047, %v2305
      %v2350 = vadd.f32 %v2048, %v2310
      %v2351 = vadd.f32 %v2049, %v2313
      %v2352 = vld [vmem:[%s246 + $0x10] sm:$0xf]
      %v2353 = vld [vmem:[%s246 + $0x14] sm:$0xf]
      %v2354 = vld [vmem:[%s246 + $0x18] sm:$0xf]
      %v2355 = vld [vmem:[%s246 + $0x1c] sm:$0xf]
      %v2356 = vld [vmem:[%s246 + $0x20] sm:$0xf]
      %v2357 = vld [vmem:[%s246 + $0x24] sm:$0xf]
      %v2358 = vld [vmem:[%s246 + $0x28] sm:$0xf]
      %v2359 = vld [vmem:[%s246 + $0x2c] sm:$0xf]
      %v2360 = vld [vmem:[%s246 + $0x30] sm:$0xf]
      %v2361 = vld [vmem:[%s246 + $0x34] sm:$0xf]
      %v2362 = vld [vmem:[%s246 + $0x38] sm:$0xf]
      %v2363 = vld [vmem:[%s246 + $0x3c] sm:$0xf]
      %v2364 = vld [vmem:[%s246 + $0x40] sm:$0xf]
      %v2365 = vld [vmem:[%s246 + $0x44] sm:$0xf]
      %v2366 = vld [vmem:[%s246 + $0x48] sm:$0xf]
      %v2367 = vld [vmem:[%s246 + $0x4c] sm:$0xf]
      %v2368 = vld [vmem:[%s246 + $0x50] sm:$0xf]
      %v2369 = vld [vmem:[%s246 + $0x54] sm:$0xf]
      %v2370 = vld [vmem:[%s246 + $0x58] sm:$0xf]
      %v2371 = vld [vmem:[%s246 + $0x5c] sm:$0xf]
      %v2372 = vld [vmem:[%s246 + $0x60] sm:$0xf]
      %v2373 = vld [vmem:[%s246 + $0x64] sm:$0xf]
      %v2374 = vld [vmem:[%s246 + $0x68] sm:$0xf]
      %v2375 = vld [vmem:[%s246 + $0x6c] sm:$0xf]
      %v2376 = vld [vmem:[%s246 + $0x70] sm:$0xf]
      %v2377 = vld [vmem:[%s246 + $0x74] sm:$0xf]
      %v2378 = vld [vmem:[%s246 + $0x78] sm:$0xf]
      %v2379 = vld [vmem:[%s246 + $0x7c] sm:$0xf]
      %v2380 = vld [vmem:[%s246 + $0x80] sm:$0xf]
      %v2381 = vld [vmem:[%s246 + $0x84] sm:$0xf]
      %v2382 = vld [vmem:[%s246 + $0x88] sm:$0xf]
      %v2383 = vld [vmem:[%s246 + $0x8c] sm:$0xf]
      %v2384 = vld [vmem:[%s246 + $0x90] sm:$0xf]
      %v2385 = vld [vmem:[%s246 + $0x94] sm:$0xf]
      %v2386 = vld [vmem:[%s246 + $0x98] sm:$0xf]
      %v2387 = vld [vmem:[%s246 + $0x9c] sm:$0xf]
      %v2388 = vld [vmem:[%s246 + $0xa0] sm:$0x1]
      %s2389 = scalar_lea.vmem %s1, 80
      %v2390 = vld [vmem:[%s2389] sm:$0xf]
      %v2391 = vld [vmem:[%s2389 + $0x4] sm:$0xf]
      %v2392 = vld [vmem:[%s2389 + $0x8] sm:$0xf]
      %v2393 = vld [vmem:[%s2389 + $0xc] sm:$0xf]
      %v2431 = vunpack.c.l.b16 %v2352
      %v2432 = vunpack.c.l.b16 %v2353
      %v2433 = vunpack.c.l.b16 %v2354
      %v2434 = vunpack.c.l.b16 %v2355
      %v2435 = vunpack.c.l.b16 %v2356
      %v2436 = vunpack.c.l.b16 %v2357
      %v2437 = vunpack.c.l.b16 %v2358
      %v2438 = vunpack.c.l.b16 %v2359
      %v2439 = vunpack.c.l.b16 %v2360
      %v2440 = vunpack.c.l.b16 %v2361
      %v2441 = vunpack.c.l.b16 %v2362
      %v2442 = vunpack.c.l.b16 %v2363
      %v2443 = vunpack.c.l.b16 %v2364
      %v2444 = vunpack.c.l.b16 %v2365
      %v2445 = vunpack.c.l.b16 %v2366
      %v2446 = vunpack.c.l.b16 %v2367
      %v2447 = vunpack.c.l.b16 %v2368
      %v2448 = vunpack.c.l.b16 %v2369
      %v2449 = vunpack.c.l.b16 %v2370
      %v2450 = vunpack.c.l.b16 %v2371
      %v2451 = vunpack.c.l.b16 %v2372
      %v2452 = vunpack.c.l.b16 %v2373
      %v2453 = vunpack.c.l.b16 %v2374
      %v2454 = vunpack.c.l.b16 %v2375
      %v2455 = vunpack.c.l.b16 %v2376
      %v2456 = vunpack.c.l.b16 %v2377
      %v2457 = vunpack.c.l.b16 %v2378
      %v2458 = vunpack.c.l.b16 %v2379
      %v2459 = vunpack.c.l.b16 %v2380
      %v2460 = vunpack.c.l.b16 %v2381
      %v2461 = vunpack.c.l.b16 %v2382
      %v2462 = vunpack.c.l.b16 %v2383
      %v2463 = vunpack.c.l.b16 %v2384
      %v2464 = vunpack.c.l.b16 %v2385
      %v2465 = vunpack.c.l.b16 %v2386
      %v2466 = vunpack.c.l.b16 %v2387
      %v2467 = vunpack.c.l.b16 %v2388
      %v2468 = vpack.c.b16 %v2432, %v2431
      %v2469 = vpack.c.b16 %v2434, %v2433
      %v2470 = vpack.c.b16 %v2436, %v2435
      %v2471 = vpack.c.b16 %v2438, %v2437
      %v2472 = vpack.c.b16 %v2440, %v2439
      %v2473 = vpack.c.b16 %v2442, %v2441
      %v2474 = vpack.c.b16 %v2444, %v2443
      %v2475 = vpack.c.b16 %v2446, %v2445
      %v2476 = vpack.c.b16 %v2448, %v2447
      %v2477 = vpack.c.b16 %v2450, %v2449
      %v2478 = vpack.c.b16 %v2452, %v2451
      %v2479 = vpack.c.b16 %v2454, %v2453
      %v2480 = vpack.c.b16 %v2456, %v2455
      %v2481 = vpack.c.b16 %v2458, %v2457
      %v2482 = vpack.c.b16 %v2460, %v2459
      %v2483 = vpack.c.b16 %v2462, %v2461
      %v2484 = vpack.c.b16 %v2464, %v2463
      %v2485 = vpack.c.b16 %v2466, %v2465
      %v2486 = vpack.c.b16 %v2467, %v2467
      %vm2487 = vsmask.f32 7424
      %v2489 = vshrl.u32 %v2468, 16
      %v2491 = vshll.u32 %v2468, 16
      %v2493 = vrot.slane %v2491, 1
      %v2494 = vor.u32 %v2489, %v2493
      %v2496 = vshll.u32 %v2469, 16
      %v2498 = vrot.slane %v2496, 1
      %v2499 = vsel %vm2487, %v2494, %v2498
      %v2500 = vshrl.u32 %v2469, 16
      %v2502 = vor.u32 %v2500, %v2498
      %v2504 = vshll.u32 %v2470, 16
      %v2506 = vrot.slane %v2504, 1
      %v2507 = vsel %vm2487, %v2502, %v2506
      %v2508 = vshrl.u32 %v2470, 16
      %v2510 = vor.u32 %v2508, %v2506
      %v2512 = vshll.u32 %v2471, 16
      %v2514 = vrot.slane %v2512, 1
      %v2515 = vsel %vm2487, %v2510, %v2514
      %v2516 = vshrl.u32 %v2471, 16
      %v2518 = vor.u32 %v2516, %v2514
      %v2520 = vshll.u32 %v2472, 16
      %v2522 = vrot.slane %v2520, 1
      %v2523 = vsel %vm2487, %v2518, %v2522
      %v2524 = vshrl.u32 %v2472, 16
      %v2526 = vor.u32 %v2524, %v2522
      %v2528 = vshll.u32 %v2473, 16
      %v2530 = vrot.slane %v2528, 1
      %v2531 = vsel %vm2487, %v2526, %v2530
      %v2532 = vshrl.u32 %v2473, 16
      %v2534 = vor.u32 %v2532, %v2530
      %v2536 = vshll.u32 %v2474, 16
      %v2538 = vrot.slane %v2536, 1
      %v2539 = vsel %vm2487, %v2534, %v2538
      %v2540 = vshrl.u32 %v2474, 16
      %v2542 = vor.u32 %v2540, %v2538
      %v2544 = vshll.u32 %v2475, 16
      %v2546 = vrot.slane %v2544, 1
      %v2547 = vsel %vm2487, %v2542, %v2546
      %v2548 = vshrl.u32 %v2475, 16
      %v2550 = vor.u32 %v2548, %v2546
      %v2552 = vshll.u32 %v2476, 16
      %v2554 = vrot.slane %v2552, 1
      %v2555 = vsel %vm2487, %v2550, %v2554
      %v2556 = vshrl.u32 %v2476, 16
      %v2558 = vor.u32 %v2556, %v2554
      %v2560 = vshll.u32 %v2477, 16
      %v2562 = vrot.slane %v2560, 1
      %v2563 = vsel %vm2487, %v2558, %v2562
      %v2564 = vshrl.u32 %v2477, 16
      %v2566 = vor.u32 %v2564, %v2562
      %v2568 = vshll.u32 %v2478, 16
      %v2570 = vrot.slane %v2568, 1
      %v2571 = vsel %vm2487, %v2566, %v2570
      %v2572 = vshrl.u32 %v2478, 16
      %v2574 = vor.u32 %v2572, %v2570
      %v2576 = vshll.u32 %v2479, 16
      %v2578 = vrot.slane %v2576, 1
      %v2579 = vsel %vm2487, %v2574, %v2578
      %v2580 = vshrl.u32 %v2479, 16
      %v2582 = vor.u32 %v2580, %v2578
      %v2584 = vshll.u32 %v2480, 16
      %v2586 = vrot.slane %v2584, 1
      %v2587 = vsel %vm2487, %v2582, %v2586
      %v2588 = vshrl.u32 %v2480, 16
      %v2590 = vor.u32 %v2588, %v2586
      %v2592 = vshll.u32 %v2481, 16
      %v2594 = vrot.slane %v2592, 1
      %v2595 = vsel %vm2487, %v2590, %v2594
      %v2596 = vshrl.u32 %v2481, 16
      %v2598 = vor.u32 %v2596, %v2594
      %v2600 = vshll.u32 %v2482, 16
      %v2602 = vrot.slane %v2600, 1
      %v2603 = vsel %vm2487, %v2598, %v2602
      %v2604 = vshrl.u32 %v2482, 16
      %v2606 = vor.u32 %v2604, %v2602
      %v2608 = vshll.u32 %v2483, 16
      %v2610 = vrot.slane %v2608, 1
      %v2611 = vsel %vm2487, %v2606, %v2610
      %v2612 = vshrl.u32 %v2483, 16
      %v2614 = vor.u32 %v2612, %v2610
      %v2616 = vshll.u32 %v2484, 16
      %v2618 = vrot.slane %v2616, 1
      %v2619 = vsel %vm2487, %v2614, %v2618
      %v2620 = vshrl.u32 %v2484, 16
      %v2622 = vor.u32 %v2620, %v2618
      %v2624 = vshll.u32 %v2485, 16
      %v2626 = vrot.slane %v2624, 1
      %v2627 = vsel %vm2487, %v2622, %v2626
      %v2628 = vshrl.u32 %v2485, 16
      %v2630 = vor.u32 %v2628, %v2626
      %v2632 = vshll.u32 %v2486, 16
      %v2634 = vrot.slane %v2632, 1
      %v2635 = vsel %vm2487, %v2630, %v2634
      %v2640 = vunpack.c.l.b16 %v2390
      %v2641 = vunpack.c.l.b16 %v2391
      %v2642 = vunpack.c.l.b16 %v2392
      %v2643 = vunpack.c.l.b16 %v2393
      %v2644 = vpack.c.b16 %v2641, %v2640
      %v2645 = vpack.c.b16 %v2643, %v2642
      %v2649 = vsel %vm443, %v2499, 0
      %v2652 = vsel %vm443, %v2507, 0
      %v2655 = vsel %vm443, %v2515, 0
      %v2658 = vsel %vm443, %v2523, 0
      %v2661 = vsel %vm443, %v2531, 0
      %v2664 = vsel %vm443, %v2539, 0
      %v2667 = vsel %vm443, %v2547, 0
      %v2670 = vsel %vm443, %v2555, 0
      %v2673 = vsel %vm443, %v2563, 0
      %v2676 = vsel %vm443, %v2571, 0
      %v2679 = vsel %vm443, %v2579, 0
      %v2682 = vsel %vm443, %v2587, 0
      %v2685 = vsel %vm443, %v2595, 0
      %v2688 = vsel %vm443, %v2603, 0
      %v2691 = vsel %vm443, %v2611, 0
      %v2694 = vsel %vm443, %v2619, 0
      %v2697 = vsel %vm443, %v2627, 0
      %v2700 = vsel %vm443, %v2635, 0
      %2702 = vmatprep.subr.bf16.mxu0 0
      %2703 = vmatpush1.bf16.msra.mxu0 %v2644
      %2704 = vmatprep.subr.bf16.mxu0 0
      %2705 = vmatpush1.bf16.msra.mxu0 %v2645
      %2706 = vmatprep.subr.bf16.mxu0 0
      %2707 = vmatpush1.bf16.msra.mxu0 0
      %2708 = vmatprep.subr.bf16.mxu0 0
      %2709 = vmatpush1.bf16.msra.mxu0 0
      %2710 = vmatprep.subr.bf16.mxu0 0
      %2711 = vmatpush1.bf16.msra.mxu0 0
      %2712 = vmatprep.subr.bf16.mxu0 0
      %2713 = vmatpush1.bf16.msra.mxu0 0
      %2714 = vmatprep.subr.bf16.mxu0 0
      %2715 = vmatpush1.bf16.msra.mxu0 0
      %2716 = vmatprep.subr.bf16.mxu0 0
      %2717 = vmatpush1.bf16.msra.mxu0 0
      %2718 = vmatprep.subr.bf16.mxu0 0
      %2719 = vmatpush1.bf16.msra.mxu0 0
      %2720 = vmatprep.subr.bf16.mxu0 0
      %2721 = vmatpush1.bf16.msra.mxu0 0
      %2722 = vmatprep.subr.bf16.mxu0 0
      %2723 = vmatpush1.bf16.msra.mxu0 0
      %2724 = vmatprep.subr.bf16.mxu0 0
      %2725 = vmatpush1.bf16.msra.mxu0 0
      %2726 = vmatprep.subr.bf16.mxu0 0
      %2727 = vmatpush1.bf16.msra.mxu0 0
      %2728 = vmatprep.subr.bf16.mxu0 0
      %2729 = vmatpush1.bf16.msra.mxu0 0
      %2730 = vmatprep.subr.bf16.mxu0 0
      %2731 = vmatpush1.bf16.msra.mxu0 0
      %2732 = vmatprep.subr.bf16.mxu0 0
      %2733 = vmatpush1.bf16.msra.mxu0 0
      %2734 = vmatprep.mubr.bf16.mxu0 0
      %2735 = vmatmul.mubr.bf16.gmra.mrb[0].mxu0 %v2649
      %v2736 = vpop.f32.mrb[0].mxu0
      %v2737 = vadd.f32 0.0, %v2736
      %v2738 = vpop.f32.mrb[0].mxu0
      %v2739 = vpop.f32.mrb[0].mxu0
      %v2740 = vadd.f32 0.0, %v2739
      %v2741 = vpop.f32.mrb[0].mxu0
      %2742 = vmatprep.mubr.bf16.mxu0 0
      %2743 = vmatmul.mubr.bf16.gmra.mrb[0].mxu0 %v2652
      %v2744 = vpop.f32.mrb[0].mxu0
      %v2745 = vadd.f32 0.0, %v2744
      %v2746 = vpop.f32.mrb[0].mxu0
      %v2747 = vpop.f32.mrb[0].mxu0
      %v2748 = vadd.f32 0.0, %v2747
      %v2749 = vpop.f32.mrb[0].mxu0
      %2750 = vmatprep.mubr.bf16.mxu0 0
      %2751 = vmatmul.mubr.bf16.gmra.mrb[0].mxu0 %v2655
      %v2752 = vpop.f32.mrb[0].mxu0
      %v2753 = vadd.f32 0.0, %v2752
      %v2754 = vpop.f32.mrb[0].mxu0
      %v2755 = vpop.f32.mrb[0].mxu0
      %v2756 = vadd.f32 0.0, %v2755
      %v2757 = vpop.f32.mrb[0].mxu0
      %2758 = vmatprep.mubr.bf16.mxu0 0
      %2759 = vmatmul.mubr.bf16.gmra.mrb[0].mxu0 %v2658
      %v2760 = vpop.f32.mrb[0].mxu0
      %v2761 = vadd.f32 0.0, %v2760
      %v2762 = vpop.f32.mrb[0].mxu0
      %v2763 = vpop.f32.mrb[0].mxu0
      %v2764 = vadd.f32 0.0, %v2763
      %v2765 = vpop.f32.mrb[0].mxu0
      %2766 = vmatprep.mubr.bf16.mxu0 0
      %2767 = vmatmul.mubr.bf16.gmra.mrb[0].mxu0 %v2661
      %v2768 = vpop.f32.mrb[0].mxu0
      %v2769 = vadd.f32 0.0, %v2768
      %v2770 = vpop.f32.mrb[0].mxu0
      %v2771 = vpop.f32.mrb[0].mxu0
      %v2772 = vadd.f32 0.0, %v2771
      %v2773 = vpop.f32.mrb[0].mxu0
      %2774 = vmatprep.mubr.bf16.mxu0 0
      %2775 = vmatmul.mubr.bf16.gmra.mrb[0].mxu0 %v2664
      %v2776 = vpop.f32.mrb[0].mxu0
      %v2777 = vadd.f32 0.0, %v2776
      %v2778 = vpop.f32.mrb[0].mxu0
      %v2779 = vpop.f32.mrb[0].mxu0
      %v2780 = vadd.f32 0.0, %v2779
      %v2781 = vpop.f32.mrb[0].mxu0
      %2782 = vmatprep.mubr.bf16.mxu0 0
      %2783 = vmatmul.mubr.bf16.gmra.mrb[0].mxu0 %v2667
      %v2784 = vpop.f32.mrb[0].mxu0
      %v2785 = vadd.f32 0.0, %v2784
      %v2786 = vpop.f32.mrb[0].mxu0
      %v2787 = vpop.f32.mrb[0].mxu0
      %v2788 = vadd.f32 0.0, %v2787
      %v2789 = vpop.f32.mrb[0].mxu0
      %2790 = vmatprep.mubr.bf16.mxu0 0
      %2791 = vmatmul.mubr.bf16.gmra.mrb[0].mxu0 %v2670
      %v2792 = vpop.f32.mrb[0].mxu0
      %v2793 = vadd.f32 0.0, %v2792
      %v2794 = vpop.f32.mrb[0].mxu0
      %v2795 = vpop.f32.mrb[0].mxu0
      %v2796 = vadd.f32 0.0, %v2795
      %v2797 = vpop.f32.mrb[0].mxu0
      %2798 = vmatprep.mubr.bf16.mxu0 0
      %2799 = vmatmul.mubr.bf16.gmra.mrb[0].mxu0 %v2673
      %v2800 = vpop.f32.mrb[0].mxu0
      %v2801 = vadd.f32 0.0, %v2800
      %v2802 = vpop.f32.mrb[0].mxu0
      %v2803 = vpop.f32.mrb[0].mxu0
      %v2804 = vadd.f32 0.0, %v2803
      %v2805 = vpop.f32.mrb[0].mxu0
      %2806 = vmatprep.mubr.bf16.mxu0 0
      %2807 = vmatmul.mubr.bf16.gmra.mrb[0].mxu0 %v2676
      %v2808 = vpop.f32.mrb[0].mxu0
      %v2809 = vadd.f32 0.0, %v2808
      %v2810 = vpop.f32.mrb[0].mxu0
      %v2811 = vpop.f32.mrb[0].mxu0
      %v2812 = vadd.f32 0.0, %v2811
      %v2813 = vpop.f32.mrb[0].mxu0
      %2814 = vmatprep.mubr.bf16.mxu0 0
      %2815 = vmatmul.mubr.bf16.gmra.mrb[0].mxu0 %v2679
      %v2816 = vpop.f32.mrb[0].mxu0
      %v2817 = vadd.f32 0.0, %v2816
      %v2818 = vpop.f32.mrb[0].mxu0
      %v2819 = vpop.f32.mrb[0].mxu0
      %v2820 = vadd.f32 0.0, %v2819
      %v2821 = vpop.f32.mrb[0].mxu0
      %2822 = vmatprep.mubr.bf16.mxu0 0
      %2823 = vmatmul.mubr.bf16.gmra.mrb[0].mxu0 %v2682
      %v2824 = vpop.f32.mrb[0].mxu0
      %v2825 = vadd.f32 0.0, %v2824
      %v2826 = vpop.f32.mrb[0].mxu0
      %v2827 = vpop.f32.mrb[0].mxu0
      %v2828 = vadd.f32 0.0, %v2827
      %v2829 = vpop.f32.mrb[0].mxu0
      %2830 = vmatprep.mubr.bf16.mxu0 0
      %2831 = vmatmul.mubr.bf16.gmra.mrb[0].mxu0 %v2685
      %v2832 = vpop.f32.mrb[0].mxu0
      %v2833 = vadd.f32 0.0, %v2832
      %v2834 = vpop.f32.mrb[0].mxu0
      %v2835 = vpop.f32.mrb[0].mxu0
      %v2836 = vadd.f32 0.0, %v2835
      %v2837 = vpop.f32.mrb[0].mxu0
      %2838 = vmatprep.mubr.bf16.mxu0 0
      %2839 = vmatmul.mubr.bf16.gmra.mrb[0].mxu0 %v2688
      %v2840 = vpop.f32.mrb[0].mxu0
      %v2841 = vadd.f32 0.0, %v2840
      %v2842 = vpop.f32.mrb[0].mxu0
      %v2843 = vpop.f32.mrb[0].mxu0
      %v2844 = vadd.f32 0.0, %v2843
      %v2845 = vpop.f32.mrb[0].mxu0
      %2846 = vmatprep.mubr.bf16.mxu0 0
      %2847 = vmatmul.mubr.bf16.gmra.mrb[0].mxu0 %v2691
      %v2848 = vpop.f32.mrb[0].mxu0
      %v2849 = vadd.f32 0.0, %v2848
      %v2850 = vpop.f32.mrb[0].mxu0
      %v2851 = vpop.f32.mrb[0].mxu0
      %v2852 = vadd.f32 0.0, %v2851
      %v2853 = vpop.f32.mrb[0].mxu0
      %2854 = vmatprep.mubr.bf16.mxu0 0
      %2855 = vmatmul.mubr.bf16.gmra.mrb[0].mxu0 %v2694
      %v2856 = vpop.f32.mrb[0].mxu0
      %v2857 = vadd.f32 0.0, %v2856
      %v2858 = vpop.f32.mrb[0].mxu0
      %v2859 = vpop.f32.mrb[0].mxu0
      %v2860 = vadd.f32 0.0, %v2859
      %v2861 = vpop.f32.mrb[0].mxu0
      %2862 = vmatprep.mubr.bf16.mxu0 0
      %2863 = vmatmul.mubr.bf16.gmra.mrb[0].mxu0 %v2697
      %v2864 = vpop.f32.mrb[0].mxu0
      %v2865 = vadd.f32 0.0, %v2864
      %v2866 = vpop.f32.mrb[0].mxu0
      %v2867 = vpop.f32.mrb[0].mxu0
      %v2868 = vadd.f32 0.0, %v2867
      %v2869 = vpop.f32.mrb[0].mxu0
      %2870 = vmatprep.mubr.bf16.mxu0 0
      %2871 = vmatmul.mubr.bf16.gmra.mrb[0].mxu0 %v2700
      %v2872 = vpop.f32.mrb[0].mxu0
      %v2873 = vadd.f32 0.0, %v2872
      %v2874 = vpop.f32.mrb[0].mxu0
      %v2875 = vpop.f32.mrb[0].mxu0
      %v2876 = vadd.f32 0.0, %v2875
      %v2877 = vpop.f32.mrb[0].mxu0
      %2878 = vdwg.mxu0
      %v2879 = vadd.f32 %v2316, %v2737
      %v2880 = vadd.f32 %v2317, %v2740
      %v2881 = vadd.f32 %v2318, %v2745
      %v2882 = vadd.f32 %v2319, %v2748
      %v2883 = vadd.f32 %v2320, %v2753
      %v2884 = vadd.f32 %v2321, %v2756
      %v2885 = vadd.f32 %v2322, %v2761
      %v2886 = vadd.f32 %v2323, %v2764
      %v2887 = vadd.f32 %v2324, %v2769
      %v2888 = vadd.f32 %v2325, %v2772
      %v2889 = vadd.f32 %v2326, %v2777
      %v2890 = vadd.f32 %v2327, %v2780
      %v2891 = vadd.f32 %v2328, %v2785
      %v2892 = vadd.f32 %v2329, %v2788
      %v2893 = vadd.f32 %v2330, %v2793
      %v2894 = vadd.f32 %v2331, %v2796
      %v2895 = vadd.f32 %v2332, %v2801
      %v2896 = vadd.f32 %v2333, %v2804
      %v2897 = vadd.f32 %v2334, %v2809
      %v2898 = vadd.f32 %v2335, %v2812
      %v2899 = vadd.f32 %v2336, %v2817
      %v2900 = vadd.f32 %v2337, %v2820
      %v2901 = vadd.f32 %v2338, %v2825
      %v2902 = vadd.f32 %v2339, %v2828
      %v2903 = vadd.f32 %v2340, %v2833
      %v2904 = vadd.f32 %v2341, %v2836
      %v2905 = vadd.f32 %v2342, %v2841
      %v2906 = vadd.f32 %v2343, %v2844
      %v2907 = vadd.f32 %v2344, %v2849
      %v2908 = vadd.f32 %v2345, %v2852
      %v2909 = vadd.f32 %v2346, %v2857
      %v2910 = vadd.f32 %v2347, %v2860
      %v2911 = vadd.f32 %v2348, %v2865
      %v2912 = vadd.f32 %v2349, %v2868
      %v2913 = vadd.f32 %v2350, %v2873
      %v2914 = vadd.f32 %v2351, %v2876
      %v2915 = vld [vmem:[%s246 + $0x18] sm:$0xf]
      %v2916 = vld [vmem:[%s246 + $0x1c] sm:$0xf]
      %v2917 = vld [vmem:[%s246 + $0x20] sm:$0xf]
      %v2918 = vld [vmem:[%s246 + $0x24] sm:$0xf]
      %v2919 = vld [vmem:[%s246 + $0x28] sm:$0xf]
      %v2920 = vld [vmem:[%s246 + $0x2c] sm:$0xf]
      %v2921 = vld [vmem:[%s246 + $0x30] sm:$0xf]
      %v2922 = vld [vmem:[%s246 + $0x34] sm:$0xf]
      %v2923 = vld [vmem:[%s246 + $0x38] sm:$0xf]
      %v2924 = vld [vmem:[%s246 + $0x3c] sm:$0xf]
      %v2925 = vld [vmem:[%s246 + $0x40] sm:$0xf]
      %v2926 = vld [vmem:[%s246 + $0x44] sm:$0xf]
      %v2927 = vld [vmem:[%s246 + $0x48] sm:$0xf]
      %v2928 = vld [vmem:[%s246 + $0x4c] sm:$0xf]
      %v2929 = vld [vmem:[%s246 + $0x50] sm:$0xf]
      %v2930 = vld [vmem:[%s246 + $0x54] sm:$0xf]
      %v2931 = vld [vmem:[%s246 + $0x58] sm:$0xf]
      %v2932 = vld [vmem:[%s246 + $0x5c] sm:$0xf]
      %v2933 = vld [vmem:[%s246 + $0x60] sm:$0xf]
      %v2934 = vld [vmem:[%s246 + $0x64] sm:$0xf]
      %v2935 = vld [vmem:[%s246 + $0x68] sm:$0xf]
      %v2936 = vld [vmem:[%s246 + $0x6c] sm:$0xf]
      %v2937 = vld [vmem:[%s246 + $0x70] sm:$0xf]
      %v2938 = vld [vmem:[%s246 + $0x74] sm:$0xf]
      %v2939 = vld [vmem:[%s246 + $0x78] sm:$0xf]
      %v2940 = vld [vmem:[%s246 + $0x7c] sm:$0xf]
      %v2941 = vld [vmem:[%s246 + $0x80] sm:$0xf]
      %v2942 = vld [vmem:[%s246 + $0x84] sm:$0xf]
      %v2943 = vld [vmem:[%s246 + $0x88] sm:$0xf]
      %v2944 = vld [vmem:[%s246 + $0x8c] sm:$0xf]
      %v2945 = vld [vmem:[%s246 + $0x90] sm:$0xf]
      %v2946 = vld [vmem:[%s246 + $0x94] sm:$0xf]
      %v2947 = vld [vmem:[%s246 + $0x98] sm:$0xf]
      %v2948 = vld [vmem:[%s246 + $0x9c] sm:$0xf]
      %v2949 = vld [vmem:[%s246 + $0xa0] sm:$0xf]
      %v2950 = vld [vmem:[%s246 + $0xa4] sm:$0xf]
      %v2951 = vld [vmem:[%s246 + $0xa8] sm:$0x1]
      %s2952 = scalar_lea.vmem %s1, 96
      %v2953 = vld [vmem:[%s2952] sm:$0xf]
      %v2954 = vld [vmem:[%s2952 + $0x4] sm:$0xf]
      %v2955 = vld [vmem:[%s2952 + $0x8] sm:$0xf]
      %v2956 = vld [vmem:[%s2952 + $0xc] sm:$0xf]
      %v2994 = vunpack.c.l.b16 %v2915
      %v2995 = vunpack.c.l.b16 %v2916
      %v2996 = vunpack.c.l.b16 %v2917
      %v2997 = vunpack.c.l.b16 %v2918
      %v2998 = vunpack.c.l.b16 %v2919
      %v2999 = vunpack.c.l.b16 %v2920
      %v3000 = vunpack.c.l.b16 %v2921
      %v3001 = vunpack.c.l.b16 %v2922
      %v3002 = vunpack.c.l.b16 %v2923
      %v3003 = vunpack.c.l.b16 %v2924
      %v3004 = vunpack.c.l.b16 %v2925
      %v3005 = vunpack.c.l.b16 %v2926
      %v3006 = vunpack.c.l.b16 %v2927
      %v3007 = vunpack.c.l.b16 %v2928
      %v3008 = vunpack.c.l.b16 %v2929
      %v3009 = vunpack.c.l.b16 %v2930
      %v3010 = vunpack.c.l.b16 %v2931
      %v3011 = vunpack.c.l.b16 %v2932
      %v3012 = vunpack.c.l.b16 %v2933
      %v3013 = vunpack.c.l.b16 %v2934
      %v3014 = vunpack.c.l.b16 %v2935
      %v3015 = vunpack.c.l.b16 %v2936
      %v3016 = vunpack.c.l.b16 %v2937
      %v3017 = vunpack.c.l.b16 %v2938
      %v3018 = vunpack.c.l.b16 %v2939
      %v3019 = vunpack.c.l.b16 %v2940
      %v3020 = vunpack.c.l.b16 %v2941
      %v3021 = vunpack.c.l.b16 %v2942
      %v3022 = vunpack.c.l.b16 %v2943
      %v3023 = vunpack.c.l.b16 %v2944
      %v3024 = vunpack.c.l.b16 %v2945
      %v3025 = vunpack.c.l.b16 %v2946
      %v3026 = vunpack.c.l.b16 %v2947
      %v3027 = vunpack.c.l.b16 %v2948
      %v3028 = vunpack.c.l.b16 %v2949
      %v3029 = vunpack.c.l.b16 %v2950
      %v3030 = vunpack.c.l.b16 %v2951
      %v3031 = vpack.c.b16 %v2995, %v2994
      %v3032 = vpack.c.b16 %v2997, %v2996
      %v3033 = vpack.c.b16 %v2999, %v2998
      %v3034 = vpack.c.b16 %v3001, %v3000
      %v3035 = vpack.c.b16 %v3003, %v3002
      %v3036 = vpack.c.b16 %v3005, %v3004
      %v3037 = vpack.c.b16 %v3007, %v3006
      %v3038 = vpack.c.b16 %v3009, %v3008
      %v3039 = vpack.c.b16 %v3011, %v3010
      %v3040 = vpack.c.b16 %v3013, %v3012
      %v3041 = vpack.c.b16 %v3015, %v3014
      %v3042 = vpack.c.b16 %v3017, %v3016
      %v3043 = vpack.c.b16 %v3019, %v3018
      %v3044 = vpack.c.b16 %v3021, %v3020
      %v3045 = vpack.c.b16 %v3023, %v3022
      %v3046 = vpack.c.b16 %v3025, %v3024
      %v3047 = vpack.c.b16 %v3027, %v3026
      %v3048 = vpack.c.b16 %v3029, %v3028
      %v3049 = vpack.c.b16 %v3030, %v3030
      %v3051 = vshrl.u32 %v3031, 16
      %v3053 = vshll.u32 %v3031, 16
      %v3055 = vrot.slane %v3053, 1
      %v3056 = vor.u32 %v3051, %v3055
      %v3058 = vshll.u32 %v3032, 16
      %v3060 = vrot.slane %v3058, 1
      %v3061 = vsel %vm2487, %v3056, %v3060
      %v3062 = vshrl.u32 %v3032, 16
      %v3064 = vor.u32 %v3062, %v3060
      %v3066 = vshll.u32 %v3033, 16
      %v3068 = vrot.slane %v3066, 1
      %v3069 = vsel %vm2487, %v3064, %v3068
      %v3070 = vshrl.u32 %v3033, 16
      %v3072 = vor.u32 %v3070, %v3068
      %v3074 = vshll.u32 %v3034, 16
      %v3076 = vrot.slane %v3074, 1
      %v3077 = vsel %vm2487, %v3072, %v3076
      %v3078 = vshrl.u32 %v3034, 16
      %v3080 = vor.u32 %v3078, %v3076
      %v3082 = vshll.u32 %v3035, 16
      %v3084 = vrot.slane %v3082, 1
      %v3085 = vsel %vm2487, %v3080, %v3084
      %v3086 = vshrl.u32 %v3035, 16
      %v3088 = vor.u32 %v3086, %v3084
      %v3090 = vshll.u32 %v3036, 16
      %v3092 = vrot.slane %v3090, 1
      %v3093 = vsel %vm2487, %v3088, %v3092
      %v3094 = vshrl.u32 %v3036, 16
      %v3096 = vor.u32 %v3094, %v3092
      %v3098 = vshll.u32 %v3037, 16
      %v3100 = vrot.slane %v3098, 1
      %v3101 = vsel %vm2487, %v3096, %v3100
      %v3102 = vshrl.u32 %v3037, 16
      %v3104 = vor.u32 %v3102, %v3100
      %v3106 = vshll.u32 %v3038, 16
      %v3108 = vrot.slane %v3106, 1
      %v3109 = vsel %vm2487, %v3104, %v3108
      %v3110 = vshrl.u32 %v3038, 16
      %v3112 = vor.u32 %v3110, %v3108
      %v3114 = vshll.u32 %v3039, 16
      %v3116 = vrot.slane %v3114, 1
      %v3117 = vsel %vm2487, %v3112, %v3116
      %v3118 = vshrl.u32 %v3039, 16
      %v3120 = vor.u32 %v3118, %v3116
      %v3122 = vshll.u32 %v3040, 16
      %v3124 = vrot.slane %v3122, 1
      %v3125 = vsel %vm2487, %v3120, %v3124
      %v3126 = vshrl.u32 %v3040, 16
      %v3128 = vor.u32 %v3126, %v3124
      %v3130 = vshll.u32 %v3041, 16
      %v3132 = vrot.slane %v3130, 1
      %v3133 = vsel %vm2487, %v3128, %v3132
      %v3134 = vshrl.u32 %v3041, 16
      %v3136 = vor.u32 %v3134, %v3132
      %v3138 = vshll.u32 %v3042, 16
      %v3140 = vrot.slane %v3138, 1
      %v3141 = vsel %vm2487, %v3136, %v3140
      %v3142 = vshrl.u32 %v3042, 16
      %v3144 = vor.u32 %v3142, %v3140
      %v3146 = vshll.u32 %v3043, 16
      %v3148 = vrot.slane %v3146, 1
      %v3149 = vsel %vm2487, %v3144, %v3148
      %v3150 = vshrl.u32 %v3043, 16
      %v3152 = vor.u32 %v3150, %v3148
      %v3154 = vshll.u32 %v3044, 16
      %v3156 = vrot.slane %v3154, 1
      %v3157 = vsel %vm2487, %v3152, %v3156
      %v3158 = vshrl.u32 %v3044, 16
      %v3160 = vor.u32 %v3158, %v3156
      %v3162 = vshll.u32 %v3045, 16
      %v3164 = vrot.slane %v3162, 1
      %v3165 = vsel %vm2487, %v3160, %v3164
      %v3166 = vshrl.u32 %v3045, 16
      %v3168 = vor.u32 %v3166, %v3164
      %v3170 = vshll.u32 %v3046, 16
      %v3172 = vrot.slane %v3170, 1
      %v3173 = vsel %vm2487, %v3168, %v3172
      %v3174 = vshrl.u32 %v3046, 16
      %v3176 = vor.u32 %v3174, %v3172
      %v3178 = vshll.u32 %v3047, 16
      %v3180 = vrot.slane %v3178, 1
      %v3181 = vsel %vm2487, %v3176, %v3180
      %v3182 = vshrl.u32 %v3047, 16
      %v3184 = vor.u32 %v3182, %v3180
      %v3186 = vshll.u32 %v3048, 16
      %v3188 = vrot.slane %v3186, 1
      %v3189 = vsel %vm2487, %v3184, %v3188
      %v3190 = vshrl.u32 %v3048, 16
      %v3192 = vor.u32 %v3190, %v3188
      %v3194 = vshll.u32 %v3049, 16
      %v3196 = vrot.slane %v3194, 1
      %v3197 = vsel %vm2487, %v3192, %v3196
      %v3202 = vunpack.c.l.b16 %v2953
      %v3203 = vunpack.c.l.b16 %v2954
      %v3204 = vunpack.c.l.b16 %v2955
      %v3205 = vunpack.c.l.b16 %v2956
      %v3206 = vpack.c.b16 %v3203, %v3202
      %v3207 = vpack.c.b16 %v3205, %v3204
      %v3211 = vsel %vm443, %v3061, 0
      %v3214 = vsel %vm443, %v3069, 0
      %v3217 = vsel %vm443, %v3077, 0
      %v3220 = vsel %vm443, %v3085, 0
      %v3223 = vsel %vm443, %v3093, 0
      %v3226 = vsel %vm443, %v3101, 0
      %v3229 = vsel %vm443, %v3109, 0
      %v3232 = vsel %vm443, %v3117, 0
      %v3235 = vsel %vm443, %v3125, 0
      %v3238 = vsel %vm443, %v3133, 0
      %v3241 = vsel %vm443, %v3141, 0
      %v3244 = vsel %vm443, %v3149, 0
      %v3247 = vsel %vm443, %v3157, 0
      %v3250 = vsel %vm443, %v3165, 0
      %v3253 = vsel %vm443, %v3173, 0
      %v3256 = vsel %vm443, %v3181, 0
      %v3259 = vsel %vm443, %v3189, 0
      %v3262 = vsel %vm443, %v3197, 0
      %3264 = vmatprep.subr.bf16.mxu0 0
      %3265 = vmatpush1.bf16.msra.mxu0 %v3206
      %3266 = vmatprep.subr.bf16.mxu0 0
      %3267 = vmatpush1.bf16.msra.mxu0 %v3207
      %3268 = vmatprep.subr.bf16.mxu0 0
      %3269 = vmatpush1.bf16.msra.mxu0 0
      %3270 = vmatprep.subr.bf16.mxu0 0
      %3271 = vmatpush1.bf16.msra.mxu0 0
      %3272 = vmatprep.subr.bf16.mxu0 0
      %3273 = vmatpush1.bf16.msra.mxu0 0
      %3274 = vmatprep.subr.bf16.mxu0 0
      %3275 = vmatpush1.bf16.msra.mxu0 0
      %3276 = vmatprep.subr.bf16.mxu0 0
      %3277 = vmatpush1.bf16.msra.mxu0 0
      %3278 = vmatprep.subr.bf16.mxu0 0
      %3279 = vmatpush1.bf16.msra.mxu0 0
      %3280 = vmatprep.subr.bf16.mxu0 0
      %3281 = vmatpush1.bf16.msra.mxu0 0
      %3282 = vmatprep.subr.bf16.mxu0 0
      %3283 = vmatpush1.bf16.msra.mxu0 0
      %3284 = vmatprep.subr.bf16.mxu0 0
      %3285 = vmatpush1.bf16.msra.mxu0 0
      %3286 = vmatprep.subr.bf16.mxu0 0
      %3287 = vmatpush1.bf16.msra.mxu0 0
      %3288 = vmatprep.subr.bf16.mxu0 0
      %3289 = vmatpush1.bf16.msra.mxu0 0
      %3290 = vmatprep.subr.bf16.mxu0 0
      %3291 = vmatpush1.bf16.msra.mxu0 0
      %3292 = vmatprep.subr.bf16.mxu0 0
      %3293 = vmatpush1.bf16.msra.mxu0 0
      %3294 = vmatprep.subr.bf16.mxu0 0
      %3295 = vmatpush1.bf16.msra.mxu0 0
      %3296 = vmatprep.mubr.bf16.mxu0 0
      %3297 = vmatmul.mubr.bf16.gmra.mrb[0].mxu0 %v3211
      %v3298 = vpop.f32.mrb[0].mxu0
      %v3299 = vadd.f32 0.0, %v3298
      %v3300 = vpop.f32.mrb[0].mxu0
      %v3301 = vpop.f32.mrb[0].mxu0
      %v3302 = vadd.f32 0.0, %v3301
      %v3303 = vpop.f32.mrb[0].mxu0
      %3304 = vmatprep.mubr.bf16.mxu0 0
      %3305 = vmatmul.mubr.bf16.gmra.mrb[0].mxu0 %v3214
      %v3306 = vpop.f32.mrb[0].mxu0
      %v3307 = vadd.f32 0.0, %v3306
      %v3308 = vpop.f32.mrb[0].mxu0
      %v3309 = vpop.f32.mrb[0].mxu0
      %v3310 = vadd.f32 0.0, %v3309
      %v3311 = vpop.f32.mrb[0].mxu0
      %3312 = vmatprep.mubr.bf16.mxu0 0
      %3313 = vmatmul.mubr.bf16.gmra.mrb[0].mxu0 %v3217
      %v3314 = vpop.f32.mrb[0].mxu0
      %v3315 = vadd.f32 0.0, %v3314
      %v3316 = vpop.f32.mrb[0].mxu0
      %v3317 = vpop.f32.mrb[0].mxu0
      %v3318 = vadd.f32 0.0, %v3317
      %v3319 = vpop.f32.mrb[0].mxu0
      %3320 = vmatprep.mubr.bf16.mxu0 0
      %3321 = vmatmul.mubr.bf16.gmra.mrb[0].mxu0 %v3220
      %v3322 = vpop.f32.mrb[0].mxu0
      %v3323 = vadd.f32 0.0, %v3322
      %v3324 = vpop.f32.mrb[0].mxu0
      %v3325 = vpop.f32.mrb[0].mxu0
      %v3326 = vadd.f32 0.0, %v3325
      %v3327 = vpop.f32.mrb[0].mxu0
      %3328 = vmatprep.mubr.bf16.mxu0 0
      %3329 = vmatmul.mubr.bf16.gmra.mrb[0].mxu0 %v3223
      %v3330 = vpop.f32.mrb[0].mxu0
      %v3331 = vadd.f32 0.0, %v3330
      %v3332 = vpop.f32.mrb[0].mxu0
      %v3333 = vpop.f32.mrb[0].mxu0
      %v3334 = vadd.f32 0.0, %v3333
      %v3335 = vpop.f32.mrb[0].mxu0
      %3336 = vmatprep.mubr.bf16.mxu0 0
      %3337 = vmatmul.mubr.bf16.gmra.mrb[0].mxu0 %v3226
      %v3338 = vpop.f32.mrb[0].mxu0
      %v3339 = vadd.f32 0.0, %v3338
      %v3340 = vpop.f32.mrb[0].mxu0
      %v3341 = vpop.f32.mrb[0].mxu0
      %v3342 = vadd.f32 0.0, %v3341
      %v3343 = vpop.f32.mrb[0].mxu0
      %3344 = vmatprep.mubr.bf16.mxu0 0
      %3345 = vmatmul.mubr.bf16.gmra.mrb[0].mxu0 %v3229
      %v3346 = vpop.f32.mrb[0].mxu0
      %v3347 = vadd.f32 0.0, %v3346
      %v3348 = vpop.f32.mrb[0].mxu0
      %v3349 = vpop.f32.mrb[0].mxu0
      %v3350 = vadd.f32 0.0, %v3349
      %v3351 = vpop.f32.mrb[0].mxu0
      %3352 = vmatprep.mubr.bf16.mxu0 0
      %3353 = vmatmul.mubr.bf16.gmra.mrb[0].mxu0 %v3232
      %v3354 = vpop.f32.mrb[0].mxu0
      %v3355 = vadd.f32 0.0, %v3354
      %v3356 = vpop.f32.mrb[0].mxu0
      %v3357 = vpop.f32.mrb[0].mxu0
      %v3358 = vadd.f32 0.0, %v3357
      %v3359 = vpop.f32.mrb[0].mxu0
      %3360 = vmatprep.mubr.bf16.mxu0 0
      %3361 = vmatmul.mubr.bf16.gmra.mrb[0].mxu0 %v3235
      %v3362 = vpop.f32.mrb[0].mxu0
      %v3363 = vadd.f32 0.0, %v3362
      %v3364 = vpop.f32.mrb[0].mxu0
      %v3365 = vpop.f32.mrb[0].mxu0
      %v3366 = vadd.f32 0.0, %v3365
      %v3367 = vpop.f32.mrb[0].mxu0
      %3368 = vmatprep.mubr.bf16.mxu0 0
      %3369 = vmatmul.mubr.bf16.gmra.mrb[0].mxu0 %v3238
      %v3370 = vpop.f32.mrb[0].mxu0
      %v3371 = vadd.f32 0.0, %v3370
      %v3372 = vpop.f32.mrb[0].mxu0
      %v3373 = vpop.f32.mrb[0].mxu0
      %v3374 = vadd.f32 0.0, %v3373
      %v3375 = vpop.f32.mrb[0].mxu0
      %3376 = vmatprep.mubr.bf16.mxu0 0
      %3377 = vmatmul.mubr.bf16.gmra.mrb[0].mxu0 %v3241
      %v3378 = vpop.f32.mrb[0].mxu0
      %v3379 = vadd.f32 0.0, %v3378
      %v3380 = vpop.f32.mrb[0].mxu0
      %v3381 = vpop.f32.mrb[0].mxu0
      %v3382 = vadd.f32 0.0, %v3381
      %v3383 = vpop.f32.mrb[0].mxu0
      %3384 = vmatprep.mubr.bf16.mxu0 0
      %3385 = vmatmul.mubr.bf16.gmra.mrb[0].mxu0 %v3244
      %v3386 = vpop.f32.mrb[0].mxu0
      %v3387 = vadd.f32 0.0, %v3386
      %v3388 = vpop.f32.mrb[0].mxu0
      %v3389 = vpop.f32.mrb[0].mxu0
      %v3390 = vadd.f32 0.0, %v3389
      %v3391 = vpop.f32.mrb[0].mxu0
      %3392 = vmatprep.mubr.bf16.mxu0 0
      %3393 = vmatmul.mubr.bf16.gmra.mrb[0].mxu0 %v3247
      %v3394 = vpop.f32.mrb[0].mxu0
      %v3395 = vadd.f32 0.0, %v3394
      %v3396 = vpop.f32.mrb[0].mxu0
      %v3397 = vpop.f32.mrb[0].mxu0
      %v3398 = vadd.f32 0.0, %v3397
      %v3399 = vpop.f32.mrb[0].mxu0
      %3400 = vmatprep.mubr.bf16.mxu0 0
      %3401 = vmatmul.mubr.bf16.gmra.mrb[0].mxu0 %v3250
      %v3402 = vpop.f32.mrb[0].mxu0
      %v3403 = vadd.f32 0.0, %v3402
      %v3404 = vpop.f32.mrb[0].mxu0
      %v3405 = vpop.f32.mrb[0].mxu0
      %v3406 = vadd.f32 0.0, %v3405
      %v3407 = vpop.f32.mrb[0].mxu0
      %3408 = vmatprep.mubr.bf16.mxu0 0
      %3409 = vmatmul.mubr.bf16.gmra.mrb[0].mxu0 %v3253
      %v3410 = vpop.f32.mrb[0].mxu0
      %v3411 = vadd.f32 0.0, %v3410
      %v3412 = vpop.f32.mrb[0].mxu0
      %v3413 = vpop.f32.mrb[0].mxu0
      %v3414 = vadd.f32 0.0, %v3413
      %v3415 = vpop.f32.mrb[0].mxu0
      %3416 = vmatprep.mubr.bf16.mxu0 0
      %3417 = vmatmul.mubr.bf16.gmra.mrb[0].mxu0 %v3256
      %v3418 = vpop.f32.mrb[0].mxu0
      %v3419 = vadd.f32 0.0, %v3418
      %v3420 = vpop.f32.mrb[0].mxu0
      %v3421 = vpop.f32.mrb[0].mxu0
      %v3422 = vadd.f32 0.0, %v3421
      %v3423 = vpop.f32.mrb[0].mxu0
      %3424 = vmatprep.mubr.bf16.mxu0 0
      %3425 = vmatmul.mubr.bf16.gmra.mrb[0].mxu0 %v3259
      %v3426 = vpop.f32.mrb[0].mxu0
      %v3427 = vadd.f32 0.0, %v3426
      %v3428 = vpop.f32.mrb[0].mxu0
      %v3429 = vpop.f32.mrb[0].mxu0
      %v3430 = vadd.f32 0.0, %v3429
      %v3431 = vpop.f32.mrb[0].mxu0
      %3432 = vmatprep.mubr.bf16.mxu0 0
      %3433 = vmatmul.mubr.bf16.gmra.mrb[0].mxu0 %v3262
      %v3434 = vpop.f32.mrb[0].mxu0
      %v3435 = vadd.f32 0.0, %v3434
      %v3436 = vpop.f32.mrb[0].mxu0
      %v3437 = vpop.f32.mrb[0].mxu0
      %v3438 = vadd.f32 0.0, %v3437
      %v3439 = vpop.f32.mrb[0].mxu0
      %3440 = vdwg.mxu0
      %v3441 = vadd.f32 %v2879, %v3299
      %v3442 = vadd.f32 %v2880, %v3302
      %v3443 = vadd.f32 %v2881, %v3307
      %v3444 = vadd.f32 %v2882, %v3310
      %v3445 = vadd.f32 %v2883, %v3315
      %v3446 = vadd.f32 %v2884, %v3318
      %v3447 = vadd.f32 %v2885, %v3323
      %v3448 = vadd.f32 %v2886, %v3326
      %v3449 = vadd.f32 %v2887, %v3331
      %v3450 = vadd.f32 %v2888, %v3334
      %v3451 = vadd.f32 %v2889, %v3339
      %v3452 = vadd.f32 %v2890, %v3342
      %v3453 = vadd.f32 %v2891, %v3347
      %v3454 = vadd.f32 %v2892, %v3350
      %v3455 = vadd.f32 %v2893, %v3355
      %v3456 = vadd.f32 %v2894, %v3358
      %v3457 = vadd.f32 %v2895, %v3363
      %v3458 = vadd.f32 %v2896, %v3366
      %v3459 = vadd.f32 %v2897, %v3371
      %v3460 = vadd.f32 %v2898, %v3374
      %v3461 = vadd.f32 %v2899, %v3379
      %v3462 = vadd.f32 %v2900, %v3382
      %v3463 = vadd.f32 %v2901, %v3387
      %v3464 = vadd.f32 %v2902, %v3390
      %v3465 = vadd.f32 %v2903, %v3395
      %v3466 = vadd.f32 %v2904, %v3398
      %v3467 = vadd.f32 %v2905, %v3403
      %v3468 = vadd.f32 %v2906, %v3406
      %v3469 = vadd.f32 %v2907, %v3411
      %v3470 = vadd.f32 %v2908, %v3414
      %v3471 = vadd.f32 %v2909, %v3419
      %v3472 = vadd.f32 %v2910, %v3422
      %v3473 = vadd.f32 %v2911, %v3427
      %v3474 = vadd.f32 %v2912, %v3430
      %v3475 = vadd.f32 %v2913, %v3435
      %v3476 = vadd.f32 %v2914, %v3438
      %v3477 = vld [vmem:[%s246 + $0x18] sm:$0xe]
      %s3478 = scalar_lea.vmem %s1, 112
      %v3479 = vld [vmem:[%s3478] sm:$0xf]
      %v3480 = vld [vmem:[%s3478 + $0x4] sm:$0xf]
      %v3481 = vld [vmem:[%s3478 + $0x8] sm:$0xf]
      %v3482 = vld [vmem:[%s3478 + $0xc] sm:$0xf]
      %v3484 = vunpack.c.l.b16 %v3477
      %v3485 = vpack.c.b16 %v2995, %v3484
      %vm3486 = vcmask 1046528
      %v3487 = vrot.slane %v3485, 1
      %v3488 = vrot.slane %v3032, 1
      %v3489 = vsel %vm3486, %v3487, %v3488
      %v3490 = vrot.slane %v3033, 1
      %v3491 = vsel %vm3486, %v3488, %v3490
      %v3492 = vrot.slane %v3034, 1
      %v3493 = vsel %vm3486, %v3490, %v3492
      %v3494 = vrot.slane %v3035, 1
      %v3495 = vsel %vm3486, %v3492, %v3494
      %v3496 = vrot.slane %v3036, 1
      %v3497 = vsel %vm3486, %v3494, %v3496
      %v3498 = vrot.slane %v3037, 1
      %v3499 = vsel %vm3486, %v3496, %v3498
      %v3500 = vrot.slane %v3038, 1
      %v3501 = vsel %vm3486, %v3498, %v3500
      %v3502 = vrot.slane %v3039, 1
      %v3503 = vsel %vm3486, %v3500, %v3502
      %v3504 = vrot.slane %v3040, 1
      %v3505 = vsel %vm3486, %v3502, %v3504
      %v3506 = vrot.slane %v3041, 1
      %v3507 = vsel %vm3486, %v3504, %v3506
      %v3508 = vrot.slane %v3042, 1
      %v3509 = vsel %vm3486, %v3506, %v3508
      %v3510 = vrot.slane %v3043, 1
      %v3511 = vsel %vm3486, %v3508, %v3510
      %v3512 = vrot.slane %v3044, 1
      %v3513 = vsel %vm3486, %v3510, %v3512
      %v3514 = vrot.slane %v3045, 1
      %v3515 = vsel %vm3486, %v3512, %v3514
      %v3516 = vrot.slane %v3046, 1
      %v3517 = vsel %vm3486, %v3514, %v3516
      %v3518 = vrot.slane %v3047, 1
      %v3519 = vsel %vm3486, %v3516, %v3518
      %v3520 = vrot.slane %v3048, 1
      %v3521 = vsel %vm3486, %v3518, %v3520
      %v3522 = vrot.slane %v3049, 1
      %v3523 = vsel %vm3486, %v3520, %v3522
      %v3528 = vunpack.c.l.b16 %v3479
      %v3529 = vunpack.c.l.b16 %v3480
      %v3530 = vunpack.c.l.b16 %v3481
      %v3531 = vunpack.c.l.b16 %v3482
      %v3532 = vpack.c.b16 %v3529, %v3528
      %v3533 = vpack.c.b16 %v3531, %v3530
      %v3537 = vsel %vm443, %v3489, 0
      %v3540 = vsel %vm443, %v3491, 0
      %v3543 = vsel %vm443, %v3493, 0
      %v3546 = vsel %vm443, %v3495, 0
      %v3549 = vsel %vm443, %v3497, 0
      %v3552 = vsel %vm443, %v3499, 0
      %v3555 = vsel %vm443, %v3501, 0
      %v3558 = vsel %vm443, %v3503, 0
      %v3561 = vsel %vm443, %v3505, 0
      %v3564 = vsel %vm443, %v3507, 0
      %v3567 = vsel %vm443, %v3509, 0
      %v3570 = vsel %vm443, %v3511, 0
      %v3573 = vsel %vm443, %v3513, 0
      %v3576 = vsel %vm443, %v3515, 0
      %v3579 = vsel %vm443, %v3517, 0
      %v3582 = vsel %vm443, %v3519, 0
      %v3585 = vsel %vm443, %v3521, 0
      %v3588 = vsel %vm443, %v3523, 0
      %3590 = vmatprep.subr.bf16.mxu0 0
      %3591 = vmatpush1.bf16.msra.mxu0 %v3532
      %3592 = vmatprep.subr.bf16.mxu0 0
      %3593 = vmatpush1.bf16.msra.mxu0 %v3533
      %3594 = vmatprep.subr.bf16.mxu0 0
      %3595 = vmatpush1.bf16.msra.mxu0 0
      %3596 = vmatprep.subr.bf16.mxu0 0
      %3597 = vmatpush1.bf16.msra.mxu0 0
      %3598 = vmatprep.subr.bf16.mxu0 0
      %3599 = vmatpush1.bf16.msra.mxu0 0
      %3600 = vmatprep.subr.bf16.mxu0 0
      %3601 = vmatpush1.bf16.msra.mxu0 0
      %3602 = vmatprep.subr.bf16.mxu0 0
      %3603 = vmatpush1.bf16.msra.mxu0 0
      %3604 = vmatprep.subr.bf16.mxu0 0
      %3605 = vmatpush1.bf16.msra.mxu0 0
      %3606 = vmatprep.subr.bf16.mxu0 0
      %3607 = vmatpush1.bf16.msra.mxu0 0
      %3608 = vmatprep.subr.bf16.mxu0 0
      %3609 = vmatpush1.bf16.msra.mxu0 0
      %3610 = vmatprep.subr.bf16.mxu0 0
      %3611 = vmatpush1.bf16.msra.mxu0 0
      %3612 = vmatprep.subr.bf16.mxu0 0
      %3613 = vmatpush1.bf16.msra.mxu0 0
      %3614 = vmatprep.subr.bf16.mxu0 0
      %3615 = vmatpush1.bf16.msra.mxu0 0
      %3616 = vmatprep.subr.bf16.mxu0 0
      %3617 = vmatpush1.bf16.msra.mxu0 0
      %3618 = vmatprep.subr.bf16.mxu0 0
      %3619 = vmatpush1.bf16.msra.mxu0 0
      %3620 = vmatprep.subr.bf16.mxu0 0
      %3621 = vmatpush1.bf16.msra.mxu0 0
      %3622 = vmatprep.mubr.bf16.mxu0 0
      %3623 = vmatmul.mubr.bf16.gmra.mrb[0].mxu0 %v3537
      %v3624 = vpop.f32.mrb[0].mxu0
      %v3625 = vadd.f32 0.0, %v3624
      %v3626 = vpop.f32.mrb[0].mxu0
      %v3627 = vpop.f32.mrb[0].mxu0
      %v3628 = vadd.f32 0.0, %v3627
      %v3629 = vpop.f32.mrb[0].mxu0
      %3630 = vmatprep.mubr.bf16.mxu0 0
      %3631 = vmatmul.mubr.bf16.gmra.mrb[0].mxu0 %v3540
      %v3632 = vpop.f32.mrb[0].mxu0
      %v3633 = vadd.f32 0.0, %v3632
      %v3634 = vpop.f32.mrb[0].mxu0
      %v3635 = vpop.f32.mrb[0].mxu0
      %v3636 = vadd.f32 0.0, %v3635
      %v3637 = vpop.f32.mrb[0].mxu0
      %3638 = vmatprep.mubr.bf16.mxu0 0
      %3639 = vmatmul.mubr.bf16.gmra.mrb[0].mxu0 %v3543
      %v3640 = vpop.f32.mrb[0].mxu0
      %v3641 = vadd.f32 0.0, %v3640
      %v3642 = vpop.f32.mrb[0].mxu0
      %v3643 = vpop.f32.mrb[0].mxu0
      %v3644 = vadd.f32 0.0, %v3643
      %v3645 = vpop.f32.mrb[0].mxu0
      %3646 = vmatprep.mubr.bf16.mxu0 0
      %3647 = vmatmul.mubr.bf16.gmra.mrb[0].mxu0 %v3546
      %v3648 = vpop.f32.mrb[0].mxu0
      %v3649 = vadd.f32 0.0, %v3648
      %v3650 = vpop.f32.mrb[0].mxu0
      %v3651 = vpop.f32.mrb[0].mxu0
      %v3652 = vadd.f32 0.0, %v3651
      %v3653 = vpop.f32.mrb[0].mxu0
      %3654 = vmatprep.mubr.bf16.mxu0 0
      %3655 = vmatmul.mubr.bf16.gmra.mrb[0].mxu0 %v3549
      %v3656 = vpop.f32.mrb[0].mxu0
      %v3657 = vadd.f32 0.0, %v3656
      %v3658 = vpop.f32.mrb[0].mxu0
      %v3659 = vpop.f32.mrb[0].mxu0
      %v3660 = vadd.f32 0.0, %v3659
      %v3661 = vpop.f32.mrb[0].mxu0
      %3662 = vmatprep.mubr.bf16.mxu0 0
      %3663 = vmatmul.mubr.bf16.gmra.mrb[0].mxu0 %v3552
      %v3664 = vpop.f32.mrb[0].mxu0
      %v3665 = vadd.f32 0.0, %v3664
      %v3666 = vpop.f32.mrb[0].mxu0
      %v3667 = vpop.f32.mrb[0].mxu0
      %v3668 = vadd.f32 0.0, %v3667
      %v3669 = vpop.f32.mrb[0].mxu0
      %3670 = vmatprep.mubr.bf16.mxu0 0
      %3671 = vmatmul.mubr.bf16.gmra.mrb[0].mxu0 %v3555
      %v3672 = vpop.f32.mrb[0].mxu0
      %v3673 = vadd.f32 0.0, %v3672
      %v3674 = vpop.f32.mrb[0].mxu0
      %v3675 = vpop.f32.mrb[0].mxu0
      %v3676 = vadd.f32 0.0, %v3675
      %v3677 = vpop.f32.mrb[0].mxu0
      %3678 = vmatprep.mubr.bf16.mxu0 0
      %3679 = vmatmul.mubr.bf16.gmra.mrb[0].mxu0 %v3558
      %v3680 = vpop.f32.mrb[0].mxu0
      %v3681 = vadd.f32 0.0, %v3680
      %v3682 = vpop.f32.mrb[0].mxu0
      %v3683 = vpop.f32.mrb[0].mxu0
      %v3684 = vadd.f32 0.0, %v3683
      %v3685 = vpop.f32.mrb[0].mxu0
      %3686 = vmatprep.mubr.bf16.mxu0 0
      %3687 = vmatmul.mubr.bf16.gmra.mrb[0].mxu0 %v3561
      %v3688 = vpop.f32.mrb[0].mxu0
      %v3689 = vadd.f32 0.0, %v3688
      %v3690 = vpop.f32.mrb[0].mxu0
      %v3691 = vpop.f32.mrb[0].mxu0
      %v3692 = vadd.f32 0.0, %v3691
      %v3693 = vpop.f32.mrb[0].mxu0
      %3694 = vmatprep.mubr.bf16.mxu0 0
      %3695 = vmatmul.mubr.bf16.gmra.mrb[0].mxu0 %v3564
      %v3696 = vpop.f32.mrb[0].mxu0
      %v3697 = vadd.f32 0.0, %v3696
      %v3698 = vpop.f32.mrb[0].mxu0
      %v3699 = vpop.f32.mrb[0].mxu0
      %v3700 = vadd.f32 0.0, %v3699
      %v3701 = vpop.f32.mrb[0].mxu0
      %3702 = vmatprep.mubr.bf16.mxu0 0
      %3703 = vmatmul.mubr.bf16.gmra.mrb[0].mxu0 %v3567
      %v3704 = vpop.f32.mrb[0].mxu0
      %v3705 = vadd.f32 0.0, %v3704
      %v3706 = vpop.f32.mrb[0].mxu0
      %v3707 = vpop.f32.mrb[0].mxu0
      %v3708 = vadd.f32 0.0, %v3707
      %v3709 = vpop.f32.mrb[0].mxu0
      %3710 = vmatprep.mubr.bf16.mxu0 0
      %3711 = vmatmul.mubr.bf16.gmra.mrb[0].mxu0 %v3570
      %v3712 = vpop.f32.mrb[0].mxu0
      %v3713 = vadd.f32 0.0, %v3712
      %v3714 = vpop.f32.mrb[0].mxu0
      %v3715 = vpop.f32.mrb[0].mxu0
      %v3716 = vadd.f32 0.0, %v3715
      %v3717 = vpop.f32.mrb[0].mxu0
      %3718 = vmatprep.mubr.bf16.mxu0 0
      %3719 = vmatmul.mubr.bf16.gmra.mrb[0].mxu0 %v3573
      %v3720 = vpop.f32.mrb[0].mxu0
      %v3721 = vadd.f32 0.0, %v3720
      %v3722 = vpop.f32.mrb[0].mxu0
      %v3723 = vpop.f32.mrb[0].mxu0
      %v3724 = vadd.f32 0.0, %v3723
      %v3725 = vpop.f32.mrb[0].mxu0
      %3726 = vmatprep.mubr.bf16.mxu0 0
      %3727 = vmatmul.mubr.bf16.gmra.mrb[0].mxu0 %v3576
      %v3728 = vpop.f32.mrb[0].mxu0
      %v3729 = vadd.f32 0.0, %v3728
      %v3730 = vpop.f32.mrb[0].mxu0
      %v3731 = vpop.f32.mrb[0].mxu0
      %v3732 = vadd.f32 0.0, %v3731
      %v3733 = vpop.f32.mrb[0].mxu0
      %3734 = vmatprep.mubr.bf16.mxu0 0
      %3735 = vmatmul.mubr.bf16.gmra.mrb[0].mxu0 %v3579
      %v3736 = vpop.f32.mrb[0].mxu0
      %v3737 = vadd.f32 0.0, %v3736
      %v3738 = vpop.f32.mrb[0].mxu0
      %v3739 = vpop.f32.mrb[0].mxu0
      %v3740 = vadd.f32 0.0, %v3739
      %v3741 = vpop.f32.mrb[0].mxu0
      %3742 = vmatprep.mubr.bf16.mxu0 0
      %3743 = vmatmul.mubr.bf16.gmra.mrb[0].mxu0 %v3582
      %v3744 = vpop.f32.mrb[0].mxu0
      %v3745 = vadd.f32 0.0, %v3744
      %v3746 = vpop.f32.mrb[0].mxu0
      %v3747 = vpop.f32.mrb[0].mxu0
      %v3748 = vadd.f32 0.0, %v3747
      %v3749 = vpop.f32.mrb[0].mxu0
      %3750 = vmatprep.mubr.bf16.mxu0 0
      %3751 = vmatmul.mubr.bf16.gmra.mrb[0].mxu0 %v3585
      %v3752 = vpop.f32.mrb[0].mxu0
      %v3753 = vadd.f32 0.0, %v3752
      %v3754 = vpop.f32.mrb[0].mxu0
      %v3755 = vpop.f32.mrb[0].mxu0
      %v3756 = vadd.f32 0.0, %v3755
      %v3757 = vpop.f32.mrb[0].mxu0
      %3758 = vmatprep.mubr.bf16.mxu0 0
      %3759 = vmatmul.mubr.bf16.gmra.mrb[0].mxu0 %v3588
      %v3760 = vpop.f32.mrb[0].mxu0
      %v3761 = vadd.f32 0.0, %v3760
      %v3762 = vpop.f32.mrb[0].mxu0
      %v3763 = vpop.f32.mrb[0].mxu0
      %v3764 = vadd.f32 0.0, %v3763
      %v3765 = vpop.f32.mrb[0].mxu0
      %3766 = vdwg.mxu0
      %v3767 = vadd.f32 %v3441, %v3625
      %v3768 = vadd.f32 %v3442, %v3628
      %v3769 = vadd.f32 %v3443, %v3633
      %v3770 = vadd.f32 %v3444, %v3636
      %v3771 = vadd.f32 %v3445, %v3641
      %v3772 = vadd.f32 %v3446, %v3644
      %v3773 = vadd.f32 %v3447, %v3649
      %v3774 = vadd.f32 %v3448, %v3652
      %v3775 = vadd.f32 %v3449, %v3657
      %v3776 = vadd.f32 %v3450, %v3660
      %v3777 = vadd.f32 %v3451, %v3665
      %v3778 = vadd.f32 %v3452, %v3668
      %v3779 = vadd.f32 %v3453, %v3673
      %v3780 = vadd.f32 %v3454, %v3676
      %v3781 = vadd.f32 %v3455, %v3681
      %v3782 = vadd.f32 %v3456, %v3684
      %v3783 = vadd.f32 %v3457, %v3689
      %v3784 = vadd.f32 %v3458, %v3692
      %v3785 = vadd.f32 %v3459, %v3697
      %v3786 = vadd.f32 %v3460, %v3700
      %v3787 = vadd.f32 %v3461, %v3705
      %v3788 = vadd.f32 %v3462, %v3708
      %v3789 = vadd.f32 %v3463, %v3713
      %v3790 = vadd.f32 %v3464, %v3716
      %v3791 = vadd.f32 %v3465, %v3721
      %v3792 = vadd.f32 %v3466, %v3724
      %v3793 = vadd.f32 %v3467, %v3729
      %v3794 = vadd.f32 %v3468, %v3732
      %v3795 = vadd.f32 %v3469, %v3737
      %v3796 = vadd.f32 %v3470, %v3740
      %v3797 = vadd.f32 %v3471, %v3745
      %v3798 = vadd.f32 %v3472, %v3748
      %v3799 = vadd.f32 %v3473, %v3753
      %v3800 = vadd.f32 %v3474, %v3756
      %v3801 = vadd.f32 %v3475, %v3761
      %v3802 = vadd.f32 %v3476, %v3764
      %v3803 = vld [vmem:[%s246 + $0xa8] sm:$0x3]
      %s3804 = scalar_lea.vmem %s1, 128
      %v3805 = vld [vmem:[%s3804] sm:$0xf]
      %v3806 = vld [vmem:[%s3804 + $0x4] sm:$0xf]
      %v3807 = vld [vmem:[%s3804 + $0x8] sm:$0xf]
      %v3808 = vld [vmem:[%s3804 + $0xc] sm:$0xf]
      %v3810 = vunpack.c.l.b16 %v3803
      %v3811 = vpack.c.b16 %v3810, %v3810
      %vm3812 = vsmask.f32 6400
      %v3814 = vshrl.u32 %v3485, 16
      %v3816 = vrot.slane %v3814, 1
      %v3817 = vshll.u32 %v3485, 16
      %v3819 = vrot.slane %v3817, 2
      %v3820 = vor.u32 %v3816, %v3819
      %v3821 = vrot.slane %v3062, 1
      %v3822 = vrot.slane %v3058, 2
      %v3823 = vor.u32 %v3821, %v3822
      %v3824 = vsel %vm3812, %v3820, %v3823
      %v3825 = vrot.slane %v3070, 1
      %v3826 = vrot.slane %v3066, 2
      %v3827 = vor.u32 %v3825, %v3826
      %v3828 = vsel %vm3812, %v3823, %v3827
      %v3829 = vrot.slane %v3078, 1
      %v3830 = vrot.slane %v3074, 2
      %v3831 = vor.u32 %v3829, %v3830
      %v3832 = vsel %vm3812, %v3827, %v3831
      %v3833 = vrot.slane %v3086, 1
      %v3834 = vrot.slane %v3082, 2
      %v3835 = vor.u32 %v3833, %v3834
      %v3836 = vsel %vm3812, %v3831, %v3835
      %v3837 = vrot.slane %v3094, 1
      %v3838 = vrot.slane %v3090, 2
      %v3839 = vor.u32 %v3837, %v3838
      %v3840 = vsel %vm3812, %v3835, %v3839
      %v3841 = vrot.slane %v3102, 1
      %v3842 = vrot.slane %v3098, 2
      %v3843 = vor.u32 %v3841, %v3842
      %v3844 = vsel %vm3812, %v3839, %v3843
      %v3845 = vrot.slane %v3110, 1
      %v3846 = vrot.slane %v3106, 2
      %v3847 = vor.u32 %v3845, %v3846
      %v3848 = vsel %vm3812, %v3843, %v3847
      %v3849 = vrot.slane %v3118, 1
      %v3850 = vrot.slane %v3114, 2
      %v3851 = vor.u32 %v3849, %v3850
      %v3852 = vsel %vm3812, %v3847, %v3851
      %v3853 = vrot.slane %v3126, 1
      %v3854 = vrot.slane %v3122, 2
      %v3855 = vor.u32 %v3853, %v3854
      %v3856 = vsel %vm3812, %v3851, %v3855
      %v3857 = vrot.slane %v3134, 1
      %v3858 = vrot.slane %v3130, 2
      %v3859 = vor.u32 %v3857, %v3858
      %v3860 = vsel %vm3812, %v3855, %v3859
      %v3861 = vrot.slane %v3142, 1
      %v3862 = vrot.slane %v3138, 2
      %v3863 = vor.u32 %v3861, %v3862
      %v3864 = vsel %vm3812, %v3859, %v3863
      %v3865 = vrot.slane %v3150, 1
      %v3866 = vrot.slane %v3146, 2
      %v3867 = vor.u32 %v3865, %v3866
      %v3868 = vsel %vm3812, %v3863, %v3867
      %v3869 = vrot.slane %v3158, 1
      %v3870 = vrot.slane %v3154, 2
      %v3871 = vor.u32 %v3869, %v3870
      %v3872 = vsel %vm3812, %v3867, %v3871
      %v3873 = vrot.slane %v3166, 1
      %v3874 = vrot.slane %v3162, 2
      %v3875 = vor.u32 %v3873, %v3874
      %v3876 = vsel %vm3812, %v3871, %v3875
      %v3877 = vrot.slane %v3174, 1
      %v3878 = vrot.slane %v3170, 2
      %v3879 = vor.u32 %v3877, %v3878
      %v3880 = vsel %vm3812, %v3875, %v3879
      %v3881 = vrot.slane %v3182, 1
      %v3882 = vrot.slane %v3178, 2
      %v3883 = vor.u32 %v3881, %v3882
      %v3884 = vsel %vm3812, %v3879, %v3883
      %v3885 = vrot.slane %v3190, 1
      %v3886 = vrot.slane %v3186, 2
      %v3887 = vor.u32 %v3885, %v3886
      %v3888 = vsel %vm3812, %v3883, %v3887
      %v3890 = vshrl.u32 %v3811, 16
      %v3892 = vrot.slane %v3890, 1
      %v3893 = vshll.u32 %v3811, 16
      %v3895 = vrot.slane %v3893, 2
      %v3896 = vor.u32 %v3892, %v3895
      %v3897 = vsel %vm3812, %v3887, %v3896
      %v3902 = vunpack.c.l.b16 %v3805
      %v3903 = vunpack.c.l.b16 %v3806
      %v3904 = vunpack.c.l.b16 %v3807
      %v3905 = vunpack.c.l.b16 %v3808
      %v3906 = vpack.c.b16 %v3903, %v3902
      %v3907 = vpack.c.b16 %v3905, %v3904
      %v3911 = vsel %vm443, %v3824, 0
      %v3914 = vsel %vm443, %v3828, 0
      %v3917 = vsel %vm443, %v3832, 0
      %v3920 = vsel %vm443, %v3836, 0
      %v3923 = vsel %vm443, %v3840, 0
      %v3926 = vsel %vm443, %v3844, 0
      %v3929 = vsel %vm443, %v3848, 0
      %v3932 = vsel %vm443, %v3852, 0
      %v3935 = vsel %vm443, %v3856, 0
      %v3938 = vsel %vm443, %v3860, 0
      %v3941 = vsel %vm443, %v3864, 0
      %v3944 = vsel %vm443, %v3868, 0
      %v3947 = vsel %vm443, %v3872, 0
      %v3950 = vsel %vm443, %v3876, 0
      %v3953 = vsel %vm443, %v3880, 0
      %v3956 = vsel %vm443, %v3884, 0
      %v3959 = vsel %vm443, %v3888, 0
      %v3962 = vsel %vm443, %v3897, 0
      %3964 = vmatprep.subr.bf16.mxu0 0
      %3965 = vmatpush1.bf16.msra.mxu0 %v3906
      %3966 = vmatprep.subr.bf16.mxu0 0
      %3967 = vmatpush1.bf16.msra.mxu0 %v3907
      %3968 = vmatprep.subr.bf16.mxu0 0
      %3969 = vmatpush1.bf16.msra.mxu0 0
      %3970 = vmatprep.subr.bf16.mxu0 0
      %3971 = vmatpush1.bf16.msra.mxu0 0
      %3972 = vmatprep.subr.bf16.mxu0 0
      %3973 = vmatpush1.bf16.msra.mxu0 0
      %3974 = vmatprep.subr.bf16.mxu0 0
      %3975 = vmatpush1.bf16.msra.mxu0 0
      %3976 = vmatprep.subr.bf16.mxu0 0
      %3977 = vmatpush1.bf16.msra.mxu0 0
      %3978 = vmatprep.subr.bf16.mxu0 0
      %3979 = vmatpush1.bf16.msra.mxu0 0
      %3980 = vmatprep.subr.bf16.mxu0 0
      %3981 = vmatpush1.bf16.msra.mxu0 0
      %3982 = vmatprep.subr.bf16.mxu0 0
      %3983 = vmatpush1.bf16.msra.mxu0 0
      %3984 = vmatprep.subr.bf16.mxu0 0
      %3985 = vmatpush1.bf16.msra.mxu0 0
      %3986 = vmatprep.subr.bf16.mxu0 0
      %3987 = vmatpush1.bf16.msra.mxu0 0
      %3988 = vmatprep.subr.bf16.mxu0 0
      %3989 = vmatpush1.bf16.msra.mxu0 0
      %3990 = vmatprep.subr.bf16.mxu0 0
      %3991 = vmatpush1.bf16.msra.mxu0 0
      %3992 = vmatprep.subr.bf16.mxu0 0
      %3993 = vmatpush1.bf16.msra.mxu0 0
      %3994 = vmatprep.subr.bf16.mxu0 0
      %3995 = vmatpush1.bf16.msra.mxu0 0
      %3996 = vmatprep.mubr.bf16.mxu0 0
      %3997 = vmatmul.mubr.bf16.gmra.mrb[0].mxu0 %v3911
      %v3998 = vpop.f32.mrb[0].mxu0
      %v3999 = vadd.f32 0.0, %v3998
      %v4000 = vpop.f32.mrb[0].mxu0
      %v4001 = vpop.f32.mrb[0].mxu0
      %v4002 = vadd.f32 0.0, %v4001
      %v4003 = vpop.f32.mrb[0].mxu0
      %4004 = vmatprep.mubr.bf16.mxu0 0
      %4005 = vmatmul.mubr.bf16.gmra.mrb[0].mxu0 %v3914
      %v4006 = vpop.f32.mrb[0].mxu0
      %v4007 = vadd.f32 0.0, %v4006
      %v4008 = vpop.f32.mrb[0].mxu0
      %v4009 = vpop.f32.mrb[0].mxu0
      %v4010 = vadd.f32 0.0, %v4009
      %v4011 = vpop.f32.mrb[0].mxu0
      %4012 = vmatprep.mubr.bf16.mxu0 0
      %4013 = vmatmul.mubr.bf16.gmra.mrb[0].mxu0 %v3917
      %v4014 = vpop.f32.mrb[0].mxu0
      %v4015 = vadd.f32 0.0, %v4014
      %v4016 = vpop.f32.mrb[0].mxu0
      %v4017 = vpop.f32.mrb[0].mxu0
      %v4018 = vadd.f32 0.0, %v4017
      %v4019 = vpop.f32.mrb[0].mxu0
      %4020 = vmatprep.mubr.bf16.mxu0 0
      %4021 = vmatmul.mubr.bf16.gmra.mrb[0].mxu0 %v3920
      %v4022 = vpop.f32.mrb[0].mxu0
      %v4023 = vadd.f32 0.0, %v4022
      %v4024 = vpop.f32.mrb[0].mxu0
      %v4025 = vpop.f32.mrb[0].mxu0
      %v4026 = vadd.f32 0.0, %v4025
      %v4027 = vpop.f32.mrb[0].mxu0
      %4028 = vmatprep.mubr.bf16.mxu0 0
      %4029 = vmatmul.mubr.bf16.gmra.mrb[0].mxu0 %v3923
      %v4030 = vpop.f32.mrb[0].mxu0
      %v4031 = vadd.f32 0.0, %v4030
      %v4032 = vpop.f32.mrb[0].mxu0
      %v4033 = vpop.f32.mrb[0].mxu0
      %v4034 = vadd.f32 0.0, %v4033
      %v4035 = vpop.f32.mrb[0].mxu0
      %4036 = vmatprep.mubr.bf16.mxu0 0
      %4037 = vmatmul.mubr.bf16.gmra.mrb[0].mxu0 %v3926
      %v4038 = vpop.f32.mrb[0].mxu0
      %v4039 = vadd.f32 0.0, %v4038
      %v4040 = vpop.f32.mrb[0].mxu0
      %v4041 = vpop.f32.mrb[0].mxu0
      %v4042 = vadd.f32 0.0, %v4041
      %v4043 = vpop.f32.mrb[0].mxu0
      %4044 = vmatprep.mubr.bf16.mxu0 0
      %4045 = vmatmul.mubr.bf16.gmra.mrb[0].mxu0 %v3929
      %v4046 = vpop.f32.mrb[0].mxu0
      %v4047 = vadd.f32 0.0, %v4046
      %v4048 = vpop.f32.mrb[0].mxu0
      %v4049 = vpop.f32.mrb[0].mxu0
      %v4050 = vadd.f32 0.0, %v4049
      %v4051 = vpop.f32.mrb[0].mxu0
      %4052 = vmatprep.mubr.bf16.mxu0 0
      %4053 = vmatmul.mubr.bf16.gmra.mrb[0].mxu0 %v3932
      %v4054 = vpop.f32.mrb[0].mxu0
      %v4055 = vadd.f32 0.0, %v4054
      %v4056 = vpop.f32.mrb[0].mxu0
      %v4057 = vpop.f32.mrb[0].mxu0
      %v4058 = vadd.f32 0.0, %v4057
      %v4059 = vpop.f32.mrb[0].mxu0
      %4060 = vmatprep.mubr.bf16.mxu0 0
      %4061 = vmatmul.mubr.bf16.gmra.mrb[0].mxu0 %v3935
      %v4062 = vpop.f32.mrb[0].mxu0
      %v4063 = vadd.f32 0.0, %v4062
      %v4064 = vpop.f32.mrb[0].mxu0
      %v4065 = vpop.f32.mrb[0].mxu0
      %v4066 = vadd.f32 0.0, %v4065
      %v4067 = vpop.f32.mrb[0].mxu0
      %4068 = vmatprep.mubr.bf16.mxu0 0
      %4069 = vmatmul.mubr.bf16.gmra.mrb[0].mxu0 %v3938
      %v4070 = vpop.f32.mrb[0].mxu0
      %v4071 = vadd.f32 0.0, %v4070
      %v4072 = vpop.f32.mrb[0].mxu0
      %v4073 = vpop.f32.mrb[0].mxu0
      %v4074 = vadd.f32 0.0, %v4073
      %v4075 = vpop.f32.mrb[0].mxu0
      %4076 = vmatprep.mubr.bf16.mxu0 0
      %4077 = vmatmul.mubr.bf16.gmra.mrb[0].mxu0 %v3941
      %v4078 = vpop.f32.mrb[0].mxu0
      %v4079 = vadd.f32 0.0, %v4078
      %v4080 = vpop.f32.mrb[0].mxu0
      %v4081 = vpop.f32.mrb[0].mxu0
      %v4082 = vadd.f32 0.0, %v4081
      %v4083 = vpop.f32.mrb[0].mxu0
      %4084 = vmatprep.mubr.bf16.mxu0 0
      %4085 = vmatmul.mubr.bf16.gmra.mrb[0].mxu0 %v3944
      %v4086 = vpop.f32.mrb[0].mxu0
      %v4087 = vadd.f32 0.0, %v4086
      %v4088 = vpop.f32.mrb[0].mxu0
      %v4089 = vpop.f32.mrb[0].mxu0
      %v4090 = vadd.f32 0.0, %v4089
      %v4091 = vpop.f32.mrb[0].mxu0
      %4092 = vmatprep.mubr.bf16.mxu0 0
      %4093 = vmatmul.mubr.bf16.gmra.mrb[0].mxu0 %v3947
      %v4094 = vpop.f32.mrb[0].mxu0
      %v4095 = vadd.f32 0.0, %v4094
      %v4096 = vpop.f32.mrb[0].mxu0
      %v4097 = vpop.f32.mrb[0].mxu0
      %v4098 = vadd.f32 0.0, %v4097
      %v4099 = vpop.f32.mrb[0].mxu0
      %4100 = vmatprep.mubr.bf16.mxu0 0
      %4101 = vmatmul.mubr.bf16.gmra.mrb[0].mxu0 %v3950
      %v4102 = vpop.f32.mrb[0].mxu0
      %v4103 = vadd.f32 0.0, %v4102
      %v4104 = vpop.f32.mrb[0].mxu0
      %v4105 = vpop.f32.mrb[0].mxu0
      %v4106 = vadd.f32 0.0, %v4105
      %v4107 = vpop.f32.mrb[0].mxu0
      %4108 = vmatprep.mubr.bf16.mxu0 0
      %4109 = vmatmul.mubr.bf16.gmra.mrb[0].mxu0 %v3953
      %v4110 = vpop.f32.mrb[0].mxu0
      %v4111 = vadd.f32 0.0, %v4110
      %v4112 = vpop.f32.mrb[0].mxu0
      %v4113 = vpop.f32.mrb[0].mxu0
      %v4114 = vadd.f32 0.0, %v4113
      %v4115 = vpop.f32.mrb[0].mxu0
      %4116 = vmatprep.mubr.bf16.mxu0 0
      %4117 = vmatmul.mubr.bf16.gmra.mrb[0].mxu0 %v3956
      %v4118 = vpop.f32.mrb[0].mxu0
      %v4119 = vadd.f32 0.0, %v4118
      %v4120 = vpop.f32.mrb[0].mxu0
      %v4121 = vpop.f32.mrb[0].mxu0
      %v4122 = vadd.f32 0.0, %v4121
      %v4123 = vpop.f32.mrb[0].mxu0
      %4124 = vmatprep.mubr.bf16.mxu0 0
      %4125 = vmatmul.mubr.bf16.gmra.mrb[0].mxu0 %v3959
      %v4126 = vpop.f32.mrb[0].mxu0
      %v4127 = vadd.f32 0.0, %v4126
      %v4128 = vpop.f32.mrb[0].mxu0
      %v4129 = vpop.f32.mrb[0].mxu0
      %v4130 = vadd.f32 0.0, %v4129
      %v4131 = vpop.f32.mrb[0].mxu0
      %4132 = vmatprep.mubr.bf16.mxu0 0
      %4133 = vmatmul.mubr.bf16.gmra.mrb[0].mxu0 %v3962
      %v4134 = vpop.f32.mrb[0].mxu0
      %v4135 = vadd.f32 0.0, %v4134
      %v4136 = vpop.f32.mrb[0].mxu0
      %v4137 = vpop.f32.mrb[0].mxu0
      %v4138 = vadd.f32 0.0, %v4137
      %v4139 = vpop.f32.mrb[0].mxu0
      %4140 = vdwg.mxu0
      %v4141 = vadd.f32 %v3767, %v3999
      %v4142 = vadd.f32 %v3768, %v4002
      %v4143 = vadd.f32 %v3769, %v4007
      %v4144 = vadd.f32 %v3770, %v4010
      %v4145 = vadd.f32 %v3771, %v4015
      %v4146 = vadd.f32 %v3772, %v4018
      %v4147 = vadd.f32 %v3773, %v4023
      %v4148 = vadd.f32 %v3774, %v4026
      %v4149 = vadd.f32 %v3775, %v4031
      %v4150 = vadd.f32 %v3776, %v4034
      %v4151 = vadd.f32 %v3777, %v4039
      %v4152 = vadd.f32 %v3778, %v4042
      %v4153 = vadd.f32 %v3779, %v4047
      %v4154 = vadd.f32 %v3780, %v4050
      %v4155 = vadd.f32 %v3781, %v4055
      %v4156 = vadd.f32 %v3782, %v4058
      %v4157 = vadd.f32 %v3783, %v4063
      %v4158 = vadd.f32 %v3784, %v4066
      %v4159 = vadd.f32 %v3785, %v4071
      %v4160 = vadd.f32 %v3786, %v4074
      %v4161 = vadd.f32 %v3787, %v4079
      %v4162 = vadd.f32 %v3788, %v4082
      %v4163 = vadd.f32 %v3789, %v4087
      %v4164 = vadd.f32 %v3790, %v4090
      %v4165 = vadd.f32 %v3791, %v4095
      %v4166 = vadd.f32 %v3792, %v4098
      %v4167 = vadd.f32 %v3793, %v4103
      %v4168 = vadd.f32 %v3794, %v4106
      %v4169 = vadd.f32 %v3795, %v4111
      %v4170 = vadd.f32 %v3796, %v4114
      %v4171 = vadd.f32 %v3797, %v4119
      %v4172 = vadd.f32 %v3798, %v4122
      %v4173 = vadd.f32 %v3799, %v4127
      %v4174 = vadd.f32 %v3800, %v4130
      %v4175 = vadd.f32 %v3801, %v4135
      %v4176 = vadd.f32 %v3802, %v4138
      %v4177 = vld [vmem:[%s2] sm:$0x1]
      %v4179 = vlaneseq
      %v4180 = vshrl.u32 %v4179, 7
      %v4181 = vsub.s32 0, %v4180
      %v4182 = vrot.slane %v4177, %v4181
      %v4184 = vadd.f32 %v4141, %v4182
      %v4185 = vadd.f32 %v4142, %v4182
      %v4186 = vadd.f32 %v4143, %v4182
      %v4187 = vadd.f32 %v4144, %v4182
      %v4188 = vadd.f32 %v4145, %v4182
      %v4189 = vadd.f32 %v4146, %v4182
      %v4190 = vadd.f32 %v4147, %v4182
      %v4191 = vadd.f32 %v4148, %v4182
      %v4192 = vadd.f32 %v4149, %v4182
      %v4193 = vadd.f32 %v4150, %v4182
      %v4194 = vadd.f32 %v4151, %v4182
      %v4195 = vadd.f32 %v4152, %v4182
      %v4196 = vadd.f32 %v4153, %v4182
      %v4197 = vadd.f32 %v4154, %v4182
      %v4198 = vadd.f32 %v4155, %v4182
      %v4199 = vadd.f32 %v4156, %v4182
      %v4200 = vadd.f32 %v4157, %v4182
      %v4201 = vadd.f32 %v4158, %v4182
      %v4202 = vadd.f32 %v4159, %v4182
      %v4203 = vadd.f32 %v4160, %v4182
      %v4204 = vadd.f32 %v4161, %v4182
      %v4205 = vadd.f32 %v4162, %v4182
      %v4206 = vadd.f32 %v4163, %v4182
      %v4207 = vadd.f32 %v4164, %v4182
      %v4208 = vadd.f32 %v4165, %v4182
      %v4209 = vadd.f32 %v4166, %v4182
      %v4210 = vadd.f32 %v4167, %v4182
      %v4211 = vadd.f32 %v4168, %v4182
      %v4212 = vadd.f32 %v4169, %v4182
      %v4213 = vadd.f32 %v4170, %v4182
      %v4214 = vadd.f32 %v4171, %v4182
      %v4215 = vadd.f32 %v4172, %v4182
      %v4216 = vadd.f32 %v4173, %v4182
      %v4217 = vadd.f32 %v4174, %v4182
      %v4218 = vadd.f32 %v4175, %v4182
      %v4219 = vadd.f32 %v4176, %v4182
      %v4220 = vmax.f32 %v4184, 0.0
      %v4221 = vmax.f32 %v4185, 0.0
      %v4222 = vmax.f32 %v4186, 0.0
      %v4223 = vmax.f32 %v4187, 0.0
      %v4224 = vmax.f32 %v4188, 0.0
      %v4225 = vmax.f32 %v4189, 0.0
      %v4226 = vmax.f32 %v4190, 0.0
      %v4227 = vmax.f32 %v4191, 0.0
      %v4228 = vmax.f32 %v4192, 0.0
      %v4229 = vmax.f32 %v4193, 0.0
      %v4230 = vmax.f32 %v4194, 0.0
      %v4231 = vmax.f32 %v4195, 0.0
      %v4232 = vmax.f32 %v4196, 0.0
      %v4233 = vmax.f32 %v4197, 0.0
      %v4234 = vmax.f32 %v4198, 0.0
      %v4235 = vmax.f32 %v4199, 0.0
      %v4236 = vmax.f32 %v4200, 0.0
      %v4237 = vmax.f32 %v4201, 0.0
      %v4238 = vmax.f32 %v4202, 0.0
      %v4239 = vmax.f32 %v4203, 0.0
      %v4240 = vmax.f32 %v4204, 0.0
      %v4241 = vmax.f32 %v4205, 0.0
      %v4242 = vmax.f32 %v4206, 0.0
      %v4243 = vmax.f32 %v4207, 0.0
      %v4244 = vmax.f32 %v4208, 0.0
      %v4245 = vmax.f32 %v4209, 0.0
      %v4246 = vmax.f32 %v4210, 0.0
      %v4247 = vmax.f32 %v4211, 0.0
      %v4248 = vmax.f32 %v4212, 0.0
      %v4249 = vmax.f32 %v4213, 0.0
      %v4250 = vmax.f32 %v4214, 0.0
      %v4251 = vmax.f32 %v4215, 0.0
      %v4252 = vmax.f32 %v4216, 0.0
      %v4253 = vmax.f32 %v4217, 0.0
      %v4254 = vmax.f32 %v4218, 0.0
      %v4255 = vmax.f32 %v4219, 0.0
      %v4256 = vld [vmem:[%s5] sm:$0xff]
      %v4257 = vld [vmem:[%s5 + $0x8] sm:$0xff]
      %v4258 = vld [vmem:[%s5 + $0x10] sm:$0xff]
      %v4259 = vld [vmem:[%s5 + $0x18] sm:$0xff]
      %v4260 = vld [vmem:[%s5 + $0x20] sm:$0xff]
      %v4261 = vld [vmem:[%s5 + $0x28] sm:$0xff]
      %v4262 = vld [vmem:[%s5 + $0x30] sm:$0xff]
      %v4263 = vld [vmem:[%s5 + $0x38] sm:$0xff]
      %v4264 = vld [vmem:[%s5 + $0x40] sm:$0xff]
      %v4265 = vld [vmem:[%s5 + $0x48] sm:$0xff]
      %v4266 = vld [vmem:[%s5 + $0x50] sm:$0xff]
      %v4267 = vld [vmem:[%s5 + $0x58] sm:$0xff]
      %v4268 = vld [vmem:[%s5 + $0x60] sm:$0xff]
      %v4269 = vld [vmem:[%s5 + $0x68] sm:$0xff]
      %v4270 = vld [vmem:[%s5 + $0x70] sm:$0xff]
      %v4271 = vld [vmem:[%s5 + $0x78] sm:$0xff]
      %v4272 = vld [vmem:[%s5 + $0x80] sm:$0xff]
      %v4273 = vld [vmem:[%s5 + $0x88] sm:$0xff]
      %v4274 = vld [vmem:[%s5 + $0x90] sm:$0xff]
      %v4275 = vld [vmem:[%s5 + $0x98] sm:$0xff]
      %v4276 = vld [vmem:[%s5 + $0xa0] sm:$0xff]
      %v4277 = vld [vmem:[%s5 + $0xa8] sm:$0xff]
      %v4278 = vld [vmem:[%s5 + $0xb0] sm:$0xff]
      %v4279 = vld [vmem:[%s5 + $0xb8] sm:$0xff]
      %v4280 = vld [vmem:[%s5 + $0xc0] sm:$0xff]
      %v4281 = vld [vmem:[%s5 + $0xc8] sm:$0xff]
      %v4282 = vld [vmem:[%s5 + $0xd0] sm:$0xff]
      %v4283 = vld [vmem:[%s5 + $0xd8] sm:$0xff]
      %v4284 = vld [vmem:[%s5 + $0xe0] sm:$0xff]
      %v4285 = vld [vmem:[%s5 + $0xe8] sm:$0xff]
      %v4286 = vld [vmem:[%s5 + $0xf0] sm:$0xff]
      %v4287 = vld [vmem:[%s5 + $0xf8] sm:$0xff]
      %v4288 = vld [vmem:[%s5 + $0x100] sm:$0xff]
      %v4289 = vld [vmem:[%s5 + $0x108] sm:$0xff]
      %v4290 = vld [vmem:[%s5 + $0x110] sm:$0xff]
      %v4291 = vld [vmem:[%s5 + $0x118] sm:$0xff]
      %4293 = vset.pattern.permute.xlu0 0
      %4294 = vperm.xlu0 %4293, %v4256
      %v4295 = vpop.permute.xlu0 %4294
      %4298 = vset.pattern.permute.xlu0 0
      %4299 = vperm.xlu0 %4298, %v4257
      %v4300 = vpop.permute.xlu0 %4299
      %4303 = vset.pattern.permute.xlu0 0
      %4304 = vperm.xlu0 %4303, %v4258
      %v4305 = vpop.permute.xlu0 %4304
      %4308 = vset.pattern.permute.xlu0 0
      %4309 = vperm.xlu0 %4308, %v4259
      %v4310 = vpop.permute.xlu0 %4309
      %4313 = vset.pattern.permute.xlu0 0
      %4314 = vperm.xlu0 %4313, %v4260
      %v4315 = vpop.permute.xlu0 %4314
      %4318 = vset.pattern.permute.xlu0 0
      %4319 = vperm.xlu0 %4318, %v4261
      %v4320 = vpop.permute.xlu0 %4319
      %4323 = vset.pattern.permute.xlu0 0
      %4324 = vperm.xlu0 %4323, %v4262
      %v4325 = vpop.permute.xlu0 %4324
      %4328 = vset.pattern.permute.xlu0 0
      %4329 = vperm.xlu0 %4328, %v4263
      %v4330 = vpop.permute.xlu0 %4329
      %4333 = vset.pattern.permute.xlu0 0
      %4334 = vperm.xlu0 %4333, %v4264
      %v4335 = vpop.permute.xlu0 %4334
      %4338 = vset.pattern.permute.xlu0 0
      %4339 = vperm.xlu0 %4338, %v4265
      %v4340 = vpop.permute.xlu0 %4339
      %4343 = vset.pattern.permute.xlu0 0
      %4344 = vperm.xlu0 %4343, %v4266
      %v4345 = vpop.permute.xlu0 %4344
      %4348 = vset.pattern.permute.xlu0 0
      %4349 = vperm.xlu0 %4348, %v4267
      %v4350 = vpop.permute.xlu0 %4349
      %4353 = vset.pattern.permute.xlu0 0
      %4354 = vperm.xlu0 %4353, %v4268
      %v4355 = vpop.permute.xlu0 %4354
      %4358 = vset.pattern.permute.xlu0 0
      %4359 = vperm.xlu0 %4358, %v4269
      %v4360 = vpop.permute.xlu0 %4359
      %4363 = vset.pattern.permute.xlu0 0
      %4364 = vperm.xlu0 %4363, %v4270
      %v4365 = vpop.permute.xlu0 %4364
      %4368 = vset.pattern.permute.xlu0 0
      %4369 = vperm.xlu0 %4368, %v4271
      %v4370 = vpop.permute.xlu0 %4369
      %4373 = vset.pattern.permute.xlu0 0
      %4374 = vperm.xlu0 %4373, %v4272
      %v4375 = vpop.permute.xlu0 %4374
      %4378 = vset.pattern.permute.xlu0 0
      %4379 = vperm.xlu0 %4378, %v4273
      %v4380 = vpop.permute.xlu0 %4379
      %4383 = vset.pattern.permute.xlu0 0
      %4384 = vperm.xlu0 %4383, %v4274
      %v4385 = vpop.permute.xlu0 %4384
      %4388 = vset.pattern.permute.xlu0 0
      %4389 = vperm.xlu0 %4388, %v4275
      %v4390 = vpop.permute.xlu0 %4389
      %4393 = vset.pattern.permute.xlu0 0
      %4394 = vperm.xlu0 %4393, %v4276
      %v4395 = vpop.permute.xlu0 %4394
      %4398 = vset.pattern.permute.xlu0 0
      %4399 = vperm.xlu0 %4398, %v4277
      %v4400 = vpop.permute.xlu0 %4399
      %4403 = vset.pattern.permute.xlu0 0
      %4404 = vperm.xlu0 %4403, %v4278
      %v4405 = vpop.permute.xlu0 %4404
      %4408 = vset.pattern.permute.xlu0 0
      %4409 = vperm.xlu0 %4408, %v4279
      %v4410 = vpop.permute.xlu0 %4409
      %4413 = vset.pattern.permute.xlu0 0
      %4414 = vperm.xlu0 %4413, %v4280
      %v4415 = vpop.permute.xlu0 %4414
      %4418 = vset.pattern.permute.xlu0 0
      %4419 = vperm.xlu0 %4418, %v4281
      %v4420 = vpop.permute.xlu0 %4419
      %4423 = vset.pattern.permute.xlu0 0
      %4424 = vperm.xlu0 %4423, %v4282
      %v4425 = vpop.permute.xlu0 %4424
      %4428 = vset.pattern.permute.xlu0 0
      %4429 = vperm.xlu0 %4428, %v4283
      %v4430 = vpop.permute.xlu0 %4429
      %4433 = vset.pattern.permute.xlu0 0
      %4434 = vperm.xlu0 %4433, %v4284
      %v4435 = vpop.permute.xlu0 %4434
      %4438 = vset.pattern.permute.xlu0 0
      %4439 = vperm.xlu0 %4438, %v4285
      %v4440 = vpop.permute.xlu0 %4439
      %4443 = vset.pattern.permute.xlu0 0
      %4444 = vperm.xlu0 %4443, %v4286
      %v4445 = vpop.permute.xlu0 %4444
      %4448 = vset.pattern.permute.xlu0 0
      %4449 = vperm.xlu0 %4448, %v4287
      %v4450 = vpop.permute.xlu0 %4449
      %4453 = vset.pattern.permute.xlu0 0
      %4454 = vperm.xlu0 %4453, %v4288
      %v4455 = vpop.permute.xlu0 %4454
      %4458 = vset.pattern.permute.xlu0 0
      %4459 = vperm.xlu0 %4458, %v4289
      %v4460 = vpop.permute.xlu0 %4459
      %4463 = vset.pattern.permute.xlu0 0
      %4464 = vperm.xlu0 %4463, %v4290
      %v4465 = vpop.permute.xlu0 %4464
      %4468 = vset.pattern.permute.xlu0 0
      %4469 = vperm.xlu0 %4468, %v4291
      %v4470 = vpop.permute.xlu0 %4469
      %v4472 = vmul.f32 %v4220, %v4295
      %v4473 = vmul.f32 %v4221, %v4300
      %v4474 = vmul.f32 %v4222, %v4305
      %v4475 = vmul.f32 %v4223, %v4310
      %v4476 = vmul.f32 %v4224, %v4315
      %v4477 = vmul.f32 %v4225, %v4320
      %v4478 = vmul.f32 %v4226, %v4325
      %v4479 = vmul.f32 %v4227, %v4330
      %v4480 = vmul.f32 %v4228, %v4335
      %v4481 = vmul.f32 %v4229, %v4340
      %v4482 = vmul.f32 %v4230, %v4345
      %v4483 = vmul.f32 %v4231, %v4350
      %v4484 = vmul.f32 %v4232, %v4355
      %v4485 = vmul.f32 %v4233, %v4360
      %v4486 = vmul.f32 %v4234, %v4365
      %v4487 = vmul.f32 %v4235, %v4370
      %v4488 = vmul.f32 %v4236, %v4375
      %v4489 = vmul.f32 %v4237, %v4380
      %v4490 = vmul.f32 %v4238, %v4385
      %v4491 = vmul.f32 %v4239, %v4390
      %v4492 = vmul.f32 %v4240, %v4395
      %v4493 = vmul.f32 %v4241, %v4400
      %v4494 = vmul.f32 %v4242, %v4405
      %v4495 = vmul.f32 %v4243, %v4410
      %v4496 = vmul.f32 %v4244, %v4415
      %v4497 = vmul.f32 %v4245, %v4420
      %v4498 = vmul.f32 %v4246, %v4425
      %v4499 = vmul.f32 %v4247, %v4430
      %v4500 = vmul.f32 %v4248, %v4435
      %v4501 = vmul.f32 %v4249, %v4440
      %v4502 = vmul.f32 %v4250, %v4445
      %v4503 = vmul.f32 %v4251, %v4450
      %v4504 = vmul.f32 %v4252, %v4455
      %v4505 = vmul.f32 %v4253, %v4460
      %v4506 = vmul.f32 %v4254, %v4465
      %v4507 = vmul.f32 %v4255, %v4470
      %4508 = vst.msk [vmem:[#allocation2] sm:$0xff] %vm443, 0
      %4509 = vst.msk [vmem:[#allocation2 + $0x8] sm:$0xff] %vm443, 0
      %4510 = vst.msk [vmem:[#allocation2 + $0xa0] sm:$0xff] %vm443, 0
      %4511 = vst.msk [vmem:[#allocation2 + $0xa8] sm:$0xff] %vm443, 0
      %v4512 = vpack.c.bf16 %v4473, %v4472
      %v4513 = vpack.c.bf16 %v4475, %v4474
      %v4514 = vpack.c.bf16 %v4477, %v4476
      %v4515 = vpack.c.bf16 %v4479, %v4478
      %v4516 = vpack.c.bf16 %v4481, %v4480
      %v4517 = vpack.c.bf16 %v4483, %v4482
      %v4518 = vpack.c.bf16 %v4485, %v4484
      %v4519 = vpack.c.bf16 %v4487, %v4486
      %v4520 = vpack.c.bf16 %v4489, %v4488
      %v4521 = vpack.c.bf16 %v4491, %v4490
      %v4522 = vpack.c.bf16 %v4493, %v4492
      %v4523 = vpack.c.bf16 %v4495, %v4494
      %v4524 = vpack.c.bf16 %v4497, %v4496
      %v4525 = vpack.c.bf16 %v4499, %v4498
      %v4526 = vpack.c.bf16 %v4501, %v4500
      %v4527 = vpack.c.bf16 %v4503, %v4502
      %v4528 = vpack.c.bf16 %v4505, %v4504
      %v4529 = vpack.c.bf16 %v4507, %v4506
      %4530 = vst.msk [vmem:[#allocation2 + $0x10] sm:$0xff] %vm443, %v4512
      %4531 = vst.msk [vmem:[#allocation2 + $0x18] sm:$0xff] %vm443, %v4513
      %4532 = vst.msk [vmem:[#allocation2 + $0x20] sm:$0xff] %vm443, %v4514
      %4533 = vst.msk [vmem:[#allocation2 + $0x28] sm:$0xff] %vm443, %v4515
      %4534 = vst.msk [vmem:[#allocation2 + $0x30] sm:$0xff] %vm443, %v4516
      %4535 = vst.msk [vmem:[#allocation2 + $0x38] sm:$0xff] %vm443, %v4517
      %4536 = vst.msk [vmem:[#allocation2 + $0x40] sm:$0xff] %vm443, %v4518
      %4537 = vst.msk [vmem:[#allocation2 + $0x48] sm:$0xff] %vm443, %v4519
      %4538 = vst.msk [vmem:[#allocation2 + $0x50] sm:$0xff] %vm443, %v4520
      %4539 = vst.msk [vmem:[#allocation2 + $0x58] sm:$0xff] %vm443, %v4521
      %4540 = vst.msk [vmem:[#allocation2 + $0x60] sm:$0xff] %vm443, %v4522
      %4541 = vst.msk [vmem:[#allocation2 + $0x68] sm:$0xff] %vm443, %v4523
      %4542 = vst.msk [vmem:[#allocation2 + $0x70] sm:$0xff] %vm443, %v4524
      %4543 = vst.msk [vmem:[#allocation2 + $0x78] sm:$0xff] %vm443, %v4525
      %4544 = vst.msk [vmem:[#allocation2 + $0x80] sm:$0xff] %vm443, %v4526
      %4545 = vst.msk [vmem:[#allocation2 + $0x88] sm:$0xff] %vm443, %v4527
      %4546 = vst.msk [vmem:[#allocation2 + $0x90] sm:$0xff] %vm443, %v4528
      %4547 = vst.msk [vmem:[#allocation2 + $0x98] sm:$0xff] %vm443, %v4529
      %v4548 = vld [vmem:[#allocation2] sm:$0xc0]
      %v4549 = vld [vmem:[#allocation2 + $0x8] sm:$0xff]
      %v4550 = vld [vmem:[#allocation2 + $0x10] sm:$0xff]
      %v4551 = vld [vmem:[#allocation2 + $0x18] sm:$0xff]
      %v4552 = vld [vmem:[#allocation2 + $0x20] sm:$0xff]
      %v4553 = vld [vmem:[#allocation2 + $0x28] sm:$0xff]
      %v4554 = vld [vmem:[#allocation2 + $0x30] sm:$0xff]
      %v4555 = vld [vmem:[#allocation2 + $0x38] sm:$0xff]
      %v4556 = vld [vmem:[#allocation2 + $0x40] sm:$0xff]
      %v4557 = vld [vmem:[#allocation2 + $0x48] sm:$0xff]
      %v4558 = vld [vmem:[#allocation2 + $0x50] sm:$0xff]
      %v4559 = vld [vmem:[#allocation2 + $0x58] sm:$0xff]
      %v4560 = vld [vmem:[#allocation2 + $0x60] sm:$0xff]
      %v4561 = vld [vmem:[#allocation2 + $0x68] sm:$0xff]
      %v4562 = vld [vmem:[#allocation2 + $0x70] sm:$0xff]
      %v4563 = vld [vmem:[#allocation2 + $0x78] sm:$0xff]
      %v4564 = vld [vmem:[#allocation2 + $0x80] sm:$0xff]
      %v4565 = vld [vmem:[#allocation2 + $0x88] sm:$0xff]
      %v4566 = vld [vmem:[#allocation2 + $0x90] sm:$0x7f]
      %v4567 = vld [vmem:[%s3] sm:$0xf]
      %v4568 = vld [vmem:[%s3 + $0x4] sm:$0xf]
      %v4569 = vld [vmem:[%s3 + $0x8] sm:$0xf]
      %v4570 = vld [vmem:[%s3 + $0xc] sm:$0xf]
      %v4571 = vld [vmem:[#allocation2] sm:$0x80]
      %s4572 = scalar_lea.vmem %s3, 16
      %v4573 = vld [vmem:[%s4572] sm:$0xf]
      %v4574 = vld [vmem:[%s4572 + $0x4] sm:$0xf]
      %v4575 = vld [vmem:[%s4572 + $0x8] sm:$0xf]
      %v4576 = vld [vmem:[%s4572 + $0xc] sm:$0xf]
      %vm4596 = vcmask 1040384
      %v4597 = vrot.slane %v4571, 7
      %v4598 = vrot.slane %v4549, 7
      %v4599 = vsel %vm4596, %v4597, %v4598
      %v4600 = vrot.slane %v4550, 7
      %v4601 = vsel %vm4596, %v4598, %v4600
      %v4602 = vrot.slane %v4551, 7
      %v4603 = vsel %vm4596, %v4600, %v4602
      %v4604 = vrot.slane %v4552, 7
      %v4605 = vsel %vm4596, %v4602, %v4604
      %v4606 = vrot.slane %v4553, 7
      %v4607 = vsel %vm4596, %v4604, %v4606
      %v4608 = vrot.slane %v4554, 7
      %v4609 = vsel %vm4596, %v4606, %v4608
      %v4610 = vrot.slane %v4555, 7
      %v4611 = vsel %vm4596, %v4608, %v4610
      %v4612 = vrot.slane %v4556, 7
      %v4613 = vsel %vm4596, %v4610, %v4612
      %v4614 = vrot.slane %v4557, 7
      %v4615 = vsel %vm4596, %v4612, %v4614
      %v4616 = vrot.slane %v4558, 7
      %v4617 = vsel %vm4596, %v4614, %v4616
      %v4618 = vrot.slane %v4559, 7
      %v4619 = vsel %vm4596, %v4616, %v4618
      %v4620 = vrot.slane %v4560, 7
      %v4621 = vsel %vm4596, %v4618, %v4620
      %v4622 = vrot.slane %v4561, 7
      %v4623 = vsel %vm4596, %v4620, %v4622
      %v4624 = vrot.slane %v4562, 7
      %v4625 = vsel %vm4596, %v4622, %v4624
      %v4626 = vrot.slane %v4563, 7
      %v4627 = vsel %vm4596, %v4624, %v4626
      %v4628 = vrot.slane %v4564, 7
      %v4629 = vsel %vm4596, %v4626, %v4628
      %v4630 = vrot.slane %v4565, 7
      %v4631 = vsel %vm4596, %v4628, %v4630
      %v4632 = vrot.slane %v4566, 7
      %v4633 = vsel %vm4596, %v4630, %v4632
      %v4638 = vunpack.c.l.b16 %v4573
      %v4639 = vunpack.c.l.b16 %v4574
      %v4640 = vunpack.c.l.b16 %v4575
      %v4641 = vunpack.c.l.b16 %v4576
      %v4642 = vpack.c.b16 %v4639, %v4638
      %v4643 = vpack.c.b16 %v4641, %v4640
      %v4647 = vsel %vm443, %v4599, 0
      %v4650 = vsel %vm443, %v4601, 0
      %v4653 = vsel %vm443, %v4603, 0
      %v4656 = vsel %vm443, %v4605, 0
      %v4659 = vsel %vm443, %v4607, 0
      %v4662 = vsel %vm443, %v4609, 0
      %v4665 = vsel %vm443, %v4611, 0
      %v4668 = vsel %vm443, %v4613, 0
      %v4671 = vsel %vm443, %v4615, 0
      %v4674 = vsel %vm443, %v4617, 0
      %v4677 = vsel %vm443, %v4619, 0
      %v4680 = vsel %vm443, %v4621, 0
      %v4683 = vsel %vm443, %v4623, 0
      %v4686 = vsel %vm443, %v4625, 0
      %v4689 = vsel %vm443, %v4627, 0
      %v4692 = vsel %vm443, %v4629, 0
      %v4695 = vsel %vm443, %v4631, 0
      %v4698 = vsel %vm443, %v4633, 0
      %4700 = vmatprep.subr.bf16.mxu0 0
      %4701 = vmatpush1.bf16.msra.mxu0 %v4642
      %4702 = vmatprep.subr.bf16.mxu0 0
      %4703 = vmatpush1.bf16.msra.mxu0 %v4643
      %4704 = vmatprep.subr.bf16.mxu0 0
      %4705 = vmatpush1.bf16.msra.mxu0 0
      %4706 = vmatprep.subr.bf16.mxu0 0
      %4707 = vmatpush1.bf16.msra.mxu0 0
      %4708 = vmatprep.subr.bf16.mxu0 0
      %4709 = vmatpush1.bf16.msra.mxu0 0
      %4710 = vmatprep.subr.bf16.mxu0 0
      %4711 = vmatpush1.bf16.msra.mxu0 0
      %4712 = vmatprep.subr.bf16.mxu0 0
      %4713 = vmatpush1.bf16.msra.mxu0 0
      %4714 = vmatprep.subr.bf16.mxu0 0
      %4715 = vmatpush1.bf16.msra.mxu0 0
      %4716 = vmatprep.subr.bf16.mxu0 0
      %4717 = vmatpush1.bf16.msra.mxu0 0
      %4718 = vmatprep.subr.bf16.mxu0 0
      %4719 = vmatpush1.bf16.msra.mxu0 0
      %4720 = vmatprep.subr.bf16.mxu0 0
      %4721 = vmatpush1.bf16.msra.mxu0 0
      %4722 = vmatprep.subr.bf16.mxu0 0
      %4723 = vmatpush1.bf16.msra.mxu0 0
      %4724 = vmatprep.subr.bf16.mxu0 0
      %4725 = vmatpush1.bf16.msra.mxu0 0
      %4726 = vmatprep.subr.bf16.mxu0 0
      %4727 = vmatpush1.bf16.msra.mxu0 0
      %4728 = vmatprep.subr.bf16.mxu0 0
      %4729 = vmatpush1.bf16.msra.mxu0 0
      %4730 = vmatprep.subr.bf16.mxu0 0
      %4731 = vmatpush1.bf16.msra.mxu0 0
      %4732 = vmatprep.mubr.bf16.mxu0 0
      %4733 = vmatmul.mubr.bf16.gmra.mrb[0].mxu0 %v4647
      %v4734 = vpop.f32.mrb[0].mxu0
      %v4735 = vadd.f32 0.0, %v4734
      %v4736 = vpop.f32.mrb[0].mxu0
      %v4737 = vpop.f32.mrb[0].mxu0
      %v4738 = vadd.f32 0.0, %v4737
      %v4739 = vpop.f32.mrb[0].mxu0
      %4740 = vmatprep.mubr.bf16.mxu0 0
      %4741 = vmatmul.mubr.bf16.gmra.mrb[0].mxu0 %v4650
      %v4742 = vpop.f32.mrb[0].mxu0
      %v4743 = vadd.f32 0.0, %v4742
      %v4744 = vpop.f32.mrb[0].mxu0
      %v4745 = vpop.f32.mrb[0].mxu0
      %v4746 = vadd.f32 0.0, %v4745
      %v4747 = vpop.f32.mrb[0].mxu0
      %4748 = vmatprep.mubr.bf16.mxu0 0
      %4749 = vmatmul.mubr.bf16.gmra.mrb[0].mxu0 %v4653
      %v4750 = vpop.f32.mrb[0].mxu0
      %v4751 = vadd.f32 0.0, %v4750
      %v4752 = vpop.f32.mrb[0].mxu0
      %v4753 = vpop.f32.mrb[0].mxu0
      %v4754 = vadd.f32 0.0, %v4753
      %v4755 = vpop.f32.mrb[0].mxu0
      %4756 = vmatprep.mubr.bf16.mxu0 0
      %4757 = vmatmul.mubr.bf16.gmra.mrb[0].mxu0 %v4656
      %v4758 = vpop.f32.mrb[0].mxu0
      %v4759 = vadd.f32 0.0, %v4758
      %v4760 = vpop.f32.mrb[0].mxu0
      %v4761 = vpop.f32.mrb[0].mxu0
      %v4762 = vadd.f32 0.0, %v4761
      %v4763 = vpop.f32.mrb[0].mxu0
      %4764 = vmatprep.mubr.bf16.mxu0 0
      %4765 = vmatmul.mubr.bf16.gmra.mrb[0].mxu0 %v4659
      %v4766 = vpop.f32.mrb[0].mxu0
      %v4767 = vadd.f32 0.0, %v4766
      %v4768 = vpop.f32.mrb[0].mxu0
      %v4769 = vpop.f32.mrb[0].mxu0
      %v4770 = vadd.f32 0.0, %v4769
      %v4771 = vpop.f32.mrb[0].mxu0
      %4772 = vmatprep.mubr.bf16.mxu0 0
      %4773 = vmatmul.mubr.bf16.gmra.mrb[0].mxu0 %v4662
      %v4774 = vpop.f32.mrb[0].mxu0
      %v4775 = vadd.f32 0.0, %v4774
      %v4776 = vpop.f32.mrb[0].mxu0
      %v4777 = vpop.f32.mrb[0].mxu0
      %v4778 = vadd.f32 0.0, %v4777
      %v4779 = vpop.f32.mrb[0].mxu0
      %4780 = vmatprep.mubr.bf16.mxu0 0
      %4781 = vmatmul.mubr.bf16.gmra.mrb[0].mxu0 %v4665
      %v4782 = vpop.f32.mrb[0].mxu0
      %v4783 = vadd.f32 0.0, %v4782
      %v4784 = vpop.f32.mrb[0].mxu0
      %v4785 = vpop.f32.mrb[0].mxu0
      %v4786 = vadd.f32 0.0, %v4785
      %v4787 = vpop.f32.mrb[0].mxu0
      %4788 = vmatprep.mubr.bf16.mxu0 0
      %4789 = vmatmul.mubr.bf16.gmra.mrb[0].mxu0 %v4668
      %v4790 = vpop.f32.mrb[0].mxu0
      %v4791 = vadd.f32 0.0, %v4790
      %v4792 = vpop.f32.mrb[0].mxu0
      %v4793 = vpop.f32.mrb[0].mxu0
      %v4794 = vadd.f32 0.0, %v4793
      %v4795 = vpop.f32.mrb[0].mxu0
      %4796 = vmatprep.mubr.bf16.mxu0 0
      %4797 = vmatmul.mubr.bf16.gmra.mrb[0].mxu0 %v4671
      %v4798 = vpop.f32.mrb[0].mxu0
      %v4799 = vadd.f32 0.0, %v4798
      %v4800 = vpop.f32.mrb[0].mxu0
      %v4801 = vpop.f32.mrb[0].mxu0
      %v4802 = vadd.f32 0.0, %v4801
      %v4803 = vpop.f32.mrb[0].mxu0
      %4804 = vmatprep.mubr.bf16.mxu0 0
      %4805 = vmatmul.mubr.bf16.gmra.mrb[0].mxu0 %v4674
      %v4806 = vpop.f32.mrb[0].mxu0
      %v4807 = vadd.f32 0.0, %v4806
      %v4808 = vpop.f32.mrb[0].mxu0
      %v4809 = vpop.f32.mrb[0].mxu0
      %v4810 = vadd.f32 0.0, %v4809
      %v4811 = vpop.f32.mrb[0].mxu0
      %4812 = vmatprep.mubr.bf16.mxu0 0
      %4813 = vmatmul.mubr.bf16.gmra.mrb[0].mxu0 %v4677
      %v4814 = vpop.f32.mrb[0].mxu0
      %v4815 = vadd.f32 0.0, %v4814
      %v4816 = vpop.f32.mrb[0].mxu0
      %v4817 = vpop.f32.mrb[0].mxu0
      %v4818 = vadd.f32 0.0, %v4817
      %v4819 = vpop.f32.mrb[0].mxu0
      %4820 = vmatprep.mubr.bf16.mxu0 0
      %4821 = vmatmul.mubr.bf16.gmra.mrb[0].mxu0 %v4680
      %v4822 = vpop.f32.mrb[0].mxu0
      %v4823 = vadd.f32 0.0, %v4822
      %v4824 = vpop.f32.mrb[0].mxu0
      %v4825 = vpop.f32.mrb[0].mxu0
      %v4826 = vadd.f32 0.0, %v4825
      %v4827 = vpop.f32.mrb[0].mxu0
      %4828 = vmatprep.mubr.bf16.mxu0 0
      %4829 = vmatmul.mubr.bf16.gmra.mrb[0].mxu0 %v4683
      %v4830 = vpop.f32.mrb[0].mxu0
      %v4831 = vadd.f32 0.0, %v4830
      %v4832 = vpop.f32.mrb[0].mxu0
      %v4833 = vpop.f32.mrb[0].mxu0
      %v4834 = vadd.f32 0.0, %v4833
      %v4835 = vpop.f32.mrb[0].mxu0
      %4836 = vmatprep.mubr.bf16.mxu0 0
      %4837 = vmatmul.mubr.bf16.gmra.mrb[0].mxu0 %v4686
      %v4838 = vpop.f32.mrb[0].mxu0
      %v4839 = vadd.f32 0.0, %v4838
      %v4840 = vpop.f32.mrb[0].mxu0
      %v4841 = vpop.f32.mrb[0].mxu0
      %v4842 = vadd.f32 0.0, %v4841
      %v4843 = vpop.f32.mrb[0].mxu0
      %4844 = vmatprep.mubr.bf16.mxu0 0
      %4845 = vmatmul.mubr.bf16.gmra.mrb[0].mxu0 %v4689
      %v4846 = vpop.f32.mrb[0].mxu0
      %v4847 = vadd.f32 0.0, %v4846
      %v4848 = vpop.f32.mrb[0].mxu0
      %v4849 = vpop.f32.mrb[0].mxu0
      %v4850 = vadd.f32 0.0, %v4849
      %v4851 = vpop.f32.mrb[0].mxu0
      %4852 = vmatprep.mubr.bf16.mxu0 0
      %4853 = vmatmul.mubr.bf16.gmra.mrb[0].mxu0 %v4692
      %v4854 = vpop.f32.mrb[0].mxu0
      %v4855 = vadd.f32 0.0, %v4854
      %v4856 = vpop.f32.mrb[0].mxu0
      %v4857 = vpop.f32.mrb[0].mxu0
      %v4858 = vadd.f32 0.0, %v4857
      %v4859 = vpop.f32.mrb[0].mxu0
      %4860 = vmatprep.mubr.bf16.mxu0 0
      %4861 = vmatmul.mubr.bf16.gmra.mrb[0].mxu0 %v4695
      %v4862 = vpop.f32.mrb[0].mxu0
      %v4863 = vadd.f32 0.0, %v4862
      %v4864 = vpop.f32.mrb[0].mxu0
      %v4865 = vpop.f32.mrb[0].mxu0
      %v4866 = vadd.f32 0.0, %v4865
      %v4867 = vpop.f32.mrb[0].mxu0
      %4868 = vmatprep.mubr.bf16.mxu0 0
      %4869 = vmatmul.mubr.bf16.gmra.mrb[0].mxu0 %v4698
      %v4870 = vpop.f32.mrb[0].mxu0
      %v4871 = vadd.f32 0.0, %v4870
      %v4872 = vpop.f32.mrb[0].mxu0
      %v4873 = vpop.f32.mrb[0].mxu0
      %v4874 = vadd.f32 0.0, %v4873
      %v4875 = vpop.f32.mrb[0].mxu0
      %4876 = vdwg.mxu0
      %vm4877 = vsmask.f32 1280
      %v4879 = vshrl.u32 %v4548, 16
      %v4881 = vrot.slane %v4879, 6
      %v4882 = vshll.u32 %v4548, 16
      %v4884 = vrot.slane %v4882, 7
      %v4885 = vor.u32 %v4881, %v4884
      %v4887 = vshrl.u32 %v4549, 16
      %v4889 = vrot.slane %v4887, 6
      %v4890 = vshll.u32 %v4549, 16
      %v4892 = vrot.slane %v4890, 7
      %v4893 = vor.u32 %v4889, %v4892
      %v4894 = vsel %vm4877, %v4885, %v4893
      %v4896 = vshrl.u32 %v4550, 16
      %v4898 = vrot.slane %v4896, 6
      %v4899 = vshll.u32 %v4550, 16
      %v4901 = vrot.slane %v4899, 7
      %v4902 = vor.u32 %v4898, %v4901
      %v4903 = vsel %vm4877, %v4893, %v4902
      %v4905 = vshrl.u32 %v4551, 16
      %v4907 = vrot.slane %v4905, 6
      %v4908 = vshll.u32 %v4551, 16
      %v4910 = vrot.slane %v4908, 7
      %v4911 = vor.u32 %v4907, %v4910
      %v4912 = vsel %vm4877, %v4902, %v4911
      %v4914 = vshrl.u32 %v4552, 16
      %v4916 = vrot.slane %v4914, 6
      %v4917 = vshll.u32 %v4552, 16
      %v4919 = vrot.slane %v4917, 7
      %v4920 = vor.u32 %v4916, %v4919
      %v4921 = vsel %vm4877, %v4911, %v4920
      %v4923 = vshrl.u32 %v4553, 16
      %v4925 = vrot.slane %v4923, 6
      %v4926 = vshll.u32 %v4553, 16
      %v4928 = vrot.slane %v4926, 7
      %v4929 = vor.u32 %v4925, %v4928
      %v4930 = vsel %vm4877, %v4920, %v4929
      %v4932 = vshrl.u32 %v4554, 16
      %v4934 = vrot.slane %v4932, 6
      %v4935 = vshll.u32 %v4554, 16
      %v4937 = vrot.slane %v4935, 7
      %v4938 = vor.u32 %v4934, %v4937
      %v4939 = vsel %vm4877, %v4929, %v4938
      %v4941 = vshrl.u32 %v4555, 16
      %v4943 = vrot.slane %v4941, 6
      %v4944 = vshll.u32 %v4555, 16
      %v4946 = vrot.slane %v4944, 7
      %v4947 = vor.u32 %v4943, %v4946
      %v4948 = vsel %vm4877, %v4938, %v4947
      %v4950 = vshrl.u32 %v4556, 16
      %v4952 = vrot.slane %v4950, 6
      %v4953 = vshll.u32 %v4556, 16
      %v4955 = vrot.slane %v4953, 7
      %v4956 = vor.u32 %v4952, %v4955
      %v4957 = vsel %vm4877, %v4947, %v4956
      %v4959 = vshrl.u32 %v4557, 16
      %v4961 = vrot.slane %v4959, 6
      %v4962 = vshll.u32 %v4557, 16
      %v4964 = vrot.slane %v4962, 7
      %v4965 = vor.u32 %v4961, %v4964
      %v4966 = vsel %vm4877, %v4956, %v4965
      %v4968 = vshrl.u32 %v4558, 16
      %v4970 = vrot.slane %v4968, 6
      %v4971 = vshll.u32 %v4558, 16
      %v4973 = vrot.slane %v4971, 7
      %v4974 = vor.u32 %v4970, %v4973
      %v4975 = vsel %vm4877, %v4965, %v4974
      %v4977 = vshrl.u32 %v4559, 16
      %v4979 = vrot.slane %v4977, 6
      %v4980 = vshll.u32 %v4559, 16
      %v4982 = vrot.slane %v4980, 7
      %v4983 = vor.u32 %v4979, %v4982
      %v4984 = vsel %vm4877, %v4974, %v4983
      %v4986 = vshrl.u32 %v4560, 16
      %v4988 = vrot.slane %v4986, 6
      %v4989 = vshll.u32 %v4560, 16
      %v4991 = vrot.slane %v4989, 7
      %v4992 = vor.u32 %v4988, %v4991
      %v4993 = vsel %vm4877, %v4983, %v4992
      %v4995 = vshrl.u32 %v4561, 16
      %v4997 = vrot.slane %v4995, 6
      %v4998 = vshll.u32 %v4561, 16
      %v5000 = vrot.slane %v4998, 7
      %v5001 = vor.u32 %v4997, %v5000
      %v5002 = vsel %vm4877, %v4992, %v5001
      %v5004 = vshrl.u32 %v4562, 16
      %v5006 = vrot.slane %v5004, 6
      %v5007 = vshll.u32 %v4562, 16
      %v5009 = vrot.slane %v5007, 7
      %v5010 = vor.u32 %v5006, %v5009
      %v5011 = vsel %vm4877, %v5001, %v5010
      %v5013 = vshrl.u32 %v4563, 16
      %v5015 = vrot.slane %v5013, 6
      %v5016 = vshll.u32 %v4563, 16
      %v5018 = vrot.slane %v5016, 7
      %v5019 = vor.u32 %v5015, %v5018
      %v5020 = vsel %vm4877, %v5010, %v5019
      %v5022 = vshrl.u32 %v4564, 16
      %v5024 = vrot.slane %v5022, 6
      %v5025 = vshll.u32 %v4564, 16
      %v5027 = vrot.slane %v5025, 7
      %v5028 = vor.u32 %v5024, %v5027
      %v5029 = vsel %vm4877, %v5019, %v5028
      %v5031 = vshrl.u32 %v4565, 16
      %v5033 = vrot.slane %v5031, 6
      %v5034 = vshll.u32 %v4565, 16
      %v5036 = vrot.slane %v5034, 7
      %v5037 = vor.u32 %v5033, %v5036
      %v5038 = vsel %vm4877, %v5028, %v5037
      %v5040 = vshrl.u32 %v4566, 16
      %v5042 = vrot.slane %v5040, 6
      %v5043 = vshll.u32 %v4566, 16
      %v5045 = vrot.slane %v5043, 7
      %v5046 = vor.u32 %v5042, %v5045
      %v5047 = vsel %vm4877, %v5037, %v5046
      %v5052 = vunpack.c.l.b16 %v4567
      %v5053 = vunpack.c.l.b16 %v4568
      %v5054 = vunpack.c.l.b16 %v4569
      %v5055 = vunpack.c.l.b16 %v4570
      %v5056 = vpack.c.b16 %v5053, %v5052
      %v5057 = vpack.c.b16 %v5055, %v5054
      %v5061 = vsel %vm443, %v4894, 0
      %v5064 = vsel %vm443, %v4903, 0
      %v5067 = vsel %vm443, %v4912, 0
      %v5070 = vsel %vm443, %v4921, 0
      %v5073 = vsel %vm443, %v4930, 0
      %v5076 = vsel %vm443, %v4939, 0
      %v5079 = vsel %vm443, %v4948, 0
      %v5082 = vsel %vm443, %v4957, 0
      %v5085 = vsel %vm443, %v4966, 0
      %v5088 = vsel %vm443, %v4975, 0
      %v5091 = vsel %vm443, %v4984, 0
      %v5094 = vsel %vm443, %v4993, 0
      %v5097 = vsel %vm443, %v5002, 0
      %v5100 = vsel %vm443, %v5011, 0
      %v5103 = vsel %vm443, %v5020, 0
      %v5106 = vsel %vm443, %v5029, 0
      %v5109 = vsel %vm443, %v5038, 0
      %v5112 = vsel %vm443, %v5047, 0
      %5114 = vmatprep.subr.bf16.mxu0 0
      %5115 = vmatpush1.bf16.msra.mxu0 %v5056
      %5116 = vmatprep.subr.bf16.mxu0 0
      %5117 = vmatpush1.bf16.msra.mxu0 %v5057
      %5118 = vmatprep.subr.bf16.mxu0 0
      %5119 = vmatpush1.bf16.msra.mxu0 0
      %5120 = vmatprep.subr.bf16.mxu0 0
      %5121 = vmatpush1.bf16.msra.mxu0 0
      %5122 = vmatprep.subr.bf16.mxu0 0
      %5123 = vmatpush1.bf16.msra.mxu0 0
      %5124 = vmatprep.subr.bf16.mxu0 0
      %5125 = vmatpush1.bf16.msra.mxu0 0
      %5126 = vmatprep.subr.bf16.mxu0 0
      %5127 = vmatpush1.bf16.msra.mxu0 0
      %5128 = vmatprep.subr.bf16.mxu0 0
      %5129 = vmatpush1.bf16.msra.mxu0 0
      %5130 = vmatprep.subr.bf16.mxu0 0
      %5131 = vmatpush1.bf16.msra.mxu0 0
      %5132 = vmatprep.subr.bf16.mxu0 0
      %5133 = vmatpush1.bf16.msra.mxu0 0
      %5134 = vmatprep.subr.bf16.mxu0 0
      %5135 = vmatpush1.bf16.msra.mxu0 0
      %5136 = vmatprep.subr.bf16.mxu0 0
      %5137 = vmatpush1.bf16.msra.mxu0 0
      %5138 = vmatprep.subr.bf16.mxu0 0
      %5139 = vmatpush1.bf16.msra.mxu0 0
      %5140 = vmatprep.subr.bf16.mxu0 0
      %5141 = vmatpush1.bf16.msra.mxu0 0
      %5142 = vmatprep.subr.bf16.mxu0 0
      %5143 = vmatpush1.bf16.msra.mxu0 0
      %5144 = vmatprep.subr.bf16.mxu0 0
      %5145 = vmatpush1.bf16.msra.mxu0 0
      %5146 = vmatprep.mubr.bf16.mxu0 0
      %5147 = vmatmul.mubr.bf16.gmra.mrb[0].mxu0 %v5061
      %v5148 = vpop.f32.mrb[0].mxu0
      %v5149 = vadd.f32 %v4735, %v5148
      %v5150 = vpop.f32.mrb[0].mxu0
      %v5151 = vpop.f32.mrb[0].mxu0
      %v5152 = vadd.f32 %v4738, %v5151
      %v5153 = vpop.f32.mrb[0].mxu0
      %5154 = vmatprep.mubr.bf16.mxu0 0
      %5155 = vmatmul.mubr.bf16.gmra.mrb[0].mxu0 %v5064
      %v5156 = vpop.f32.mrb[0].mxu0
      %v5157 = vadd.f32 %v4743, %v5156
      %v5158 = vpop.f32.mrb[0].mxu0
      %v5159 = vpop.f32.mrb[0].mxu0
      %v5160 = vadd.f32 %v4746, %v5159
      %v5161 = vpop.f32.mrb[0].mxu0
      %5162 = vmatprep.mubr.bf16.mxu0 0
      %5163 = vmatmul.mubr.bf16.gmra.mrb[0].mxu0 %v5067
      %v5164 = vpop.f32.mrb[0].mxu0
      %v5165 = vadd.f32 %v4751, %v5164
      %v5166 = vpop.f32.mrb[0].mxu0
      %v5167 = vpop.f32.mrb[0].mxu0
      %v5168 = vadd.f32 %v4754, %v5167
      %v5169 = vpop.f32.mrb[0].mxu0
      %5170 = vmatprep.mubr.bf16.mxu0 0
      %5171 = vmatmul.mubr.bf16.gmra.mrb[0].mxu0 %v5070
      %v5172 = vpop.f32.mrb[0].mxu0
      %v5173 = vadd.f32 %v4759, %v5172
      %v5174 = vpop.f32.mrb[0].mxu0
      %v5175 = vpop.f32.mrb[0].mxu0
      %v5176 = vadd.f32 %v4762, %v5175
      %v5177 = vpop.f32.mrb[0].mxu0
      %5178 = vmatprep.mubr.bf16.mxu0 0
      %5179 = vmatmul.mubr.bf16.gmra.mrb[0].mxu0 %v5073
      %v5180 = vpop.f32.mrb[0].mxu0
      %v5181 = vadd.f32 %v4767, %v5180
      %v5182 = vpop.f32.mrb[0].mxu0
      %v5183 = vpop.f32.mrb[0].mxu0
      %v5184 = vadd.f32 %v4770, %v5183
      %v5185 = vpop.f32.mrb[0].mxu0
      %5186 = vmatprep.mubr.bf16.mxu0 0
      %5187 = vmatmul.mubr.bf16.gmra.mrb[0].mxu0 %v5076
      %v5188 = vpop.f32.mrb[0].mxu0
      %v5189 = vadd.f32 %v4775, %v5188
      %v5190 = vpop.f32.mrb[0].mxu0
      %v5191 = vpop.f32.mrb[0].mxu0
      %v5192 = vadd.f32 %v4778, %v5191
      %v5193 = vpop.f32.mrb[0].mxu0
      %5194 = vmatprep.mubr.bf16.mxu0 0
      %5195 = vmatmul.mubr.bf16.gmra.mrb[0].mxu0 %v5079
      %v5196 = vpop.f32.mrb[0].mxu0
      %v5197 = vadd.f32 %v4783, %v5196
      %v5198 = vpop.f32.mrb[0].mxu0
      %v5199 = vpop.f32.mrb[0].mxu0
      %v5200 = vadd.f32 %v4786, %v5199
      %v5201 = vpop.f32.mrb[0].mxu0
      %5202 = vmatprep.mubr.bf16.mxu0 0
      %5203 = vmatmul.mubr.bf16.gmra.mrb[0].mxu0 %v5082
      %v5204 = vpop.f32.mrb[0].mxu0
      %v5205 = vadd.f32 %v4791, %v5204
      %v5206 = vpop.f32.mrb[0].mxu0
      %v5207 = vpop.f32.mrb[0].mxu0
      %v5208 = vadd.f32 %v4794, %v5207
      %v5209 = vpop.f32.mrb[0].mxu0
      %5210 = vmatprep.mubr.bf16.mxu0 0
      %5211 = vmatmul.mubr.bf16.gmra.mrb[0].mxu0 %v5085
      %v5212 = vpop.f32.mrb[0].mxu0
      %v5213 = vadd.f32 %v4799, %v5212
      %v5214 = vpop.f32.mrb[0].mxu0
      %v5215 = vpop.f32.mrb[0].mxu0
      %v5216 = vadd.f32 %v4802, %v5215
      %v5217 = vpop.f32.mrb[0].mxu0
      %5218 = vmatprep.mubr.bf16.mxu0 0
      %5219 = vmatmul.mubr.bf16.gmra.mrb[0].mxu0 %v5088
      %v5220 = vpop.f32.mrb[0].mxu0
      %v5221 = vadd.f32 %v4807, %v5220
      %v5222 = vpop.f32.mrb[0].mxu0
      %v5223 = vpop.f32.mrb[0].mxu0
      %v5224 = vadd.f32 %v4810, %v5223
      %v5225 = vpop.f32.mrb[0].mxu0
      %5226 = vmatprep.mubr.bf16.mxu0 0
      %5227 = vmatmul.mubr.bf16.gmra.mrb[0].mxu0 %v5091
      %v5228 = vpop.f32.mrb[0].mxu0
      %v5229 = vadd.f32 %v4815, %v5228
      %v5230 = vpop.f32.mrb[0].mxu0
      %v5231 = vpop.f32.mrb[0].mxu0
      %v5232 = vadd.f32 %v4818, %v5231
      %v5233 = vpop.f32.mrb[0].mxu0
      %5234 = vmatprep.mubr.bf16.mxu0 0
      %5235 = vmatmul.mubr.bf16.gmra.mrb[0].mxu0 %v5094
      %v5236 = vpop.f32.mrb[0].mxu0
      %v5237 = vadd.f32 %v4823, %v5236
      %v5238 = vpop.f32.mrb[0].mxu0
      %v5239 = vpop.f32.mrb[0].mxu0
      %v5240 = vadd.f32 %v4826, %v5239
      %v5241 = vpop.f32.mrb[0].mxu0
      %5242 = vmatprep.mubr.bf16.mxu0 0
      %5243 = vmatmul.mubr.bf16.gmra.mrb[0].mxu0 %v5097
      %v5244 = vpop.f32.mrb[0].mxu0
      %v5245 = vadd.f32 %v4831, %v5244
      %v5246 = vpop.f32.mrb[0].mxu0
      %v5247 = vpop.f32.mrb[0].mxu0
      %v5248 = vadd.f32 %v4834, %v5247
      %v5249 = vpop.f32.mrb[0].mxu0
      %5250 = vmatprep.mubr.bf16.mxu0 0
      %5251 = vmatmul.mubr.bf16.gmra.mrb[0].mxu0 %v5100
      %v5252 = vpop.f32.mrb[0].mxu0
      %v5253 = vadd.f32 %v4839, %v5252
      %v5254 = vpop.f32.mrb[0].mxu0
      %v5255 = vpop.f32.mrb[0].mxu0
      %v5256 = vadd.f32 %v4842, %v5255
      %v5257 = vpop.f32.mrb[0].mxu0
      %5258 = vmatprep.mubr.bf16.mxu0 0
      %5259 = vmatmul.mubr.bf16.gmra.mrb[0].mxu0 %v5103
      %v5260 = vpop.f32.mrb[0].mxu0
      %v5261 = vadd.f32 %v4847, %v5260
      %v5262 = vpop.f32.mrb[0].mxu0
      %v5263 = vpop.f32.mrb[0].mxu0
      %v5264 = vadd.f32 %v4850, %v5263
      %v5265 = vpop.f32.mrb[0].mxu0
      %5266 = vmatprep.mubr.bf16.mxu0 0
      %5267 = vmatmul.mubr.bf16.gmra.mrb[0].mxu0 %v5106
      %v5268 = vpop.f32.mrb[0].mxu0
      %v5269 = vadd.f32 %v4855, %v5268
      %v5270 = vpop.f32.mrb[0].mxu0
      %v5271 = vpop.f32.mrb[0].mxu0
      %v5272 = vadd.f32 %v4858, %v5271
      %v5273 = vpop.f32.mrb[0].mxu0
      %5274 = vmatprep.mubr.bf16.mxu0 0
      %5275 = vmatmul.mubr.bf16.gmra.mrb[0].mxu0 %v5109
      %v5276 = vpop.f32.mrb[0].mxu0
      %v5277 = vadd.f32 %v4863, %v5276
      %v5278 = vpop.f32.mrb[0].mxu0
      %v5279 = vpop.f32.mrb[0].mxu0
      %v5280 = vadd.f32 %v4866, %v5279
      %v5281 = vpop.f32.mrb[0].mxu0
      %5282 = vmatprep.mubr.bf16.mxu0 0
      %5283 = vmatmul.mubr.bf16.gmra.mrb[0].mxu0 %v5112
      %v5284 = vpop.f32.mrb[0].mxu0
      %v5285 = vadd.f32 %v4871, %v5284
      %v5286 = vpop.f32.mrb[0].mxu0
      %v5287 = vpop.f32.mrb[0].mxu0
      %v5288 = vadd.f32 %v4874, %v5287
      %v5289 = vpop.f32.mrb[0].mxu0
      %5290 = vdwg.mxu0
      %v5291 = vld [vmem:[#allocation2 + $0x90] sm:$0xff]
      %s5292 = scalar_lea.vmem %s3, 32
      %v5293 = vld [vmem:[%s5292] sm:$0xf]
      %v5294 = vld [vmem:[%s5292 + $0x4] sm:$0xf]
      %v5295 = vld [vmem:[%s5292 + $0x8] sm:$0xf]
      %v5296 = vld [vmem:[%s5292 + $0xc] sm:$0xf]
      %vm5297 = vsmask.f32 256
      %v5299 = vshrl.u32 %v4571, 16
      %v5301 = vrot.slane %v5299, 7
      %v5302 = vrot.slane %v4887, 7
      %v5303 = vor.u32 %v5302, %v4890
      %v5304 = vsel %vm5297, %v5301, %v5303
      %v5305 = vrot.slane %v4896, 7
      %v5306 = vor.u32 %v5305, %v4899
      %v5307 = vsel %vm5297, %v5302, %v5306
      %v5308 = vrot.slane %v4905, 7
      %v5309 = vor.u32 %v5308, %v4908
      %v5310 = vsel %vm5297, %v5305, %v5309
      %v5311 = vrot.slane %v4914, 7
      %v5312 = vor.u32 %v5311, %v4917
      %v5313 = vsel %vm5297, %v5308, %v5312
      %v5314 = vrot.slane %v4923, 7
      %v5315 = vor.u32 %v5314, %v4926
      %v5316 = vsel %vm5297, %v5311, %v5315
      %v5317 = vrot.slane %v4932, 7
      %v5318 = vor.u32 %v5317, %v4935
      %v5319 = vsel %vm5297, %v5314, %v5318
      %v5320 = vrot.slane %v4941, 7
      %v5321 = vor.u32 %v5320, %v4944
      %v5322 = vsel %vm5297, %v5317, %v5321
      %v5323 = vrot.slane %v4950, 7
      %v5324 = vor.u32 %v5323, %v4953
      %v5325 = vsel %vm5297, %v5320, %v5324
      %v5326 = vrot.slane %v4959, 7
      %v5327 = vor.u32 %v5326, %v4962
      %v5328 = vsel %vm5297, %v5323, %v5327
      %v5329 = vrot.slane %v4968, 7
      %v5330 = vor.u32 %v5329, %v4971
      %v5331 = vsel %vm5297, %v5326, %v5330
      %v5332 = vrot.slane %v4977, 7
      %v5333 = vor.u32 %v5332, %v4980
      %v5334 = vsel %vm5297, %v5329, %v5333
      %v5335 = vrot.slane %v4986, 7
      %v5336 = vor.u32 %v5335, %v4989
      %v5337 = vsel %vm5297, %v5332, %v5336
      %v5338 = vrot.slane %v4995, 7
      %v5339 = vor.u32 %v5338, %v4998
      %v5340 = vsel %vm5297, %v5335, %v5339
      %v5341 = vrot.slane %v5004, 7
      %v5342 = vor.u32 %v5341, %v5007
      %v5343 = vsel %vm5297, %v5338, %v5342
      %v5344 = vrot.slane %v5013, 7
      %v5345 = vor.u32 %v5344, %v5016
      %v5346 = vsel %vm5297, %v5341, %v5345
      %v5347 = vrot.slane %v5022, 7
      %v5348 = vor.u32 %v5347, %v5025
      %v5349 = vsel %vm5297, %v5344, %v5348
      %v5350 = vrot.slane %v5031, 7
      %v5351 = vor.u32 %v5350, %v5034
      %v5352 = vsel %vm5297, %v5347, %v5351
      %v5354 = vshrl.u32 %v5291, 16
      %v5356 = vrot.slane %v5354, 7
      %v5357 = vshll.u32 %v5291, 16
      %v5359 = vor.u32 %v5356, %v5357
      %v5360 = vsel %vm5297, %v5350, %v5359
      %v5365 = vunpack.c.l.b16 %v5293
      %v5366 = vunpack.c.l.b16 %v5294
      %v5367 = vunpack.c.l.b16 %v5295
      %v5368 = vunpack.c.l.b16 %v5296
      %v5369 = vpack.c.b16 %v5366, %v5365
      %v5370 = vpack.c.b16 %v5368, %v5367
      %v5374 = vsel %vm443, %v5304, 0
      %v5377 = vsel %vm443, %v5307, 0
      %v5380 = vsel %vm443, %v5310, 0
      %v5383 = vsel %vm443, %v5313, 0
      %v5386 = vsel %vm443, %v5316, 0
      %v5389 = vsel %vm443, %v5319, 0
      %v5392 = vsel %vm443, %v5322, 0
      %v5395 = vsel %vm443, %v5325, 0
      %v5398 = vsel %vm443, %v5328, 0
      %v5401 = vsel %vm443, %v5331, 0
      %v5404 = vsel %vm443, %v5334, 0
      %v5407 = vsel %vm443, %v5337, 0
      %v5410 = vsel %vm443, %v5340, 0
      %v5413 = vsel %vm443, %v5343, 0
      %v5416 = vsel %vm443, %v5346, 0
      %v5419 = vsel %vm443, %v5349, 0
      %v5422 = vsel %vm443, %v5352, 0
      %v5425 = vsel %vm443, %v5360, 0
      %5427 = vmatprep.subr.bf16.mxu0 0
      %5428 = vmatpush1.bf16.msra.mxu0 %v5369
      %5429 = vmatprep.subr.bf16.mxu0 0
      %5430 = vmatpush1.bf16.msra.mxu0 %v5370
      %5431 = vmatprep.subr.bf16.mxu0 0
      %5432 = vmatpush1.bf16.msra.mxu0 0
      %5433 = vmatprep.subr.bf16.mxu0 0
      %5434 = vmatpush1.bf16.msra.mxu0 0
      %5435 = vmatprep.subr.bf16.mxu0 0
      %5436 = vmatpush1.bf16.msra.mxu0 0
      %5437 = vmatprep.subr.bf16.mxu0 0
      %5438 = vmatpush1.bf16.msra.mxu0 0
      %5439 = vmatprep.subr.bf16.mxu0 0
      %5440 = vmatpush1.bf16.msra.mxu0 0
      %5441 = vmatprep.subr.bf16.mxu0 0
      %5442 = vmatpush1.bf16.msra.mxu0 0
      %5443 = vmatprep.subr.bf16.mxu0 0
      %5444 = vmatpush1.bf16.msra.mxu0 0
      %5445 = vmatprep.subr.bf16.mxu0 0
      %5446 = vmatpush1.bf16.msra.mxu0 0
      %5447 = vmatprep.subr.bf16.mxu0 0
      %5448 = vmatpush1.bf16.msra.mxu0 0
      %5449 = vmatprep.subr.bf16.mxu0 0
      %5450 = vmatpush1.bf16.msra.mxu0 0
      %5451 = vmatprep.subr.bf16.mxu0 0
      %5452 = vmatpush1.bf16.msra.mxu0 0
      %5453 = vmatprep.subr.bf16.mxu0 0
      %5454 = vmatpush1.bf16.msra.mxu0 0
      %5455 = vmatprep.subr.bf16.mxu0 0
      %5456 = vmatpush1.bf16.msra.mxu0 0
      %5457 = vmatprep.subr.bf16.mxu0 0
      %5458 = vmatpush1.bf16.msra.mxu0 0
      %5459 = vmatprep.mubr.bf16.mxu0 0
      %5460 = vmatmul.mubr.bf16.gmra.mrb[0].mxu0 %v5374
      %v5461 = vpop.f32.mrb[0].mxu0
      %v5462 = vadd.f32 0.0, %v5461
      %v5463 = vpop.f32.mrb[0].mxu0
      %v5464 = vpop.f32.mrb[0].mxu0
      %v5465 = vadd.f32 0.0, %v5464
      %v5466 = vpop.f32.mrb[0].mxu0
      %5467 = vmatprep.mubr.bf16.mxu0 0
      %5468 = vmatmul.mubr.bf16.gmra.mrb[0].mxu0 %v5377
      %v5469 = vpop.f32.mrb[0].mxu0
      %v5470 = vadd.f32 0.0, %v5469
      %v5471 = vpop.f32.mrb[0].mxu0
      %v5472 = vpop.f32.mrb[0].mxu0
      %v5473 = vadd.f32 0.0, %v5472
      %v5474 = vpop.f32.mrb[0].mxu0
      %5475 = vmatprep.mubr.bf16.mxu0 0
      %5476 = vmatmul.mubr.bf16.gmra.mrb[0].mxu0 %v5380
      %v5477 = vpop.f32.mrb[0].mxu0
      %v5478 = vadd.f32 0.0, %v5477
      %v5479 = vpop.f32.mrb[0].mxu0
      %v5480 = vpop.f32.mrb[0].mxu0
      %v5481 = vadd.f32 0.0, %v5480
      %v5482 = vpop.f32.mrb[0].mxu0
      %5483 = vmatprep.mubr.bf16.mxu0 0
      %5484 = vmatmul.mubr.bf16.gmra.mrb[0].mxu0 %v5383
      %v5485 = vpop.f32.mrb[0].mxu0
      %v5486 = vadd.f32 0.0, %v5485
      %v5487 = vpop.f32.mrb[0].mxu0
      %v5488 = vpop.f32.mrb[0].mxu0
      %v5489 = vadd.f32 0.0, %v5488
      %v5490 = vpop.f32.mrb[0].mxu0
      %5491 = vmatprep.mubr.bf16.mxu0 0
      %5492 = vmatmul.mubr.bf16.gmra.mrb[0].mxu0 %v5386
      %v5493 = vpop.f32.mrb[0].mxu0
      %v5494 = vadd.f32 0.0, %v5493
      %v5495 = vpop.f32.mrb[0].mxu0
      %v5496 = vpop.f32.mrb[0].mxu0
      %v5497 = vadd.f32 0.0, %v5496
      %v5498 = vpop.f32.mrb[0].mxu0
      %5499 = vmatprep.mubr.bf16.mxu0 0
      %5500 = vmatmul.mubr.bf16.gmra.mrb[0].mxu0 %v5389
      %v5501 = vpop.f32.mrb[0].mxu0
      %v5502 = vadd.f32 0.0, %v5501
      %v5503 = vpop.f32.mrb[0].mxu0
      %v5504 = vpop.f32.mrb[0].mxu0
      %v5505 = vadd.f32 0.0, %v5504
      %v5506 = vpop.f32.mrb[0].mxu0
      %5507 = vmatprep.mubr.bf16.mxu0 0
      %5508 = vmatmul.mubr.bf16.gmra.mrb[0].mxu0 %v5392
      %v5509 = vpop.f32.mrb[0].mxu0
      %v5510 = vadd.f32 0.0, %v5509
      %v5511 = vpop.f32.mrb[0].mxu0
      %v5512 = vpop.f32.mrb[0].mxu0
      %v5513 = vadd.f32 0.0, %v5512
      %v5514 = vpop.f32.mrb[0].mxu0
      %5515 = vmatprep.mubr.bf16.mxu0 0
      %5516 = vmatmul.mubr.bf16.gmra.mrb[0].mxu0 %v5395
      %v5517 = vpop.f32.mrb[0].mxu0
      %v5518 = vadd.f32 0.0, %v5517
      %v5519 = vpop.f32.mrb[0].mxu0
      %v5520 = vpop.f32.mrb[0].mxu0
      %v5521 = vadd.f32 0.0, %v5520
      %v5522 = vpop.f32.mrb[0].mxu0
      %5523 = vmatprep.mubr.bf16.mxu0 0
      %5524 = vmatmul.mubr.bf16.gmra.mrb[0].mxu0 %v5398
      %v5525 = vpop.f32.mrb[0].mxu0
      %v5526 = vadd.f32 0.0, %v5525
      %v5527 = vpop.f32.mrb[0].mxu0
      %v5528 = vpop.f32.mrb[0].mxu0
      %v5529 = vadd.f32 0.0, %v5528
      %v5530 = vpop.f32.mrb[0].mxu0
      %5531 = vmatprep.mubr.bf16.mxu0 0
      %5532 = vmatmul.mubr.bf16.gmra.mrb[0].mxu0 %v5401
      %v5533 = vpop.f32.mrb[0].mxu0
      %v5534 = vadd.f32 0.0, %v5533
      %v5535 = vpop.f32.mrb[0].mxu0
      %v5536 = vpop.f32.mrb[0].mxu0
      %v5537 = vadd.f32 0.0, %v5536
      %v5538 = vpop.f32.mrb[0].mxu0
      %5539 = vmatprep.mubr.bf16.mxu0 0
      %5540 = vmatmul.mubr.bf16.gmra.mrb[0].mxu0 %v5404
      %v5541 = vpop.f32.mrb[0].mxu0
      %v5542 = vadd.f32 0.0, %v5541
      %v5543 = vpop.f32.mrb[0].mxu0
      %v5544 = vpop.f32.mrb[0].mxu0
      %v5545 = vadd.f32 0.0, %v5544
      %v5546 = vpop.f32.mrb[0].mxu0
      %5547 = vmatprep.mubr.bf16.mxu0 0
      %5548 = vmatmul.mubr.bf16.gmra.mrb[0].mxu0 %v5407
      %v5549 = vpop.f32.mrb[0].mxu0
      %v5550 = vadd.f32 0.0, %v5549
      %v5551 = vpop.f32.mrb[0].mxu0
      %v5552 = vpop.f32.mrb[0].mxu0
      %v5553 = vadd.f32 0.0, %v5552
      %v5554 = vpop.f32.mrb[0].mxu0
      %5555 = vmatprep.mubr.bf16.mxu0 0
      %5556 = vmatmul.mubr.bf16.gmra.mrb[0].mxu0 %v5410
      %v5557 = vpop.f32.mrb[0].mxu0
      %v5558 = vadd.f32 0.0, %v5557
      %v5559 = vpop.f32.mrb[0].mxu0
      %v5560 = vpop.f32.mrb[0].mxu0
      %v5561 = vadd.f32 0.0, %v5560
      %v5562 = vpop.f32.mrb[0].mxu0
      %5563 = vmatprep.mubr.bf16.mxu0 0
      %5564 = vmatmul.mubr.bf16.gmra.mrb[0].mxu0 %v5413
      %v5565 = vpop.f32.mrb[0].mxu0
      %v5566 = vadd.f32 0.0, %v5565
      %v5567 = vpop.f32.mrb[0].mxu0
      %v5568 = vpop.f32.mrb[0].mxu0
      %v5569 = vadd.f32 0.0, %v5568
      %v5570 = vpop.f32.mrb[0].mxu0
      %5571 = vmatprep.mubr.bf16.mxu0 0
      %5572 = vmatmul.mubr.bf16.gmra.mrb[0].mxu0 %v5416
      %v5573 = vpop.f32.mrb[0].mxu0
      %v5574 = vadd.f32 0.0, %v5573
      %v5575 = vpop.f32.mrb[0].mxu0
      %v5576 = vpop.f32.mrb[0].mxu0
      %v5577 = vadd.f32 0.0, %v5576
      %v5578 = vpop.f32.mrb[0].mxu0
      %5579 = vmatprep.mubr.bf16.mxu0 0
      %5580 = vmatmul.mubr.bf16.gmra.mrb[0].mxu0 %v5419
      %v5581 = vpop.f32.mrb[0].mxu0
      %v5582 = vadd.f32 0.0, %v5581
      %v5583 = vpop.f32.mrb[0].mxu0
      %v5584 = vpop.f32.mrb[0].mxu0
      %v5585 = vadd.f32 0.0, %v5584
      %v5586 = vpop.f32.mrb[0].mxu0
      %5587 = vmatprep.mubr.bf16.mxu0 0
      %5588 = vmatmul.mubr.bf16.gmra.mrb[0].mxu0 %v5422
      %v5589 = vpop.f32.mrb[0].mxu0
      %v5590 = vadd.f32 0.0, %v5589
      %v5591 = vpop.f32.mrb[0].mxu0
      %v5592 = vpop.f32.mrb[0].mxu0
      %v5593 = vadd.f32 0.0, %v5592
      %v5594 = vpop.f32.mrb[0].mxu0
      %5595 = vmatprep.mubr.bf16.mxu0 0
      %5596 = vmatmul.mubr.bf16.gmra.mrb[0].mxu0 %v5425
      %v5597 = vpop.f32.mrb[0].mxu0
      %v5598 = vadd.f32 0.0, %v5597
      %v5599 = vpop.f32.mrb[0].mxu0
      %v5600 = vpop.f32.mrb[0].mxu0
      %v5601 = vadd.f32 0.0, %v5600
      %v5602 = vpop.f32.mrb[0].mxu0
      %5603 = vdwg.mxu0
      %v5604 = vadd.f32 %v5149, %v5462
      %v5605 = vadd.f32 %v5152, %v5465
      %v5606 = vadd.f32 %v5157, %v5470
      %v5607 = vadd.f32 %v5160, %v5473
      %v5608 = vadd.f32 %v5165, %v5478
      %v5609 = vadd.f32 %v5168, %v5481
      %v5610 = vadd.f32 %v5173, %v5486
      %v5611 = vadd.f32 %v5176, %v5489
      %v5612 = vadd.f32 %v5181, %v5494
      %v5613 = vadd.f32 %v5184, %v5497
      %v5614 = vadd.f32 %v5189, %v5502
      %v5615 = vadd.f32 %v5192, %v5505
      %v5616 = vadd.f32 %v5197, %v5510
      %v5617 = vadd.f32 %v5200, %v5513
      %v5618 = vadd.f32 %v5205, %v5518
      %v5619 = vadd.f32 %v5208, %v5521
      %v5620 = vadd.f32 %v5213, %v5526
      %v5621 = vadd.f32 %v5216, %v5529
      %v5622 = vadd.f32 %v5221, %v5534
      %v5623 = vadd.f32 %v5224, %v5537
      %v5624 = vadd.f32 %v5229, %v5542
      %v5625 = vadd.f32 %v5232, %v5545
      %v5626 = vadd.f32 %v5237, %v5550
      %v5627 = vadd.f32 %v5240, %v5553
      %v5628 = vadd.f32 %v5245, %v5558
      %v5629 = vadd.f32 %v5248, %v5561
      %v5630 = vadd.f32 %v5253, %v5566
      %v5631 = vadd.f32 %v5256, %v5569
      %v5632 = vadd.f32 %v5261, %v5574
      %v5633 = vadd.f32 %v5264, %v5577
      %v5634 = vadd.f32 %v5269, %v5582
      %v5635 = vadd.f32 %v5272, %v5585
      %v5636 = vadd.f32 %v5277, %v5590
      %v5637 = vadd.f32 %v5280, %v5593
      %v5638 = vadd.f32 %v5285, %v5598
      %v5639 = vadd.f32 %v5288, %v5601
      %v5640 = vld [vmem:[#allocation2 + $0x8] sm:$0x80]
      %v5641 = vld [vmem:[#allocation2 + $0x10] sm:$0xff]
      %v5642 = vld [vmem:[#allocation2 + $0x18] sm:$0xff]
      %v5643 = vld [vmem:[#allocation2 + $0x20] sm:$0xff]
      %v5644 = vld [vmem:[#allocation2 + $0x28] sm:$0xff]
      %v5645 = vld [vmem:[#allocation2 + $0x30] sm:$0xff]
      %v5646 = vld [vmem:[#allocation2 + $0x38] sm:$0xff]
      %v5647 = vld [vmem:[#allocation2 + $0x40] sm:$0xff]
      %v5648 = vld [vmem:[#allocation2 + $0x48] sm:$0xff]
      %v5649 = vld [vmem:[#allocation2 + $0x50] sm:$0xff]
      %v5650 = vld [vmem:[#allocation2 + $0x58] sm:$0xff]
      %v5651 = vld [vmem:[#allocation2 + $0x60] sm:$0xff]
      %v5652 = vld [vmem:[#allocation2 + $0x68] sm:$0xff]
      %v5653 = vld [vmem:[#allocation2 + $0x70] sm:$0xff]
      %v5654 = vld [vmem:[#allocation2 + $0x78] sm:$0xff]
      %v5655 = vld [vmem:[#allocation2 + $0x80] sm:$0xff]
      %v5656 = vld [vmem:[#allocation2 + $0x88] sm:$0xff]
      %v5657 = vld [vmem:[#allocation2 + $0x90] sm:$0xff]
      %v5658 = vld [vmem:[#allocation2 + $0x98] sm:$0xff]
      %s5659 = scalar_lea.vmem %s3, 48
      %v5660 = vld [vmem:[%s5659] sm:$0xf]
      %v5661 = vld [vmem:[%s5659 + $0x4] sm:$0xf]
      %v5662 = vld [vmem:[%s5659 + $0x8] sm:$0xf]
      %v5663 = vld [vmem:[%s5659 + $0xc] sm:$0xf]
      %v5665 = vshrl.u32 %v5640, 16
      %v5667 = vrot.slane %v5665, 7
      %v5669 = vshrl.u32 %v5641, 16
      %v5671 = vrot.slane %v5669, 7
      %v5672 = vshll.u32 %v5641, 16
      %v5674 = vor.u32 %v5671, %v5672
      %v5675 = vsel %vm5297, %v5667, %v5674
      %v5677 = vshrl.u32 %v5642, 16
      %v5679 = vrot.slane %v5677, 7
      %v5680 = vshll.u32 %v5642, 16
      %v5682 = vor.u32 %v5679, %v5680
      %v5683 = vsel %vm5297, %v5671, %v5682
      %v5685 = vshrl.u32 %v5643, 16
      %v5687 = vrot.slane %v5685, 7
      %v5688 = vshll.u32 %v5643, 16
      %v5690 = vor.u32 %v5687, %v5688
      %v5691 = vsel %vm5297, %v5679, %v5690
      %v5693 = vshrl.u32 %v5644, 16
      %v5695 = vrot.slane %v5693, 7
      %v5696 = vshll.u32 %v5644, 16
      %v5698 = vor.u32 %v5695, %v5696
      %v5699 = vsel %vm5297, %v5687, %v5698
      %v5701 = vshrl.u32 %v5645, 16
      %v5703 = vrot.slane %v5701, 7
      %v5704 = vshll.u32 %v5645, 16
      %v5706 = vor.u32 %v5703, %v5704
      %v5707 = vsel %vm5297, %v5695, %v5706
      %v5709 = vshrl.u32 %v5646, 16
      %v5711 = vrot.slane %v5709, 7
      %v5712 = vshll.u32 %v5646, 16
      %v5714 = vor.u32 %v5711, %v5712
      %v5715 = vsel %vm5297, %v5703, %v5714
      %v5717 = vshrl.u32 %v5647, 16
      %v5719 = vrot.slane %v5717, 7
      %v5720 = vshll.u32 %v5647, 16
      %v5722 = vor.u32 %v5719, %v5720
      %v5723 = vsel %vm5297, %v5711, %v5722
      %v5725 = vshrl.u32 %v5648, 16
      %v5727 = vrot.slane %v5725, 7
      %v5728 = vshll.u32 %v5648, 16
      %v5730 = vor.u32 %v5727, %v5728
      %v5731 = vsel %vm5297, %v5719, %v5730
      %v5733 = vshrl.u32 %v5649, 16
      %v5735 = vrot.slane %v5733, 7
      %v5736 = vshll.u32 %v5649, 16
      %v5738 = vor.u32 %v5735, %v5736
      %v5739 = vsel %vm5297, %v5727, %v5738
      %v5741 = vshrl.u32 %v5650, 16
      %v5743 = vrot.slane %v5741, 7
      %v5744 = vshll.u32 %v5650, 16
      %v5746 = vor.u32 %v5743, %v5744
      %v5747 = vsel %vm5297, %v5735, %v5746
      %v5749 = vshrl.u32 %v5651, 16
      %v5751 = vrot.slane %v5749, 7
      %v5752 = vshll.u32 %v5651, 16
      %v5754 = vor.u32 %v5751, %v5752
      %v5755 = vsel %vm5297, %v5743, %v5754
      %v5757 = vshrl.u32 %v5652, 16
      %v5759 = vrot.slane %v5757, 7
      %v5760 = vshll.u32 %v5652, 16
      %v5762 = vor.u32 %v5759, %v5760
      %v5763 = vsel %vm5297, %v5751, %v5762
      %v5765 = vshrl.u32 %v5653, 16
      %v5767 = vrot.slane %v5765, 7
      %v5768 = vshll.u32 %v5653, 16
      %v5770 = vor.u32 %v5767, %v5768
      %v5771 = vsel %vm5297, %v5759, %v5770
      %v5773 = vshrl.u32 %v5654, 16
      %v5775 = vrot.slane %v5773, 7
      %v5776 = vshll.u32 %v5654, 16
      %v5778 = vor.u32 %v5775, %v5776
      %v5779 = vsel %vm5297, %v5767, %v5778
      %v5781 = vshrl.u32 %v5655, 16
      %v5783 = vrot.slane %v5781, 7
      %v5784 = vshll.u32 %v5655, 16
      %v5786 = vor.u32 %v5783, %v5784
      %v5787 = vsel %vm5297, %v5775, %v5786
      %v5789 = vshrl.u32 %v5656, 16
      %v5791 = vrot.slane %v5789, 7
      %v5792 = vshll.u32 %v5656, 16
      %v5794 = vor.u32 %v5791, %v5792
      %v5795 = vsel %vm5297, %v5783, %v5794
      %v5797 = vshrl.u32 %v5657, 16
      %v5799 = vrot.slane %v5797, 7
      %v5800 = vshll.u32 %v5657, 16
      %v5802 = vor.u32 %v5799, %v5800
      %v5803 = vsel %vm5297, %v5791, %v5802
      %v5805 = vshrl.u32 %v5658, 16
      %v5807 = vrot.slane %v5805, 7
      %v5808 = vshll.u32 %v5658, 16
      %v5810 = vor.u32 %v5807, %v5808
      %v5811 = vsel %vm5297, %v5799, %v5810
      %v5816 = vunpack.c.l.b16 %v5660
      %v5817 = vunpack.c.l.b16 %v5661
      %v5818 = vunpack.c.l.b16 %v5662
      %v5819 = vunpack.c.l.b16 %v5663
      %v5820 = vpack.c.b16 %v5817, %v5816
      %v5821 = vpack.c.b16 %v5819, %v5818
      %v5825 = vsel %vm443, %v5675, 0
      %v5828 = vsel %vm443, %v5683, 0
      %v5831 = vsel %vm443, %v5691, 0
      %v5834 = vsel %vm443, %v5699, 0
      %v5837 = vsel %vm443, %v5707, 0
      %v5840 = vsel %vm443, %v5715, 0
      %v5843 = vsel %vm443, %v5723, 0
      %v5846 = vsel %vm443, %v5731, 0
      %v5849 = vsel %vm443, %v5739, 0
      %v5852 = vsel %vm443, %v5747, 0
      %v5855 = vsel %vm443, %v5755, 0
      %v5858 = vsel %vm443, %v5763, 0
      %v5861 = vsel %vm443, %v5771, 0
      %v5864 = vsel %vm443, %v5779, 0
      %v5867 = vsel %vm443, %v5787, 0
      %v5870 = vsel %vm443, %v5795, 0
      %v5873 = vsel %vm443, %v5803, 0
      %v5876 = vsel %vm443, %v5811, 0
      %5878 = vmatprep.subr.bf16.mxu0 0
      %5879 = vmatpush1.bf16.msra.mxu0 %v5820
      %5880 = vmatprep.subr.bf16.mxu0 0
      %5881 = vmatpush1.bf16.msra.mxu0 %v5821
      %5882 = vmatprep.subr.bf16.mxu0 0
      %5883 = vmatpush1.bf16.msra.mxu0 0
      %5884 = vmatprep.subr.bf16.mxu0 0
      %5885 = vmatpush1.bf16.msra.mxu0 0
      %5886 = vmatprep.subr.bf16.mxu0 0
      %5887 = vmatpush1.bf16.msra.mxu0 0
      %5888 = vmatprep.subr.bf16.mxu0 0
      %5889 = vmatpush1.bf16.msra.mxu0 0
      %5890 = vmatprep.subr.bf16.mxu0 0
      %5891 = vmatpush1.bf16.msra.mxu0 0
      %5892 = vmatprep.subr.bf16.mxu0 0
      %5893 = vmatpush1.bf16.msra.mxu0 0
      %5894 = vmatprep.subr.bf16.mxu0 0
      %5895 = vmatpush1.bf16.msra.mxu0 0
      %5896 = vmatprep.subr.bf16.mxu0 0
      %5897 = vmatpush1.bf16.msra.mxu0 0
      %5898 = vmatprep.subr.bf16.mxu0 0
      %5899 = vmatpush1.bf16.msra.mxu0 0
      %5900 = vmatprep.subr.bf16.mxu0 0
      %5901 = vmatpush1.bf16.msra.mxu0 0
      %5902 = vmatprep.subr.bf16.mxu0 0
      %5903 = vmatpush1.bf16.msra.mxu0 0
      %5904 = vmatprep.subr.bf16.mxu0 0
      %5905 = vmatpush1.bf16.msra.mxu0 0
      %5906 = vmatprep.subr.bf16.mxu0 0
      %5907 = vmatpush1.bf16.msra.mxu0 0
      %5908 = vmatprep.subr.bf16.mxu0 0
      %5909 = vmatpush1.bf16.msra.mxu0 0
      %5910 = vmatprep.mubr.bf16.mxu0 0
      %5911 = vmatmul.mubr.bf16.gmra.mrb[0].mxu0 %v5825
      %v5912 = vpop.f32.mrb[0].mxu0
      %v5913 = vadd.f32 0.0, %v5912
      %v5914 = vpop.f32.mrb[0].mxu0
      %v5915 = vpop.f32.mrb[0].mxu0
      %v5916 = vadd.f32 0.0, %v5915
      %v5917 = vpop.f32.mrb[0].mxu0
      %5918 = vmatprep.mubr.bf16.mxu0 0
      %5919 = vmatmul.mubr.bf16.gmra.mrb[0].mxu0 %v5828
      %v5920 = vpop.f32.mrb[0].mxu0
      %v5921 = vadd.f32 0.0, %v5920
      %v5922 = vpop.f32.mrb[0].mxu0
      %v5923 = vpop.f32.mrb[0].mxu0
      %v5924 = vadd.f32 0.0, %v5923
      %v5925 = vpop.f32.mrb[0].mxu0
      %5926 = vmatprep.mubr.bf16.mxu0 0
      %5927 = vmatmul.mubr.bf16.gmra.mrb[0].mxu0 %v5831
      %v5928 = vpop.f32.mrb[0].mxu0
      %v5929 = vadd.f32 0.0, %v5928
      %v5930 = vpop.f32.mrb[0].mxu0
      %v5931 = vpop.f32.mrb[0].mxu0
      %v5932 = vadd.f32 0.0, %v5931
      %v5933 = vpop.f32.mrb[0].mxu0
      %5934 = vmatprep.mubr.bf16.mxu0 0
      %5935 = vmatmul.mubr.bf16.gmra.mrb[0].mxu0 %v5834
      %v5936 = vpop.f32.mrb[0].mxu0
      %v5937 = vadd.f32 0.0, %v5936
      %v5938 = vpop.f32.mrb[0].mxu0
      %v5939 = vpop.f32.mrb[0].mxu0
      %v5940 = vadd.f32 0.0, %v5939
      %v5941 = vpop.f32.mrb[0].mxu0
      %5942 = vmatprep.mubr.bf16.mxu0 0
      %5943 = vmatmul.mubr.bf16.gmra.mrb[0].mxu0 %v5837
      %v5944 = vpop.f32.mrb[0].mxu0
      %v5945 = vadd.f32 0.0, %v5944
      %v5946 = vpop.f32.mrb[0].mxu0
      %v5947 = vpop.f32.mrb[0].mxu0
      %v5948 = vadd.f32 0.0, %v5947
      %v5949 = vpop.f32.mrb[0].mxu0
      %5950 = vmatprep.mubr.bf16.mxu0 0
      %5951 = vmatmul.mubr.bf16.gmra.mrb[0].mxu0 %v5840
      %v5952 = vpop.f32.mrb[0].mxu0
      %v5953 = vadd.f32 0.0, %v5952
      %v5954 = vpop.f32.mrb[0].mxu0
      %v5955 = vpop.f32.mrb[0].mxu0
      %v5956 = vadd.f32 0.0, %v5955
      %v5957 = vpop.f32.mrb[0].mxu0
      %5958 = vmatprep.mubr.bf16.mxu0 0
      %5959 = vmatmul.mubr.bf16.gmra.mrb[0].mxu0 %v5843
      %v5960 = vpop.f32.mrb[0].mxu0
      %v5961 = vadd.f32 0.0, %v5960
      %v5962 = vpop.f32.mrb[0].mxu0
      %v5963 = vpop.f32.mrb[0].mxu0
      %v5964 = vadd.f32 0.0, %v5963
      %v5965 = vpop.f32.mrb[0].mxu0
      %5966 = vmatprep.mubr.bf16.mxu0 0
      %5967 = vmatmul.mubr.bf16.gmra.mrb[0].mxu0 %v5846
      %v5968 = vpop.f32.mrb[0].mxu0
      %v5969 = vadd.f32 0.0, %v5968
      %v5970 = vpop.f32.mrb[0].mxu0
      %v5971 = vpop.f32.mrb[0].mxu0
      %v5972 = vadd.f32 0.0, %v5971
      %v5973 = vpop.f32.mrb[0].mxu0
      %5974 = vmatprep.mubr.bf16.mxu0 0
      %5975 = vmatmul.mubr.bf16.gmra.mrb[0].mxu0 %v5849
      %v5976 = vpop.f32.mrb[0].mxu0
      %v5977 = vadd.f32 0.0, %v5976
      %v5978 = vpop.f32.mrb[0].mxu0
      %v5979 = vpop.f32.mrb[0].mxu0
      %v5980 = vadd.f32 0.0, %v5979
      %v5981 = vpop.f32.mrb[0].mxu0
      %5982 = vmatprep.mubr.bf16.mxu0 0
      %5983 = vmatmul.mubr.bf16.gmra.mrb[0].mxu0 %v5852
      %v5984 = vpop.f32.mrb[0].mxu0
      %v5985 = vadd.f32 0.0, %v5984
      %v5986 = vpop.f32.mrb[0].mxu0
      %v5987 = vpop.f32.mrb[0].mxu0
      %v5988 = vadd.f32 0.0, %v5987
      %v5989 = vpop.f32.mrb[0].mxu0
      %5990 = vmatprep.mubr.bf16.mxu0 0
      %5991 = vmatmul.mubr.bf16.gmra.mrb[0].mxu0 %v5855
      %v5992 = vpop.f32.mrb[0].mxu0
      %v5993 = vadd.f32 0.0, %v5992
      %v5994 = vpop.f32.mrb[0].mxu0
      %v5995 = vpop.f32.mrb[0].mxu0
      %v5996 = vadd.f32 0.0, %v5995
      %v5997 = vpop.f32.mrb[0].mxu0
      %5998 = vmatprep.mubr.bf16.mxu0 0
      %5999 = vmatmul.mubr.bf16.gmra.mrb[0].mxu0 %v5858
      %v6000 = vpop.f32.mrb[0].mxu0
      %v6001 = vadd.f32 0.0, %v6000
      %v6002 = vpop.f32.mrb[0].mxu0
      %v6003 = vpop.f32.mrb[0].mxu0
      %v6004 = vadd.f32 0.0, %v6003
      %v6005 = vpop.f32.mrb[0].mxu0
      %6006 = vmatprep.mubr.bf16.mxu0 0
      %6007 = vmatmul.mubr.bf16.gmra.mrb[0].mxu0 %v5861
      %v6008 = vpop.f32.mrb[0].mxu0
      %v6009 = vadd.f32 0.0, %v6008
      %v6010 = vpop.f32.mrb[0].mxu0
      %v6011 = vpop.f32.mrb[0].mxu0
      %v6012 = vadd.f32 0.0, %v6011
      %v6013 = vpop.f32.mrb[0].mxu0
      %6014 = vmatprep.mubr.bf16.mxu0 0
      %6015 = vmatmul.mubr.bf16.gmra.mrb[0].mxu0 %v5864
      %v6016 = vpop.f32.mrb[0].mxu0
      %v6017 = vadd.f32 0.0, %v6016
      %v6018 = vpop.f32.mrb[0].mxu0
      %v6019 = vpop.f32.mrb[0].mxu0
      %v6020 = vadd.f32 0.0, %v6019
      %v6021 = vpop.f32.mrb[0].mxu0
      %6022 = vmatprep.mubr.bf16.mxu0 0
      %6023 = vmatmul.mubr.bf16.gmra.mrb[0].mxu0 %v5867
      %v6024 = vpop.f32.mrb[0].mxu0
      %v6025 = vadd.f32 0.0, %v6024
      %v6026 = vpop.f32.mrb[0].mxu0
      %v6027 = vpop.f32.mrb[0].mxu0
      %v6028 = vadd.f32 0.0, %v6027
      %v6029 = vpop.f32.mrb[0].mxu0
      %6030 = vmatprep.mubr.bf16.mxu0 0
      %6031 = vmatmul.mubr.bf16.gmra.mrb[0].mxu0 %v5870
      %v6032 = vpop.f32.mrb[0].mxu0
      %v6033 = vadd.f32 0.0, %v6032
      %v6034 = vpop.f32.mrb[0].mxu0
      %v6035 = vpop.f32.mrb[0].mxu0
      %v6036 = vadd.f32 0.0, %v6035
      %v6037 = vpop.f32.mrb[0].mxu0
      %6038 = vmatprep.mubr.bf16.mxu0 0
      %6039 = vmatmul.mubr.bf16.gmra.mrb[0].mxu0 %v5873
      %v6040 = vpop.f32.mrb[0].mxu0
      %v6041 = vadd.f32 0.0, %v6040
      %v6042 = vpop.f32.mrb[0].mxu0
      %v6043 = vpop.f32.mrb[0].mxu0
      %v6044 = vadd.f32 0.0, %v6043
      %v6045 = vpop.f32.mrb[0].mxu0
      %6046 = vmatprep.mubr.bf16.mxu0 0
      %6047 = vmatmul.mubr.bf16.gmra.mrb[0].mxu0 %v5876
      %v6048 = vpop.f32.mrb[0].mxu0
      %v6049 = vadd.f32 0.0, %v6048
      %v6050 = vpop.f32.mrb[0].mxu0
      %v6051 = vpop.f32.mrb[0].mxu0
      %v6052 = vadd.f32 0.0, %v6051
      %v6053 = vpop.f32.mrb[0].mxu0
      %6054 = vdwg.mxu0
      %v6055 = vadd.f32 %v5604, %v5913
      %v6056 = vadd.f32 %v5605, %v5916
      %v6057 = vadd.f32 %v5606, %v5921
      %v6058 = vadd.f32 %v5607, %v5924
      %v6059 = vadd.f32 %v5608, %v5929
      %v6060 = vadd.f32 %v5609, %v5932
      %v6061 = vadd.f32 %v5610, %v5937
      %v6062 = vadd.f32 %v5611, %v5940
      %v6063 = vadd.f32 %v5612, %v5945
      %v6064 = vadd.f32 %v5613, %v5948
      %v6065 = vadd.f32 %v5614, %v5953
      %v6066 = vadd.f32 %v5615, %v5956
      %v6067 = vadd.f32 %v5616, %v5961
      %v6068 = vadd.f32 %v5617, %v5964
      %v6069 = vadd.f32 %v5618, %v5969
      %v6070 = vadd.f32 %v5619, %v5972
      %v6071 = vadd.f32 %v5620, %v5977
      %v6072 = vadd.f32 %v5621, %v5980
      %v6073 = vadd.f32 %v5622, %v5985
      %v6074 = vadd.f32 %v5623, %v5988
      %v6075 = vadd.f32 %v5624, %v5993
      %v6076 = vadd.f32 %v5625, %v5996
      %v6077 = vadd.f32 %v5626, %v6001
      %v6078 = vadd.f32 %v5627, %v6004
      %v6079 = vadd.f32 %v5628, %v6009
      %v6080 = vadd.f32 %v5629, %v6012
      %v6081 = vadd.f32 %v5630, %v6017
      %v6082 = vadd.f32 %v5631, %v6020
      %v6083 = vadd.f32 %v5632, %v6025
      %v6084 = vadd.f32 %v5633, %v6028
      %v6085 = vadd.f32 %v5634, %v6033
      %v6086 = vadd.f32 %v5635, %v6036
      %v6087 = vadd.f32 %v5636, %v6041
      %v6088 = vadd.f32 %v5637, %v6044
      %v6089 = vadd.f32 %v5638, %v6049
      %v6090 = vadd.f32 %v5639, %v6052
      %s6091 = scalar_lea.vmem %s3, 64
      %v6092 = vld [vmem:[%s6091] sm:$0xf]
      %v6093 = vld [vmem:[%s6091 + $0x4] sm:$0xf]
      %v6094 = vld [vmem:[%s6091 + $0x8] sm:$0xf]
      %v6095 = vld [vmem:[%s6091 + $0xc] sm:$0xf]
      %v6100 = vunpack.c.l.b16 %v6092
      %v6101 = vunpack.c.l.b16 %v6093
      %v6102 = vunpack.c.l.b16 %v6094
      %v6103 = vunpack.c.l.b16 %v6095
      %v6104 = vpack.c.b16 %v6101, %v6100
      %v6105 = vpack.c.b16 %v6103, %v6102
      %v6108 = vsel %vm443, %v5641, 0
      %v6110 = vsel %vm443, %v5642, 0
      %v6112 = vsel %vm443, %v5643, 0
      %v6114 = vsel %vm443, %v5644, 0
      %v6116 = vsel %vm443, %v5645, 0
      %v6118 = vsel %vm443, %v5646, 0
      %v6120 = vsel %vm443, %v5647, 0
      %v6122 = vsel %vm443, %v5648, 0
      %v6124 = vsel %vm443, %v5649, 0
      %v6126 = vsel %vm443, %v5650, 0
      %v6128 = vsel %vm443, %v5651, 0
      %v6130 = vsel %vm443, %v5652, 0
      %v6132 = vsel %vm443, %v5653, 0
      %v6134 = vsel %vm443, %v5654, 0
      %v6136 = vsel %vm443, %v5655, 0
      %v6138 = vsel %vm443, %v5656, 0
      %v6140 = vsel %vm443, %v5657, 0
      %v6142 = vsel %vm443, %v5658, 0
      %6144 = vmatprep.subr.bf16.mxu0 0
      %6145 = vmatpush1.bf16.msra.mxu0 %v6104
      %6146 = vmatprep.subr.bf16.mxu0 0
      %6147 = vmatpush1.bf16.msra.mxu0 %v6105
      %6148 = vmatprep.subr.bf16.mxu0 0
      %6149 = vmatpush1.bf16.msra.mxu0 0
      %6150 = vmatprep.subr.bf16.mxu0 0
      %6151 = vmatpush1.bf16.msra.mxu0 0
      %6152 = vmatprep.subr.bf16.mxu0 0
      %6153 = vmatpush1.bf16.msra.mxu0 0
      %6154 = vmatprep.subr.bf16.mxu0 0
      %6155 = vmatpush1.bf16.msra.mxu0 0
      %6156 = vmatprep.subr.bf16.mxu0 0
      %6157 = vmatpush1.bf16.msra.mxu0 0
      %6158 = vmatprep.subr.bf16.mxu0 0
      %6159 = vmatpush1.bf16.msra.mxu0 0
      %6160 = vmatprep.subr.bf16.mxu0 0
      %6161 = vmatpush1.bf16.msra.mxu0 0
      %6162 = vmatprep.subr.bf16.mxu0 0
      %6163 = vmatpush1.bf16.msra.mxu0 0
      %6164 = vmatprep.subr.bf16.mxu0 0
      %6165 = vmatpush1.bf16.msra.mxu0 0
      %6166 = vmatprep.subr.bf16.mxu0 0
      %6167 = vmatpush1.bf16.msra.mxu0 0
      %6168 = vmatprep.subr.bf16.mxu0 0
      %6169 = vmatpush1.bf16.msra.mxu0 0
      %6170 = vmatprep.subr.bf16.mxu0 0
      %6171 = vmatpush1.bf16.msra.mxu0 0
      %6172 = vmatprep.subr.bf16.mxu0 0
      %6173 = vmatpush1.bf16.msra.mxu0 0
      %6174 = vmatprep.subr.bf16.mxu0 0
      %6175 = vmatpush1.bf16.msra.mxu0 0
      %6176 = vmatprep.mubr.bf16.mxu0 0
      %6177 = vmatmul.mubr.bf16.gmra.mrb[0].mxu0 %v6108
      %v6178 = vpop.f32.mrb[0].mxu0
      %v6179 = vadd.f32 0.0, %v6178
      %v6180 = vpop.f32.mrb[0].mxu0
      %v6181 = vpop.f32.mrb[0].mxu0
      %v6182 = vadd.f32 0.0, %v6181
      %v6183 = vpop.f32.mrb[0].mxu0
      %6184 = vmatprep.mubr.bf16.mxu0 0
      %6185 = vmatmul.mubr.bf16.gmra.mrb[0].mxu0 %v6110
      %v6186 = vpop.f32.mrb[0].mxu0
      %v6187 = vadd.f32 0.0, %v6186
      %v6188 = vpop.f32.mrb[0].mxu0
      %v6189 = vpop.f32.mrb[0].mxu0
      %v6190 = vadd.f32 0.0, %v6189
      %v6191 = vpop.f32.mrb[0].mxu0
      %6192 = vmatprep.mubr.bf16.mxu0 0
      %6193 = vmatmul.mubr.bf16.gmra.mrb[0].mxu0 %v6112
      %v6194 = vpop.f32.mrb[0].mxu0
      %v6195 = vadd.f32 0.0, %v6194
      %v6196 = vpop.f32.mrb[0].mxu0
      %v6197 = vpop.f32.mrb[0].mxu0
      %v6198 = vadd.f32 0.0, %v6197
      %v6199 = vpop.f32.mrb[0].mxu0
      %6200 = vmatprep.mubr.bf16.mxu0 0
      %6201 = vmatmul.mubr.bf16.gmra.mrb[0].mxu0 %v6114
      %v6202 = vpop.f32.mrb[0].mxu0
      %v6203 = vadd.f32 0.0, %v6202
      %v6204 = vpop.f32.mrb[0].mxu0
      %v6205 = vpop.f32.mrb[0].mxu0
      %v6206 = vadd.f32 0.0, %v6205
      %v6207 = vpop.f32.mrb[0].mxu0
      %6208 = vmatprep.mubr.bf16.mxu0 0
      %6209 = vmatmul.mubr.bf16.gmra.mrb[0].mxu0 %v6116
      %v6210 = vpop.f32.mrb[0].mxu0
      %v6211 = vadd.f32 0.0, %v6210
      %v6212 = vpop.f32.mrb[0].mxu0
      %v6213 = vpop.f32.mrb[0].mxu0
      %v6214 = vadd.f32 0.0, %v6213
      %v6215 = vpop.f32.mrb[0].mxu0
      %6216 = vmatprep.mubr.bf16.mxu0 0
      %6217 = vmatmul.mubr.bf16.gmra.mrb[0].mxu0 %v6118
      %v6218 = vpop.f32.mrb[0].mxu0
      %v6219 = vadd.f32 0.0, %v6218
      %v6220 = vpop.f32.mrb[0].mxu0
      %v6221 = vpop.f32.mrb[0].mxu0
      %v6222 = vadd.f32 0.0, %v6221
      %v6223 = vpop.f32.mrb[0].mxu0
      %6224 = vmatprep.mubr.bf16.mxu0 0
      %6225 = vmatmul.mubr.bf16.gmra.mrb[0].mxu0 %v6120
      %v6226 = vpop.f32.mrb[0].mxu0
      %v6227 = vadd.f32 0.0, %v6226
      %v6228 = vpop.f32.mrb[0].mxu0
      %v6229 = vpop.f32.mrb[0].mxu0
      %v6230 = vadd.f32 0.0, %v6229
      %v6231 = vpop.f32.mrb[0].mxu0
      %6232 = vmatprep.mubr.bf16.mxu0 0
      %6233 = vmatmul.mubr.bf16.gmra.mrb[0].mxu0 %v6122
      %v6234 = vpop.f32.mrb[0].mxu0
      %v6235 = vadd.f32 0.0, %v6234
      %v6236 = vpop.f32.mrb[0].mxu0
      %v6237 = vpop.f32.mrb[0].mxu0
      %v6238 = vadd.f32 0.0, %v6237
      %v6239 = vpop.f32.mrb[0].mxu0
      %6240 = vmatprep.mubr.bf16.mxu0 0
      %6241 = vmatmul.mubr.bf16.gmra.mrb[0].mxu0 %v6124
      %v6242 = vpop.f32.mrb[0].mxu0
      %v6243 = vadd.f32 0.0, %v6242
      %v6244 = vpop.f32.mrb[0].mxu0
      %v6245 = vpop.f32.mrb[0].mxu0
      %v6246 = vadd.f32 0.0, %v6245
      %v6247 = vpop.f32.mrb[0].mxu0
      %6248 = vmatprep.mubr.bf16.mxu0 0
      %6249 = vmatmul.mubr.bf16.gmra.mrb[0].mxu0 %v6126
      %v6250 = vpop.f32.mrb[0].mxu0
      %v6251 = vadd.f32 0.0, %v6250
      %v6252 = vpop.f32.mrb[0].mxu0
      %v6253 = vpop.f32.mrb[0].mxu0
      %v6254 = vadd.f32 0.0, %v6253
      %v6255 = vpop.f32.mrb[0].mxu0
      %6256 = vmatprep.mubr.bf16.mxu0 0
      %6257 = vmatmul.mubr.bf16.gmra.mrb[0].mxu0 %v6128
      %v6258 = vpop.f32.mrb[0].mxu0
      %v6259 = vadd.f32 0.0, %v6258
      %v6260 = vpop.f32.mrb[0].mxu0
      %v6261 = vpop.f32.mrb[0].mxu0
      %v6262 = vadd.f32 0.0, %v6261
      %v6263 = vpop.f32.mrb[0].mxu0
      %6264 = vmatprep.mubr.bf16.mxu0 0
      %6265 = vmatmul.mubr.bf16.gmra.mrb[0].mxu0 %v6130
      %v6266 = vpop.f32.mrb[0].mxu0
      %v6267 = vadd.f32 0.0, %v6266
      %v6268 = vpop.f32.mrb[0].mxu0
      %v6269 = vpop.f32.mrb[0].mxu0
      %v6270 = vadd.f32 0.0, %v6269
      %v6271 = vpop.f32.mrb[0].mxu0
      %6272 = vmatprep.mubr.bf16.mxu0 0
      %6273 = vmatmul.mubr.bf16.gmra.mrb[0].mxu0 %v6132
      %v6274 = vpop.f32.mrb[0].mxu0
      %v6275 = vadd.f32 0.0, %v6274
      %v6276 = vpop.f32.mrb[0].mxu0
      %v6277 = vpop.f32.mrb[0].mxu0
      %v6278 = vadd.f32 0.0, %v6277
      %v6279 = vpop.f32.mrb[0].mxu0
      %6280 = vmatprep.mubr.bf16.mxu0 0
      %6281 = vmatmul.mubr.bf16.gmra.mrb[0].mxu0 %v6134
      %v6282 = vpop.f32.mrb[0].mxu0
      %v6283 = vadd.f32 0.0, %v6282
      %v6284 = vpop.f32.mrb[0].mxu0
      %v6285 = vpop.f32.mrb[0].mxu0
      %v6286 = vadd.f32 0.0, %v6285
      %v6287 = vpop.f32.mrb[0].mxu0
      %6288 = vmatprep.mubr.bf16.mxu0 0
      %6289 = vmatmul.mubr.bf16.gmra.mrb[0].mxu0 %v6136
      %v6290 = vpop.f32.mrb[0].mxu0
      %v6291 = vadd.f32 0.0, %v6290
      %v6292 = vpop.f32.mrb[0].mxu0
      %v6293 = vpop.f32.mrb[0].mxu0
      %v6294 = vadd.f32 0.0, %v6293
      %v6295 = vpop.f32.mrb[0].mxu0
      %6296 = vmatprep.mubr.bf16.mxu0 0
      %6297 = vmatmul.mubr.bf16.gmra.mrb[0].mxu0 %v6138
      %v6298 = vpop.f32.mrb[0].mxu0
      %v6299 = vadd.f32 0.0, %v6298
      %v6300 = vpop.f32.mrb[0].mxu0
      %v6301 = vpop.f32.mrb[0].mxu0
      %v6302 = vadd.f32 0.0, %v6301
      %v6303 = vpop.f32.mrb[0].mxu0
      %6304 = vmatprep.mubr.bf16.mxu0 0
      %6305 = vmatmul.mubr.bf16.gmra.mrb[0].mxu0 %v6140
      %v6306 = vpop.f32.mrb[0].mxu0
      %v6307 = vadd.f32 0.0, %v6306
      %v6308 = vpop.f32.mrb[0].mxu0
      %v6309 = vpop.f32.mrb[0].mxu0
      %v6310 = vadd.f32 0.0, %v6309
      %v6311 = vpop.f32.mrb[0].mxu0
      %6312 = vmatprep.mubr.bf16.mxu0 0
      %6313 = vmatmul.mubr.bf16.gmra.mrb[0].mxu0 %v6142
      %v6314 = vpop.f32.mrb[0].mxu0
      %v6315 = vadd.f32 0.0, %v6314
      %v6316 = vpop.f32.mrb[0].mxu0
      %v6317 = vpop.f32.mrb[0].mxu0
      %v6318 = vadd.f32 0.0, %v6317
      %v6319 = vpop.f32.mrb[0].mxu0
      %6320 = vdwg.mxu0
      %v6321 = vadd.f32 %v6055, %v6179
      %v6322 = vadd.f32 %v6056, %v6182
      %v6323 = vadd.f32 %v6057, %v6187
      %v6324 = vadd.f32 %v6058, %v6190
      %v6325 = vadd.f32 %v6059, %v6195
      %v6326 = vadd.f32 %v6060, %v6198
      %v6327 = vadd.f32 %v6061, %v6203
      %v6328 = vadd.f32 %v6062, %v6206
      %v6329 = vadd.f32 %v6063, %v6211
      %v6330 = vadd.f32 %v6064, %v6214
      %v6331 = vadd.f32 %v6065, %v6219
      %v6332 = vadd.f32 %v6066, %v6222
      %v6333 = vadd.f32 %v6067, %v6227
      %v6334 = vadd.f32 %v6068, %v6230
      %v6335 = vadd.f32 %v6069, %v6235
      %v6336 = vadd.f32 %v6070, %v6238
      %v6337 = vadd.f32 %v6071, %v6243
      %v6338 = vadd.f32 %v6072, %v6246
      %v6339 = vadd.f32 %v6073, %v6251
      %v6340 = vadd.f32 %v6074, %v6254
      %v6341 = vadd.f32 %v6075, %v6259
      %v6342 = vadd.f32 %v6076, %v6262
      %v6343 = vadd.f32 %v6077, %v6267
      %v6344 = vadd.f32 %v6078, %v6270
      %v6345 = vadd.f32 %v6079, %v6275
      %v6346 = vadd.f32 %v6080, %v6278
      %v6347 = vadd.f32 %v6081, %v6283
      %v6348 = vadd.f32 %v6082, %v6286
      %v6349 = vadd.f32 %v6083, %v6291
      %v6350 = vadd.f32 %v6084, %v6294
      %v6351 = vadd.f32 %v6085, %v6299
      %v6352 = vadd.f32 %v6086, %v6302
      %v6353 = vadd.f32 %v6087, %v6307
      %v6354 = vadd.f32 %v6088, %v6310
      %v6355 = vadd.f32 %v6089, %v6315
      %v6356 = vadd.f32 %v6090, %v6318
      %v6357 = vld [vmem:[#allocation2 + $0x10] sm:$0xff]
      %v6358 = vld [vmem:[#allocation2 + $0x18] sm:$0xff]
      %v6359 = vld [vmem:[#allocation2 + $0x20] sm:$0xff]
      %v6360 = vld [vmem:[#allocation2 + $0x28] sm:$0xff]
      %v6361 = vld [vmem:[#allocation2 + $0x30] sm:$0xff]
      %v6362 = vld [vmem:[#allocation2 + $0x38] sm:$0xff]
      %v6363 = vld [vmem:[#allocation2 + $0x40] sm:$0xff]
      %v6364 = vld [vmem:[#allocation2 + $0x48] sm:$0xff]
      %v6365 = vld [vmem:[#allocation2 + $0x50] sm:$0xff]
      %v6366 = vld [vmem:[#allocation2 + $0x58] sm:$0xff]
      %v6367 = vld [vmem:[#allocation2 + $0x60] sm:$0xff]
      %v6368 = vld [vmem:[#allocation2 + $0x68] sm:$0xff]
      %v6369 = vld [vmem:[#allocation2 + $0x70] sm:$0xff]
      %v6370 = vld [vmem:[#allocation2 + $0x78] sm:$0xff]
      %v6371 = vld [vmem:[#allocation2 + $0x80] sm:$0xff]
      %v6372 = vld [vmem:[#allocation2 + $0x88] sm:$0xff]
      %v6373 = vld [vmem:[#allocation2 + $0x90] sm:$0xff]
      %v6374 = vld [vmem:[#allocation2 + $0x98] sm:$0xff]
      %v6375 = vld [vmem:[#allocation2 + $0xa0] sm:$0x1]
      %s6376 = scalar_lea.vmem %s3, 80
      %v6377 = vld [vmem:[%s6376] sm:$0xf]
      %v6378 = vld [vmem:[%s6376 + $0x4] sm:$0xf]
      %v6379 = vld [vmem:[%s6376 + $0x8] sm:$0xf]
      %v6380 = vld [vmem:[%s6376 + $0xc] sm:$0xf]
      %v6382 = vshrl.u32 %v6357, 16
      %v6384 = vshll.u32 %v6357, 16
      %v6386 = vrot.slane %v6384, 1
      %v6387 = vor.u32 %v6382, %v6386
      %v6389 = vshll.u32 %v6358, 16
      %v6391 = vrot.slane %v6389, 1
      %v6392 = vsel %vm2487, %v6387, %v6391
      %v6393 = vshrl.u32 %v6358, 16
      %v6395 = vor.u32 %v6393, %v6391
      %v6397 = vshll.u32 %v6359, 16
      %v6399 = vrot.slane %v6397, 1
      %v6400 = vsel %vm2487, %v6395, %v6399
      %v6401 = vshrl.u32 %v6359, 16
      %v6403 = vor.u32 %v6401, %v6399
      %v6405 = vshll.u32 %v6360, 16
      %v6407 = vrot.slane %v6405, 1
      %v6408 = vsel %vm2487, %v6403, %v6407
      %v6409 = vshrl.u32 %v6360, 16
      %v6411 = vor.u32 %v6409, %v6407
      %v6413 = vshll.u32 %v6361, 16
      %v6415 = vrot.slane %v6413, 1
      %v6416 = vsel %vm2487, %v6411, %v6415
      %v6417 = vshrl.u32 %v6361, 16
      %v6419 = vor.u32 %v6417, %v6415
      %v6421 = vshll.u32 %v6362, 16
      %v6423 = vrot.slane %v6421, 1
      %v6424 = vsel %vm2487, %v6419, %v6423
      %v6425 = vshrl.u32 %v6362, 16
      %v6427 = vor.u32 %v6425, %v6423
      %v6429 = vshll.u32 %v6363, 16
      %v6431 = vrot.slane %v6429, 1
      %v6432 = vsel %vm2487, %v6427, %v6431
      %v6433 = vshrl.u32 %v6363, 16
      %v6435 = vor.u32 %v6433, %v6431
      %v6437 = vshll.u32 %v6364, 16
      %v6439 = vrot.slane %v6437, 1
      %v6440 = vsel %vm2487, %v6435, %v6439
      %v6441 = vshrl.u32 %v6364, 16
      %v6443 = vor.u32 %v6441, %v6439
      %v6445 = vshll.u32 %v6365, 16
      %v6447 = vrot.slane %v6445, 1
      %v6448 = vsel %vm2487, %v6443, %v6447
      %v6449 = vshrl.u32 %v6365, 16
      %v6451 = vor.u32 %v6449, %v6447
      %v6453 = vshll.u32 %v6366, 16
      %v6455 = vrot.slane %v6453, 1
      %v6456 = vsel %vm2487, %v6451, %v6455
      %v6457 = vshrl.u32 %v6366, 16
      %v6459 = vor.u32 %v6457, %v6455
      %v6461 = vshll.u32 %v6367, 16
      %v6463 = vrot.slane %v6461, 1
      %v6464 = vsel %vm2487, %v6459, %v6463
      %v6465 = vshrl.u32 %v6367, 16
      %v6467 = vor.u32 %v6465, %v6463
      %v6469 = vshll.u32 %v6368, 16
      %v6471 = vrot.slane %v6469, 1
      %v6472 = vsel %vm2487, %v6467, %v6471
      %v6473 = vshrl.u32 %v6368, 16
      %v6475 = vor.u32 %v6473, %v6471
      %v6477 = vshll.u32 %v6369, 16
      %v6479 = vrot.slane %v6477, 1
      %v6480 = vsel %vm2487, %v6475, %v6479
      %v6481 = vshrl.u32 %v6369, 16
      %v6483 = vor.u32 %v6481, %v6479
      %v6485 = vshll.u32 %v6370, 16
      %v6487 = vrot.slane %v6485, 1
      %v6488 = vsel %vm2487, %v6483, %v6487
      %v6489 = vshrl.u32 %v6370, 16
      %v6491 = vor.u32 %v6489, %v6487
      %v6493 = vshll.u32 %v6371, 16
      %v6495 = vrot.slane %v6493, 1
      %v6496 = vsel %vm2487, %v6491, %v6495
      %v6497 = vshrl.u32 %v6371, 16
      %v6499 = vor.u32 %v6497, %v6495
      %v6501 = vshll.u32 %v6372, 16
      %v6503 = vrot.slane %v6501, 1
      %v6504 = vsel %vm2487, %v6499, %v6503
      %v6505 = vshrl.u32 %v6372, 16
      %v6507 = vor.u32 %v6505, %v6503
      %v6509 = vshll.u32 %v6373, 16
      %v6511 = vrot.slane %v6509, 1
      %v6512 = vsel %vm2487, %v6507, %v6511
      %v6513 = vshrl.u32 %v6373, 16
      %v6515 = vor.u32 %v6513, %v6511
      %v6517 = vshll.u32 %v6374, 16
      %v6519 = vrot.slane %v6517, 1
      %v6520 = vsel %vm2487, %v6515, %v6519
      %v6521 = vshrl.u32 %v6374, 16
      %v6523 = vor.u32 %v6521, %v6519
      %v6525 = vshll.u32 %v6375, 16
      %v6527 = vrot.slane %v6525, 1
      %v6528 = vsel %vm2487, %v6523, %v6527
      %v6533 = vunpack.c.l.b16 %v6377
      %v6534 = vunpack.c.l.b16 %v6378
      %v6535 = vunpack.c.l.b16 %v6379
      %v6536 = vunpack.c.l.b16 %v6380
      %v6537 = vpack.c.b16 %v6534, %v6533
      %v6538 = vpack.c.b16 %v6536, %v6535
      %v6542 = vsel %vm443, %v6392, 0
      %v6545 = vsel %vm443, %v6400, 0
      %v6548 = vsel %vm443, %v6408, 0
      %v6551 = vsel %vm443, %v6416, 0
      %v6554 = vsel %vm443, %v6424, 0
      %v6557 = vsel %vm443, %v6432, 0
      %v6560 = vsel %vm443, %v6440, 0
      %v6563 = vsel %vm443, %v6448, 0
      %v6566 = vsel %vm443, %v6456, 0
      %v6569 = vsel %vm443, %v6464, 0
      %v6572 = vsel %vm443, %v6472, 0
      %v6575 = vsel %vm443, %v6480, 0
      %v6578 = vsel %vm443, %v6488, 0
      %v6581 = vsel %vm443, %v6496, 0
      %v6584 = vsel %vm443, %v6504, 0
      %v6587 = vsel %vm443, %v6512, 0
      %v6590 = vsel %vm443, %v6520, 0
      %v6593 = vsel %vm443, %v6528, 0
      %6595 = vmatprep.subr.bf16.mxu0 0
      %6596 = vmatpush1.bf16.msra.mxu0 %v6537
      %6597 = vmatprep.subr.bf16.mxu0 0
      %6598 = vmatpush1.bf16.msra.mxu0 %v6538
      %6599 = vmatprep.subr.bf16.mxu0 0
      %6600 = vmatpush1.bf16.msra.mxu0 0
      %6601 = vmatprep.subr.bf16.mxu0 0
      %6602 = vmatpush1.bf16.msra.mxu0 0
      %6603 = vmatprep.subr.bf16.mxu0 0
      %6604 = vmatpush1.bf16.msra.mxu0 0
      %6605 = vmatprep.subr.bf16.mxu0 0
      %6606 = vmatpush1.bf16.msra.mxu0 0
      %6607 = vmatprep.subr.bf16.mxu0 0
      %6608 = vmatpush1.bf16.msra.mxu0 0
      %6609 = vmatprep.subr.bf16.mxu0 0
      %6610 = vmatpush1.bf16.msra.mxu0 0
      %6611 = vmatprep.subr.bf16.mxu0 0
      %6612 = vmatpush1.bf16.msra.mxu0 0
      %6613 = vmatprep.subr.bf16.mxu0 0
      %6614 = vmatpush1.bf16.msra.mxu0 0
      %6615 = vmatprep.subr.bf16.mxu0 0
      %6616 = vmatpush1.bf16.msra.mxu0 0
      %6617 = vmatprep.subr.bf16.mxu0 0
      %6618 = vmatpush1.bf16.msra.mxu0 0
      %6619 = vmatprep.subr.bf16.mxu0 0
      %6620 = vmatpush1.bf16.msra.mxu0 0
      %6621 = vmatprep.subr.bf16.mxu0 0
      %6622 = vmatpush1.bf16.msra.mxu0 0
      %6623 = vmatprep.subr.bf16.mxu0 0
      %6624 = vmatpush1.bf16.msra.mxu0 0
      %6625 = vmatprep.subr.bf16.mxu0 0
      %6626 = vmatpush1.bf16.msra.mxu0 0
      %6627 = vmatprep.mubr.bf16.mxu0 0
      %6628 = vmatmul.mubr.bf16.gmra.mrb[0].mxu0 %v6542
      %v6629 = vpop.f32.mrb[0].mxu0
      %v6630 = vadd.f32 0.0, %v6629
      %v6631 = vpop.f32.mrb[0].mxu0
      %v6632 = vpop.f32.mrb[0].mxu0
      %v6633 = vadd.f32 0.0, %v6632
      %v6634 = vpop.f32.mrb[0].mxu0
      %6635 = vmatprep.mubr.bf16.mxu0 0
      %6636 = vmatmul.mubr.bf16.gmra.mrb[0].mxu0 %v6545
      %v6637 = vpop.f32.mrb[0].mxu0
      %v6638 = vadd.f32 0.0, %v6637
      %v6639 = vpop.f32.mrb[0].mxu0
      %v6640 = vpop.f32.mrb[0].mxu0
      %v6641 = vadd.f32 0.0, %v6640
      %v6642 = vpop.f32.mrb[0].mxu0
      %6643 = vmatprep.mubr.bf16.mxu0 0
      %6644 = vmatmul.mubr.bf16.gmra.mrb[0].mxu0 %v6548
      %v6645 = vpop.f32.mrb[0].mxu0
      %v6646 = vadd.f32 0.0, %v6645
      %v6647 = vpop.f32.mrb[0].mxu0
      %v6648 = vpop.f32.mrb[0].mxu0
      %v6649 = vadd.f32 0.0, %v6648
      %v6650 = vpop.f32.mrb[0].mxu0
      %6651 = vmatprep.mubr.bf16.mxu0 0
      %6652 = vmatmul.mubr.bf16.gmra.mrb[0].mxu0 %v6551
      %v6653 = vpop.f32.mrb[0].mxu0
      %v6654 = vadd.f32 0.0, %v6653
      %v6655 = vpop.f32.mrb[0].mxu0
      %v6656 = vpop.f32.mrb[0].mxu0
      %v6657 = vadd.f32 0.0, %v6656
      %v6658 = vpop.f32.mrb[0].mxu0
      %6659 = vmatprep.mubr.bf16.mxu0 0
      %6660 = vmatmul.mubr.bf16.gmra.mrb[0].mxu0 %v6554
      %v6661 = vpop.f32.mrb[0].mxu0
      %v6662 = vadd.f32 0.0, %v6661
      %v6663 = vpop.f32.mrb[0].mxu0
      %v6664 = vpop.f32.mrb[0].mxu0
      %v6665 = vadd.f32 0.0, %v6664
      %v6666 = vpop.f32.mrb[0].mxu0
      %6667 = vmatprep.mubr.bf16.mxu0 0
      %6668 = vmatmul.mubr.bf16.gmra.mrb[0].mxu0 %v6557
      %v6669 = vpop.f32.mrb[0].mxu0
      %v6670 = vadd.f32 0.0, %v6669
      %v6671 = vpop.f32.mrb[0].mxu0
      %v6672 = vpop.f32.mrb[0].mxu0
      %v6673 = vadd.f32 0.0, %v6672
      %v6674 = vpop.f32.mrb[0].mxu0
      %6675 = vmatprep.mubr.bf16.mxu0 0
      %6676 = vmatmul.mubr.bf16.gmra.mrb[0].mxu0 %v6560
      %v6677 = vpop.f32.mrb[0].mxu0
      %v6678 = vadd.f32 0.0, %v6677
      %v6679 = vpop.f32.mrb[0].mxu0
      %v6680 = vpop.f32.mrb[0].mxu0
      %v6681 = vadd.f32 0.0, %v6680
      %v6682 = vpop.f32.mrb[0].mxu0
      %6683 = vmatprep.mubr.bf16.mxu0 0
      %6684 = vmatmul.mubr.bf16.gmra.mrb[0].mxu0 %v6563
      %v6685 = vpop.f32.mrb[0].mxu0
      %v6686 = vadd.f32 0.0, %v6685
      %v6687 = vpop.f32.mrb[0].mxu0
      %v6688 = vpop.f32.mrb[0].mxu0
      %v6689 = vadd.f32 0.0, %v6688
      %v6690 = vpop.f32.mrb[0].mxu0
      %6691 = vmatprep.mubr.bf16.mxu0 0
      %6692 = vmatmul.mubr.bf16.gmra.mrb[0].mxu0 %v6566
      %v6693 = vpop.f32.mrb[0].mxu0
      %v6694 = vadd.f32 0.0, %v6693
      %v6695 = vpop.f32.mrb[0].mxu0
      %v6696 = vpop.f32.mrb[0].mxu0
      %v6697 = vadd.f32 0.0, %v6696
      %v6698 = vpop.f32.mrb[0].mxu0
      %6699 = vmatprep.mubr.bf16.mxu0 0
      %6700 = vmatmul.mubr.bf16.gmra.mrb[0].mxu0 %v6569
      %v6701 = vpop.f32.mrb[0].mxu0
      %v6702 = vadd.f32 0.0, %v6701
      %v6703 = vpop.f32.mrb[0].mxu0
      %v6704 = vpop.f32.mrb[0].mxu0
      %v6705 = vadd.f32 0.0, %v6704
      %v6706 = vpop.f32.mrb[0].mxu0
      %6707 = vmatprep.mubr.bf16.mxu0 0
      %6708 = vmatmul.mubr.bf16.gmra.mrb[0].mxu0 %v6572
      %v6709 = vpop.f32.mrb[0].mxu0
      %v6710 = vadd.f32 0.0, %v6709
      %v6711 = vpop.f32.mrb[0].mxu0
      %v6712 = vpop.f32.mrb[0].mxu0
      %v6713 = vadd.f32 0.0, %v6712
      %v6714 = vpop.f32.mrb[0].mxu0
      %6715 = vmatprep.mubr.bf16.mxu0 0
      %6716 = vmatmul.mubr.bf16.gmra.mrb[0].mxu0 %v6575
      %v6717 = vpop.f32.mrb[0].mxu0
      %v6718 = vadd.f32 0.0, %v6717
      %v6719 = vpop.f32.mrb[0].mxu0
      %v6720 = vpop.f32.mrb[0].mxu0
      %v6721 = vadd.f32 0.0, %v6720
      %v6722 = vpop.f32.mrb[0].mxu0
      %6723 = vmatprep.mubr.bf16.mxu0 0
      %6724 = vmatmul.mubr.bf16.gmra.mrb[0].mxu0 %v6578
      %v6725 = vpop.f32.mrb[0].mxu0
      %v6726 = vadd.f32 0.0, %v6725
      %v6727 = vpop.f32.mrb[0].mxu0
      %v6728 = vpop.f32.mrb[0].mxu0
      %v6729 = vadd.f32 0.0, %v6728
      %v6730 = vpop.f32.mrb[0].mxu0
      %6731 = vmatprep.mubr.bf16.mxu0 0
      %6732 = vmatmul.mubr.bf16.gmra.mrb[0].mxu0 %v6581
      %v6733 = vpop.f32.mrb[0].mxu0
      %v6734 = vadd.f32 0.0, %v6733
      %v6735 = vpop.f32.mrb[0].mxu0
      %v6736 = vpop.f32.mrb[0].mxu0
      %v6737 = vadd.f32 0.0, %v6736
      %v6738 = vpop.f32.mrb[0].mxu0
      %6739 = vmatprep.mubr.bf16.mxu0 0
      %6740 = vmatmul.mubr.bf16.gmra.mrb[0].mxu0 %v6584
      %v6741 = vpop.f32.mrb[0].mxu0
      %v6742 = vadd.f32 0.0, %v6741
      %v6743 = vpop.f32.mrb[0].mxu0
      %v6744 = vpop.f32.mrb[0].mxu0
      %v6745 = vadd.f32 0.0, %v6744
      %v6746 = vpop.f32.mrb[0].mxu0
      %6747 = vmatprep.mubr.bf16.mxu0 0
      %6748 = vmatmul.mubr.bf16.gmra.mrb[0].mxu0 %v6587
      %v6749 = vpop.f32.mrb[0].mxu0
      %v6750 = vadd.f32 0.0, %v6749
      %v6751 = vpop.f32.mrb[0].mxu0
      %v6752 = vpop.f32.mrb[0].mxu0
      %v6753 = vadd.f32 0.0, %v6752
      %v6754 = vpop.f32.mrb[0].mxu0
      %6755 = vmatprep.mubr.bf16.mxu0 0
      %6756 = vmatmul.mubr.bf16.gmra.mrb[0].mxu0 %v6590
      %v6757 = vpop.f32.mrb[0].mxu0
      %v6758 = vadd.f32 0.0, %v6757
      %v6759 = vpop.f32.mrb[0].mxu0
      %v6760 = vpop.f32.mrb[0].mxu0
      %v6761 = vadd.f32 0.0, %v6760
      %v6762 = vpop.f32.mrb[0].mxu0
      %6763 = vmatprep.mubr.bf16.mxu0 0
      %6764 = vmatmul.mubr.bf16.gmra.mrb[0].mxu0 %v6593
      %v6765 = vpop.f32.mrb[0].mxu0
      %v6766 = vadd.f32 0.0, %v6765
      %v6767 = vpop.f32.mrb[0].mxu0
      %v6768 = vpop.f32.mrb[0].mxu0
      %v6769 = vadd.f32 0.0, %v6768
      %v6770 = vpop.f32.mrb[0].mxu0
      %6771 = vdwg.mxu0
      %v6772 = vadd.f32 %v6321, %v6630
      %v6773 = vadd.f32 %v6322, %v6633
      %v6774 = vadd.f32 %v6323, %v6638
      %v6775 = vadd.f32 %v6324, %v6641
      %v6776 = vadd.f32 %v6325, %v6646
      %v6777 = vadd.f32 %v6326, %v6649
      %v6778 = vadd.f32 %v6327, %v6654
      %v6779 = vadd.f32 %v6328, %v6657
      %v6780 = vadd.f32 %v6329, %v6662
      %v6781 = vadd.f32 %v6330, %v6665
      %v6782 = vadd.f32 %v6331, %v6670
      %v6783 = vadd.f32 %v6332, %v6673
      %v6784 = vadd.f32 %v6333, %v6678
      %v6785 = vadd.f32 %v6334, %v6681
      %v6786 = vadd.f32 %v6335, %v6686
      %v6787 = vadd.f32 %v6336, %v6689
      %v6788 = vadd.f32 %v6337, %v6694
      %v6789 = vadd.f32 %v6338, %v6697
      %v6790 = vadd.f32 %v6339, %v6702
      %v6791 = vadd.f32 %v6340, %v6705
      %v6792 = vadd.f32 %v6341, %v6710
      %v6793 = vadd.f32 %v6342, %v6713
      %v6794 = vadd.f32 %v6343, %v6718
      %v6795 = vadd.f32 %v6344, %v6721
      %v6796 = vadd.f32 %v6345, %v6726
      %v6797 = vadd.f32 %v6346, %v6729
      %v6798 = vadd.f32 %v6347, %v6734
      %v6799 = vadd.f32 %v6348, %v6737
      %v6800 = vadd.f32 %v6349, %v6742
      %v6801 = vadd.f32 %v6350, %v6745
      %v6802 = vadd.f32 %v6351, %v6750
      %v6803 = vadd.f32 %v6352, %v6753
      %v6804 = vadd.f32 %v6353, %v6758
      %v6805 = vadd.f32 %v6354, %v6761
      %v6806 = vadd.f32 %v6355, %v6766
      %v6807 = vadd.f32 %v6356, %v6769
      %v6808 = vld [vmem:[#allocation2 + $0x18] sm:$0xff]
      %v6809 = vld [vmem:[#allocation2 + $0x20] sm:$0xff]
      %v6810 = vld [vmem:[#allocation2 + $0x28] sm:$0xff]
      %v6811 = vld [vmem:[#allocation2 + $0x30] sm:$0xff]
      %v6812 = vld [vmem:[#allocation2 + $0x38] sm:$0xff]
      %v6813 = vld [vmem:[#allocation2 + $0x40] sm:$0xff]
      %v6814 = vld [vmem:[#allocation2 + $0x48] sm:$0xff]
      %v6815 = vld [vmem:[#allocation2 + $0x50] sm:$0xff]
      %v6816 = vld [vmem:[#allocation2 + $0x58] sm:$0xff]
      %v6817 = vld [vmem:[#allocation2 + $0x60] sm:$0xff]
      %v6818 = vld [vmem:[#allocation2 + $0x68] sm:$0xff]
      %v6819 = vld [vmem:[#allocation2 + $0x70] sm:$0xff]
      %v6820 = vld [vmem:[#allocation2 + $0x78] sm:$0xff]
      %v6821 = vld [vmem:[#allocation2 + $0x80] sm:$0xff]
      %v6822 = vld [vmem:[#allocation2 + $0x88] sm:$0xff]
      %v6823 = vld [vmem:[#allocation2 + $0x90] sm:$0xff]
      %v6824 = vld [vmem:[#allocation2 + $0x98] sm:$0xff]
      %v6825 = vld [vmem:[#allocation2 + $0xa0] sm:$0xff]
      %v6826 = vld [vmem:[#allocation2 + $0xa8] sm:$0x1]
      %s6827 = scalar_lea.vmem %s3, 96
      %v6828 = vld [vmem:[%s6827] sm:$0xf]
      %v6829 = vld [vmem:[%s6827 + $0x4] sm:$0xf]
      %v6830 = vld [vmem:[%s6827 + $0x8] sm:$0xf]
      %v6831 = vld [vmem:[%s6827 + $0xc] sm:$0xf]
      %v6833 = vshrl.u32 %v6808, 16
      %v6835 = vshll.u32 %v6808, 16
      %v6837 = vrot.slane %v6835, 1
      %v6838 = vor.u32 %v6833, %v6837
      %v6840 = vshll.u32 %v6809, 16
      %v6842 = vrot.slane %v6840, 1
      %v6843 = vsel %vm2487, %v6838, %v6842
      %v6844 = vshrl.u32 %v6809, 16
      %v6846 = vor.u32 %v6844, %v6842
      %v6848 = vshll.u32 %v6810, 16
      %v6850 = vrot.slane %v6848, 1
      %v6851 = vsel %vm2487, %v6846, %v6850
      %v6852 = vshrl.u32 %v6810, 16
      %v6854 = vor.u32 %v6852, %v6850
      %v6856 = vshll.u32 %v6811, 16
      %v6858 = vrot.slane %v6856, 1
      %v6859 = vsel %vm2487, %v6854, %v6858
      %v6860 = vshrl.u32 %v6811, 16
      %v6862 = vor.u32 %v6860, %v6858
      %v6864 = vshll.u32 %v6812, 16
      %v6866 = vrot.slane %v6864, 1
      %v6867 = vsel %vm2487, %v6862, %v6866
      %v6868 = vshrl.u32 %v6812, 16
      %v6870 = vor.u32 %v6868, %v6866
      %v6872 = vshll.u32 %v6813, 16
      %v6874 = vrot.slane %v6872, 1
      %v6875 = vsel %vm2487, %v6870, %v6874
      %v6876 = vshrl.u32 %v6813, 16
      %v6878 = vor.u32 %v6876, %v6874
      %v6880 = vshll.u32 %v6814, 16
      %v6882 = vrot.slane %v6880, 1
      %v6883 = vsel %vm2487, %v6878, %v6882
      %v6884 = vshrl.u32 %v6814, 16
      %v6886 = vor.u32 %v6884, %v6882
      %v6888 = vshll.u32 %v6815, 16
      %v6890 = vrot.slane %v6888, 1
      %v6891 = vsel %vm2487, %v6886, %v6890
      %v6892 = vshrl.u32 %v6815, 16
      %v6894 = vor.u32 %v6892, %v6890
      %v6896 = vshll.u32 %v6816, 16
      %v6898 = vrot.slane %v6896, 1
      %v6899 = vsel %vm2487, %v6894, %v6898
      %v6900 = vshrl.u32 %v6816, 16
      %v6902 = vor.u32 %v6900, %v6898
      %v6904 = vshll.u32 %v6817, 16
      %v6906 = vrot.slane %v6904, 1
      %v6907 = vsel %vm2487, %v6902, %v6906
      %v6908 = vshrl.u32 %v6817, 16
      %v6910 = vor.u32 %v6908, %v6906
      %v6912 = vshll.u32 %v6818, 16
      %v6914 = vrot.slane %v6912, 1
      %v6915 = vsel %vm2487, %v6910, %v6914
      %v6916 = vshrl.u32 %v6818, 16
      %v6918 = vor.u32 %v6916, %v6914
      %v6920 = vshll.u32 %v6819, 16
      %v6922 = vrot.slane %v6920, 1
      %v6923 = vsel %vm2487, %v6918, %v6922
      %v6924 = vshrl.u32 %v6819, 16
      %v6926 = vor.u32 %v6924, %v6922
      %v6928 = vshll.u32 %v6820, 16
      %v6930 = vrot.slane %v6928, 1
      %v6931 = vsel %vm2487, %v6926, %v6930
      %v6932 = vshrl.u32 %v6820, 16
      %v6934 = vor.u32 %v6932, %v6930
      %v6936 = vshll.u32 %v6821, 16
      %v6938 = vrot.slane %v6936, 1
      %v6939 = vsel %vm2487, %v6934, %v6938
      %v6940 = vshrl.u32 %v6821, 16
      %v6942 = vor.u32 %v6940, %v6938
      %v6944 = vshll.u32 %v6822, 16
      %v6946 = vrot.slane %v6944, 1
      %v6947 = vsel %vm2487, %v6942, %v6946
      %v6948 = vshrl.u32 %v6822, 16
      %v6950 = vor.u32 %v6948, %v6946
      %v6952 = vshll.u32 %v6823, 16
      %v6954 = vrot.slane %v6952, 1
      %v6955 = vsel %vm2487, %v6950, %v6954
      %v6956 = vshrl.u32 %v6823, 16
      %v6958 = vor.u32 %v6956, %v6954
      %v6960 = vshll.u32 %v6824, 16
      %v6962 = vrot.slane %v6960, 1
      %v6963 = vsel %vm2487, %v6958, %v6962
      %v6964 = vshrl.u32 %v6824, 16
      %v6966 = vor.u32 %v6964, %v6962
      %v6968 = vshll.u32 %v6825, 16
      %v6970 = vrot.slane %v6968, 1
      %v6971 = vsel %vm2487, %v6966, %v6970
      %v6972 = vshrl.u32 %v6825, 16
      %v6974 = vor.u32 %v6972, %v6970
      %v6976 = vshll.u32 %v6826, 16
      %v6978 = vrot.slane %v6976, 1
      %v6979 = vsel %vm2487, %v6974, %v6978
      %v6984 = vunpack.c.l.b16 %v6828
      %v6985 = vunpack.c.l.b16 %v6829
      %v6986 = vunpack.c.l.b16 %v6830
      %v6987 = vunpack.c.l.b16 %v6831
      %v6988 = vpack.c.b16 %v6985, %v6984
      %v6989 = vpack.c.b16 %v6987, %v6986
      %v6993 = vsel %vm443, %v6843, 0
      %v6996 = vsel %vm443, %v6851, 0
      %v6999 = vsel %vm443, %v6859, 0
      %v7002 = vsel %vm443, %v6867, 0
      %v7005 = vsel %vm443, %v6875, 0
      %v7008 = vsel %vm443, %v6883, 0
      %v7011 = vsel %vm443, %v6891, 0
      %v7014 = vsel %vm443, %v6899, 0
      %v7017 = vsel %vm443, %v6907, 0
      %v7020 = vsel %vm443, %v6915, 0
      %v7023 = vsel %vm443, %v6923, 0
      %v7026 = vsel %vm443, %v6931, 0
      %v7029 = vsel %vm443, %v6939, 0
      %v7032 = vsel %vm443, %v6947, 0
      %v7035 = vsel %vm443, %v6955, 0
      %v7038 = vsel %vm443, %v6963, 0
      %v7041 = vsel %vm443, %v6971, 0
      %v7044 = vsel %vm443, %v6979, 0
      %7046 = vmatprep.subr.bf16.mxu0 0
      %7047 = vmatpush1.bf16.msra.mxu0 %v6988
      %7048 = vmatprep.subr.bf16.mxu0 0
      %7049 = vmatpush1.bf16.msra.mxu0 %v6989
      %7050 = vmatprep.subr.bf16.mxu0 0
      %7051 = vmatpush1.bf16.msra.mxu0 0
      %7052 = vmatprep.subr.bf16.mxu0 0
      %7053 = vmatpush1.bf16.msra.mxu0 0
      %7054 = vmatprep.subr.bf16.mxu0 0
      %7055 = vmatpush1.bf16.msra.mxu0 0
      %7056 = vmatprep.subr.bf16.mxu0 0
      %7057 = vmatpush1.bf16.msra.mxu0 0
      %7058 = vmatprep.subr.bf16.mxu0 0
      %7059 = vmatpush1.bf16.msra.mxu0 0
      %7060 = vmatprep.subr.bf16.mxu0 0
      %7061 = vmatpush1.bf16.msra.mxu0 0
      %7062 = vmatprep.subr.bf16.mxu0 0
      %7063 = vmatpush1.bf16.msra.mxu0 0
      %7064 = vmatprep.subr.bf16.mxu0 0
      %7065 = vmatpush1.bf16.msra.mxu0 0
      %7066 = vmatprep.subr.bf16.mxu0 0
      %7067 = vmatpush1.bf16.msra.mxu0 0
      %7068 = vmatprep.subr.bf16.mxu0 0
      %7069 = vmatpush1.bf16.msra.mxu0 0
      %7070 = vmatprep.subr.bf16.mxu0 0
      %7071 = vmatpush1.bf16.msra.mxu0 0
      %7072 = vmatprep.subr.bf16.mxu0 0
      %7073 = vmatpush1.bf16.msra.mxu0 0
      %7074 = vmatprep.subr.bf16.mxu0 0
      %7075 = vmatpush1.bf16.msra.mxu0 0
      %7076 = vmatprep.subr.bf16.mxu0 0
      %7077 = vmatpush1.bf16.msra.mxu0 0
      %7078 = vmatprep.mubr.bf16.mxu0 0
      %7079 = vmatmul.mubr.bf16.gmra.mrb[0].mxu0 %v6993
      %v7080 = vpop.f32.mrb[0].mxu0
      %v7081 = vadd.f32 0.0, %v7080
      %v7082 = vpop.f32.mrb[0].mxu0
      %v7083 = vpop.f32.mrb[0].mxu0
      %v7084 = vadd.f32 0.0, %v7083
      %v7085 = vpop.f32.mrb[0].mxu0
      %7086 = vmatprep.mubr.bf16.mxu0 0
      %7087 = vmatmul.mubr.bf16.gmra.mrb[0].mxu0 %v6996
      %v7088 = vpop.f32.mrb[0].mxu0
      %v7089 = vadd.f32 0.0, %v7088
      %v7090 = vpop.f32.mrb[0].mxu0
      %v7091 = vpop.f32.mrb[0].mxu0
      %v7092 = vadd.f32 0.0, %v7091
      %v7093 = vpop.f32.mrb[0].mxu0
      %7094 = vmatprep.mubr.bf16.mxu0 0
      %7095 = vmatmul.mubr.bf16.gmra.mrb[0].mxu0 %v6999
      %v7096 = vpop.f32.mrb[0].mxu0
      %v7097 = vadd.f32 0.0, %v7096
      %v7098 = vpop.f32.mrb[0].mxu0
      %v7099 = vpop.f32.mrb[0].mxu0
      %v7100 = vadd.f32 0.0, %v7099
      %v7101 = vpop.f32.mrb[0].mxu0
      %7102 = vmatprep.mubr.bf16.mxu0 0
      %7103 = vmatmul.mubr.bf16.gmra.mrb[0].mxu0 %v7002
      %v7104 = vpop.f32.mrb[0].mxu0
      %v7105 = vadd.f32 0.0, %v7104
      %v7106 = vpop.f32.mrb[0].mxu0
      %v7107 = vpop.f32.mrb[0].mxu0
      %v7108 = vadd.f32 0.0, %v7107
      %v7109 = vpop.f32.mrb[0].mxu0
      %7110 = vmatprep.mubr.bf16.mxu0 0
      %7111 = vmatmul.mubr.bf16.gmra.mrb[0].mxu0 %v7005
      %v7112 = vpop.f32.mrb[0].mxu0
      %v7113 = vadd.f32 0.0, %v7112
      %v7114 = vpop.f32.mrb[0].mxu0
      %v7115 = vpop.f32.mrb[0].mxu0
      %v7116 = vadd.f32 0.0, %v7115
      %v7117 = vpop.f32.mrb[0].mxu0
      %7118 = vmatprep.mubr.bf16.mxu0 0
      %7119 = vmatmul.mubr.bf16.gmra.mrb[0].mxu0 %v7008
      %v7120 = vpop.f32.mrb[0].mxu0
      %v7121 = vadd.f32 0.0, %v7120
      %v7122 = vpop.f32.mrb[0].mxu0
      %v7123 = vpop.f32.mrb[0].mxu0
      %v7124 = vadd.f32 0.0, %v7123
      %v7125 = vpop.f32.mrb[0].mxu0
      %7126 = vmatprep.mubr.bf16.mxu0 0
      %7127 = vmatmul.mubr.bf16.gmra.mrb[0].mxu0 %v7011
      %v7128 = vpop.f32.mrb[0].mxu0
      %v7129 = vadd.f32 0.0, %v7128
      %v7130 = vpop.f32.mrb[0].mxu0
      %v7131 = vpop.f32.mrb[0].mxu0
      %v7132 = vadd.f32 0.0, %v7131
      %v7133 = vpop.f32.mrb[0].mxu0
      %7134 = vmatprep.mubr.bf16.mxu0 0
      %7135 = vmatmul.mubr.bf16.gmra.mrb[0].mxu0 %v7014
      %v7136 = vpop.f32.mrb[0].mxu0
      %v7137 = vadd.f32 0.0, %v7136
      %v7138 = vpop.f32.mrb[0].mxu0
      %v7139 = vpop.f32.mrb[0].mxu0
      %v7140 = vadd.f32 0.0, %v7139
      %v7141 = vpop.f32.mrb[0].mxu0
      %7142 = vmatprep.mubr.bf16.mxu0 0
      %7143 = vmatmul.mubr.bf16.gmra.mrb[0].mxu0 %v7017
      %v7144 = vpop.f32.mrb[0].mxu0
      %v7145 = vadd.f32 0.0, %v7144
      %v7146 = vpop.f32.mrb[0].mxu0
      %v7147 = vpop.f32.mrb[0].mxu0
      %v7148 = vadd.f32 0.0, %v7147
      %v7149 = vpop.f32.mrb[0].mxu0
      %7150 = vmatprep.mubr.bf16.mxu0 0
      %7151 = vmatmul.mubr.bf16.gmra.mrb[0].mxu0 %v7020
      %v7152 = vpop.f32.mrb[0].mxu0
      %v7153 = vadd.f32 0.0, %v7152
      %v7154 = vpop.f32.mrb[0].mxu0
      %v7155 = vpop.f32.mrb[0].mxu0
      %v7156 = vadd.f32 0.0, %v7155
      %v7157 = vpop.f32.mrb[0].mxu0
      %7158 = vmatprep.mubr.bf16.mxu0 0
      %7159 = vmatmul.mubr.bf16.gmra.mrb[0].mxu0 %v7023
      %v7160 = vpop.f32.mrb[0].mxu0
      %v7161 = vadd.f32 0.0, %v7160
      %v7162 = vpop.f32.mrb[0].mxu0
      %v7163 = vpop.f32.mrb[0].mxu0
      %v7164 = vadd.f32 0.0, %v7163
      %v7165 = vpop.f32.mrb[0].mxu0
      %7166 = vmatprep.mubr.bf16.mxu0 0
      %7167 = vmatmul.mubr.bf16.gmra.mrb[0].mxu0 %v7026
      %v7168 = vpop.f32.mrb[0].mxu0
      %v7169 = vadd.f32 0.0, %v7168
      %v7170 = vpop.f32.mrb[0].mxu0
      %v7171 = vpop.f32.mrb[0].mxu0
      %v7172 = vadd.f32 0.0, %v7171
      %v7173 = vpop.f32.mrb[0].mxu0
      %7174 = vmatprep.mubr.bf16.mxu0 0
      %7175 = vmatmul.mubr.bf16.gmra.mrb[0].mxu0 %v7029
      %v7176 = vpop.f32.mrb[0].mxu0
      %v7177 = vadd.f32 0.0, %v7176
      %v7178 = vpop.f32.mrb[0].mxu0
      %v7179 = vpop.f32.mrb[0].mxu0
      %v7180 = vadd.f32 0.0, %v7179
      %v7181 = vpop.f32.mrb[0].mxu0
      %7182 = vmatprep.mubr.bf16.mxu0 0
      %7183 = vmatmul.mubr.bf16.gmra.mrb[0].mxu0 %v7032
      %v7184 = vpop.f32.mrb[0].mxu0
      %v7185 = vadd.f32 0.0, %v7184
      %v7186 = vpop.f32.mrb[0].mxu0
      %v7187 = vpop.f32.mrb[0].mxu0
      %v7188 = vadd.f32 0.0, %v7187
      %v7189 = vpop.f32.mrb[0].mxu0
      %7190 = vmatprep.mubr.bf16.mxu0 0
      %7191 = vmatmul.mubr.bf16.gmra.mrb[0].mxu0 %v7035
      %v7192 = vpop.f32.mrb[0].mxu0
      %v7193 = vadd.f32 0.0, %v7192
      %v7194 = vpop.f32.mrb[0].mxu0
      %v7195 = vpop.f32.mrb[0].mxu0
      %v7196 = vadd.f32 0.0, %v7195
      %v7197 = vpop.f32.mrb[0].mxu0
      %7198 = vmatprep.mubr.bf16.mxu0 0
      %7199 = vmatmul.mubr.bf16.gmra.mrb[0].mxu0 %v7038
      %v7200 = vpop.f32.mrb[0].mxu0
      %v7201 = vadd.f32 0.0, %v7200
      %v7202 = vpop.f32.mrb[0].mxu0
      %v7203 = vpop.f32.mrb[0].mxu0
      %v7204 = vadd.f32 0.0, %v7203
      %v7205 = vpop.f32.mrb[0].mxu0
      %7206 = vmatprep.mubr.bf16.mxu0 0
      %7207 = vmatmul.mubr.bf16.gmra.mrb[0].mxu0 %v7041
      %v7208 = vpop.f32.mrb[0].mxu0
      %v7209 = vadd.f32 0.0, %v7208
      %v7210 = vpop.f32.mrb[0].mxu0
      %v7211 = vpop.f32.mrb[0].mxu0
      %v7212 = vadd.f32 0.0, %v7211
      %v7213 = vpop.f32.mrb[0].mxu0
      %7214 = vmatprep.mubr.bf16.mxu0 0
      %7215 = vmatmul.mubr.bf16.gmra.mrb[0].mxu0 %v7044
      %v7216 = vpop.f32.mrb[0].mxu0
      %v7217 = vadd.f32 0.0, %v7216
      %v7218 = vpop.f32.mrb[0].mxu0
      %v7219 = vpop.f32.mrb[0].mxu0
      %v7220 = vadd.f32 0.0, %v7219
      %v7221 = vpop.f32.mrb[0].mxu0
      %7222 = vdwg.mxu0
      %v7223 = vadd.f32 %v6772, %v7081
      %v7224 = vadd.f32 %v6773, %v7084
      %v7225 = vadd.f32 %v6774, %v7089
      %v7226 = vadd.f32 %v6775, %v7092
      %v7227 = vadd.f32 %v6776, %v7097
      %v7228 = vadd.f32 %v6777, %v7100
      %v7229 = vadd.f32 %v6778, %v7105
      %v7230 = vadd.f32 %v6779, %v7108
      %v7231 = vadd.f32 %v6780, %v7113
      %v7232 = vadd.f32 %v6781, %v7116
      %v7233 = vadd.f32 %v6782, %v7121
      %v7234 = vadd.f32 %v6783, %v7124
      %v7235 = vadd.f32 %v6784, %v7129
      %v7236 = vadd.f32 %v6785, %v7132
      %v7237 = vadd.f32 %v6786, %v7137
      %v7238 = vadd.f32 %v6787, %v7140
      %v7239 = vadd.f32 %v6788, %v7145
      %v7240 = vadd.f32 %v6789, %v7148
      %v7241 = vadd.f32 %v6790, %v7153
      %v7242 = vadd.f32 %v6791, %v7156
      %v7243 = vadd.f32 %v6792, %v7161
      %v7244 = vadd.f32 %v6793, %v7164
      %v7245 = vadd.f32 %v6794, %v7169
      %v7246 = vadd.f32 %v6795, %v7172
      %v7247 = vadd.f32 %v6796, %v7177
      %v7248 = vadd.f32 %v6797, %v7180
      %v7249 = vadd.f32 %v6798, %v7185
      %v7250 = vadd.f32 %v6799, %v7188
      %v7251 = vadd.f32 %v6800, %v7193
      %v7252 = vadd.f32 %v6801, %v7196
      %v7253 = vadd.f32 %v6802, %v7201
      %v7254 = vadd.f32 %v6803, %v7204
      %v7255 = vadd.f32 %v6804, %v7209
      %v7256 = vadd.f32 %v6805, %v7212
      %v7257 = vadd.f32 %v6806, %v7217
      %v7258 = vadd.f32 %v6807, %v7220
      %v7259 = vld [vmem:[#allocation2 + $0x18] sm:$0xfe]
      %s7260 = scalar_lea.vmem %s3, 112
      %v7261 = vld [vmem:[%s7260] sm:$0xf]
      %v7262 = vld [vmem:[%s7260 + $0x4] sm:$0xf]
      %v7263 = vld [vmem:[%s7260 + $0x8] sm:$0xf]
      %v7264 = vld [vmem:[%s7260 + $0xc] sm:$0xf]
      %v7284 = vrot.slane %v7259, 1
      %v7285 = vrot.slane %v6809, 1
      %v7286 = vsel %vm3486, %v7284, %v7285
      %v7287 = vrot.slane %v6810, 1
      %v7288 = vsel %vm3486, %v7285, %v7287
      %v7289 = vrot.slane %v6811, 1
      %v7290 = vsel %vm3486, %v7287, %v7289
      %v7291 = vrot.slane %v6812, 1
      %v7292 = vsel %vm3486, %v7289, %v7291
      %v7293 = vrot.slane %v6813, 1
      %v7294 = vsel %vm3486, %v7291, %v7293
      %v7295 = vrot.slane %v6814, 1
      %v7296 = vsel %vm3486, %v7293, %v7295
      %v7297 = vrot.slane %v6815, 1
      %v7298 = vsel %vm3486, %v7295, %v7297
      %v7299 = vrot.slane %v6816, 1
      %v7300 = vsel %vm3486, %v7297, %v7299
      %v7301 = vrot.slane %v6817, 1
      %v7302 = vsel %vm3486, %v7299, %v7301
      %v7303 = vrot.slane %v6818, 1
      %v7304 = vsel %vm3486, %v7301, %v7303
      %v7305 = vrot.slane %v6819, 1
      %v7306 = vsel %vm3486, %v7303, %v7305
      %v7307 = vrot.slane %v6820, 1
      %v7308 = vsel %vm3486, %v7305, %v7307
      %v7309 = vrot.slane %v6821, 1
      %v7310 = vsel %vm3486, %v7307, %v7309
      %v7311 = vrot.slane %v6822, 1
      %v7312 = vsel %vm3486, %v7309, %v7311
      %v7313 = vrot.slane %v6823, 1
      %v7314 = vsel %vm3486, %v7311, %v7313
      %v7315 = vrot.slane %v6824, 1
      %v7316 = vsel %vm3486, %v7313, %v7315
      %v7317 = vrot.slane %v6825, 1
      %v7318 = vsel %vm3486, %v7315, %v7317
      %v7319 = vrot.slane %v6826, 1
      %v7320 = vsel %vm3486, %v7317, %v7319
      %v7325 = vunpack.c.l.b16 %v7261
      %v7326 = vunpack.c.l.b16 %v7262
      %v7327 = vunpack.c.l.b16 %v7263
      %v7328 = vunpack.c.l.b16 %v7264
      %v7329 = vpack.c.b16 %v7326, %v7325
      %v7330 = vpack.c.b16 %v7328, %v7327
      %v7334 = vsel %vm443, %v7286, 0
      %v7337 = vsel %vm443, %v7288, 0
      %v7340 = vsel %vm443, %v7290, 0
      %v7343 = vsel %vm443, %v7292, 0
      %v7346 = vsel %vm443, %v7294, 0
      %v7349 = vsel %vm443, %v7296, 0
      %v7352 = vsel %vm443, %v7298, 0
      %v7355 = vsel %vm443, %v7300, 0
      %v7358 = vsel %vm443, %v7302, 0
      %v7361 = vsel %vm443, %v7304, 0
      %v7364 = vsel %vm443, %v7306, 0
      %v7367 = vsel %vm443, %v7308, 0
      %v7370 = vsel %vm443, %v7310, 0
      %v7373 = vsel %vm443, %v7312, 0
      %v7376 = vsel %vm443, %v7314, 0
      %v7379 = vsel %vm443, %v7316, 0
      %v7382 = vsel %vm443, %v7318, 0
      %v7385 = vsel %vm443, %v7320, 0
      %7387 = vmatprep.subr.bf16.mxu0 0
      %7388 = vmatpush1.bf16.msra.mxu0 %v7329
      %7389 = vmatprep.subr.bf16.mxu0 0
      %7390 = vmatpush1.bf16.msra.mxu0 %v7330
      %7391 = vmatprep.subr.bf16.mxu0 0
      %7392 = vmatpush1.bf16.msra.mxu0 0
      %7393 = vmatprep.subr.bf16.mxu0 0
      %7394 = vmatpush1.bf16.msra.mxu0 0
      %7395 = vmatprep.subr.bf16.mxu0 0
      %7396 = vmatpush1.bf16.msra.mxu0 0
      %7397 = vmatprep.subr.bf16.mxu0 0
      %7398 = vmatpush1.bf16.msra.mxu0 0
      %7399 = vmatprep.subr.bf16.mxu0 0
      %7400 = vmatpush1.bf16.msra.mxu0 0
      %7401 = vmatprep.subr.bf16.mxu0 0
      %7402 = vmatpush1.bf16.msra.mxu0 0
      %7403 = vmatprep.subr.bf16.mxu0 0
      %7404 = vmatpush1.bf16.msra.mxu0 0
      %7405 = vmatprep.subr.bf16.mxu0 0
      %7406 = vmatpush1.bf16.msra.mxu0 0
      %7407 = vmatprep.subr.bf16.mxu0 0
      %7408 = vmatpush1.bf16.msra.mxu0 0
      %7409 = vmatprep.subr.bf16.mxu0 0
      %7410 = vmatpush1.bf16.msra.mxu0 0
      %7411 = vmatprep.subr.bf16.mxu0 0
      %7412 = vmatpush1.bf16.msra.mxu0 0
      %7413 = vmatprep.subr.bf16.mxu0 0
      %7414 = vmatpush1.bf16.msra.mxu0 0
      %7415 = vmatprep.subr.bf16.mxu0 0
      %7416 = vmatpush1.bf16.msra.mxu0 0
      %7417 = vmatprep.subr.bf16.mxu0 0
      %7418 = vmatpush1.bf16.msra.mxu0 0
      %7419 = vmatprep.mubr.bf16.mxu0 0
      %7420 = vmatmul.mubr.bf16.gmra.mrb[0].mxu0 %v7334
      %v7421 = vpop.f32.mrb[0].mxu0
      %v7422 = vadd.f32 0.0, %v7421
      %v7423 = vpop.f32.mrb[0].mxu0
      %v7424 = vpop.f32.mrb[0].mxu0
      %v7425 = vadd.f32 0.0, %v7424
      %v7426 = vpop.f32.mrb[0].mxu0
      %7427 = vmatprep.mubr.bf16.mxu0 0
      %7428 = vmatmul.mubr.bf16.gmra.mrb[0].mxu0 %v7337
      %v7429 = vpop.f32.mrb[0].mxu0
      %v7430 = vadd.f32 0.0, %v7429
      %v7431 = vpop.f32.mrb[0].mxu0
      %v7432 = vpop.f32.mrb[0].mxu0
      %v7433 = vadd.f32 0.0, %v7432
      %v7434 = vpop.f32.mrb[0].mxu0
      %7435 = vmatprep.mubr.bf16.mxu0 0
      %7436 = vmatmul.mubr.bf16.gmra.mrb[0].mxu0 %v7340
      %v7437 = vpop.f32.mrb[0].mxu0
      %v7438 = vadd.f32 0.0, %v7437
      %v7439 = vpop.f32.mrb[0].mxu0
      %v7440 = vpop.f32.mrb[0].mxu0
      %v7441 = vadd.f32 0.0, %v7440
      %v7442 = vpop.f32.mrb[0].mxu0
      %7443 = vmatprep.mubr.bf16.mxu0 0
      %7444 = vmatmul.mubr.bf16.gmra.mrb[0].mxu0 %v7343
      %v7445 = vpop.f32.mrb[0].mxu0
      %v7446 = vadd.f32 0.0, %v7445
      %v7447 = vpop.f32.mrb[0].mxu0
      %v7448 = vpop.f32.mrb[0].mxu0
      %v7449 = vadd.f32 0.0, %v7448
      %v7450 = vpop.f32.mrb[0].mxu0
      %7451 = vmatprep.mubr.bf16.mxu0 0
      %7452 = vmatmul.mubr.bf16.gmra.mrb[0].mxu0 %v7346
      %v7453 = vpop.f32.mrb[0].mxu0
      %v7454 = vadd.f32 0.0, %v7453
      %v7455 = vpop.f32.mrb[0].mxu0
      %v7456 = vpop.f32.mrb[0].mxu0
      %v7457 = vadd.f32 0.0, %v7456
      %v7458 = vpop.f32.mrb[0].mxu0
      %7459 = vmatprep.mubr.bf16.mxu0 0
      %7460 = vmatmul.mubr.bf16.gmra.mrb[0].mxu0 %v7349
      %v7461 = vpop.f32.mrb[0].mxu0
      %v7462 = vadd.f32 0.0, %v7461
      %v7463 = vpop.f32.mrb[0].mxu0
      %v7464 = vpop.f32.mrb[0].mxu0
      %v7465 = vadd.f32 0.0, %v7464
      %v7466 = vpop.f32.mrb[0].mxu0
      %7467 = vmatprep.mubr.bf16.mxu0 0
      %7468 = vmatmul.mubr.bf16.gmra.mrb[0].mxu0 %v7352
      %v7469 = vpop.f32.mrb[0].mxu0
      %v7470 = vadd.f32 0.0, %v7469
      %v7471 = vpop.f32.mrb[0].mxu0
      %v7472 = vpop.f32.mrb[0].mxu0
      %v7473 = vadd.f32 0.0, %v7472
      %v7474 = vpop.f32.mrb[0].mxu0
      %7475 = vmatprep.mubr.bf16.mxu0 0
      %7476 = vmatmul.mubr.bf16.gmra.mrb[0].mxu0 %v7355
      %v7477 = vpop.f32.mrb[0].mxu0
      %v7478 = vadd.f32 0.0, %v7477
      %v7479 = vpop.f32.mrb[0].mxu0
      %v7480 = vpop.f32.mrb[0].mxu0
      %v7481 = vadd.f32 0.0, %v7480
      %v7482 = vpop.f32.mrb[0].mxu0
      %7483 = vmatprep.mubr.bf16.mxu0 0
      %7484 = vmatmul.mubr.bf16.gmra.mrb[0].mxu0 %v7358
      %v7485 = vpop.f32.mrb[0].mxu0
      %v7486 = vadd.f32 0.0, %v7485
      %v7487 = vpop.f32.mrb[0].mxu0
      %v7488 = vpop.f32.mrb[0].mxu0
      %v7489 = vadd.f32 0.0, %v7488
      %v7490 = vpop.f32.mrb[0].mxu0
      %7491 = vmatprep.mubr.bf16.mxu0 0
      %7492 = vmatmul.mubr.bf16.gmra.mrb[0].mxu0 %v7361
      %v7493 = vpop.f32.mrb[0].mxu0
      %v7494 = vadd.f32 0.0, %v7493
      %v7495 = vpop.f32.mrb[0].mxu0
      %v7496 = vpop.f32.mrb[0].mxu0
      %v7497 = vadd.f32 0.0, %v7496
      %v7498 = vpop.f32.mrb[0].mxu0
      %7499 = vmatprep.mubr.bf16.mxu0 0
      %7500 = vmatmul.mubr.bf16.gmra.mrb[0].mxu0 %v7364
      %v7501 = vpop.f32.mrb[0].mxu0
      %v7502 = vadd.f32 0.0, %v7501
      %v7503 = vpop.f32.mrb[0].mxu0
      %v7504 = vpop.f32.mrb[0].mxu0
      %v7505 = vadd.f32 0.0, %v7504
      %v7506 = vpop.f32.mrb[0].mxu0
      %7507 = vmatprep.mubr.bf16.mxu0 0
      %7508 = vmatmul.mubr.bf16.gmra.mrb[0].mxu0 %v7367
      %v7509 = vpop.f32.mrb[0].mxu0
      %v7510 = vadd.f32 0.0, %v7509
      %v7511 = vpop.f32.mrb[0].mxu0
      %v7512 = vpop.f32.mrb[0].mxu0
      %v7513 = vadd.f32 0.0, %v7512
      %v7514 = vpop.f32.mrb[0].mxu0
      %7515 = vmatprep.mubr.bf16.mxu0 0
      %7516 = vmatmul.mubr.bf16.gmra.mrb[0].mxu0 %v7370
      %v7517 = vpop.f32.mrb[0].mxu0
      %v7518 = vadd.f32 0.0, %v7517
      %v7519 = vpop.f32.mrb[0].mxu0
      %v7520 = vpop.f32.mrb[0].mxu0
      %v7521 = vadd.f32 0.0, %v7520
      %v7522 = vpop.f32.mrb[0].mxu0
      %7523 = vmatprep.mubr.bf16.mxu0 0
      %7524 = vmatmul.mubr.bf16.gmra.mrb[0].mxu0 %v7373
      %v7525 = vpop.f32.mrb[0].mxu0
      %v7526 = vadd.f32 0.0, %v7525
      %v7527 = vpop.f32.mrb[0].mxu0
      %v7528 = vpop.f32.mrb[0].mxu0
      %v7529 = vadd.f32 0.0, %v7528
      %v7530 = vpop.f32.mrb[0].mxu0
      %7531 = vmatprep.mubr.bf16.mxu0 0
      %7532 = vmatmul.mubr.bf16.gmra.mrb[0].mxu0 %v7376
      %v7533 = vpop.f32.mrb[0].mxu0
      %v7534 = vadd.f32 0.0, %v7533
      %v7535 = vpop.f32.mrb[0].mxu0
      %v7536 = vpop.f32.mrb[0].mxu0
      %v7537 = vadd.f32 0.0, %v7536
      %v7538 = vpop.f32.mrb[0].mxu0
      %7539 = vmatprep.mubr.bf16.mxu0 0
      %7540 = vmatmul.mubr.bf16.gmra.mrb[0].mxu0 %v7379
      %v7541 = vpop.f32.mrb[0].mxu0
      %v7542 = vadd.f32 0.0, %v7541
      %v7543 = vpop.f32.mrb[0].mxu0
      %v7544 = vpop.f32.mrb[0].mxu0
      %v7545 = vadd.f32 0.0, %v7544
      %v7546 = vpop.f32.mrb[0].mxu0
      %7547 = vmatprep.mubr.bf16.mxu0 0
      %7548 = vmatmul.mubr.bf16.gmra.mrb[0].mxu0 %v7382
      %v7549 = vpop.f32.mrb[0].mxu0
      %v7550 = vadd.f32 0.0, %v7549
      %v7551 = vpop.f32.mrb[0].mxu0
      %v7552 = vpop.f32.mrb[0].mxu0
      %v7553 = vadd.f32 0.0, %v7552
      %v7554 = vpop.f32.mrb[0].mxu0
      %7555 = vmatprep.mubr.bf16.mxu0 0
      %7556 = vmatmul.mubr.bf16.gmra.mrb[0].mxu0 %v7385
      %v7557 = vpop.f32.mrb[0].mxu0
      %v7558 = vadd.f32 0.0, %v7557
      %v7559 = vpop.f32.mrb[0].mxu0
      %v7560 = vpop.f32.mrb[0].mxu0
      %v7561 = vadd.f32 0.0, %v7560
      %v7562 = vpop.f32.mrb[0].mxu0
      %7563 = vdwg.mxu0
      %v7564 = vadd.f32 %v7223, %v7422
      %v7565 = vadd.f32 %v7224, %v7425
      %v7566 = vadd.f32 %v7225, %v7430
      %v7567 = vadd.f32 %v7226, %v7433
      %v7568 = vadd.f32 %v7227, %v7438
      %v7569 = vadd.f32 %v7228, %v7441
      %v7570 = vadd.f32 %v7229, %v7446
      %v7571 = vadd.f32 %v7230, %v7449
      %v7572 = vadd.f32 %v7231, %v7454
      %v7573 = vadd.f32 %v7232, %v7457
      %v7574 = vadd.f32 %v7233, %v7462
      %v7575 = vadd.f32 %v7234, %v7465
      %v7576 = vadd.f32 %v7235, %v7470
      %v7577 = vadd.f32 %v7236, %v7473
      %v7578 = vadd.f32 %v7237, %v7478
      %v7579 = vadd.f32 %v7238, %v7481
      %v7580 = vadd.f32 %v7239, %v7486
      %v7581 = vadd.f32 %v7240, %v7489
      %v7582 = vadd.f32 %v7241, %v7494
      %v7583 = vadd.f32 %v7242, %v7497
      %v7584 = vadd.f32 %v7243, %v7502
      %v7585 = vadd.f32 %v7244, %v7505
      %v7586 = vadd.f32 %v7245, %v7510
      %v7587 = vadd.f32 %v7246, %v7513
      %v7588 = vadd.f32 %v7247, %v7518
      %v7589 = vadd.f32 %v7248, %v7521
      %v7590 = vadd.f32 %v7249, %v7526
      %v7591 = vadd.f32 %v7250, %v7529
      %v7592 = vadd.f32 %v7251, %v7534
      %v7593 = vadd.f32 %v7252, %v7537
      %v7594 = vadd.f32 %v7253, %v7542
      %v7595 = vadd.f32 %v7254, %v7545
      %v7596 = vadd.f32 %v7255, %v7550
      %v7597 = vadd.f32 %v7256, %v7553
      %v7598 = vadd.f32 %v7257, %v7558
      %v7599 = vadd.f32 %v7258, %v7561
      %v7600 = vld [vmem:[#allocation2 + $0xa8] sm:$0x3]
      %s7601 = scalar_lea.vmem %s3, 128
      %v7602 = vld [vmem:[%s7601] sm:$0xf]
      %v7603 = vld [vmem:[%s7601 + $0x4] sm:$0xf]
      %v7604 = vld [vmem:[%s7601 + $0x8] sm:$0xf]
      %v7605 = vld [vmem:[%s7601 + $0xc] sm:$0xf]
      %v7607 = vshrl.u32 %v7259, 16
      %v7609 = vrot.slane %v7607, 1
      %v7610 = vshll.u32 %v7259, 16
      %v7612 = vrot.slane %v7610, 2
      %v7613 = vor.u32 %v7609, %v7612
      %v7614 = vrot.slane %v6844, 1
      %v7615 = vrot.slane %v6840, 2
      %v7616 = vor.u32 %v7614, %v7615
      %v7617 = vsel %vm3812, %v7613, %v7616
      %v7618 = vrot.slane %v6852, 1
      %v7619 = vrot.slane %v6848, 2
      %v7620 = vor.u32 %v7618, %v7619
      %v7621 = vsel %vm3812, %v7616, %v7620
      %v7622 = vrot.slane %v6860, 1
      %v7623 = vrot.slane %v6856, 2
      %v7624 = vor.u32 %v7622, %v7623
      %v7625 = vsel %vm3812, %v7620, %v7624
      %v7626 = vrot.slane %v6868, 1
      %v7627 = vrot.slane %v6864, 2
      %v7628 = vor.u32 %v7626, %v7627
      %v7629 = vsel %vm3812, %v7624, %v7628
      %v7630 = vrot.slane %v6876, 1
      %v7631 = vrot.slane %v6872, 2
      %v7632 = vor.u32 %v7630, %v7631
      %v7633 = vsel %vm3812, %v7628, %v7632
      %v7634 = vrot.slane %v6884, 1
      %v7635 = vrot.slane %v6880, 2
      %v7636 = vor.u32 %v7634, %v7635
      %v7637 = vsel %vm3812, %v7632, %v7636
      %v7638 = vrot.slane %v6892, 1
      %v7639 = vrot.slane %v6888, 2
      %v7640 = vor.u32 %v7638, %v7639
      %v7641 = vsel %vm3812, %v7636, %v7640
      %v7642 = vrot.slane %v6900, 1
      %v7643 = vrot.slane %v6896, 2
      %v7644 = vor.u32 %v7642, %v7643
      %v7645 = vsel %vm3812, %v7640, %v7644
      %v7646 = vrot.slane %v6908, 1
      %v7647 = vrot.slane %v6904, 2
      %v7648 = vor.u32 %v7646, %v7647
      %v7649 = vsel %vm3812, %v7644, %v7648
      %v7650 = vrot.slane %v6916, 1
      %v7651 = vrot.slane %v6912, 2
      %v7652 = vor.u32 %v7650, %v7651
      %v7653 = vsel %vm3812, %v7648, %v7652
      %v7654 = vrot.slane %v6924, 1
      %v7655 = vrot.slane %v6920, 2
      %v7656 = vor.u32 %v7654, %v7655
      %v7657 = vsel %vm3812, %v7652, %v7656
      %v7658 = vrot.slane %v6932, 1
      %v7659 = vrot.slane %v6928, 2
      %v7660 = vor.u32 %v7658, %v7659
      %v7661 = vsel %vm3812, %v7656, %v7660
      %v7662 = vrot.slane %v6940, 1
      %v7663 = vrot.slane %v6936, 2
      %v7664 = vor.u32 %v7662, %v7663
      %v7665 = vsel %vm3812, %v7660, %v7664
      %v7666 = vrot.slane %v6948, 1
      %v7667 = vrot.slane %v6944, 2
      %v7668 = vor.u32 %v7666, %v7667
      %v7669 = vsel %vm3812, %v7664, %v7668
      %v7670 = vrot.slane %v6956, 1
      %v7671 = vrot.slane %v6952, 2
      %v7672 = vor.u32 %v7670, %v7671
      %v7673 = vsel %vm3812, %v7668, %v7672
      %v7674 = vrot.slane %v6964, 1
      %v7675 = vrot.slane %v6960, 2
      %v7676 = vor.u32 %v7674, %v7675
      %v7677 = vsel %vm3812, %v7672, %v7676
      %v7678 = vrot.slane %v6972, 1
      %v7679 = vrot.slane %v6968, 2
      %v7680 = vor.u32 %v7678, %v7679
      %v7681 = vsel %vm3812, %v7676, %v7680
      %v7683 = vshrl.u32 %v7600, 16
      %v7685 = vrot.slane %v7683, 1
      %v7686 = vshll.u32 %v7600, 16
      %v7688 = vrot.slane %v7686, 2
      %v7689 = vor.u32 %v7685, %v7688
      %v7690 = vsel %vm3812, %v7680, %v7689
      %v7695 = vunpack.c.l.b16 %v7602
      %v7696 = vunpack.c.l.b16 %v7603
      %v7697 = vunpack.c.l.b16 %v7604
      %v7698 = vunpack.c.l.b16 %v7605
      %v7699 = vpack.c.b16 %v7696, %v7695
      %v7700 = vpack.c.b16 %v7698, %v7697
      %v7704 = vsel %vm443, %v7617, 0
      %v7707 = vsel %vm443, %v7621, 0
      %v7710 = vsel %vm443, %v7625, 0
      %v7713 = vsel %vm443, %v7629, 0
      %v7716 = vsel %vm443, %v7633, 0
      %v7719 = vsel %vm443, %v7637, 0
      %v7722 = vsel %vm443, %v7641, 0
      %v7725 = vsel %vm443, %v7645, 0
      %v7728 = vsel %vm443, %v7649, 0
      %v7731 = vsel %vm443, %v7653, 0
      %v7734 = vsel %vm443, %v7657, 0
      %v7737 = vsel %vm443, %v7661, 0
      %v7740 = vsel %vm443, %v7665, 0
      %v7743 = vsel %vm443, %v7669, 0
      %v7746 = vsel %vm443, %v7673, 0
      %v7749 = vsel %vm443, %v7677, 0
      %v7752 = vsel %vm443, %v7681, 0
      %v7755 = vsel %vm443, %v7690, 0
      %7757 = vmatprep.subr.bf16.mxu0 0
      %7758 = vmatpush1.bf16.msra.mxu0 %v7699
      %7759 = vmatprep.subr.bf16.mxu0 0
      %7760 = vmatpush1.bf16.msra.mxu0 %v7700
      %7761 = vmatprep.subr.bf16.mxu0 0
      %7762 = vmatpush1.bf16.msra.mxu0 0
      %7763 = vmatprep.subr.bf16.mxu0 0
      %7764 = vmatpush1.bf16.msra.mxu0 0
      %7765 = vmatprep.subr.bf16.mxu0 0
      %7766 = vmatpush1.bf16.msra.mxu0 0
      %7767 = vmatprep.subr.bf16.mxu0 0
      %7768 = vmatpush1.bf16.msra.mxu0 0
      %7769 = vmatprep.subr.bf16.mxu0 0
      %7770 = vmatpush1.bf16.msra.mxu0 0
      %7771 = vmatprep.subr.bf16.mxu0 0
      %7772 = vmatpush1.bf16.msra.mxu0 0
      %7773 = vmatprep.subr.bf16.mxu0 0
      %7774 = vmatpush1.bf16.msra.mxu0 0
      %7775 = vmatprep.subr.bf16.mxu0 0
      %7776 = vmatpush1.bf16.msra.mxu0 0
      %7777 = vmatprep.subr.bf16.mxu0 0
      %7778 = vmatpush1.bf16.msra.mxu0 0
      %7779 = vmatprep.subr.bf16.mxu0 0
      %7780 = vmatpush1.bf16.msra.mxu0 0
      %7781 = vmatprep.subr.bf16.mxu0 0
      %7782 = vmatpush1.bf16.msra.mxu0 0
      %7783 = vmatprep.subr.bf16.mxu0 0
      %7784 = vmatpush1.bf16.msra.mxu0 0
      %7785 = vmatprep.subr.bf16.mxu0 0
      %7786 = vmatpush1.bf16.msra.mxu0 0
      %7787 = vmatprep.subr.bf16.mxu0 0
      %7788 = vmatpush1.bf16.msra.mxu0 0
      %7789 = vmatprep.mubr.bf16.mxu0 0
      %7790 = vmatmul.mubr.bf16.gmra.mrb[0].mxu0 %v7704
      %v7791 = vpop.f32.mrb[0].mxu0
      %v7792 = vadd.f32 0.0, %v7791
      %v7793 = vpop.f32.mrb[0].mxu0
      %v7794 = vpop.f32.mrb[0].mxu0
      %v7795 = vadd.f32 0.0, %v7794
      %v7796 = vpop.f32.mrb[0].mxu0
      %7797 = vmatprep.mubr.bf16.mxu0 0
      %7798 = vmatmul.mubr.bf16.gmra.mrb[0].mxu0 %v7707
      %v7799 = vpop.f32.mrb[0].mxu0
      %v7800 = vadd.f32 0.0, %v7799
      %v7801 = vpop.f32.mrb[0].mxu0
      %v7802 = vpop.f32.mrb[0].mxu0
      %v7803 = vadd.f32 0.0, %v7802
      %v7804 = vpop.f32.mrb[0].mxu0
      %7805 = vmatprep.mubr.bf16.mxu0 0
      %7806 = vmatmul.mubr.bf16.gmra.mrb[0].mxu0 %v7710
      %v7807 = vpop.f32.mrb[0].mxu0
      %v7808 = vadd.f32 0.0, %v7807
      %v7809 = vpop.f32.mrb[0].mxu0
      %v7810 = vpop.f32.mrb[0].mxu0
      %v7811 = vadd.f32 0.0, %v7810
      %v7812 = vpop.f32.mrb[0].mxu0
      %7813 = vmatprep.mubr.bf16.mxu0 0
      %7814 = vmatmul.mubr.bf16.gmra.mrb[0].mxu0 %v7713
      %v7815 = vpop.f32.mrb[0].mxu0
      %v7816 = vadd.f32 0.0, %v7815
      %v7817 = vpop.f32.mrb[0].mxu0
      %v7818 = vpop.f32.mrb[0].mxu0
      %v7819 = vadd.f32 0.0, %v7818
      %v7820 = vpop.f32.mrb[0].mxu0
      %7821 = vmatprep.mubr.bf16.mxu0 0
      %7822 = vmatmul.mubr.bf16.gmra.mrb[0].mxu0 %v7716
      %v7823 = vpop.f32.mrb[0].mxu0
      %v7824 = vadd.f32 0.0, %v7823
      %v7825 = vpop.f32.mrb[0].mxu0
      %v7826 = vpop.f32.mrb[0].mxu0
      %v7827 = vadd.f32 0.0, %v7826
      %v7828 = vpop.f32.mrb[0].mxu0
      %7829 = vmatprep.mubr.bf16.mxu0 0
      %7830 = vmatmul.mubr.bf16.gmra.mrb[0].mxu0 %v7719
      %v7831 = vpop.f32.mrb[0].mxu0
      %v7832 = vadd.f32 0.0, %v7831
      %v7833 = vpop.f32.mrb[0].mxu0
      %v7834 = vpop.f32.mrb[0].mxu0
      %v7835 = vadd.f32 0.0, %v7834
      %v7836 = vpop.f32.mrb[0].mxu0
      %7837 = vmatprep.mubr.bf16.mxu0 0
      %7838 = vmatmul.mubr.bf16.gmra.mrb[0].mxu0 %v7722
      %v7839 = vpop.f32.mrb[0].mxu0
      %v7840 = vadd.f32 0.0, %v7839
      %v7841 = vpop.f32.mrb[0].mxu0
      %v7842 = vpop.f32.mrb[0].mxu0
      %v7843 = vadd.f32 0.0, %v7842
      %v7844 = vpop.f32.mrb[0].mxu0
      %7845 = vmatprep.mubr.bf16.mxu0 0
      %7846 = vmatmul.mubr.bf16.gmra.mrb[0].mxu0 %v7725
      %v7847 = vpop.f32.mrb[0].mxu0
      %v7848 = vadd.f32 0.0, %v7847
      %v7849 = vpop.f32.mrb[0].mxu0
      %v7850 = vpop.f32.mrb[0].mxu0
      %v7851 = vadd.f32 0.0, %v7850
      %v7852 = vpop.f32.mrb[0].mxu0
      %7853 = vmatprep.mubr.bf16.mxu0 0
      %7854 = vmatmul.mubr.bf16.gmra.mrb[0].mxu0 %v7728
      %v7855 = vpop.f32.mrb[0].mxu0
      %v7856 = vadd.f32 0.0, %v7855
      %v7857 = vpop.f32.mrb[0].mxu0
      %v7858 = vpop.f32.mrb[0].mxu0
      %v7859 = vadd.f32 0.0, %v7858
      %v7860 = vpop.f32.mrb[0].mxu0
      %7861 = vmatprep.mubr.bf16.mxu0 0
      %7862 = vmatmul.mubr.bf16.gmra.mrb[0].mxu0 %v7731
      %v7863 = vpop.f32.mrb[0].mxu0
      %v7864 = vadd.f32 0.0, %v7863
      %v7865 = vpop.f32.mrb[0].mxu0
      %v7866 = vpop.f32.mrb[0].mxu0
      %v7867 = vadd.f32 0.0, %v7866
      %v7868 = vpop.f32.mrb[0].mxu0
      %7869 = vmatprep.mubr.bf16.mxu0 0
      %7870 = vmatmul.mubr.bf16.gmra.mrb[0].mxu0 %v7734
      %v7871 = vpop.f32.mrb[0].mxu0
      %v7872 = vadd.f32 0.0, %v7871
      %v7873 = vpop.f32.mrb[0].mxu0
      %v7874 = vpop.f32.mrb[0].mxu0
      %v7875 = vadd.f32 0.0, %v7874
      %v7876 = vpop.f32.mrb[0].mxu0
      %7877 = vmatprep.mubr.bf16.mxu0 0
      %7878 = vmatmul.mubr.bf16.gmra.mrb[0].mxu0 %v7737
      %v7879 = vpop.f32.mrb[0].mxu0
      %v7880 = vadd.f32 0.0, %v7879
      %v7881 = vpop.f32.mrb[0].mxu0
      %v7882 = vpop.f32.mrb[0].mxu0
      %v7883 = vadd.f32 0.0, %v7882
      %v7884 = vpop.f32.mrb[0].mxu0
      %7885 = vmatprep.mubr.bf16.mxu0 0
      %7886 = vmatmul.mubr.bf16.gmra.mrb[0].mxu0 %v7740
      %v7887 = vpop.f32.mrb[0].mxu0
      %v7888 = vadd.f32 0.0, %v7887
      %v7889 = vpop.f32.mrb[0].mxu0
      %v7890 = vpop.f32.mrb[0].mxu0
      %v7891 = vadd.f32 0.0, %v7890
      %v7892 = vpop.f32.mrb[0].mxu0
      %7893 = vmatprep.mubr.bf16.mxu0 0
      %7894 = vmatmul.mubr.bf16.gmra.mrb[0].mxu0 %v7743
      %v7895 = vpop.f32.mrb[0].mxu0
      %v7896 = vadd.f32 0.0, %v7895
      %v7897 = vpop.f32.mrb[0].mxu0
      %v7898 = vpop.f32.mrb[0].mxu0
      %v7899 = vadd.f32 0.0, %v7898
      %v7900 = vpop.f32.mrb[0].mxu0
      %7901 = vmatprep.mubr.bf16.mxu0 0
      %7902 = vmatmul.mubr.bf16.gmra.mrb[0].mxu0 %v7746
      %v7903 = vpop.f32.mrb[0].mxu0
      %v7904 = vadd.f32 0.0, %v7903
      %v7905 = vpop.f32.mrb[0].mxu0
      %v7906 = vpop.f32.mrb[0].mxu0
      %v7907 = vadd.f32 0.0, %v7906
      %v7908 = vpop.f32.mrb[0].mxu0
      %7909 = vmatprep.mubr.bf16.mxu0 0
      %7910 = vmatmul.mubr.bf16.gmra.mrb[0].mxu0 %v7749
      %v7911 = vpop.f32.mrb[0].mxu0
      %v7912 = vadd.f32 0.0, %v7911
      %v7913 = vpop.f32.mrb[0].mxu0
      %v7914 = vpop.f32.mrb[0].mxu0
      %v7915 = vadd.f32 0.0, %v7914
      %v7916 = vpop.f32.mrb[0].mxu0
      %7917 = vmatprep.mubr.bf16.mxu0 0
      %7918 = vmatmul.mubr.bf16.gmra.mrb[0].mxu0 %v7752
      %v7919 = vpop.f32.mrb[0].mxu0
      %v7920 = vadd.f32 0.0, %v7919
      %v7921 = vpop.f32.mrb[0].mxu0
      %v7922 = vpop.f32.mrb[0].mxu0
      %v7923 = vadd.f32 0.0, %v7922
      %v7924 = vpop.f32.mrb[0].mxu0
      %7925 = vmatprep.mubr.bf16.mxu0 0
      %7926 = vmatmul.mubr.bf16.gmra.mrb[0].mxu0 %v7755
      %v7927 = vpop.f32.mrb[0].mxu0
      %v7928 = vadd.f32 0.0, %v7927
      %v7929 = vpop.f32.mrb[0].mxu0
      %v7930 = vpop.f32.mrb[0].mxu0
      %v7931 = vadd.f32 0.0, %v7930
      %v7932 = vpop.f32.mrb[0].mxu0
      %7933 = vdwg.mxu0
      %v7934 = vadd.f32 %v7564, %v7792
      %v7935 = vadd.f32 %v7565, %v7795
      %v7936 = vadd.f32 %v7566, %v7800
      %v7937 = vadd.f32 %v7567, %v7803
      %v7938 = vadd.f32 %v7568, %v7808
      %v7939 = vadd.f32 %v7569, %v7811
      %v7940 = vadd.f32 %v7570, %v7816
      %v7941 = vadd.f32 %v7571, %v7819
      %v7942 = vadd.f32 %v7572, %v7824
      %v7943 = vadd.f32 %v7573, %v7827
      %v7944 = vadd.f32 %v7574, %v7832
      %v7945 = vadd.f32 %v7575, %v7835
      %v7946 = vadd.f32 %v7576, %v7840
      %v7947 = vadd.f32 %v7577, %v7843
      %v7948 = vadd.f32 %v7578, %v7848
      %v7949 = vadd.f32 %v7579, %v7851
      %v7950 = vadd.f32 %v7580, %v7856
      %v7951 = vadd.f32 %v7581, %v7859
      %v7952 = vadd.f32 %v7582, %v7864
      %v7953 = vadd.f32 %v7583, %v7867
      %v7954 = vadd.f32 %v7584, %v7872
      %v7955 = vadd.f32 %v7585, %v7875
      %v7956 = vadd.f32 %v7586, %v7880
      %v7957 = vadd.f32 %v7587, %v7883
      %v7958 = vadd.f32 %v7588, %v7888
      %v7959 = vadd.f32 %v7589, %v7891
      %v7960 = vadd.f32 %v7590, %v7896
      %v7961 = vadd.f32 %v7591, %v7899
      %v7962 = vadd.f32 %v7592, %v7904
      %v7963 = vadd.f32 %v7593, %v7907
      %v7964 = vadd.f32 %v7594, %v7912
      %v7965 = vadd.f32 %v7595, %v7915
      %v7966 = vadd.f32 %v7596, %v7920
      %v7967 = vadd.f32 %v7597, %v7923
      %v7968 = vadd.f32 %v7598, %v7928
      %v7969 = vadd.f32 %v7599, %v7931
      %v7970 = vld [vmem:[%s246 + $0x10] sm:$0xf]
      %v7971 = vld [vmem:[%s246 + $0x14] sm:$0xf]
      %v7972 = vld [vmem:[%s246 + $0x18] sm:$0xf]
      %v7973 = vld [vmem:[%s246 + $0x1c] sm:$0xf]
      %v7974 = vld [vmem:[%s246 + $0x20] sm:$0xf]
      %v7975 = vld [vmem:[%s246 + $0x24] sm:$0xf]
      %v7976 = vld [vmem:[%s246 + $0x28] sm:$0xf]
      %v7977 = vld [vmem:[%s246 + $0x2c] sm:$0xf]
      %v7978 = vld [vmem:[%s246 + $0x30] sm:$0xf]
      %v7979 = vld [vmem:[%s246 + $0x34] sm:$0xf]
      %v7980 = vld [vmem:[%s246 + $0x38] sm:$0xf]
      %v7981 = vld [vmem:[%s246 + $0x3c] sm:$0xf]
      %v7982 = vld [vmem:[%s246 + $0x40] sm:$0xf]
      %v7983 = vld [vmem:[%s246 + $0x44] sm:$0xf]
      %v7984 = vld [vmem:[%s246 + $0x48] sm:$0xf]
      %v7985 = vld [vmem:[%s246 + $0x4c] sm:$0xf]
      %v7986 = vld [vmem:[%s246 + $0x50] sm:$0xf]
      %v7987 = vld [vmem:[%s246 + $0x54] sm:$0xf]
      %v7988 = vld [vmem:[%s246 + $0x58] sm:$0xf]
      %v7989 = vld [vmem:[%s246 + $0x5c] sm:$0xf]
      %v7990 = vld [vmem:[%s246 + $0x60] sm:$0xf]
      %v7991 = vld [vmem:[%s246 + $0x64] sm:$0xf]
      %v7992 = vld [vmem:[%s246 + $0x68] sm:$0xf]
      %v7993 = vld [vmem:[%s246 + $0x6c] sm:$0xf]
      %v7994 = vld [vmem:[%s246 + $0x70] sm:$0xf]
      %v7995 = vld [vmem:[%s246 + $0x74] sm:$0xf]
      %v7996 = vld [vmem:[%s246 + $0x78] sm:$0xf]
      %v7997 = vld [vmem:[%s246 + $0x7c] sm:$0xf]
      %v7998 = vld [vmem:[%s246 + $0x80] sm:$0xf]
      %v7999 = vld [vmem:[%s246 + $0x84] sm:$0xf]
      %v8000 = vld [vmem:[%s246 + $0x88] sm:$0xf]
      %v8001 = vld [vmem:[%s246 + $0x8c] sm:$0xf]
      %v8002 = vld [vmem:[%s246 + $0x90] sm:$0xf]
      %v8003 = vld [vmem:[%s246 + $0x94] sm:$0xf]
      %v8004 = vld [vmem:[%s246 + $0x98] sm:$0xf]
      %v8005 = vld [vmem:[%s246 + $0x9c] sm:$0xf]
      %v8006 = vunpack.c.l.bf16 %v7970
      %v8007 = vunpack.c.l.bf16 %v7971
      %v8008 = vunpack.c.l.bf16 %v7972
      %v8009 = vunpack.c.l.bf16 %v7973
      %v8010 = vunpack.c.l.bf16 %v7974
      %v8011 = vunpack.c.l.bf16 %v7975
      %v8012 = vunpack.c.l.bf16 %v7976
      %v8013 = vunpack.c.l.bf16 %v7977
      %v8014 = vunpack.c.l.bf16 %v7978
      %v8015 = vunpack.c.l.bf16 %v7979
      %v8016 = vunpack.c.l.bf16 %v7980
      %v8017 = vunpack.c.l.bf16 %v7981
      %v8018 = vunpack.c.l.bf16 %v7982
      %v8019 = vunpack.c.l.bf16 %v7983
      %v8020 = vunpack.c.l.bf16 %v7984
      %v8021 = vunpack.c.l.bf16 %v7985
      %v8022 = vunpack.c.l.bf16 %v7986
      %v8023 = vunpack.c.l.bf16 %v7987
      %v8024 = vunpack.c.l.bf16 %v7988
      %v8025 = vunpack.c.l.bf16 %v7989
      %v8026 = vunpack.c.l.bf16 %v7990
      %v8027 = vunpack.c.l.bf16 %v7991
      %v8028 = vunpack.c.l.bf16 %v7992
      %v8029 = vunpack.c.l.bf16 %v7993
      %v8030 = vunpack.c.l.bf16 %v7994
      %v8031 = vunpack.c.l.bf16 %v7995
      %v8032 = vunpack.c.l.bf16 %v7996
      %v8033 = vunpack.c.l.bf16 %v7997
      %v8034 = vunpack.c.l.bf16 %v7998
      %v8035 = vunpack.c.l.bf16 %v7999
      %v8036 = vunpack.c.l.bf16 %v8000
      %v8037 = vunpack.c.l.bf16 %v8001
      %v8038 = vunpack.c.l.bf16 %v8002
      %v8039 = vunpack.c.l.bf16 %v8003
      %v8040 = vunpack.c.l.bf16 %v8004
      %v8041 = vunpack.c.l.bf16 %v8005
      %v8042 = vld [vmem:[%s4] sm:$0x1]
      %v8044 = vlaneseq
      %v8045 = vshrl.u32 %v8044, 7
      %v8046 = vsub.s32 0, %v8045
      %v8047 = vrot.slane %v8042, %v8046
      %v8049 = vadd.f32 %v7934, %v8047
      %v8050 = vadd.f32 %v7935, %v8047
      %v8051 = vadd.f32 %v7936, %v8047
      %v8052 = vadd.f32 %v7937, %v8047
      %v8053 = vadd.f32 %v7938, %v8047
      %v8054 = vadd.f32 %v7939, %v8047
      %v8055 = vadd.f32 %v7940, %v8047
      %v8056 = vadd.f32 %v7941, %v8047
      %v8057 = vadd.f32 %v7942, %v8047
      %v8058 = vadd.f32 %v7943, %v8047
      %v8059 = vadd.f32 %v7944, %v8047
      %v8060 = vadd.f32 %v7945, %v8047
      %v8061 = vadd.f32 %v7946, %v8047
      %v8062 = vadd.f32 %v7947, %v8047
      %v8063 = vadd.f32 %v7948, %v8047
      %v8064 = vadd.f32 %v7949, %v8047
      %v8065 = vadd.f32 %v7950, %v8047
      %v8066 = vadd.f32 %v7951, %v8047
      %v8067 = vadd.f32 %v7952, %v8047
      %v8068 = vadd.f32 %v7953, %v8047
      %v8069 = vadd.f32 %v7954, %v8047
      %v8070 = vadd.f32 %v7955, %v8047
      %v8071 = vadd.f32 %v7956, %v8047
      %v8072 = vadd.f32 %v7957, %v8047
      %v8073 = vadd.f32 %v7958, %v8047
      %v8074 = vadd.f32 %v7959, %v8047
      %v8075 = vadd.f32 %v7960, %v8047
      %v8076 = vadd.f32 %v7961, %v8047
      %v8077 = vadd.f32 %v7962, %v8047
      %v8078 = vadd.f32 %v7963, %v8047
      %v8079 = vadd.f32 %v7964, %v8047
      %v8080 = vadd.f32 %v7965, %v8047
      %v8081 = vadd.f32 %v7966, %v8047
      %v8082 = vadd.f32 %v7967, %v8047
      %v8083 = vadd.f32 %v7968, %v8047
      %v8084 = vadd.f32 %v7969, %v8047
      %v8085 = vadd.f32 %v8049, %v8006
      %v8086 = vadd.f32 %v8050, %v8007
      %v8087 = vadd.f32 %v8051, %v8008
      %v8088 = vadd.f32 %v8052, %v8009
      %v8089 = vadd.f32 %v8053, %v8010
      %v8090 = vadd.f32 %v8054, %v8011
      %v8091 = vadd.f32 %v8055, %v8012
      %v8092 = vadd.f32 %v8056, %v8013
      %v8093 = vadd.f32 %v8057, %v8014
      %v8094 = vadd.f32 %v8058, %v8015
      %v8095 = vadd.f32 %v8059, %v8016
      %v8096 = vadd.f32 %v8060, %v8017
      %v8097 = vadd.f32 %v8061, %v8018
      %v8098 = vadd.f32 %v8062, %v8019
      %v8099 = vadd.f32 %v8063, %v8020
      %v8100 = vadd.f32 %v8064, %v8021
      %v8101 = vadd.f32 %v8065, %v8022
      %v8102 = vadd.f32 %v8066, %v8023
      %v8103 = vadd.f32 %v8067, %v8024
      %v8104 = vadd.f32 %v8068, %v8025
      %v8105 = vadd.f32 %v8069, %v8026
      %v8106 = vadd.f32 %v8070, %v8027
      %v8107 = vadd.f32 %v8071, %v8028
      %v8108 = vadd.f32 %v8072, %v8029
      %v8109 = vadd.f32 %v8073, %v8030
      %v8110 = vadd.f32 %v8074, %v8031
      %v8111 = vadd.f32 %v8075, %v8032
      %v8112 = vadd.f32 %v8076, %v8033
      %v8113 = vadd.f32 %v8077, %v8034
      %v8114 = vadd.f32 %v8078, %v8035
      %v8115 = vadd.f32 %v8079, %v8036
      %v8116 = vadd.f32 %v8080, %v8037
      %v8117 = vadd.f32 %v8081, %v8038
      %v8118 = vadd.f32 %v8082, %v8039
      %v8119 = vadd.f32 %v8083, %v8040
      %v8120 = vadd.f32 %v8084, %v8041
      %v8121 = vmax.f32 %v8085, 0.0
      %v8122 = vmax.f32 %v8086, 0.0
      %v8123 = vmax.f32 %v8087, 0.0
      %v8124 = vmax.f32 %v8088, 0.0
      %v8125 = vmax.f32 %v8089, 0.0
      %v8126 = vmax.f32 %v8090, 0.0
      %v8127 = vmax.f32 %v8091, 0.0
      %v8128 = vmax.f32 %v8092, 0.0
      %v8129 = vmax.f32 %v8093, 0.0
      %v8130 = vmax.f32 %v8094, 0.0
      %v8131 = vmax.f32 %v8095, 0.0
      %v8132 = vmax.f32 %v8096, 0.0
      %v8133 = vmax.f32 %v8097, 0.0
      %v8134 = vmax.f32 %v8098, 0.0
      %v8135 = vmax.f32 %v8099, 0.0
      %v8136 = vmax.f32 %v8100, 0.0
      %v8137 = vmax.f32 %v8101, 0.0
      %v8138 = vmax.f32 %v8102, 0.0
      %v8139 = vmax.f32 %v8103, 0.0
      %v8140 = vmax.f32 %v8104, 0.0
      %v8141 = vmax.f32 %v8105, 0.0
      %v8142 = vmax.f32 %v8106, 0.0
      %v8143 = vmax.f32 %v8107, 0.0
      %v8144 = vmax.f32 %v8108, 0.0
      %v8145 = vmax.f32 %v8109, 0.0
      %v8146 = vmax.f32 %v8110, 0.0
      %v8147 = vmax.f32 %v8111, 0.0
      %v8148 = vmax.f32 %v8112, 0.0
      %v8149 = vmax.f32 %v8113, 0.0
      %v8150 = vmax.f32 %v8114, 0.0
      %v8151 = vmax.f32 %v8115, 0.0
      %v8152 = vmax.f32 %v8116, 0.0
      %v8153 = vmax.f32 %v8117, 0.0
      %v8154 = vmax.f32 %v8118, 0.0
      %v8155 = vmax.f32 %v8119, 0.0
      %v8156 = vmax.f32 %v8120, 0.0
      %v8157 = vpack.c.bf16 %v8122, %v8121
      %v8158 = vpack.c.bf16 %v8124, %v8123
      %v8159 = vpack.c.bf16 %v8126, %v8125
      %v8160 = vpack.c.bf16 %v8128, %v8127
      %v8161 = vpack.c.bf16 %v8130, %v8129
      %v8162 = vpack.c.bf16 %v8132, %v8131
      %v8163 = vpack.c.bf16 %v8134, %v8133
      %v8164 = vpack.c.bf16 %v8136, %v8135
      %v8165 = vpack.c.bf16 %v8138, %v8137
      %v8166 = vpack.c.bf16 %v8140, %v8139
      %v8167 = vpack.c.bf16 %v8142, %v8141
      %v8168 = vpack.c.bf16 %v8144, %v8143
      %v8169 = vpack.c.bf16 %v8146, %v8145
      %v8170 = vpack.c.bf16 %v8148, %v8147
      %v8171 = vpack.c.bf16 %v8150, %v8149
      %v8172 = vpack.c.bf16 %v8152, %v8151
      %v8173 = vpack.c.bf16 %v8154, %v8153
      %v8174 = vpack.c.bf16 %v8156, %v8155
      %v8193 = vunpack.c.l.b16 %v8157
      %v8194 = vunpack.c.h.b16 %v8157
      %v8195 = vunpack.c.l.b16 %v8158
      %v8196 = vunpack.c.h.b16 %v8158
      %v8197 = vunpack.c.l.b16 %v8159
      %v8198 = vunpack.c.h.b16 %v8159
      %v8199 = vunpack.c.l.b16 %v8160
      %v8200 = vunpack.c.h.b16 %v8160
      %v8201 = vunpack.c.l.b16 %v8161
      %v8202 = vunpack.c.h.b16 %v8161
      %v8203 = vunpack.c.l.b16 %v8162
      %v8204 = vunpack.c.h.b16 %v8162
      %v8205 = vunpack.c.l.b16 %v8163
      %v8206 = vunpack.c.h.b16 %v8163
      %v8207 = vunpack.c.l.b16 %v8164
      %v8208 = vunpack.c.h.b16 %v8164
      %v8209 = vunpack.c.l.b16 %v8165
      %v8210 = vunpack.c.h.b16 %v8165
      %v8211 = vunpack.c.l.b16 %v8166
      %v8212 = vunpack.c.h.b16 %v8166
      %v8213 = vunpack.c.l.b16 %v8167
      %v8214 = vunpack.c.h.b16 %v8167
      %v8215 = vunpack.c.l.b16 %v8168
      %v8216 = vunpack.c.h.b16 %v8168
      %v8217 = vunpack.c.l.b16 %v8169
      %v8218 = vunpack.c.h.b16 %v8169
      %v8219 = vunpack.c.l.b16 %v8170
      %v8220 = vunpack.c.h.b16 %v8170
      %v8221 = vunpack.c.l.b16 %v8171
      %v8222 = vunpack.c.h.b16 %v8171
      %v8223 = vunpack.c.l.b16 %v8172
      %v8224 = vunpack.c.h.b16 %v8172
      %v8225 = vunpack.c.l.b16 %v8173
      %v8226 = vunpack.c.h.b16 %v8173
      %v8227 = vunpack.c.l.b16 %v8174
      %v8228 = vunpack.c.h.b16 %v8174
      %v8229 = vpack.c.b16 %v8193, %v8193
      %v8230 = vpack.c.b16 %v8194, %v8194
      %v8231 = vpack.c.b16 %v8195, %v8195
      %v8232 = vpack.c.b16 %v8196, %v8196
      %v8233 = vpack.c.b16 %v8197, %v8197
      %v8234 = vpack.c.b16 %v8198, %v8198
      %v8235 = vpack.c.b16 %v8199, %v8199
      %v8236 = vpack.c.b16 %v8200, %v8200
      %v8237 = vpack.c.b16 %v8201, %v8201
      %v8238 = vpack.c.b16 %v8202, %v8202
      %v8239 = vpack.c.b16 %v8203, %v8203
      %v8240 = vpack.c.b16 %v8204, %v8204
      %v8241 = vpack.c.b16 %v8205, %v8205
      %v8242 = vpack.c.b16 %v8206, %v8206
      %v8243 = vpack.c.b16 %v8207, %v8207
      %v8244 = vpack.c.b16 %v8208, %v8208
      %v8245 = vpack.c.b16 %v8209, %v8209
      %v8246 = vpack.c.b16 %v8210, %v8210
      %v8247 = vpack.c.b16 %v8211, %v8211
      %v8248 = vpack.c.b16 %v8212, %v8212
      %v8249 = vpack.c.b16 %v8213, %v8213
      %v8250 = vpack.c.b16 %v8214, %v8214
      %v8251 = vpack.c.b16 %v8215, %v8215
      %v8252 = vpack.c.b16 %v8216, %v8216
      %v8253 = vpack.c.b16 %v8217, %v8217
      %v8254 = vpack.c.b16 %v8218, %v8218
      %v8255 = vpack.c.b16 %v8219, %v8219
      %v8256 = vpack.c.b16 %v8220, %v8220
      %v8257 = vpack.c.b16 %v8221, %v8221
      %v8258 = vpack.c.b16 %v8222, %v8222
      %v8259 = vpack.c.b16 %v8223, %v8223
      %v8260 = vpack.c.b16 %v8224, %v8224
      %v8261 = vpack.c.b16 %v8225, %v8225
      %v8262 = vpack.c.b16 %v8226, %v8226
      %v8263 = vpack.c.b16 %v8227, %v8227
      %v8264 = vpack.c.b16 %v8228, %v8228
      %vm8301 = vcmask 257024
      %8302 = vst.msk [vmem:[%s251] sm:$0xf] %vm8301, %v8229
      %8303 = vst.msk [vmem:[%s251 + $0x4] sm:$0xf] %vm8301, %v8230
      %8304 = vst.msk [vmem:[%s251 + $0x8] sm:$0xf] %vm8301, %v8231
      %8305 = vst.msk [vmem:[%s251 + $0xc] sm:$0xf] %vm8301, %v8232
      %8306 = vst.msk [vmem:[%s251 + $0x10] sm:$0xf] %vm8301, %v8233
      %8307 = vst.msk [vmem:[%s251 + $0x14] sm:$0xf] %vm8301, %v8234
      %8308 = vst.msk [vmem:[%s251 + $0x18] sm:$0xf] %vm8301, %v8235
      %8309 = vst.msk [vmem:[%s251 + $0x1c] sm:$0xf] %vm8301, %v8236
      %8310 = vst.msk [vmem:[%s251 + $0x20] sm:$0xf] %vm8301, %v8237
      %8311 = vst.msk [vmem:[%s251 + $0x24] sm:$0xf] %vm8301, %v8238
      %8312 = vst.msk [vmem:[%s251 + $0x28] sm:$0xf] %vm8301, %v8239
      %8313 = vst.msk [vmem:[%s251 + $0x2c] sm:$0xf] %vm8301, %v8240
      %8314 = vst.msk [vmem:[%s251 + $0x30] sm:$0xf] %vm8301, %v8241
      %8315 = vst.msk [vmem:[%s251 + $0x34] sm:$0xf] %vm8301, %v8242
      %8316 = vst.msk [vmem:[%s251 + $0x38] sm:$0xf] %vm8301, %v8243
      %8317 = vst.msk [vmem:[%s251 + $0x3c] sm:$0xf] %vm8301, %v8244
      %8318 = vst.msk [vmem:[%s251 + $0x40] sm:$0xf] %vm8301, %v8245
      %8319 = vst.msk [vmem:[%s251 + $0x44] sm:$0xf] %vm8301, %v8246
      %8320 = vst.msk [vmem:[%s251 + $0x48] sm:$0xf] %vm8301, %v8247
      %8321 = vst.msk [vmem:[%s251 + $0x4c] sm:$0xf] %vm8301, %v8248
      %8322 = vst.msk [vmem:[%s251 + $0x50] sm:$0xf] %vm8301, %v8249
      %8323 = vst.msk [vmem:[%s251 + $0x54] sm:$0xf] %vm8301, %v8250
      %8324 = vst.msk [vmem:[%s251 + $0x58] sm:$0xf] %vm8301, %v8251
      %8325 = vst.msk [vmem:[%s251 + $0x5c] sm:$0xf] %vm8301, %v8252
      %8326 = vst.msk [vmem:[%s251 + $0x60] sm:$0xf] %vm8301, %v8253
      %8327 = vst.msk [vmem:[%s251 + $0x64] sm:$0xf] %vm8301, %v8254
      %8328 = vst.msk [vmem:[%s251 + $0x68] sm:$0xf] %vm8301, %v8255
      %8329 = vst.msk [vmem:[%s251 + $0x6c] sm:$0xf] %vm8301, %v8256
      %8330 = vst.msk [vmem:[%s251 + $0x70] sm:$0xf] %vm8301, %v8257
      %8331 = vst.msk [vmem:[%s251 + $0x74] sm:$0xf] %vm8301, %v8258
      %8332 = vst.msk [vmem:[%s251 + $0x78] sm:$0xf] %vm8301, %v8259
      %8333 = vst.msk [vmem:[%s251 + $0x7c] sm:$0xf] %vm8301, %v8260
      %8334 = vst.msk [vmem:[%s251 + $0x80] sm:$0xf] %vm8301, %v8261
      %8335 = vst.msk [vmem:[%s251 + $0x84] sm:$0xf] %vm8301, %v8262
      %8336 = vst.msk [vmem:[%s251 + $0x88] sm:$0xf] %vm8301, %v8263
      %8337 = vst.msk [vmem:[%s251 + $0x8c] sm:$0xf] %vm8301, %v8264
      %p8338 = scmp.lt.s32.totalorder %s17, 1
      %s8339 = scalar_select %p8338, %s17, 1
      %s8340 = smul.addr %s8339, 36
      %s8341 = smul.addr %s8340, 4
      %s8342 = scalar_lea.vmem %s6, %s8341
      // Predicated region
      $region45: #{tpu_custom_call.1} parent=43 // pred_check
        %p8343 = pneg %p166
      $region46: #{tpu_custom_call.1} parent=43 // pred_check_branch
        %8345 = sbr.rel (%p8343) target = $region48
      $region47: #{tpu_custom_call.1} parent=43 // pred_region
        _
      $region48: #{tpu_custom_call.1} parent=43 // pred_fallthru
        _
    $region44: #{tpu_custom_call.1} parent=5 // pred_fallthru
      _
    %p8346 = scmp.le.s32.totalorder 2, %s12
    // Predicated region
    $region49: #{tpu_custom_call.1} parent=5 // pred_check
      %p8347 = pneg %p8346
    $region50: #{tpu_custom_call.1} parent=5 // pred_check_branch
      %8349 = sbr.rel (%p8347) target = $region52
    $region51: #{tpu_custom_call.1} parent=5 // pred_region
      %s8350 = ssub.s32 %s12, 2
      // Predicated region
      $region53: #{tpu_custom_call.1} parent=51 // pred_check
        %p8351 = pneg %p172
      $region54: #{tpu_custom_call.1} parent=51 // pred_check_branch
        %8353 = sbr.rel (%p8351) target = $region56
      $region55: #{tpu_custom_call.1} parent=51 // pred_region
        %p8354 = scmp.lt.s32.totalorder %s18, 1
        %s8355 = scalar_select %p8354, %s18, 1
        %s8356 = smul.addr %s8355, 36
        %s8357 = smul.addr %s8356, 4
        %s8358 = scalar_lea.vmem %s6, %s8357
      $region56: #{tpu_custom_call.1} parent=51 // pred_fallthru
        _
    $region52: #{tpu_custom_call.1} parent=5 // pred_fallthru
      _
  $region6: #{tpu_custom_call.1} parent=0 // loop_footer
    %s16 = sadd.s32 1, %s12
  $region7: #{tpu_custom_call.1} parent=0 // loop_footer_branch
    %11 = sbr.rel target = $region3
  $region8: #{tpu_custom_call.1} parent=0 // loop_exit
    _

</llo_original>
